<compile_context>
chip_gen: v5e
topology: v5e:2x2
jax: 0.10.0
libtpu: 0.0.40
codegen_flags: <defaults>
</compile_context>

<pallas_src>
import jax
import jax.numpy as jnp
from jax import lax
from jax.experimental import pallas as pl
from jax.experimental.pallas import tpu as pltpu


def _round_up(x, m):
    return ((x + m - 1) // m) * m


def _vmem_capacity():
    try:
        cap = pltpu.get_tpu_info().vmem_capacity_bytes
        if cap:
            return int(cap)
    except Exception:
        pass
    return 64 * 1024 * 1024              # v7x-safe fallback


def _vmem_limit():
    cap = _vmem_capacity()
    return int(min(cap * 0.9, 112 * 1024 * 1024))


def _select_batch_tile(B, T, I, H, num_layers):
    """One batch-tile size (multiple of 8) shared by the LSTM-stack and attention kernels."""
    cap = _vmem_capacity()
    # Conservative f32 bytes per batch row resident in VMEM for the LSTM kernel
    # (double-buffered in/out blocks, gx scratch + matmul temp, seq scratch, slack).
    lstm_row = T * 4 * (2 * I + 12 * H)
    # Attention: double-buffered (T, tb, H) tile + bf16 matmul copy + a1 activations.
    att_row = T * 4 * 3 * H + T * 32 * 4
    lstm_budget = int(cap * 0.55)
    # ~2 MiB/buffer attention tiles on v7x (64 MiB VMEM), ~8 MiB/buffer on v5e/v6e.
    att_budget = (4 << 20) if cap <= (64 << 20) else (16 << 20)
    tb = min(lstm_budget // max(lstm_row, 1), att_budget // max(att_row, 1))
    tb = max(8, (tb // 8) * 8)
    tb = min(tb, _round_up(B, 8))
    return int(tb)


def _const2d(arr):
    """Full-array block with a constant index map (weights stay VMEM-resident)."""
    return pl.BlockSpec(arr.shape, lambda i: (0, 0))


# -----------------------------------------------------------------------------
# 1) Fused LSTM stack kernel (all layers, one batch tile per grid step)
# -----------------------------------------------------------------------------
def _make_lstm_stack_kernel(num_layers, unroll):
    def kernel(*refs):
        x_ref = refs[0]                                   # (T, tb, I)
        w_refs = refs[1:1 + 3 * num_layers]               # per layer: wih, whh, bias
        out_ref = refs[1 + 3 * num_layers]                # (T, tb, H)
        gx_ref = refs[2 + 3 * num_layers]                 # (T, tb, 4H) scratch
        seq_ref = refs[3 + 3 * num_layers] if num_layers > 1 else None

        T, tb, _ = x_ref.shape
        H = out_ref.shape[-1]

        for layer in range(num_layers):
            wih = w_refs[3 * layer][...]                  # (I_l, 4H) bf16
            whh = w_refs[3 * layer + 1][...]              # (H,  4H) bf16
            bias = w_refs[3 * layer + 2][...]             # (1,  4H) f32

            # Input projection hoisted out of the recurrence: ONE (T*tb, I_l)@(I_l, 4H)
            # bf16 MXU matmul instead of T tiny per-step matmuls.
            xin = x_ref[...] if layer == 0 else seq_ref[...]
            in_dim = xin.shape[-1]
            gx = jnp.dot(xin.reshape(T * tb, in_dim).astype(jnp.bfloat16), wih,
                         preferred_element_type=jnp.float32) + bias
            gx_ref[...] = gx.reshape(T, tb, 4 * H)

            dst = out_ref if layer == num_layers - 1 else seq_ref

            def step(t, carry, whh=whh, dst=dst):
                h, c = carry
                gates = gx_ref[t] + jnp.dot(h.astype(jnp.bfloat16), whh,
                                            preferred_element_type=jnp.float32)
                # TODO(synk): if H % 128 != 0 these gate slices are sub-lane-width;
                # a lane-aligned (padded) gate layout would avoid masked lane ops.
                i_g = jax.nn.sigmoid(gates[:, 0 * H:1 * H])
                f_g = jax.nn.sigmoid(gates[:, 1 * H:2 * H])
                g_g = jnp.tanh(gates[:, 2 * H:3 * H])
                o_g = jax.nn.sigmoid(gates[:, 3 * H:4 * H])
                c_new = f_g * c + i_g * g_g
                h_new = o_g * jnp.tanh(c_new)
                dst[t] = h_new
                return h_new, c_new

            zeros = jnp.zeros((tb, H), jnp.float32)
            lax.fori_loop(0, T, step, (zeros, zeros), unroll=unroll)

    return kernel


def lstm_forward_tm(X_seq, lstm_prep, tb):
    """X_seq: (B, T, I) f32  ->  time-major (T, Bp, H) f32, Bp = round_up(B, tb)."""
    B, T, I = X_seq.shape
    H = lstm_prep[-1][1].shape[0]
    num_layers = len(lstm_prep)
    Bp = _round_up(B, tb)

    x_tm = jnp.transpose(X_seq.astype(jnp.float32), (1, 0, 2))      # (T, B, I) - small
    if Bp != B:
        x_tm = jnp.pad(x_tm, ((0, 0), (0, Bp - B), (0, 0)))

    flat_w = [a for layer in lstm_prep for a in layer]
    in_specs = [pl.BlockSpec((T, tb, I), lambda i: (0, i, 0))]
    in_specs += [_const2d(a) for a in flat_w]

    scratch = [pltpu.VMEM((T, tb, 4 * H), jnp.float32)]
    if num_layers > 1:
        scratch.append(pltpu.VMEM((T, tb, H), jnp.float32))

    unroll = max(1, min(8, T))
    return pl.pallas_call(
        _make_lstm_stack_kernel(num_layers, unroll),
        out_shape=jax.ShapeDtypeStruct((T, Bp, H), jnp.float32),
        grid=(Bp // tb,),
        in_specs=in_specs,
        out_specs=pl.BlockSpec((T, tb, H), lambda i: (0, i, 0)),
        scratch_shapes=scratch,
        compiler_params=pltpu.CompilerParams(
            dimension_semantics=("parallel",),
            vmem_limit_bytes=_vmem_limit()),
    )(x_tm, *flat_w)


# -----------------------------------------------------------------------------
# 2) Attention kernel (time-major input, batch-tiled grid)
# -----------------------------------------------------------------------------
def _attention_kernel(x_ref, len_ref, w1_ref, b1_ref, w2_ref, b2_ref, o_ref):
    T, tb, H = x_ref.shape
    x = x_ref[...]                                                   # (T, tb, H) f32

    # attention1: Linear(H -> 32) + ReLU as ONE fused bf16 MXU matmul over T*tb rows.
    a1 = jnp.dot(x.reshape(T * tb, H).astype(jnp.bfloat16), w1_ref[...],
                 preferred_element_type=jnp.float32) + b1_ref[...]
    a1 = jnp.maximum(a1, 0.0).reshape(T, tb, 32)

    # attention2: Linear(32 -> 1) as a VPU multiply + lane reduce -> (T, tb) scores.
    scores = jnp.sum(a1 * w2_ref[...], axis=-1) + b2_ref[...]        # (T, tb)

    # Small XLU transpose so the mask/softmax run lane-dense over the time axis.
    s = jnp.transpose(scores)                                        # (tb, T)
    pos = lax.broadcasted_iota(jnp.int32, (tb, T), 1)
    # NOTE: rows with length == 0 would yield NaN (0/0), exactly like the PyTorch
    # module; callers must pass lengths >= 1 (padded rows are given length 1).
    s = jnp.where(pos < len_ref[...], s, -jnp.inf)
    m = jnp.max(s, axis=-1, keepdims=True)
    e = jnp.exp(s - m)
    w = e * pl.reciprocal(jnp.sum(e, axis=-1, keepdims=True), approx=True)

    # context = sum_t w[b,t] * x[t,b,:] as a VPU weighted accumulate (no M=1 matmuls).
    wt = jnp.transpose(w)                                            # (T, tb)
    o_ref[...] = jnp.sum(x * wt[:, :, None], axis=0)                 # (tb, H)


def attention_forward_tm(lstm_out_tm, lstm_len, prep, tb, batch):
    """lstm_out_tm: (T, Bp, H) time-major.  Returns (batch, H) context."""
    T, Bp, H = lstm_out_tm.shape
    lens = lstm_len.astype(jnp.int32)
    if Bp != batch:
        lens = jnp.pad(lens, (0, Bp - batch), constant_values=1)
    lens2d = lens.reshape(Bp, 1)

    out = pl.pallas_call(
        _attention_kernel,
        out_shape=jax.ShapeDtypeStruct((Bp, H), jnp.float32),
        grid=(Bp // tb,),
        in_specs=[
            pl.BlockSpec((T, tb, H), lambda i: (0, i, 0)),   # LSTM output tile
            pl.BlockSpec((tb, 1), lambda i: (i, 0)),         # length column
            _const2d(prep["att1_w"]),
            _const2d(prep["att1_b"]),
            _const2d(prep["att2_w"]),
            _const2d(prep["att2_b"]),
        ],
        out_specs=pl.BlockSpec((tb, H), lambda i: (i, 0)),
        compiler_params=pltpu.CompilerParams(
            dimension_semantics=("parallel",),
            vmem_limit_bytes=_vmem_limit()),
    )(lstm_out_tm, lens2d, prep["att1_w"], prep["att1_b"],
      prep["att2_w"], prep["att2_b"])
    return out[:batch]


# -----------------------------------------------------------------------------
# 3) Fused MLP head kernel (batch-tiled grid)
# -----------------------------------------------------------------------------
def _head_kernel(x_ref, wrc_ref, brc_ref, w1_ref, b1_ref, g1_ref, be1_ref,
                 w2_ref, b2_ref, g2_ref, be2_ref, wout_ref, bout_ref, o_ref):
    bf16 = jnp.bfloat16

    def layer_norm(v, g, b):
        mu = jnp.mean(v, axis=-1, keepdims=True)
        var = jnp.mean((v - mu) * (v - mu), axis=-1, keepdims=True)
        return (v - mu) * lax.rsqrt(var + 1e-5) * g + b

    x = x_ref[...]                                                   # (tb, H+3) f32
    h = jnp.maximum(jnp.dot(x.astype(bf16), wrc_ref[...],
                            preferred_element_type=jnp.float32) + brc_ref[...], 0.0)

    r = jnp.dot(h.astype(bf16), w1_ref[...],
                preferred_element_type=jnp.float32) + b1_ref[...]
    r = jnp.maximum(layer_norm(r, g1_ref[...], be1_ref[...]), 0.0)
    # TODO(synk): nn.Dropout(0.1) is the identity in eval/inference mode; training-mode
    # dropout (pltpu.prng_random_bits masking) is intentionally not applied here.
    r = jnp.dot(r.astype(bf16), w2_ref[...],
                preferred_element_type=jnp.float32) + b2_ref[...]
    r = layer_norm(r, g2_ref[...], be2_ref[...])
    h = jnp.maximum(h + r, 0.0)

    logits = jnp.dot(h.astype(bf16), wout_ref[...],
                     preferred_element_type=jnp.float32) + bout_ref[...]
    mx = jnp.max(logits, axis=-1, keepdims=True)
    e = jnp.exp(logits - mx)
    o_ref[...] = e / jnp.sum(e, axis=-1, keepdims=True)   # exact normalization for output


def head_forward(x, prep):
    B, F = x.shape
    head_w = prep["head"]
    K = head_w[-1].shape[-1]
    tbh = min(256, _round_up(B, 8))
    Bp = _round_up(B, tbh)
    xp = x.astype(jnp.float32)
    if Bp != B:
        xp = jnp.pad(xp, ((0, Bp - B), (0, 0)))

    in_specs = [pl.BlockSpec((tbh, F), lambda i: (i, 0))] + [_const2d(w) for w in head_w]
    out = pl.pallas_call(
        _head_kernel,
        out_shape=jax.ShapeDtypeStruct((Bp, K), jnp.float32),
        grid=(Bp // tbh,),
        in_specs=in_specs,
        out_specs=pl.BlockSpec((tbh, K), lambda i: (i, 0)),
        compiler_params=pltpu.CompilerParams(
            dimension_semantics=("parallel",),
            vmem_limit_bytes=_vmem_limit()),
    )(xp, *head_w)
    return out[:B]


# -----------------------------------------------------------------------------
# Parameter prep (one-time transposes / bf16 casts) and full forward
# -----------------------------------------------------------------------------
def prepare_params(p):
    f32, bf16 = jnp.float32, jnp.bfloat16
    prep = {}
    prep["lstm"] = [
        (jnp.transpose(w_ih).astype(bf16),              # (I_l, 4H)
         jnp.transpose(w_hh).astype(bf16),              # (H, 4H)
         (b_ih + b_hh).reshape(1, -1).astype(f32))      # (1, 4H)
        for (w_ih, w_hh, b_ih, b_hh) in p["lstm"]]
    prep["att1_w"] = jnp.transpose(p["att1_w"]).astype(bf16)        # (H, 32)
    prep["att1_b"] = p["att1_b"].reshape(1, -1).astype(f32)
    prep["att2_w"] = p["att2_w"].reshape(1, -1).astype(f32)         # (1, 32), used on VPU
    prep["att2_b"] = p["att2_b"].reshape(1, 1).astype(f32)
    prep["head"] = (
        jnp.transpose(p["rc_w"]).astype(bf16), p["rc_b"].reshape(1, -1).astype(f32),
        jnp.transpose(p["r1_w"]).astype(bf16), p["r1_b"].reshape(1, -1).astype(f32),
        p["ln1_g"].reshape(1, -1).astype(f32), p["ln1_b"].reshape(1, -1).astype(f32),
        jnp.transpose(p["r2_w"]).astype(bf16), p["r2_b"].reshape(1, -1).astype(f32),
        p["ln2_g"].reshape(1, -1).astype(f32), p["ln2_b"].reshape(1, -1).astype(f32),
        jnp.transpose(p["out_w"]).astype(bf16), p["out_b"].reshape(1, -1).astype(f32),
    )
    return prep


def dropoff_lstm_forward(X_seq, X_seq_lengths, meta, prep):
    B, T, I = X_seq.shape
    H = prep["lstm"][-1][1].shape[0]
    num_layers = len(prep["lstm"])
    tb = _select_batch_tile(B, T, I, H, num_layers)
    lstm_out_tm = lstm_forward_tm(X_seq, prep["lstm"], tb)                   # (T, Bp, H)
    context = attention_forward_tm(lstm_out_tm, X_seq_lengths, prep, tb, B)  # (B, H)
    concat = jnp.concatenate([context, meta.astype(jnp.float32)], axis=1)
    return head_forward(concat, prep)                                        # (B, K)


# -----------------------------------------------------------------------------
# Pure-JAX f32 reference (mirrors the PyTorch forward)
# -----------------------------------------------------------------------------
def _lstm_reference(x, lstm_params):
    out = x.astype(jnp.float32)
    B, T, _ = x.shape
    for (w_ih, w_hh, b_ih, b_hh) in lstm_params:
        H = w_hh.shape[1]
        h = jnp.zeros((B, H), jnp.float32)
        c = jnp.zeros((B, H), jnp.float32)
        hs = []
        for t in range(T):
            gates = out[:, t, :] @ w_ih.T + h @ w_hh.T + b_ih + b_hh
            i_g = jax.nn.sigmoid(gates[:, 0 * H:1 * H])
            f_g = jax.nn.sigmoid(gates[:, 1 * H:2 * H])
            g_g = jnp.tanh(gates[:, 2 * H:3 * H])
            o_g = jax.nn.sigmoid(gates[:, 3 * H:4 * H])
            c = f_g * c + i_g * g_g
            h = o_g * jnp.tanh(c)
            hs.append(h)
        out = jnp.stack(hs, axis=1)
    return out


def _attention_reference(lstm_out, lstm_len, p):
    a1 = jnp.maximum(lstm_out @ p["att1_w"].T + p["att1_b"], 0.0)
    scores = (a1 @ p["att2_w"].T + p["att2_b"])[..., 0]
    B, T = scores.shape
    mask = jnp.arange(T)[None, :] < lstm_len[:, None]
    scores = jnp.where(mask, scores, -jnp.inf)
    w = jax.nn.softmax(scores, axis=-1)
    return jnp.sum(lstm_out * w[..., None], axis=1)


def _head_reference(x, p):
    def ln(v, g, b):
        mu = v.mean(-1, keepdims=True)
        var = ((v - mu) ** 2).mean(-1, keepdims=True)
        return (v - mu) / jnp.sqrt(var + 1e-5) * g + b
    h = jnp.maximum(x @ p["rc_w"].T + p["rc_b"], 0.0)
    r = h @ p["r1_w"].T + p["r1_b"]
    r = jnp.maximum(ln(r, p["ln1_g"], p["ln1_b"]), 0.0)
    r = r @ p["r2_w"].T + p["r2_b"]
    r = ln(r, p["ln2_g"], p["ln2_b"])
    h = jnp.maximum(h + r, 0.0)
    return jax.nn.softmax(h @ p["out_w"].T + p["out_b"], axis=1)


def _reference_forward(X_seq, lengths, meta, params):
    lstm_out = _lstm_reference(X_seq, params["lstm"])
    ctx = _attention_reference(lstm_out, lengths, params)
    return _head_reference(jnp.concatenate([ctx, meta], axis=1), params)


# -----------------------------------------------------------------------------
# Deterministic parameter init (PyTorch-style layouts and uniform bounds)
# -----------------------------------------------------------------------------
def _init_params(key, input_size, hidden, num_layers, clusters):
    ki = iter(jax.random.split(key, 4 * num_layers + 12))

    def uniform(k, shape, fan_in):
        bound = 1.0 / (fan_in ** 0.5)
        return jax.random.uniform(k, shape, jnp.float32, -bound, bound)

    p = {}
    lstm = []
    for layer in range(num_layers):
        in_l = input_size if layer == 0 else hidden
        lstm.append((uniform(next(ki), (4 * hidden, in_l), hidden),
                     uniform(next(ki), (4 * hidden, hidden), hidden),
                     uniform(next(ki), (4 * hidden,), hidden),
                     uniform(next(ki), (4 * hidden,), hidden)))
    p["lstm"] = lstm
    p["att1_w"] = uniform(next(ki), (32, hidden), hidden)
    p["att1_b"] = uniform(next(ki), (32,), hidden)
    p["att2_w"] = uniform(next(ki), (1, 32), 32)
    p["att2_b"] = uniform(next(ki), (1,), 32)
    p["rc_w"] = uniform(next(ki), (1024, hidden + 3), hidden + 3)
    p["rc_b"] = uniform(next(ki), (1024,), hidden + 3)
    p["r1_w"] = uniform(next(ki), (1024, 1024), 1024)
    p["r1_b"] = uniform(next(ki), (1024,), 1024)
    p["ln1_g"] = jnp.ones((1024,), jnp.float32)
    p["ln1_b"] = jnp.zeros((1024,), jnp.float32)
    p["r2_w"] = uniform(next(ki), (1024, 1024), 1024)
    p["r2_b"] = uniform(next(ki), (1024,), 1024)
    p["ln2_g"] = jnp.ones((1024,), jnp.float32)
    p["ln2_b"] = jnp.zeros((1024,), jnp.float32)
    p["out_w"] = uniform(next(ki), (clusters, 1024), 1024)
    p["out_b"] = uniform(next(ki), (clusters,), 1024)
    return p


if __name__ == "__main__":
    B, T, INPUT, HIDDEN, LAYERS, CLUSTERS = 2, 8, 4, 32, 2, 10
    root = jax.random.PRNGKey(0)
    k_x, k_meta, k_p = jax.random.split(root, 3)

    X_seq = jax.random.normal(k_x, (B, T, INPUT), jnp.float32)
    X_seq_lengths = jnp.array([8, 5], dtype=jnp.int32)   # descending (enforce_sorted=True)
    meta = jax.random.normal(k_meta, (B, 3), jnp.float32)
    params = _init_params(k_p, INPUT, HIDDEN, LAYERS, CLUSTERS)
    prep = prepare_params(params)

    fwd = jax.jit(dropoff_lstm_forward)
    out = jax.block_until_ready(fwd(X_seq, X_seq_lengths, meta, prep))
    assert out.shape == (B, CLUSTERS)
    assert bool(jnp.all(jnp.isfinite(out)))

    # End-to-end check against a pure-JAX f32 mirror of the PyTorch forward.
    # Tolerance accounts for the bf16 MXU operands (f32 accumulation) in the kernels.
    ref = _reference_forward(X_seq, X_seq_lengths, meta, params)
    assert jnp.allclose(out, ref, atol=2e-2, rtol=2e-2), (
        f"max abs diff {float(jnp.max(jnp.abs(out - ref)))}")

    # Intermediate checks on the fused LSTM stack and attention kernels.
    tb = _select_batch_tile(B, T, INPUT, HIDDEN, LAYERS)
    lstm_tm = lstm_forward_tm(X_seq, prep["lstm"], tb)               # (T, Bp, H)
    lstm_ref = _lstm_reference(X_seq, params["lstm"])                # (B, T, H)
    assert jnp.allclose(jnp.transpose(lstm_tm[:, :B, :], (1, 0, 2)), lstm_ref,
                        atol=2e-2, rtol=2e-2)
    ctx_k = attention_forward_tm(lstm_tm, X_seq_lengths, prep, tb, B)
    ctx_ref = _attention_reference(lstm_ref, X_seq_lengths, params)
    assert ctx_k.shape == (B, HIDDEN)
    assert jnp.allclose(ctx_k, ctx_ref, atol=2e-2, rtol=2e-2)

    print("KERNEL_OK")
</pallas_src>

<mosaic_0001>
module attributes {stable_mosaic.version = 11 : i64} {
  func.func @_attention_kernel(%arg0: i32, %arg1: memref<8x8x32xf32, #tpu.memory_space<vmem>>, %arg2: memref<8x1xi32, #tpu.memory_space<vmem>>, %arg3: memref<32x32xbf16, #tpu.memory_space<vmem>>, %arg4: memref<1x32xf32, #tpu.memory_space<vmem>>, %arg5: memref<1x32xf32, #tpu.memory_space<vmem>>, %arg6: memref<1x1xf32, #tpu.memory_space<vmem>>, %arg7: memref<8x32xf32, #tpu.memory_space<vmem>>) attributes {dimension_semantics = [#tpu.dimension_semantics<parallel>], iteration_bounds = array<i64: 1>, scalar_prefetch = 0 : i64, scratch_operands = 0 : i64, tpu.core_type = #tpu.core_type<tc>, window_params = [{transform_indices = @transform_0, window_bounds = array<i64: 8, 8, 32>}, {transform_indices = @transform_1, window_bounds = array<i64: 8, 1>}, {pipeline_mode = #tpu.pipeline_mode<synchronous>, transform_indices = @transform_2, window_bounds = array<i64: 32, 32>}, {pipeline_mode = #tpu.pipeline_mode<synchronous>, transform_indices = @transform_3, window_bounds = array<i64: 1, 32>}, {pipeline_mode = #tpu.pipeline_mode<synchronous>, transform_indices = @transform_4, window_bounds = array<i64: 1, 32>}, {pipeline_mode = #tpu.pipeline_mode<synchronous>, transform_indices = @transform_5, window_bounds = array<i64: 1, 1>}, {transform_indices = @transform_6, window_bounds = array<i64: 8, 32>}]} {
    %c0 = arith.constant 0 : index
    %c0_0 = arith.constant 0 : index
    %c0_1 = arith.constant 0 : index
    %0 = vector.load %arg1[%c0, %c0_0, %c0_1] : memref<8x8x32xf32, #tpu.memory_space<vmem>>, vector<8x8x32xf32>
    %1 = vector.shape_cast %0 : vector<8x8x32xf32> to vector<64x32xf32>
    %2 = arith.truncf %1 : vector<64x32xf32> to vector<64x32xbf16>
    %c0_2 = arith.constant 0 : index
    %c0_3 = arith.constant 0 : index
    %3 = vector.load %arg3[%c0_2, %c0_3] : memref<32x32xbf16, #tpu.memory_space<vmem>>, vector<32x32xbf16>
    %cst = arith.constant dense<0.000000e+00> : vector<64x32xf32>
    %4 = tpu.matmul %2, %3, %cst {dimension_numbers = #tpu.dot_dimension_numbers<[1], [0], [0], [1], [0, 0, 1, 1], [], []>} : vector<64x32xbf16>, vector<32x32xbf16>, vector<64x32xf32> -> vector<64x32xf32>
    %c0_4 = arith.constant 0 : index
    %c0_5 = arith.constant 0 : index
    %5 = vector.load %arg4[%c0_4, %c0_5] : memref<1x32xf32, #tpu.memory_space<vmem>>, vector<1x32xf32>
    %6 = vector.broadcast %5 : vector<1x32xf32> to vector<64x32xf32>
    %7 = arith.addf %4, %6 : vector<64x32xf32>
    %cst_6 = arith.constant 0.000000e+00 : f32
    %8 = vector.broadcast %cst_6 : f32 to vector<64x32xf32>
    %9 = arith.maximumf %7, %8 : vector<64x32xf32>
    %10 = vector.shape_cast %9 : vector<64x32xf32> to vector<8x8x32xf32>
    %c0_7 = arith.constant 0 : index
    %c0_8 = arith.constant 0 : index
    %11 = vector.load %arg5[%c0_7, %c0_8] : memref<1x32xf32, #tpu.memory_space<vmem>>, vector<1x32xf32>
    %12 = vector.shape_cast %11 : vector<1x32xf32> to vector<1x1x32xf32>
    %13 = vector.broadcast %12 : vector<1x1x32xf32> to vector<8x8x32xf32>
    %14 = arith.mulf %10, %13 : vector<8x8x32xf32>
    %cst_9 = arith.constant dense<0.000000e+00> : vector<8x8xf32>
    %15 = vector.multi_reduction <add>, %14, %cst_9 [2] : vector<8x8x32xf32> to vector<8x8xf32>
    %c0_10 = arith.constant 0 : index
    %c0_11 = arith.constant 0 : index
    %16 = vector.load %arg6[%c0_10, %c0_11] : memref<1x1xf32, #tpu.memory_space<vmem>>, vector<1x1xf32>
    %17 = vector.broadcast %16 : vector<1x1xf32> to vector<8x8xf32>
    %18 = arith.addf %15, %17 : vector<8x8xf32>
    %19 = tpu.transpose %18, [1, 0] : vector<8x8xf32> -> vector<8x8xf32>
    %20 = tpu.iota {dimensions = array<i32: 1>} : vector<8x8xi32>
    %c0_12 = arith.constant 0 : index
    %c0_13 = arith.constant 0 : index
    %21 = vector.load %arg2[%c0_12, %c0_13] : memref<8x1xi32, #tpu.memory_space<vmem>>, vector<8x1xi32>
    %22 = vector.broadcast %21 : vector<8x1xi32> to vector<8x8xi32>
    %23 = arith.cmpi slt, %20, %22 : vector<8x8xi32>
    %cst_14 = arith.constant 0xFF800000 : f32
    %24 = vector.broadcast %cst_14 : f32 to vector<8x8xf32>
    %25 = arith.select %23, %19, %24 : vector<8x8xi1>, vector<8x8xf32>
    %cst_15 = arith.constant dense<0xFF800000> : vector<8xf32>
    %26 = vector.multi_reduction <maximumf>, %25, %cst_15 [1] : vector<8x8xf32> to vector<8xf32>
    %27 = vector.shape_cast %26 : vector<8xf32> to vector<8x1xf32>
    %28 = vector.broadcast %27 : vector<8x1xf32> to vector<8x8xf32>
    %29 = arith.subf %25, %28 : vector<8x8xf32>
    %30 = math.exp %29 : vector<8x8xf32>
    %cst_16 = arith.constant dense<0.000000e+00> : vector<8xf32>
    %31 = vector.multi_reduction <add>, %30, %cst_16 [1] : vector<8x8xf32> to vector<8xf32>
    %32 = vector.shape_cast %31 : vector<8xf32> to vector<8x1xf32>
    %33 = tpu.reciprocal %32 {approx = true} : vector<8x1xf32> -> vector<8x1xf32>
    %34 = vector.broadcast %33 : vector<8x1xf32> to vector<8x8xf32>
    %35 = arith.mulf %30, %34 : vector<8x8xf32>
    %36 = tpu.transpose %35, [1, 0] : vector<8x8xf32> -> vector<8x8xf32>
    %37 = vector.shape_cast %36 : vector<8x8xf32> to vector<8x8x1xf32>
    %38 = vector.broadcast %37 : vector<8x8x1xf32> to vector<8x8x32xf32>
    %39 = arith.mulf %0, %38 : vector<8x8x32xf32>
    %cst_17 = arith.constant dense<0.000000e+00> : vector<8x32xf32>
    %40 = vector.multi_reduction <add>, %39, %cst_17 [0] : vector<8x8x32xf32> to vector<8x32xf32>
    %c0_18 = arith.constant 0 : index
    %c0_19 = arith.constant 0 : index
    %41 = vector.load %arg7[%c0_18, %c0_19] : memref<8x32xf32, #tpu.memory_space<vmem>>, vector<8x32xf32>
    tpu.vector_store %arg7[%c0_18, %c0_19], %40 {strides = array<i32>} : memref<8x32xf32, #tpu.memory_space<vmem>>, vector<8x32xf32>,
    return
  }
  func.func @transform_0(%arg0: i32) -> (i32, i32, i32) {
    %c0_i32 = arith.constant 0 : i32
    %c0_i32_0 = arith.constant 0 : i32
    %c0_i32_1 = arith.constant 0 : i32
    return %c0_i32, %arg0, %c0_i32_0 : i32, i32, i32
  }
  func.func @transform_1(%arg0: i32) -> (i32, i32) {
    %c0_i32 = arith.constant 0 : i32
    %c0_i32_0 = arith.constant 0 : i32
    return %arg0, %c0_i32 : i32, i32
  }
  func.func @transform_2(%arg0: i32) -> (i32, i32) {
    %c0_i32 = arith.constant 0 : i32
    %c0_i32_0 = arith.constant 0 : i32
    %c0_i32_1 = arith.constant 0 : i32
    return %c0_i32, %c0_i32_0 : i32, i32
  }
  func.func @transform_3(%arg0: i32) -> (i32, i32) {
    %c0_i32 = arith.constant 0 : i32
    %c0_i32_0 = arith.constant 0 : i32
    %c0_i32_1 = arith.constant 0 : i32
    return %c0_i32, %c0_i32_0 : i32, i32
  }
  func.func @transform_4(%arg0: i32) -> (i32, i32) {
    %c0_i32 = arith.constant 0 : i32
    %c0_i32_0 = arith.constant 0 : i32
    %c0_i32_1 = arith.constant 0 : i32
    return %c0_i32, %c0_i32_0 : i32, i32
  }
  func.func @transform_5(%arg0: i32) -> (i32, i32) {
    %c0_i32 = arith.constant 0 : i32
    %c0_i32_0 = arith.constant 0 : i32
    %c0_i32_1 = arith.constant 0 : i32
    return %c0_i32, %c0_i32_0 : i32, i32
  }
  func.func @transform_6(%arg0: i32) -> (i32, i32) {
    %c0_i32 = arith.constant 0 : i32
    %c0_i32_0 = arith.constant 0 : i32
    return %arg0, %c0_i32 : i32, i32
  }
}

module attributes {stable_mosaic.version = 11 : i64} {
  func.func @kernel(%arg0: i32, %arg1: memref<8x8x4xf32, #tpu.memory_space<vmem>>, %arg2: memref<4x128xbf16, #tpu.memory_space<vmem>>, %arg3: memref<32x128xbf16, #tpu.memory_space<vmem>>, %arg4: memref<1x128xf32, #tpu.memory_space<vmem>>, %arg5: memref<32x128xbf16, #tpu.memory_space<vmem>>, %arg6: memref<32x128xbf16, #tpu.memory_space<vmem>>, %arg7: memref<1x128xf32, #tpu.memory_space<vmem>>, %arg8: memref<8x8x32xf32, #tpu.memory_space<vmem>>, %arg9: memref<8x8x128xf32, #tpu.memory_space<vmem>>, %arg10: memref<8x8x32xf32, #tpu.memory_space<vmem>>) attributes {dimension_semantics = [#tpu.dimension_semantics<parallel>], iteration_bounds = array<i64: 1>, scalar_prefetch = 0 : i64, scratch_operands = 2 : i64, tpu.core_type = #tpu.core_type<tc>, window_params = [{transform_indices = @transform_0, window_bounds = array<i64: 8, 8, 4>}, {pipeline_mode = #tpu.pipeline_mode<synchronous>, transform_indices = @transform_1, window_bounds = array<i64: 4, 128>}, {pipeline_mode = #tpu.pipeline_mode<synchronous>, transform_indices = @transform_2, window_bounds = array<i64: 32, 128>}, {pipeline_mode = #tpu.pipeline_mode<synchronous>, transform_indices = @transform_3, window_bounds = array<i64: 1, 128>}, {pipeline_mode = #tpu.pipeline_mode<synchronous>, transform_indices = @transform_4, window_bounds = array<i64: 32, 128>}, {pipeline_mode = #tpu.pipeline_mode<synchronous>, transform_indices = @transform_5, window_bounds = array<i64: 32, 128>}, {pipeline_mode = #tpu.pipeline_mode<synchronous>, transform_indices = @transform_6, window_bounds = array<i64: 1, 128>}, {transform_indices = @transform_7, window_bounds = array<i64: 8, 8, 32>}]} {
    %c0 = arith.constant 0 : index
    %c0_0 = arith.constant 0 : index
    %0 = vector.load %arg2[%c0, %c0_0] : memref<4x128xbf16, #tpu.memory_space<vmem>>, vector<4x128xbf16>
    %c0_1 = arith.constant 0 : index
    %c0_2 = arith.constant 0 : index
    %1 = vector.load %arg3[%c0_1, %c0_2] : memref<32x128xbf16, #tpu.memory_space<vmem>>, vector<32x128xbf16>
    %c0_3 = arith.constant 0 : index
    %c0_4 = arith.constant 0 : index
    %2 = vector.load %arg4[%c0_3, %c0_4] : memref<1x128xf32, #tpu.memory_space<vmem>>, vector<1x128xf32>
    %c0_5 = arith.constant 0 : index
    %c0_6 = arith.constant 0 : index
    %c0_7 = arith.constant 0 : index
    %3 = vector.load %arg1[%c0_5, %c0_6, %c0_7] : memref<8x8x4xf32, #tpu.memory_space<vmem>>, vector<8x8x4xf32>
    %4 = vector.shape_cast %3 : vector<8x8x4xf32> to vector<64x4xf32>
    %5 = arith.truncf %4 : vector<64x4xf32> to vector<64x4xbf16>
    %cst = arith.constant dense<0.000000e+00> : vector<64x128xf32>
    %6 = tpu.matmul %5, %0, %cst {dimension_numbers = #tpu.dot_dimension_numbers<[1], [0], [0], [1], [0, 0, 1, 1], [], []>} : vector<64x4xbf16>, vector<4x128xbf16>, vector<64x128xf32> -> vector<64x128xf32>
    %7 = vector.broadcast %2 : vector<1x128xf32> to vector<64x128xf32>
    %8 = arith.addf %6, %7 : vector<64x128xf32>
    %9 = vector.shape_cast %8 : vector<64x128xf32> to vector<8x8x128xf32>
    %c0_8 = arith.constant 0 : index
    %c0_9 = arith.constant 0 : index
    %c0_10 = arith.constant 0 : index
    %10 = vector.load %arg9[%c0_8, %c0_9, %c0_10] : memref<8x8x128xf32, #tpu.memory_space<vmem>>, vector<8x8x128xf32>
    tpu.vector_store %arg9[%c0_8, %c0_9, %c0_10], %9 {strides = array<i32>} : memref<8x8x128xf32, #tpu.memory_space<vmem>>, vector<8x8x128xf32>,
    %cst_11 = arith.constant 0.000000e+00 : f32
    %11 = vector.broadcast %cst_11 : f32 to vector<8x32xf32>
    %c0_i32 = arith.constant 0 : i32
    %12 = arith.index_cast %c0_i32 : i32 to index
    %c0_12 = arith.constant 0 : index
    %c0_13 = arith.constant 0 : index
    %13 = vector.load %arg9[%12, %c0_12, %c0_13] : memref<8x8x128xf32, #tpu.memory_space<vmem>>, vector<1x8x128xf32>
    %14 = vector.shape_cast %13 : vector<1x8x128xf32> to vector<8x128xf32>
    %15 = arith.truncf %11 : vector<8x32xf32> to vector<8x32xbf16>
    %cst_14 = arith.constant dense<0.000000e+00> : vector<8x128xf32>
    %16 = tpu.matmul %15, %1, %cst_14 {dimension_numbers = #tpu.dot_dimension_numbers<[1], [0], [0], [1], [0, 0, 1, 1], [], []>} : vector<8x32xbf16>, vector<32x128xbf16>, vector<8x128xf32> -> vector<8x128xf32>
    %17 = arith.addf %14, %16 : vector<8x128xf32>
    %18 = vector.extract_strided_slice %17 {offsets = [0, 0], sizes = [8, 32], strides = [1, 1]} : vector<8x128xf32> to vector<8x32xf32>
    %19 = arith.negf %18 : vector<8x32xf32>
    %20 = math.exp %19 : vector<8x32xf32>
    %cst_15 = arith.constant 1.000000e+00 : f32
    %21 = vector.broadcast %cst_15 : f32 to vector<8x32xf32>
    %22 = arith.addf %21, %20 : vector<8x32xf32>
    %23 = arith.divf %21, %22 : vector<8x32xf32>
    %24 = vector.extract_strided_slice %17 {offsets = [0, 32], sizes = [8, 32], strides = [1, 1]} : vector<8x128xf32> to vector<8x32xf32>
    %25 = arith.negf %24 : vector<8x32xf32>
    %26 = math.exp %25 : vector<8x32xf32>
    %cst_16 = arith.constant 1.000000e+00 : f32
    %27 = vector.broadcast %cst_16 : f32 to vector<8x32xf32>
    %28 = arith.addf %27, %26 : vector<8x32xf32>
    %29 = arith.divf %27, %28 : vector<8x32xf32>
    %30 = vector.extract_strided_slice %17 {offsets = [0, 64], sizes = [8, 32], strides = [1, 1]} : vector<8x128xf32> to vector<8x32xf32>
    %31 = math.tanh %30 : vector<8x32xf32>
    %32 = vector.extract_strided_slice %17 {offsets = [0, 96], sizes = [8, 32], strides = [1, 1]} : vector<8x128xf32> to vector<8x32xf32>
    %33 = arith.negf %32 : vector<8x32xf32>
    %34 = math.exp %33 : vector<8x32xf32>
    %cst_17 = arith.constant 1.000000e+00 : f32
    %35 = vector.broadcast %cst_17 : f32 to vector<8x32xf32>
    %36 = arith.addf %35, %34 : vector<8x32xf32>
    %37 = arith.divf %35, %36 : vector<8x32xf32>
    %38 = arith.mulf %29, %11 : vector<8x32xf32>
    %39 = arith.mulf %23, %31 : vector<8x32xf32>
    %40 = arith.addf %38, %39 : vector<8x32xf32>
    %41 = math.tanh %40 : vector<8x32xf32>
    %42 = arith.mulf %37, %41 : vector<8x32xf32>
    %43 = arith.index_cast %c0_i32 : i32 to index
    %c0_18 = arith.constant 0 : index
    %c0_19 = arith.constant 0 : index
    %44 = vector.load %arg10[%43, %c0_18, %c0_19] : memref<8x8x32xf32, #tpu.memory_space<vmem>>, vector<1x8x32xf32>
    %45 = vector.shape_cast %44 : vector<1x8x32xf32> to vector<8x32xf32>
    %46 = vector.shape_cast %42 : vector<8x32xf32> to vector<1x8x32xf32>
    tpu.vector_store %arg10[%43, %c0_18, %c0_19], %46 {strides = array<i32>} : memref<8x8x32xf32, #tpu.memory_space<vmem>>, vector<1x8x32xf32>,
    %c1_i32 = arith.constant 1 : i32
    %47 = arith.index_cast %c1_i32 : i32 to index
    %c0_20 = arith.constant 0 : index
    %c0_21 = arith.constant 0 : index
    %48 = vector.load %arg9[%47, %c0_20, %c0_21] : memref<8x8x128xf32, #tpu.memory_space<vmem>>, vector<1x8x128xf32>
    %49 = vector.shape_cast %48 : vector<1x8x128xf32> to vector<8x128xf32>
    %50 = arith.truncf %42 : vector<8x32xf32> to vector<8x32xbf16>
    %cst_22 = arith.constant dense<0.000000e+00> : vector<8x128xf32>
    %51 = tpu.matmul %50, %1, %cst_22 {dimension_numbers = #tpu.dot_dimension_numbers<[1], [0], [0], [1], [0, 0, 1, 1], [], []>} : vector<8x32xbf16>, vector<32x128xbf16>, vector<8x128xf32> -> vector<8x128xf32>
    %52 = arith.addf %49, %51 : vector<8x128xf32>
    %53 = vector.extract_strided_slice %52 {offsets = [0, 0], sizes = [8, 32], strides = [1, 1]} : vector<8x128xf32> to vector<8x32xf32>
    %54 = arith.negf %53 : vector<8x32xf32>
    %55 = math.exp %54 : vector<8x32xf32>
    %cst_23 = arith.constant 1.000000e+00 : f32
    %56 = vector.broadcast %cst_23 : f32 to vector<8x32xf32>
    %57 = arith.addf %56, %55 : vector<8x32xf32>
    %58 = arith.divf %56, %57 : vector<8x32xf32>
    %59 = vector.extract_strided_slice %52 {offsets = [0, 32], sizes = [8, 32], strides = [1, 1]} : vector<8x128xf32> to vector<8x32xf32>
    %60 = arith.negf %59 : vector<8x32xf32>
    %61 = math.exp %60 : vector<8x32xf32>
    %cst_24 = arith.constant 1.000000e+00 : f32
    %62 = vector.broadcast %cst_24 : f32 to vector<8x32xf32>
    %63 = arith.addf %62, %61 : vector<8x32xf32>
    %64 = arith.divf %62, %63 : vector<8x32xf32>
    %65 = vector.extract_strided_slice %52 {offsets = [0, 64], sizes = [8, 32], strides = [1, 1]} : vector<8x128xf32> to vector<8x32xf32>
    %66 = math.tanh %65 : vector<8x32xf32>
    %67 = vector.extract_strided_slice %52 {offsets = [0, 96], sizes = [8, 32], strides = [1, 1]} : vector<8x128xf32> to vector<8x32xf32>
    %68 = arith.negf %67 : vector<8x32xf32>
    %69 = math.exp %68 : vector<8x32xf32>
    %cst_25 = arith.constant 1.000000e+00 : f32
    %70 = vector.broadcast %cst_25 : f32 to vector<8x32xf32>
    %71 = arith.addf %70, %69 : vector<8x32xf32>
    %72 = arith.divf %70, %71 : vector<8x32xf32>
    %73 = arith.mulf %64, %40 : vector<8x32xf32>
    %74 = arith.mulf %58, %66 : vector<8x32xf32>
    %75 = arith.addf %73, %74 : vector<8x32xf32>
    %76 = math.tanh %75 : vector<8x32xf32>
    %77 = arith.mulf %72, %76 : vector<8x32xf32>
    %78 = arith.index_cast %c1_i32 : i32 to index
    %c0_26 = arith.constant 0 : index
    %c0_27 = arith.constant 0 : index
    %79 = vector.load %arg10[%78, %c0_26, %c0_27] : memref<8x8x32xf32, #tpu.memory_space<vmem>>, vector<1x8x32xf32>
    %80 = vector.shape_cast %79 : vector<1x8x32xf32> to vector<8x32xf32>
    %81 = vector.shape_cast %77 : vector<8x32xf32> to vector<1x8x32xf32>
    tpu.vector_store %arg10[%78, %c0_26, %c0_27], %81 {strides = array<i32>} : memref<8x8x32xf32, #tpu.memory_space<vmem>>, vector<1x8x32xf32>,
    %c2_i32 = arith.constant 2 : i32
    %82 = arith.index_cast %c2_i32 : i32 to index
    %c0_28 = arith.constant 0 : index
    %c0_29 = arith.constant 0 : index
    %83 = vector.load %arg9[%82, %c0_28, %c0_29] : memref<8x8x128xf32, #tpu.memory_space<vmem>>, vector<1x8x128xf32>
    %84 = vector.shape_cast %83 : vector<1x8x128xf32> to vector<8x128xf32>
    %85 = arith.truncf %77 : vector<8x32xf32> to vector<8x32xbf16>
    %cst_30 = arith.constant dense<0.000000e+00> : vector<8x128xf32>
    %86 = tpu.matmul %85, %1, %cst_30 {dimension_numbers = #tpu.dot_dimension_numbers<[1], [0], [0], [1], [0, 0, 1, 1], [], []>} : vector<8x32xbf16>, vector<32x128xbf16>, vector<8x128xf32> -> vector<8x128xf32>
    %87 = arith.addf %84, %86 : vector<8x128xf32>
    %88 = vector.extract_strided_slice %87 {offsets = [0, 0], sizes = [8, 32], strides = [1, 1]} : vector<8x128xf32> to vector<8x32xf32>
    %89 = arith.negf %88 : vector<8x32xf32>
    %90 = math.exp %89 : vector<8x32xf32>
    %cst_31 = arith.constant 1.000000e+00 : f32
    %91 = vector.broadcast %cst_31 : f32 to vector<8x32xf32>
    %92 = arith.addf %91, %90 : vector<8x32xf32>
    %93 = arith.divf %91, %92 : vector<8x32xf32>
    %94 = vector.extract_strided_slice %87 {offsets = [0, 32], sizes = [8, 32], strides = [1, 1]} : vector<8x128xf32> to vector<8x32xf32>
    %95 = arith.negf %94 : vector<8x32xf32>
    %96 = math.exp %95 : vector<8x32xf32>
    %cst_32 = arith.constant 1.000000e+00 : f32
    %97 = vector.broadcast %cst_32 : f32 to vector<8x32xf32>
    %98 = arith.addf %97, %96 : vector<8x32xf32>
    %99 = arith.divf %97, %98 : vector<8x32xf32>
    %100 = vector.extract_strided_slice %87 {offsets = [0, 64], sizes = [8, 32], strides = [1, 1]} : vector<8x128xf32> to vector<8x32xf32>
    %101 = math.tanh %100 : vector<8x32xf32>
    %102 = vector.extract_strided_slice %87 {offsets = [0, 96], sizes = [8, 32], strides = [1, 1]} : vector<8x128xf32> to vector<8x32xf32>
    %103 = arith.negf %102 : vector<8x32xf32>
    %104 = math.exp %103 : vector<8x32xf32>
    %cst_33 = arith.constant 1.000000e+00 : f32
    %105 = vector.broadcast %cst_33 : f32 to vector<8x32xf32>
    %106 = arith.addf %105, %104 : vector<8x32xf32>
    %107 = arith.divf %105, %106 : vector<8x32xf32>
    %108 = arith.mulf %99, %75 : vector<8x32xf32>
    %109 = arith.mulf %93, %101 : vector<8x32xf32>
    %110 = arith.addf %108, %109 : vector<8x32xf32>
    %111 = math.tanh %110 : vector<8x32xf32>
    %112 = arith.mulf %107, %111 : vector<8x32xf32>
    %113 = arith.index_cast %c2_i32 : i32 to index
    %c0_34 = arith.constant 0 : index
    %c0_35 = arith.constant 0 : index
    %114 = vector.load %arg10[%113, %c0_34, %c0_35] : memref<8x8x32xf32, #tpu.memory_space<vmem>>, vector<1x8x32xf32>
    %115 = vector.shape_cast %114 : vector<1x8x32xf32> to vector<8x32xf32>
    %116 = vector.shape_cast %112 : vector<8x32xf32> to vector<1x8x32xf32>
    tpu.vector_store %arg10[%113, %c0_34, %c0_35], %116 {strides = array<i32>} : memref<8x8x32xf32, #tpu.memory_space<vmem>>, vector<1x8x32xf32>,
    %c3_i32 = arith.constant 3 : i32
    %117 = arith.index_cast %c3_i32 : i32 to index
    %c0_36 = arith.constant 0 : index
    %c0_37 = arith.constant 0 : index
    %118 = vector.load %arg9[%117, %c0_36, %c0_37] : memref<8x8x128xf32, #tpu.memory_space<vmem>>, vector<1x8x128xf32>
    %119 = vector.shape_cast %118 : vector<1x8x128xf32> to vector<8x128xf32>
    %120 = arith.truncf %112 : vector<8x32xf32> to vector<8x32xbf16>
    %cst_38 = arith.constant dense<0.000000e+00> : vector<8x128xf32>
    %121 = tpu.matmul %120, %1, %cst_38 {dimension_numbers = #tpu.dot_dimension_numbers<[1], [0], [0], [1], [0, 0, 1, 1], [], []>} : vector<8x32xbf16>, vector<32x128xbf16>, vector<8x128xf32> -> vector<8x128xf32>
    %122 = arith.addf %119, %121 : vector<8x128xf32>
    %123 = vector.extract_strided_slice %122 {offsets = [0, 0], sizes = [8, 32], strides = [1, 1]} : vector<8x128xf32> to vector<8x32xf32>
    %124 = arith.negf %123 : vector<8x32xf32>
    %125 = math.exp %124 : vector<8x32xf32>
    %cst_39 = arith.constant 1.000000e+00 : f32
    %126 = vector.broadcast %cst_39 : f32 to vector<8x32xf32>
    %127 = arith.addf %126, %125 : vector<8x32xf32>
    %128 = arith.divf %126, %127 : vector<8x32xf32>
    %129 = vector.extract_strided_slice %122 {offsets = [0, 32], sizes = [8, 32], strides = [1, 1]} : vector<8x128xf32> to vector<8x32xf32>
    %130 = arith.negf %129 : vector<8x32xf32>
    %131 = math.exp %130 : vector<8x32xf32>
    %cst_40 = arith.constant 1.000000e+00 : f32
    %132 = vector.broadcast %cst_40 : f32 to vector<8x32xf32>
    %133 = arith.addf %132, %131 : vector<8x32xf32>
    %134 = arith.divf %132, %133 : vector<8x32xf32>
    %135 = vector.extract_strided_slice %122 {offsets = [0, 64], sizes = [8, 32], strides = [1, 1]} : vector<8x128xf32> to vector<8x32xf32>
    %136 = math.tanh %135 : vector<8x32xf32>
    %137 = vector.extract_strided_slice %122 {offsets = [0, 96], sizes = [8, 32], strides = [1, 1]} : vector<8x128xf32> to vector<8x32xf32>
    %138 = arith.negf %137 : vector<8x32xf32>
    %139 = math.exp %138 : vector<8x32xf32>
    %cst_41 = arith.constant 1.000000e+00 : f32
    %140 = vector.broadcast %cst_41 : f32 to vector<8x32xf32>
    %141 = arith.addf %140, %139 : vector<8x32xf32>
    %142 = arith.divf %140, %141 : vector<8x32xf32>
    %143 = arith.mulf %134, %110 : vector<8x32xf32>
    %144 = arith.mulf %128, %136 : vector<8x32xf32>
    %145 = arith.addf %143, %144 : vector<8x32xf32>
    %146 = math.tanh %145 : vector<8x32xf32>
    %147 = arith.mulf %142, %146 : vector<8x32xf32>
    %148 = arith.index_cast %c3_i32 : i32 to index
    %c0_42 = arith.constant 0 : index
    %c0_43 = arith.constant 0 : index
    %149 = vector.load %arg10[%148, %c0_42, %c0_43] : memref<8x8x32xf32, #tpu.memory_space<vmem>>, vector<1x8x32xf32>
    %150 = vector.shape_cast %149 : vector<1x8x32xf32> to vector<8x32xf32>
    %151 = vector.shape_cast %147 : vector<8x32xf32> to vector<1x8x32xf32>
    tpu.vector_store %arg10[%148, %c0_42, %c0_43], %151 {strides = array<i32>} : memref<8x8x32xf32, #tpu.memory_space<vmem>>, vector<1x8x32xf32>,
    %c4_i32 = arith.constant 4 : i32
    %152 = arith.index_cast %c4_i32 : i32 to index
    %c0_44 = arith.constant 0 : index
    %c0_45 = arith.constant 0 : index
    %153 = vector.load %arg9[%152, %c0_44, %c0_45] : memref<8x8x128xf32, #tpu.memory_space<vmem>>, vector<1x8x128xf32>
    %154 = vector.shape_cast %153 : vector<1x8x128xf32> to vector<8x128xf32>
    %155 = arith.truncf %147 : vector<8x32xf32> to vector<8x32xbf16>
    %cst_46 = arith.constant dense<0.000000e+00> : vector<8x128xf32>
    %156 = tpu.matmul %155, %1, %cst_46 {dimension_numbers = #tpu.dot_dimension_numbers<[1], [0], [0], [1], [0, 0, 1, 1], [], []>} : vector<8x32xbf16>, vector<32x128xbf16>, vector<8x128xf32> -> vector<8x128xf32>
    %157 = arith.addf %154, %156 : vector<8x128xf32>
    %158 = vector.extract_strided_slice %157 {offsets = [0, 0], sizes = [8, 32], strides = [1, 1]} : vector<8x128xf32> to vector<8x32xf32>
    %159 = arith.negf %158 : vector<8x32xf32>
    %160 = math.exp %159 : vector<8x32xf32>
    %cst_47 = arith.constant 1.000000e+00 : f32
    %161 = vector.broadcast %cst_47 : f32 to vector<8x32xf32>
    %162 = arith.addf %161, %160 : vector<8x32xf32>
    %163 = arith.divf %161, %162 : vector<8x32xf32>
    %164 = vector.extract_strided_slice %157 {offsets = [0, 32], sizes = [8, 32], strides = [1, 1]} : vector<8x128xf32> to vector<8x32xf32>
    %165 = arith.negf %164 : vector<8x32xf32>
    %166 = math.exp %165 : vector<8x32xf32>
    %cst_48 = arith.constant 1.000000e+00 : f32
    %167 = vector.broadcast %cst_48 : f32 to vector<8x32xf32>
    %168 = arith.addf %167, %166 : vector<8x32xf32>
    %169 = arith.divf %167, %168 : vector<8x32xf32>
    %170 = vector.extract_strided_slice %157 {offsets = [0, 64], sizes = [8, 32], strides = [1, 1]} : vector<8x128xf32> to vector<8x32xf32>
    %171 = math.tanh %170 : vector<8x32xf32>
    %172 = vector.extract_strided_slice %157 {offsets = [0, 96], sizes = [8, 32], strides = [1, 1]} : vector<8x128xf32> to vector<8x32xf32>
    %173 = arith.negf %172 : vector<8x32xf32>
    %174 = math.exp %173 : vector<8x32xf32>
    %cst_49 = arith.constant 1.000000e+00 : f32
    %175 = vector.broadcast %cst_49 : f32 to vector<8x32xf32>
    %176 = arith.addf %175, %174 : vector<8x32xf32>
    %177 = arith.divf %175, %176 : vector<8x32xf32>
    %178 = arith.mulf %169, %145 : vector<8x32xf32>
    %179 = arith.mulf %163, %171 : vector<8x32xf32>
    %180 = arith.addf %178, %179 : vector<8x32xf32>
    %181 = math.tanh %180 : vector<8x32xf32>
    %182 = arith.mulf %177, %181 : vector<8x32xf32>
    %183 = arith.index_cast %c4_i32 : i32 to index
    %c0_50 = arith.constant 0 : index
    %c0_51 = arith.constant 0 : index
    %184 = vector.load %arg10[%183, %c0_50, %c0_51] : memref<8x8x32xf32, #tpu.memory_space<vmem>>, vector<1x8x32xf32>
    %185 = vector.shape_cast %184 : vector<1x8x32xf32> to vector<8x32xf32>
    %186 = vector.shape_cast %182 : vector<8x32xf32> to vector<1x8x32xf32>
    tpu.vector_store %arg10[%183, %c0_50, %c0_51], %186 {strides = array<i32>} : memref<8x8x32xf32, #tpu.memory_space<vmem>>, vector<1x8x32xf32>,
    %c5_i32 = arith.constant 5 : i32
    %187 = arith.index_cast %c5_i32 : i32 to index
    %c0_52 = arith.constant 0 : index
    %c0_53 = arith.constant 0 : index
    %188 = vector.load %arg9[%187, %c0_52, %c0_53] : memref<8x8x128xf32, #tpu.memory_space<vmem>>, vector<1x8x128xf32>
    %189 = vector.shape_cast %188 : vector<1x8x128xf32> to vector<8x128xf32>
    %190 = arith.truncf %182 : vector<8x32xf32> to vector<8x32xbf16>
    %cst_54 = arith.constant dense<0.000000e+00> : vector<8x128xf32>
    %191 = tpu.matmul %190, %1, %cst_54 {dimension_numbers = #tpu.dot_dimension_numbers<[1], [0], [0], [1], [0, 0, 1, 1], [], []>} : vector<8x32xbf16>, vector<32x128xbf16>, vector<8x128xf32> -> vector<8x128xf32>
    %192 = arith.addf %189, %191 : vector<8x128xf32>
    %193 = vector.extract_strided_slice %192 {offsets = [0, 0], sizes = [8, 32], strides = [1, 1]} : vector<8x128xf32> to vector<8x32xf32>
    %194 = arith.negf %193 : vector<8x32xf32>
    %195 = math.exp %194 : vector<8x32xf32>
    %cst_55 = arith.constant 1.000000e+00 : f32
    %196 = vector.broadcast %cst_55 : f32 to vector<8x32xf32>
    %197 = arith.addf %196, %195 : vector<8x32xf32>
    %198 = arith.divf %196, %197 : vector<8x32xf32>
    %199 = vector.extract_strided_slice %192 {offsets = [0, 32], sizes = [8, 32], strides = [1, 1]} : vector<8x128xf32> to vector<8x32xf32>
    %200 = arith.negf %199 : vector<8x32xf32>
    %201 = math.exp %200 : vector<8x32xf32>
    %cst_56 = arith.constant 1.000000e+00 : f32
    %202 = vector.broadcast %cst_56 : f32 to vector<8x32xf32>
    %203 = arith.addf %202, %201 : vector<8x32xf32>
    %204 = arith.divf %202, %203 : vector<8x32xf32>
    %205 = vector.extract_strided_slice %192 {offsets = [0, 64], sizes = [8, 32], strides = [1, 1]} : vector<8x128xf32> to vector<8x32xf32>
    %206 = math.tanh %205 : vector<8x32xf32>
    %207 = vector.extract_strided_slice %192 {offsets = [0, 96], sizes = [8, 32], strides = [1, 1]} : vector<8x128xf32> to vector<8x32xf32>
    %208 = arith.negf %207 : vector<8x32xf32>
    %209 = math.exp %208 : vector<8x32xf32>
    %cst_57 = arith.constant 1.000000e+00 : f32
    %210 = vector.broadcast %cst_57 : f32 to vector<8x32xf32>
    %211 = arith.addf %210, %209 : vector<8x32xf32>
    %212 = arith.divf %210, %211 : vector<8x32xf32>
    %213 = arith.mulf %204, %180 : vector<8x32xf32>
    %214 = arith.mulf %198, %206 : vector<8x32xf32>
    %215 = arith.addf %213, %214 : vector<8x32xf32>
    %216 = math.tanh %215 : vector<8x32xf32>
    %217 = arith.mulf %212, %216 : vector<8x32xf32>
    %218 = arith.index_cast %c5_i32 : i32 to index
    %c0_58 = arith.constant 0 : index
    %c0_59 = arith.constant 0 : index
    %219 = vector.load %arg10[%218, %c0_58, %c0_59] : memref<8x8x32xf32, #tpu.memory_space<vmem>>, vector<1x8x32xf32>
    %220 = vector.shape_cast %219 : vector<1x8x32xf32> to vector<8x32xf32>
    %221 = vector.shape_cast %217 : vector<8x32xf32> to vector<1x8x32xf32>
    tpu.vector_store %arg10[%218, %c0_58, %c0_59], %221 {strides = array<i32>} : memref<8x8x32xf32, #tpu.memory_space<vmem>>, vector<1x8x32xf32>,
    %c6_i32 = arith.constant 6 : i32
    %222 = arith.index_cast %c6_i32 : i32 to index
    %c0_60 = arith.constant 0 : index
    %c0_61 = arith.constant 0 : index
    %223 = vector.load %arg9[%222, %c0_60, %c0_61] : memref<8x8x128xf32, #tpu.memory_space<vmem>>, vector<1x8x128xf32>
    %224 = vector.shape_cast %223 : vector<1x8x128xf32> to vector<8x128xf32>
    %225 = arith.truncf %217 : vector<8x32xf32> to vector<8x32xbf16>
    %cst_62 = arith.constant dense<0.000000e+00> : vector<8x128xf32>
    %226 = tpu.matmul %225, %1, %cst_62 {dimension_numbers = #tpu.dot_dimension_numbers<[1], [0], [0], [1], [0, 0, 1, 1], [], []>} : vector<8x32xbf16>, vector<32x128xbf16>, vector<8x128xf32> -> vector<8x128xf32>
    %227 = arith.addf %224, %226 : vector<8x128xf32>
    %228 = vector.extract_strided_slice %227 {offsets = [0, 0], sizes = [8, 32], strides = [1, 1]} : vector<8x128xf32> to vector<8x32xf32>
    %229 = arith.negf %228 : vector<8x32xf32>
    %230 = math.exp %229 : vector<8x32xf32>
    %cst_63 = arith.constant 1.000000e+00 : f32
    %231 = vector.broadcast %cst_63 : f32 to vector<8x32xf32>
    %232 = arith.addf %231, %230 : vector<8x32xf32>
    %233 = arith.divf %231, %232 : vector<8x32xf32>
    %234 = vector.extract_strided_slice %227 {offsets = [0, 32], sizes = [8, 32], strides = [1, 1]} : vector<8x128xf32> to vector<8x32xf32>
    %235 = arith.negf %234 : vector<8x32xf32>
    %236 = math.exp %235 : vector<8x32xf32>
    %cst_64 = arith.constant 1.000000e+00 : f32
    %237 = vector.broadcast %cst_64 : f32 to vector<8x32xf32>
    %238 = arith.addf %237, %236 : vector<8x32xf32>
    %239 = arith.divf %237, %238 : vector<8x32xf32>
    %240 = vector.extract_strided_slice %227 {offsets = [0, 64], sizes = [8, 32], strides = [1, 1]} : vector<8x128xf32> to vector<8x32xf32>
    %241 = math.tanh %240 : vector<8x32xf32>
    %242 = vector.extract_strided_slice %227 {offsets = [0, 96], sizes = [8, 32], strides = [1, 1]} : vector<8x128xf32> to vector<8x32xf32>
    %243 = arith.negf %242 : vector<8x32xf32>
    %244 = math.exp %243 : vector<8x32xf32>
    %cst_65 = arith.constant 1.000000e+00 : f32
    %245 = vector.broadcast %cst_65 : f32 to vector<8x32xf32>
    %246 = arith.addf %245, %244 : vector<8x32xf32>
    %247 = arith.divf %245, %246 : vector<8x32xf32>
    %248 = arith.mulf %239, %215 : vector<8x32xf32>
    %249 = arith.mulf %233, %241 : vector<8x32xf32>
    %250 = arith.addf %248, %249 : vector<8x32xf32>
    %251 = math.tanh %250 : vector<8x32xf32>
    %252 = arith.mulf %247, %251 : vector<8x32xf32>
    %253 = arith.index_cast %c6_i32 : i32 to index
    %c0_66 = arith.constant 0 : index
    %c0_67 = arith.constant 0 : index
    %254 = vector.load %arg10[%253, %c0_66, %c0_67] : memref<8x8x32xf32, #tpu.memory_space<vmem>>, vector<1x8x32xf32>
    %255 = vector.shape_cast %254 : vector<1x8x32xf32> to vector<8x32xf32>
    %256 = vector.shape_cast %252 : vector<8x32xf32> to vector<1x8x32xf32>
    tpu.vector_store %arg10[%253, %c0_66, %c0_67], %256 {strides = array<i32>} : memref<8x8x32xf32, #tpu.memory_space<vmem>>, vector<1x8x32xf32>,
    %c7_i32 = arith.constant 7 : i32
    %257 = arith.index_cast %c7_i32 : i32 to index
    %c0_68 = arith.constant 0 : index
    %c0_69 = arith.constant 0 : index
    %258 = vector.load %arg9[%257, %c0_68, %c0_69] : memref<8x8x128xf32, #tpu.memory_space<vmem>>, vector<1x8x128xf32>
    %259 = vector.shape_cast %258 : vector<1x8x128xf32> to vector<8x128xf32>
    %260 = arith.truncf %252 : vector<8x32xf32> to vector<8x32xbf16>
    %cst_70 = arith.constant dense<0.000000e+00> : vector<8x128xf32>
    %261 = tpu.matmul %260, %1, %cst_70 {dimension_numbers = #tpu.dot_dimension_numbers<[1], [0], [0], [1], [0, 0, 1, 1], [], []>} : vector<8x32xbf16>, vector<32x128xbf16>, vector<8x128xf32> -> vector<8x128xf32>
    %262 = arith.addf %259, %261 : vector<8x128xf32>
    %263 = vector.extract_strided_slice %262 {offsets = [0, 0], sizes = [8, 32], strides = [1, 1]} : vector<8x128xf32> to vector<8x32xf32>
    %264 = arith.negf %263 : vector<8x32xf32>
    %265 = math.exp %264 : vector<8x32xf32>
    %cst_71 = arith.constant 1.000000e+00 : f32
    %266 = vector.broadcast %cst_71 : f32 to vector<8x32xf32>
    %267 = arith.addf %266, %265 : vector<8x32xf32>
    %268 = arith.divf %266, %267 : vector<8x32xf32>
    %269 = vector.extract_strided_slice %262 {offsets = [0, 32], sizes = [8, 32], strides = [1, 1]} : vector<8x128xf32> to vector<8x32xf32>
    %270 = arith.negf %269 : vector<8x32xf32>
    %271 = math.exp %270 : vector<8x32xf32>
    %cst_72 = arith.constant 1.000000e+00 : f32
    %272 = vector.broadcast %cst_72 : f32 to vector<8x32xf32>
    %273 = arith.addf %272, %271 : vector<8x32xf32>
    %274 = arith.divf %272, %273 : vector<8x32xf32>
    %275 = vector.extract_strided_slice %262 {offsets = [0, 64], sizes = [8, 32], strides = [1, 1]} : vector<8x128xf32> to vector<8x32xf32>
    %276 = math.tanh %275 : vector<8x32xf32>
    %277 = vector.extract_strided_slice %262 {offsets = [0, 96], sizes = [8, 32], strides = [1, 1]} : vector<8x128xf32> to vector<8x32xf32>
    %278 = arith.negf %277 : vector<8x32xf32>
    %279 = math.exp %278 : vector<8x32xf32>
    %cst_73 = arith.constant 1.000000e+00 : f32
    %280 = vector.broadcast %cst_73 : f32 to vector<8x32xf32>
    %281 = arith.addf %280, %279 : vector<8x32xf32>
    %282 = arith.divf %280, %281 : vector<8x32xf32>
    %283 = arith.mulf %274, %250 : vector<8x32xf32>
    %284 = arith.mulf %268, %276 : vector<8x32xf32>
    %285 = arith.addf %283, %284 : vector<8x32xf32>
    %286 = math.tanh %285 : vector<8x32xf32>
    %287 = arith.mulf %282, %286 : vector<8x32xf32>
    %288 = arith.index_cast %c7_i32 : i32 to index
    %c0_74 = arith.constant 0 : index
    %c0_75 = arith.constant 0 : index
    %289 = vector.load %arg10[%288, %c0_74, %c0_75] : memref<8x8x32xf32, #tpu.memory_space<vmem>>, vector<1x8x32xf32>
    %290 = vector.shape_cast %289 : vector<1x8x32xf32> to vector<8x32xf32>
    %291 = vector.shape_cast %287 : vector<8x32xf32> to vector<1x8x32xf32>
    tpu.vector_store %arg10[%288, %c0_74, %c0_75], %291 {strides = array<i32>} : memref<8x8x32xf32, #tpu.memory_space<vmem>>, vector<1x8x32xf32>,
    %c8_i32 = arith.constant 8 : i32
    %c0_76 = arith.constant 0 : index
    %c0_77 = arith.constant 0 : index
    %292 = vector.load %arg5[%c0_76, %c0_77] : memref<32x128xbf16, #tpu.memory_space<vmem>>, vector<32x128xbf16>
    %c0_78 = arith.constant 0 : index
    %c0_79 = arith.constant 0 : index
    %293 = vector.load %arg6[%c0_78, %c0_79] : memref<32x128xbf16, #tpu.memory_space<vmem>>, vector<32x128xbf16>
    %c0_80 = arith.constant 0 : index
    %c0_81 = arith.constant 0 : index
    %294 = vector.load %arg7[%c0_80, %c0_81] : memref<1x128xf32, #tpu.memory_space<vmem>>, vector<1x128xf32>
    %c0_82 = arith.constant 0 : index
    %c0_83 = arith.constant 0 : index
    %c0_84 = arith.constant 0 : index
    %295 = vector.load %arg10[%c0_82, %c0_83, %c0_84] : memref<8x8x32xf32, #tpu.memory_space<vmem>>, vector<8x8x32xf32>
    %296 = vector.shape_cast %295 : vector<8x8x32xf32> to vector<64x32xf32>
    %297 = arith.truncf %296 : vector<64x32xf32> to vector<64x32xbf16>
    %cst_85 = arith.constant dense<0.000000e+00> : vector<64x128xf32>
    %298 = tpu.matmul %297, %292, %cst_85 {dimension_numbers = #tpu.dot_dimension_numbers<[1], [0], [0], [1], [0, 0, 1, 1], [], []>} : vector<64x32xbf16>, vector<32x128xbf16>, vector<64x128xf32> -> vector<64x128xf32>
    %299 = vector.broadcast %294 : vector<1x128xf32> to vector<64x128xf32>
    %300 = arith.addf %298, %299 : vector<64x128xf32>
    %301 = vector.shape_cast %300 : vector<64x128xf32> to vector<8x8x128xf32>
    %c0_86 = arith.constant 0 : index
    %c0_87 = arith.constant 0 : index
    %c0_88 = arith.constant 0 : index
    %302 = vector.load %arg9[%c0_86, %c0_87, %c0_88] : memref<8x8x128xf32, #tpu.memory_space<vmem>>, vector<8x8x128xf32>
    tpu.vector_store %arg9[%c0_86, %c0_87, %c0_88], %301 {strides = array<i32>} : memref<8x8x128xf32, #tpu.memory_space<vmem>>, vector<8x8x128xf32>,
    %cst_89 = arith.constant 0.000000e+00 : f32
    %303 = vector.broadcast %cst_89 : f32 to vector<8x32xf32>
    %c0_i32_90 = arith.constant 0 : i32
    %304 = arith.index_cast %c0_i32_90 : i32 to index
    %c0_91 = arith.constant 0 : index
    %c0_92 = arith.constant 0 : index
    %305 = vector.load %arg9[%304, %c0_91, %c0_92] : memref<8x8x128xf32, #tpu.memory_space<vmem>>, vector<1x8x128xf32>
    %306 = vector.shape_cast %305 : vector<1x8x128xf32> to vector<8x128xf32>
    %307 = arith.truncf %303 : vector<8x32xf32> to vector<8x32xbf16>
    %cst_93 = arith.constant dense<0.000000e+00> : vector<8x128xf32>
    %308 = tpu.matmul %307, %293, %cst_93 {dimension_numbers = #tpu.dot_dimension_numbers<[1], [0], [0], [1], [0, 0, 1, 1], [], []>} : vector<8x32xbf16>, vector<32x128xbf16>, vector<8x128xf32> -> vector<8x128xf32>
    %309 = arith.addf %306, %308 : vector<8x128xf32>
    %310 = vector.extract_strided_slice %309 {offsets = [0, 0], sizes = [8, 32], strides = [1, 1]} : vector<8x128xf32> to vector<8x32xf32>
    %311 = arith.negf %310 : vector<8x32xf32>
    %312 = math.exp %311 : vector<8x32xf32>
    %cst_94 = arith.constant 1.000000e+00 : f32
    %313 = vector.broadcast %cst_94 : f32 to vector<8x32xf32>
    %314 = arith.addf %313, %312 : vector<8x32xf32>
    %315 = arith.divf %313, %314 : vector<8x32xf32>
    %316 = vector.extract_strided_slice %309 {offsets = [0, 32], sizes = [8, 32], strides = [1, 1]} : vector<8x128xf32> to vector<8x32xf32>
    %317 = arith.negf %316 : vector<8x32xf32>
    %318 = math.exp %317 : vector<8x32xf32>
    %cst_95 = arith.constant 1.000000e+00 : f32
    %319 = vector.broadcast %cst_95 : f32 to vector<8x32xf32>
    %320 = arith.addf %319, %318 : vector<8x32xf32>
    %321 = arith.divf %319, %320 : vector<8x32xf32>
    %322 = vector.extract_strided_slice %309 {offsets = [0, 64], sizes = [8, 32], strides = [1, 1]} : vector<8x128xf32> to vector<8x32xf32>
    %323 = math.tanh %322 : vector<8x32xf32>
    %324 = vector.extract_strided_slice %309 {offsets = [0, 96], sizes = [8, 32], strides = [1, 1]} : vector<8x128xf32> to vector<8x32xf32>
    %325 = arith.negf %324 : vector<8x32xf32>
    %326 = math.exp %325 : vector<8x32xf32>
    %cst_96 = arith.constant 1.000000e+00 : f32
    %327 = vector.broadcast %cst_96 : f32 to vector<8x32xf32>
    %328 = arith.addf %327, %326 : vector<8x32xf32>
    %329 = arith.divf %327, %328 : vector<8x32xf32>
    %330 = arith.mulf %321, %303 : vector<8x32xf32>
    %331 = arith.mulf %315, %323 : vector<8x32xf32>
    %332 = arith.addf %330, %331 : vector<8x32xf32>
    %333 = math.tanh %332 : vector<8x32xf32>
    %334 = arith.mulf %329, %333 : vector<8x32xf32>
    %335 = arith.index_cast %c0_i32_90 : i32 to index
    %c0_97 = arith.constant 0 : index
    %c0_98 = arith.constant 0 : index
    %336 = vector.load %arg8[%335, %c0_97, %c0_98] : memref<8x8x32xf32, #tpu.memory_space<vmem>>, vector<1x8x32xf32>
    %337 = vector.shape_cast %336 : vector<1x8x32xf32> to vector<8x32xf32>
    %338 = vector.shape_cast %334 : vector<8x32xf32> to vector<1x8x32xf32>
    tpu.vector_store %arg8[%335, %c0_97, %c0_98], %338 {strides = array<i32>} : memref<8x8x32xf32, #tpu.memory_space<vmem>>, vector<1x8x32xf32>,
    %c1_i32_99 = arith.constant 1 : i32
    %339 = arith.index_cast %c1_i32_99 : i32 to index
    %c0_100 = arith.constant 0 : index
    %c0_101 = arith.constant 0 : index
    %340 = vector.load %arg9[%339, %c0_100, %c0_101] : memref<8x8x128xf32, #tpu.memory_space<vmem>>, vector<1x8x128xf32>
    %341 = vector.shape_cast %340 : vector<1x8x128xf32> to vector<8x128xf32>
    %342 = arith.truncf %334 : vector<8x32xf32> to vector<8x32xbf16>
    %cst_102 = arith.constant dense<0.000000e+00> : vector<8x128xf32>
    %343 = tpu.matmul %342, %293, %cst_102 {dimension_numbers = #tpu.dot_dimension_numbers<[1], [0], [0], [1], [0, 0, 1, 1], [], []>} : vector<8x32xbf16>, vector<32x128xbf16>, vector<8x128xf32> -> vector<8x128xf32>
    %344 = arith.addf %341, %343 : vector<8x128xf32>
    %345 = vector.extract_strided_slice %344 {offsets = [0, 0], sizes = [8, 32], strides = [1, 1]} : vector<8x128xf32> to vector<8x32xf32>
    %346 = arith.negf %345 : vector<8x32xf32>
    %347 = math.exp %346 : vector<8x32xf32>
    %cst_103 = arith.constant 1.000000e+00 : f32
    %348 = vector.broadcast %cst_103 : f32 to vector<8x32xf32>
    %349 = arith.addf %348, %347 : vector<8x32xf32>
    %350 = arith.divf %348, %349 : vector<8x32xf32>
    %351 = vector.extract_strided_slice %344 {offsets = [0, 32], sizes = [8, 32], strides = [1, 1]} : vector<8x128xf32> to vector<8x32xf32>
    %352 = arith.negf %351 : vector<8x32xf32>
    %353 = math.exp %352 : vector<8x32xf32>
    %cst_104 = arith.constant 1.000000e+00 : f32
    %354 = vector.broadcast %cst_104 : f32 to vector<8x32xf32>
    %355 = arith.addf %354, %353 : vector<8x32xf32>
    %356 = arith.divf %354, %355 : vector<8x32xf32>
    %357 = vector.extract_strided_slice %344 {offsets = [0, 64], sizes = [8, 32], strides = [1, 1]} : vector<8x128xf32> to vector<8x32xf32>
    %358 = math.tanh %357 : vector<8x32xf32>
    %359 = vector.extract_strided_slice %344 {offsets = [0, 96], sizes = [8, 32], strides = [1, 1]} : vector<8x128xf32> to vector<8x32xf32>
    %360 = arith.negf %359 : vector<8x32xf32>
    %361 = math.exp %360 : vector<8x32xf32>
    %cst_105 = arith.constant 1.000000e+00 : f32
    %362 = vector.broadcast %cst_105 : f32 to vector<8x32xf32>
    %363 = arith.addf %362, %361 : vector<8x32xf32>
    %364 = arith.divf %362, %363 : vector<8x32xf32>
    %365 = arith.mulf %356, %332 : vector<8x32xf32>
    %366 = arith.mulf %350, %358 : vector<8x32xf32>
    %367 = arith.addf %365, %366 : vector<8x32xf32>
    %368 = math.tanh %367 : vector<8x32xf32>
    %369 = arith.mulf %364, %368 : vector<8x32xf32>
    %370 = arith.index_cast %c1_i32_99 : i32 to index
    %c0_106 = arith.constant 0 : index
    %c0_107 = arith.constant 0 : index
    %371 = vector.load %arg8[%370, %c0_106, %c0_107] : memref<8x8x32xf32, #tpu.memory_space<vmem>>, vector<1x8x32xf32>
    %372 = vector.shape_cast %371 : vector<1x8x32xf32> to vector<8x32xf32>
    %373 = vector.shape_cast %369 : vector<8x32xf32> to vector<1x8x32xf32>
    tpu.vector_store %arg8[%370, %c0_106, %c0_107], %373 {strides = array<i32>} : memref<8x8x32xf32, #tpu.memory_space<vmem>>, vector<1x8x32xf32>,
    %c2_i32_108 = arith.constant 2 : i32
    %374 = arith.index_cast %c2_i32_108 : i32 to index
    %c0_109 = arith.constant 0 : index
    %c0_110 = arith.constant 0 : index
    %375 = vector.load %arg9[%374, %c0_109, %c0_110] : memref<8x8x128xf32, #tpu.memory_space<vmem>>, vector<1x8x128xf32>
    %376 = vector.shape_cast %375 : vector<1x8x128xf32> to vector<8x128xf32>
    %377 = arith.truncf %369 : vector<8x32xf32> to vector<8x32xbf16>
    %cst_111 = arith.constant dense<0.000000e+00> : vector<8x128xf32>
    %378 = tpu.matmul %377, %293, %cst_111 {dimension_numbers = #tpu.dot_dimension_numbers<[1], [0], [0], [1], [0, 0, 1, 1], [], []>} : vector<8x32xbf16>, vector<32x128xbf16>, vector<8x128xf32> -> vector<8x128xf32>
    %379 = arith.addf %376, %378 : vector<8x128xf32>
    %380 = vector.extract_strided_slice %379 {offsets = [0, 0], sizes = [8, 32], strides = [1, 1]} : vector<8x128xf32> to vector<8x32xf32>
    %381 = arith.negf %380 : vector<8x32xf32>
    %382 = math.exp %381 : vector<8x32xf32>
    %cst_112 = arith.constant 1.000000e+00 : f32
    %383 = vector.broadcast %cst_112 : f32 to vector<8x32xf32>
    %384 = arith.addf %383, %382 : vector<8x32xf32>
    %385 = arith.divf %383, %384 : vector<8x32xf32>
    %386 = vector.extract_strided_slice %379 {offsets = [0, 32], sizes = [8, 32], strides = [1, 1]} : vector<8x128xf32> to vector<8x32xf32>
    %387 = arith.negf %386 : vector<8x32xf32>
    %388 = math.exp %387 : vector<8x32xf32>
    %cst_113 = arith.constant 1.000000e+00 : f32
    %389 = vector.broadcast %cst_113 : f32 to vector<8x32xf32>
    %390 = arith.addf %389, %388 : vector<8x32xf32>
    %391 = arith.divf %389, %390 : vector<8x32xf32>
    %392 = vector.extract_strided_slice %379 {offsets = [0, 64], sizes = [8, 32], strides = [1, 1]} : vector<8x128xf32> to vector<8x32xf32>
    %393 = math.tanh %392 : vector<8x32xf32>
    %394 = vector.extract_strided_slice %379 {offsets = [0, 96], sizes = [8, 32], strides = [1, 1]} : vector<8x128xf32> to vector<8x32xf32>
    %395 = arith.negf %394 : vector<8x32xf32>
    %396 = math.exp %395 : vector<8x32xf32>
    %cst_114 = arith.constant 1.000000e+00 : f32
    %397 = vector.broadcast %cst_114 : f32 to vector<8x32xf32>
    %398 = arith.addf %397, %396 : vector<8x32xf32>
    %399 = arith.divf %397, %398 : vector<8x32xf32>
    %400 = arith.mulf %391, %367 : vector<8x32xf32>
    %401 = arith.mulf %385, %393 : vector<8x32xf32>
    %402 = arith.addf %400, %401 : vector<8x32xf32>
    %403 = math.tanh %402 : vector<8x32xf32>
    %404 = arith.mulf %399, %403 : vector<8x32xf32>
    %405 = arith.index_cast %c2_i32_108 : i32 to index
    %c0_115 = arith.constant 0 : index
    %c0_116 = arith.constant 0 : index
    %406 = vector.load %arg8[%405, %c0_115, %c0_116] : memref<8x8x32xf32, #tpu.memory_space<vmem>>, vector<1x8x32xf32>
    %407 = vector.shape_cast %406 : vector<1x8x32xf32> to vector<8x32xf32>
    %408 = vector.shape_cast %404 : vector<8x32xf32> to vector<1x8x32xf32>
    tpu.vector_store %arg8[%405, %c0_115, %c0_116], %408 {strides = array<i32>} : memref<8x8x32xf32, #tpu.memory_space<vmem>>, vector<1x8x32xf32>,
    %c3_i32_117 = arith.constant 3 : i32
    %409 = arith.index_cast %c3_i32_117 : i32 to index
    %c0_118 = arith.constant 0 : index
    %c0_119 = arith.constant 0 : index
    %410 = vector.load %arg9[%409, %c0_118, %c0_119] : memref<8x8x128xf32, #tpu.memory_space<vmem>>, vector<1x8x128xf32>
    %411 = vector.shape_cast %410 : vector<1x8x128xf32> to vector<8x128xf32>
    %412 = arith.truncf %404 : vector<8x32xf32> to vector<8x32xbf16>
    %cst_120 = arith.constant dense<0.000000e+00> : vector<8x128xf32>
    %413 = tpu.matmul %412, %293, %cst_120 {dimension_numbers = #tpu.dot_dimension_numbers<[1], [0], [0], [1], [0, 0, 1, 1], [], []>} : vector<8x32xbf16>, vector<32x128xbf16>, vector<8x128xf32> -> vector<8x128xf32>
    %414 = arith.addf %411, %413 : vector<8x128xf32>
    %415 = vector.extract_strided_slice %414 {offsets = [0, 0], sizes = [8, 32], strides = [1, 1]} : vector<8x128xf32> to vector<8x32xf32>
    %416 = arith.negf %415 : vector<8x32xf32>
    %417 = math.exp %416 : vector<8x32xf32>
    %cst_121 = arith.constant 1.000000e+00 : f32
    %418 = vector.broadcast %cst_121 : f32 to vector<8x32xf32>
    %419 = arith.addf %418, %417 : vector<8x32xf32>
    %420 = arith.divf %418, %419 : vector<8x32xf32>
    %421 = vector.extract_strided_slice %414 {offsets = [0, 32], sizes = [8, 32], strides = [1, 1]} : vector<8x128xf32> to vector<8x32xf32>
    %422 = arith.negf %421 : vector<8x32xf32>
    %423 = math.exp %422 : vector<8x32xf32>
    %cst_122 = arith.constant 1.000000e+00 : f32
    %424 = vector.broadcast %cst_122 : f32 to vector<8x32xf32>
    %425 = arith.addf %424, %423 : vector<8x32xf32>
    %426 = arith.divf %424, %425 : vector<8x32xf32>
    %427 = vector.extract_strided_slice %414 {offsets = [0, 64], sizes = [8, 32], strides = [1, 1]} : vector<8x128xf32> to vector<8x32xf32>
    %428 = math.tanh %427 : vector<8x32xf32>
    %429 = vector.extract_strided_slice %414 {offsets = [0, 96], sizes = [8, 32], strides = [1, 1]} : vector<8x128xf32> to vector<8x32xf32>
    %430 = arith.negf %429 : vector<8x32xf32>
    %431 = math.exp %430 : vector<8x32xf32>
    %cst_123 = arith.constant 1.000000e+00 : f32
    %432 = vector.broadcast %cst_123 : f32 to vector<8x32xf32>
    %433 = arith.addf %432, %431 : vector<8x32xf32>
    %434 = arith.divf %432, %433 : vector<8x32xf32>
    %435 = arith.mulf %426, %402 : vector<8x32xf32>
    %436 = arith.mulf %420, %428 : vector<8x32xf32>
    %437 = arith.addf %435, %436 : vector<8x32xf32>
    %438 = math.tanh %437 : vector<8x32xf32>
    %439 = arith.mulf %434, %438 : vector<8x32xf32>
    %440 = arith.index_cast %c3_i32_117 : i32 to index
    %c0_124 = arith.constant 0 : index
    %c0_125 = arith.constant 0 : index
    %441 = vector.load %arg8[%440, %c0_124, %c0_125] : memref<8x8x32xf32, #tpu.memory_space<vmem>>, vector<1x8x32xf32>
    %442 = vector.shape_cast %441 : vector<1x8x32xf32> to vector<8x32xf32>
    %443 = vector.shape_cast %439 : vector<8x32xf32> to vector<1x8x32xf32>
    tpu.vector_store %arg8[%440, %c0_124, %c0_125], %443 {strides = array<i32>} : memref<8x8x32xf32, #tpu.memory_space<vmem>>, vector<1x8x32xf32>,
    %c4_i32_126 = arith.constant 4 : i32
    %444 = arith.index_cast %c4_i32_126 : i32 to index
    %c0_127 = arith.constant 0 : index
    %c0_128 = arith.constant 0 : index
    %445 = vector.load %arg9[%444, %c0_127, %c0_128] : memref<8x8x128xf32, #tpu.memory_space<vmem>>, vector<1x8x128xf32>
    %446 = vector.shape_cast %445 : vector<1x8x128xf32> to vector<8x128xf32>
    %447 = arith.truncf %439 : vector<8x32xf32> to vector<8x32xbf16>
    %cst_129 = arith.constant dense<0.000000e+00> : vector<8x128xf32>
    %448 = tpu.matmul %447, %293, %cst_129 {dimension_numbers = #tpu.dot_dimension_numbers<[1], [0], [0], [1], [0, 0, 1, 1], [], []>} : vector<8x32xbf16>, vector<32x128xbf16>, vector<8x128xf32> -> vector<8x128xf32>
    %449 = arith.addf %446, %448 : vector<8x128xf32>
    %450 = vector.extract_strided_slice %449 {offsets = [0, 0], sizes = [8, 32], strides = [1, 1]} : vector<8x128xf32> to vector<8x32xf32>
    %451 = arith.negf %450 : vector<8x32xf32>
    %452 = math.exp %451 : vector<8x32xf32>
    %cst_130 = arith.constant 1.000000e+00 : f32
    %453 = vector.broadcast %cst_130 : f32 to vector<8x32xf32>
    %454 = arith.addf %453, %452 : vector<8x32xf32>
    %455 = arith.divf %453, %454 : vector<8x32xf32>
    %456 = vector.extract_strided_slice %449 {offsets = [0, 32], sizes = [8, 32], strides = [1, 1]} : vector<8x128xf32> to vector<8x32xf32>
    %457 = arith.negf %456 : vector<8x32xf32>
    %458 = math.exp %457 : vector<8x32xf32>
    %cst_131 = arith.constant 1.000000e+00 : f32
    %459 = vector.broadcast %cst_131 : f32 to vector<8x32xf32>
    %460 = arith.addf %459, %458 : vector<8x32xf32>
    %461 = arith.divf %459, %460 : vector<8x32xf32>
    %462 = vector.extract_strided_slice %449 {offsets = [0, 64], sizes = [8, 32], strides = [1, 1]} : vector<8x128xf32> to vector<8x32xf32>
    %463 = math.tanh %462 : vector<8x32xf32>
    %464 = vector.extract_strided_slice %449 {offsets = [0, 96], sizes = [8, 32], strides = [1, 1]} : vector<8x128xf32> to vector<8x32xf32>
    %465 = arith.negf %464 : vector<8x32xf32>
    %466 = math.exp %465 : vector<8x32xf32>
    %cst_132 = arith.constant 1.000000e+00 : f32
    %467 = vector.broadcast %cst_132 : f32 to vector<8x32xf32>
    %468 = arith.addf %467, %466 : vector<8x32xf32>
    %469 = arith.divf %467, %468 : vector<8x32xf32>
    %470 = arith.mulf %461, %437 : vector<8x32xf32>
    %471 = arith.mulf %455, %463 : vector<8x32xf32>
    %472 = arith.addf %470, %471 : vector<8x32xf32>
    %473 = math.tanh %472 : vector<8x32xf32>
    %474 = arith.mulf %469, %473 : vector<8x32xf32>
    %475 = arith.index_cast %c4_i32_126 : i32 to index
    %c0_133 = arith.constant 0 : index
    %c0_134 = arith.constant 0 : index
    %476 = vector.load %arg8[%475, %c0_133, %c0_134] : memref<8x8x32xf32, #tpu.memory_space<vmem>>, vector<1x8x32xf32>
    %477 = vector.shape_cast %476 : vector<1x8x32xf32> to vector<8x32xf32>
    %478 = vector.shape_cast %474 : vector<8x32xf32> to vector<1x8x32xf32>
    tpu.vector_store %arg8[%475, %c0_133, %c0_134], %478 {strides = array<i32>} : memref<8x8x32xf32, #tpu.memory_space<vmem>>, vector<1x8x32xf32>,
    %c5_i32_135 = arith.constant 5 : i32
    %479 = arith.index_cast %c5_i32_135 : i32 to index
    %c0_136 = arith.constant 0 : index
    %c0_137 = arith.constant 0 : index
    %480 = vector.load %arg9[%479, %c0_136, %c0_137] : memref<8x8x128xf32, #tpu.memory_space<vmem>>, vector<1x8x128xf32>
    %481 = vector.shape_cast %480 : vector<1x8x128xf32> to vector<8x128xf32>
    %482 = arith.truncf %474 : vector<8x32xf32> to vector<8x32xbf16>
    %cst_138 = arith.constant dense<0.000000e+00> : vector<8x128xf32>
    %483 = tpu.matmul %482, %293, %cst_138 {dimension_numbers = #tpu.dot_dimension_numbers<[1], [0], [0], [1], [0, 0, 1, 1], [], []>} : vector<8x32xbf16>, vector<32x128xbf16>, vector<8x128xf32> -> vector<8x128xf32>
    %484 = arith.addf %481, %483 : vector<8x128xf32>
    %485 = vector.extract_strided_slice %484 {offsets = [0, 0], sizes = [8, 32], strides = [1, 1]} : vector<8x128xf32> to vector<8x32xf32>
    %486 = arith.negf %485 : vector<8x32xf32>
    %487 = math.exp %486 : vector<8x32xf32>
    %cst_139 = arith.constant 1.000000e+00 : f32
    %488 = vector.broadcast %cst_139 : f32 to vector<8x32xf32>
    %489 = arith.addf %488, %487 : vector<8x32xf32>
    %490 = arith.divf %488, %489 : vector<8x32xf32>
    %491 = vector.extract_strided_slice %484 {offsets = [0, 32], sizes = [8, 32], strides = [1, 1]} : vector<8x128xf32> to vector<8x32xf32>
    %492 = arith.negf %491 : vector<8x32xf32>
    %493 = math.exp %492 : vector<8x32xf32>
    %cst_140 = arith.constant 1.000000e+00 : f32
    %494 = vector.broadcast %cst_140 : f32 to vector<8x32xf32>
    %495 = arith.addf %494, %493 : vector<8x32xf32>
    %496 = arith.divf %494, %495 : vector<8x32xf32>
    %497 = vector.extract_strided_slice %484 {offsets = [0, 64], sizes = [8, 32], strides = [1, 1]} : vector<8x128xf32> to vector<8x32xf32>
    %498 = math.tanh %497 : vector<8x32xf32>
    %499 = vector.extract_strided_slice %484 {offsets = [0, 96], sizes = [8, 32], strides = [1, 1]} : vector<8x128xf32> to vector<8x32xf32>
    %500 = arith.negf %499 : vector<8x32xf32>
    %501 = math.exp %500 : vector<8x32xf32>
    %cst_141 = arith.constant 1.000000e+00 : f32
    %502 = vector.broadcast %cst_141 : f32 to vector<8x32xf32>
    %503 = arith.addf %502, %501 : vector<8x32xf32>
    %504 = arith.divf %502, %503 : vector<8x32xf32>
    %505 = arith.mulf %496, %472 : vector<8x32xf32>
    %506 = arith.mulf %490, %498 : vector<8x32xf32>
    %507 = arith.addf %505, %506 : vector<8x32xf32>
    %508 = math.tanh %507 : vector<8x32xf32>
    %509 = arith.mulf %504, %508 : vector<8x32xf32>
    %510 = arith.index_cast %c5_i32_135 : i32 to index
    %c0_142 = arith.constant 0 : index
    %c0_143 = arith.constant 0 : index
    %511 = vector.load %arg8[%510, %c0_142, %c0_143] : memref<8x8x32xf32, #tpu.memory_space<vmem>>, vector<1x8x32xf32>
    %512 = vector.shape_cast %511 : vector<1x8x32xf32> to vector<8x32xf32>
    %513 = vector.shape_cast %509 : vector<8x32xf32> to vector<1x8x32xf32>
    tpu.vector_store %arg8[%510, %c0_142, %c0_143], %513 {strides = array<i32>} : memref<8x8x32xf32, #tpu.memory_space<vmem>>, vector<1x8x32xf32>,
    %c6_i32_144 = arith.constant 6 : i32
    %514 = arith.index_cast %c6_i32_144 : i32 to index
    %c0_145 = arith.constant 0 : index
    %c0_146 = arith.constant 0 : index
    %515 = vector.load %arg9[%514, %c0_145, %c0_146] : memref<8x8x128xf32, #tpu.memory_space<vmem>>, vector<1x8x128xf32>
    %516 = vector.shape_cast %515 : vector<1x8x128xf32> to vector<8x128xf32>
    %517 = arith.truncf %509 : vector<8x32xf32> to vector<8x32xbf16>
    %cst_147 = arith.constant dense<0.000000e+00> : vector<8x128xf32>
    %518 = tpu.matmul %517, %293, %cst_147 {dimension_numbers = #tpu.dot_dimension_numbers<[1], [0], [0], [1], [0, 0, 1, 1], [], []>} : vector<8x32xbf16>, vector<32x128xbf16>, vector<8x128xf32> -> vector<8x128xf32>
    %519 = arith.addf %516, %518 : vector<8x128xf32>
    %520 = vector.extract_strided_slice %519 {offsets = [0, 0], sizes = [8, 32], strides = [1, 1]} : vector<8x128xf32> to vector<8x32xf32>
    %521 = arith.negf %520 : vector<8x32xf32>
    %522 = math.exp %521 : vector<8x32xf32>
    %cst_148 = arith.constant 1.000000e+00 : f32
    %523 = vector.broadcast %cst_148 : f32 to vector<8x32xf32>
    %524 = arith.addf %523, %522 : vector<8x32xf32>
    %525 = arith.divf %523, %524 : vector<8x32xf32>
    %526 = vector.extract_strided_slice %519 {offsets = [0, 32], sizes = [8, 32], strides = [1, 1]} : vector<8x128xf32> to vector<8x32xf32>
    %527 = arith.negf %526 : vector<8x32xf32>
    %528 = math.exp %527 : vector<8x32xf32>
    %cst_149 = arith.constant 1.000000e+00 : f32
    %529 = vector.broadcast %cst_149 : f32 to vector<8x32xf32>
    %530 = arith.addf %529, %528 : vector<8x32xf32>
    %531 = arith.divf %529, %530 : vector<8x32xf32>
    %532 = vector.extract_strided_slice %519 {offsets = [0, 64], sizes = [8, 32], strides = [1, 1]} : vector<8x128xf32> to vector<8x32xf32>
    %533 = math.tanh %532 : vector<8x32xf32>
    %534 = vector.extract_strided_slice %519 {offsets = [0, 96], sizes = [8, 32], strides = [1, 1]} : vector<8x128xf32> to vector<8x32xf32>
    %535 = arith.negf %534 : vector<8x32xf32>
    %536 = math.exp %535 : vector<8x32xf32>
    %cst_150 = arith.constant 1.000000e+00 : f32
    %537 = vector.broadcast %cst_150 : f32 to vector<8x32xf32>
    %538 = arith.addf %537, %536 : vector<8x32xf32>
    %539 = arith.divf %537, %538 : vector<8x32xf32>
    %540 = arith.mulf %531, %507 : vector<8x32xf32>
    %541 = arith.mulf %525, %533 : vector<8x32xf32>
    %542 = arith.addf %540, %541 : vector<8x32xf32>
    %543 = math.tanh %542 : vector<8x32xf32>
    %544 = arith.mulf %539, %543 : vector<8x32xf32>
    %545 = arith.index_cast %c6_i32_144 : i32 to index
    %c0_151 = arith.constant 0 : index
    %c0_152 = arith.constant 0 : index
    %546 = vector.load %arg8[%545, %c0_151, %c0_152] : memref<8x8x32xf32, #tpu.memory_space<vmem>>, vector<1x8x32xf32>
    %547 = vector.shape_cast %546 : vector<1x8x32xf32> to vector<8x32xf32>
    %548 = vector.shape_cast %544 : vector<8x32xf32> to vector<1x8x32xf32>
    tpu.vector_store %arg8[%545, %c0_151, %c0_152], %548 {strides = array<i32>} : memref<8x8x32xf32, #tpu.memory_space<vmem>>, vector<1x8x32xf32>,
    %c7_i32_153 = arith.constant 7 : i32
    %549 = arith.index_cast %c7_i32_153 : i32 to index
    %c0_154 = arith.constant 0 : index
    %c0_155 = arith.constant 0 : index
    %550 = vector.load %arg9[%549, %c0_154, %c0_155] : memref<8x8x128xf32, #tpu.memory_space<vmem>>, vector<1x8x128xf32>
    %551 = vector.shape_cast %550 : vector<1x8x128xf32> to vector<8x128xf32>
    %552 = arith.truncf %544 : vector<8x32xf32> to vector<8x32xbf16>
    %cst_156 = arith.constant dense<0.000000e+00> : vector<8x128xf32>
    %553 = tpu.matmul %552, %293, %cst_156 {dimension_numbers = #tpu.dot_dimension_numbers<[1], [0], [0], [1], [0, 0, 1, 1], [], []>} : vector<8x32xbf16>, vector<32x128xbf16>, vector<8x128xf32> -> vector<8x128xf32>
    %554 = arith.addf %551, %553 : vector<8x128xf32>
    %555 = vector.extract_strided_slice %554 {offsets = [0, 0], sizes = [8, 32], strides = [1, 1]} : vector<8x128xf32> to vector<8x32xf32>
    %556 = arith.negf %555 : vector<8x32xf32>
    %557 = math.exp %556 : vector<8x32xf32>
    %cst_157 = arith.constant 1.000000e+00 : f32
    %558 = vector.broadcast %cst_157 : f32 to vector<8x32xf32>
    %559 = arith.addf %558, %557 : vector<8x32xf32>
    %560 = arith.divf %558, %559 : vector<8x32xf32>
    %561 = vector.extract_strided_slice %554 {offsets = [0, 32], sizes = [8, 32], strides = [1, 1]} : vector<8x128xf32> to vector<8x32xf32>
    %562 = arith.negf %561 : vector<8x32xf32>
    %563 = math.exp %562 : vector<8x32xf32>
    %cst_158 = arith.constant 1.000000e+00 : f32
    %564 = vector.broadcast %cst_158 : f32 to vector<8x32xf32>
    %565 = arith.addf %564, %563 : vector<8x32xf32>
    %566 = arith.divf %564, %565 : vector<8x32xf32>
    %567 = vector.extract_strided_slice %554 {offsets = [0, 64], sizes = [8, 32], strides = [1, 1]} : vector<8x128xf32> to vector<8x32xf32>
    %568 = math.tanh %567 : vector<8x32xf32>
    %569 = vector.extract_strided_slice %554 {offsets = [0, 96], sizes = [8, 32], strides = [1, 1]} : vector<8x128xf32> to vector<8x32xf32>
    %570 = arith.negf %569 : vector<8x32xf32>
    %571 = math.exp %570 : vector<8x32xf32>
    %cst_159 = arith.constant 1.000000e+00 : f32
    %572 = vector.broadcast %cst_159 : f32 to vector<8x32xf32>
    %573 = arith.addf %572, %571 : vector<8x32xf32>
    %574 = arith.divf %572, %573 : vector<8x32xf32>
    %575 = arith.mulf %566, %542 : vector<8x32xf32>
    %576 = arith.mulf %560, %568 : vector<8x32xf32>
    %577 = arith.addf %575, %576 : vector<8x32xf32>
    %578 = math.tanh %577 : vector<8x32xf32>
    %579 = arith.mulf %574, %578 : vector<8x32xf32>
    %580 = arith.index_cast %c7_i32_153 : i32 to index
    %c0_160 = arith.constant 0 : index
    %c0_161 = arith.constant 0 : index
    %581 = vector.load %arg8[%580, %c0_160, %c0_161] : memref<8x8x32xf32, #tpu.memory_space<vmem>>, vector<1x8x32xf32>
    %582 = vector.shape_cast %581 : vector<1x8x32xf32> to vector<8x32xf32>
    %583 = vector.shape_cast %579 : vector<8x32xf32> to vector<1x8x32xf32>
    tpu.vector_store %arg8[%580, %c0_160, %c0_161], %583 {strides = array<i32>} : memref<8x8x32xf32, #tpu.memory_space<vmem>>, vector<1x8x32xf32>,
    %c8_i32_162 = arith.constant 8 : i32
    return
  }
  func.func @transform_0(%arg0: i32) -> (i32, i32, i32) {
    %c0_i32 = arith.constant 0 : i32
    %c0_i32_0 = arith.constant 0 : i32
    %c0_i32_1 = arith.constant 0 : i32
    return %c0_i32, %arg0, %c0_i32_0 : i32, i32, i32
  }
  func.func @transform_1(%arg0: i32) -> (i32, i32) {
    %c0_i32 = arith.constant 0 : i32
    %c0_i32_0 = arith.constant 0 : i32
    %c0_i32_1 = arith.constant 0 : i32
    return %c0_i32, %c0_i32_0 : i32, i32
  }
  func.func @transform_2(%arg0: i32) -> (i32, i32) {
    %c0_i32 = arith.constant 0 : i32
    %c0_i32_0 = arith.constant 0 : i32
    %c0_i32_1 = arith.constant 0 : i32
    return %c0_i32, %c0_i32_0 : i32, i32
  }
  func.func @transform_3(%arg0: i32) -> (i32, i32) {
    %c0_i32 = arith.constant 0 : i32
    %c0_i32_0 = arith.constant 0 : i32
    %c0_i32_1 = arith.constant 0 : i32
    return %c0_i32, %c0_i32_0 : i32, i32
  }
  func.func @transform_4(%arg0: i32) -> (i32, i32) {
    %c0_i32 = arith.constant 0 : i32
    %c0_i32_0 = arith.constant 0 : i32
    %c0_i32_1 = arith.constant 0 : i32
    return %c0_i32, %c0_i32_0 : i32, i32
  }
  func.func @transform_5(%arg0: i32) -> (i32, i32) {
    %c0_i32 = arith.constant 0 : i32
    %c0_i32_0 = arith.constant 0 : i32
    %c0_i32_1 = arith.constant 0 : i32
    return %c0_i32, %c0_i32_0 : i32, i32
  }
  func.func @transform_6(%arg0: i32) -> (i32, i32) {
    %c0_i32 = arith.constant 0 : i32
    %c0_i32_0 = arith.constant 0 : i32
    %c0_i32_1 = arith.constant 0 : i32
    return %c0_i32, %c0_i32_0 : i32, i32
  }
  func.func @transform_7(%arg0: i32) -> (i32, i32, i32) {
    %c0_i32 = arith.constant 0 : i32
    %c0_i32_0 = arith.constant 0 : i32
    %c0_i32_1 = arith.constant 0 : i32
    return %c0_i32, %arg0, %c0_i32_0 : i32, i32, i32
  }
}

module attributes {stable_mosaic.version = 11 : i64} {
  func.func @_head_kernel(%arg0: i32, %arg1: memref<8x35xf32, #tpu.memory_space<vmem>>, %arg2: memref<35x1024xbf16, #tpu.memory_space<vmem>>, %arg3: memref<1x1024xf32, #tpu.memory_space<vmem>>, %arg4: memref<1024x1024xbf16, #tpu.memory_space<vmem>>, %arg5: memref<1x1024xf32, #tpu.memory_space<vmem>>, %arg6: memref<1x1024xf32, #tpu.memory_space<vmem>>, %arg7: memref<1x1024xf32, #tpu.memory_space<vmem>>, %arg8: memref<1024x1024xbf16, #tpu.memory_space<vmem>>, %arg9: memref<1x1024xf32, #tpu.memory_space<vmem>>, %arg10: memref<1x1024xf32, #tpu.memory_space<vmem>>, %arg11: memref<1x1024xf32, #tpu.memory_space<vmem>>, %arg12: memref<1024x10xbf16, #tpu.memory_space<vmem>>, %arg13: memref<1x10xf32, #tpu.memory_space<vmem>>, %arg14: memref<8x10xf32, #tpu.memory_space<vmem>>) attributes {dimension_semantics = [#tpu.dimension_semantics<parallel>], iteration_bounds = array<i64: 1>, scalar_prefetch = 0 : i64, scratch_operands = 0 : i64, tpu.core_type = #tpu.core_type<tc>, window_params = [{transform_indices = @transform_0, window_bounds = array<i64: 8, 35>}, {pipeline_mode = #tpu.pipeline_mode<synchronous>, transform_indices = @transform_1, window_bounds = array<i64: 35, 1024>}, {pipeline_mode = #tpu.pipeline_mode<synchronous>, transform_indices = @transform_2, window_bounds = array<i64: 1, 1024>}, {pipeline_mode = #tpu.pipeline_mode<synchronous>, transform_indices = @transform_3, window_bounds = array<i64: 1024, 1024>}, {pipeline_mode = #tpu.pipeline_mode<synchronous>, transform_indices = @transform_4, window_bounds = array<i64: 1, 1024>}, {pipeline_mode = #tpu.pipeline_mode<synchronous>, transform_indices = @transform_5, window_bounds = array<i64: 1, 1024>}, {pipeline_mode = #tpu.pipeline_mode<synchronous>, transform_indices = @transform_6, window_bounds = array<i64: 1, 1024>}, {pipeline_mode = #tpu.pipeline_mode<synchronous>, transform_indices = @transform_7, window_bounds = array<i64: 1024, 1024>}, {pipeline_mode = #tpu.pipeline_mode<synchronous>, transform_indices = @transform_8, window_bounds = array<i64: 1, 1024>}, {pipeline_mode = #tpu.pipeline_mode<synchronous>, transform_indices = @transform_9, window_bounds = array<i64: 1, 1024>}, {pipeline_mode = #tpu.pipeline_mode<synchronous>, transform_indices = @transform_10, window_bounds = array<i64: 1, 1024>}, {pipeline_mode = #tpu.pipeline_mode<synchronous>, transform_indices = @transform_11, window_bounds = array<i64: 1024, 10>}, {pipeline_mode = #tpu.pipeline_mode<synchronous>, transform_indices = @transform_12, window_bounds = array<i64: 1, 10>}, {transform_indices = @transform_13, window_bounds = array<i64: 8, 10>}]} {
    %c0 = arith.constant 0 : index
    %c0_0 = arith.constant 0 : index
    %0 = vector.load %arg1[%c0, %c0_0] : memref<8x35xf32, #tpu.memory_space<vmem>>, vector<8x35xf32>
    %1 = arith.truncf %0 : vector<8x35xf32> to vector<8x35xbf16>
    %c0_1 = arith.constant 0 : index
    %c0_2 = arith.constant 0 : index
    %2 = vector.load %arg2[%c0_1, %c0_2] : memref<35x1024xbf16, #tpu.memory_space<vmem>>, vector<35x1024xbf16>
    %cst = arith.constant dense<0.000000e+00> : vector<8x1024xf32>
    %3 = tpu.matmul %1, %2, %cst {dimension_numbers = #tpu.dot_dimension_numbers<[1], [0], [0], [1], [0, 0, 1, 1], [], []>} : vector<8x35xbf16>, vector<35x1024xbf16>, vector<8x1024xf32> -> vector<8x1024xf32>
    %c0_3 = arith.constant 0 : index
    %c0_4 = arith.constant 0 : index
    %4 = vector.load %arg3[%c0_3, %c0_4] : memref<1x1024xf32, #tpu.memory_space<vmem>>, vector<1x1024xf32>
    %5 = vector.broadcast %4 : vector<1x1024xf32> to vector<8x1024xf32>
    %6 = arith.addf %3, %5 : vector<8x1024xf32>
    %cst_5 = arith.constant 0.000000e+00 : f32
    %7 = vector.broadcast %cst_5 : f32 to vector<8x1024xf32>
    %8 = arith.maximumf %6, %7 : vector<8x1024xf32>
    %9 = arith.truncf %8 : vector<8x1024xf32> to vector<8x1024xbf16>
    %c0_6 = arith.constant 0 : index
    %c0_7 = arith.constant 0 : index
    %10 = vector.load %arg4[%c0_6, %c0_7] : memref<1024x1024xbf16, #tpu.memory_space<vmem>>, vector<1024x1024xbf16>
    %cst_8 = arith.constant dense<0.000000e+00> : vector<8x1024xf32>
    %11 = tpu.matmul %9, %10, %cst_8 {dimension_numbers = #tpu.dot_dimension_numbers<[1], [0], [0], [1], [0, 0, 1, 1], [], []>} : vector<8x1024xbf16>, vector<1024x1024xbf16>, vector<8x1024xf32> -> vector<8x1024xf32>
    %c0_9 = arith.constant 0 : index
    %c0_10 = arith.constant 0 : index
    %12 = vector.load %arg5[%c0_9, %c0_10] : memref<1x1024xf32, #tpu.memory_space<vmem>>, vector<1x1024xf32>
    %13 = vector.broadcast %12 : vector<1x1024xf32> to vector<8x1024xf32>
    %14 = arith.addf %11, %13 : vector<8x1024xf32>
    %c0_11 = arith.constant 0 : index
    %c0_12 = arith.constant 0 : index
    %15 = vector.load %arg6[%c0_11, %c0_12] : memref<1x1024xf32, #tpu.memory_space<vmem>>, vector<1x1024xf32>
    %c0_13 = arith.constant 0 : index
    %c0_14 = arith.constant 0 : index
    %16 = vector.load %arg7[%c0_13, %c0_14] : memref<1x1024xf32, #tpu.memory_space<vmem>>, vector<1x1024xf32>
    %cst_15 = arith.constant dense<0.000000e+00> : vector<8xf32>
    %17 = vector.multi_reduction <add>, %14, %cst_15 [1] : vector<8x1024xf32> to vector<8xf32>
    %18 = vector.shape_cast %17 : vector<8xf32> to vector<8x1xf32>
    %cst_16 = arith.constant 1.024000e+03 : f32
    %19 = vector.broadcast %cst_16 : f32 to vector<8x1xf32>
    %20 = arith.divf %18, %19 : vector<8x1xf32>
    %21 = vector.broadcast %20 : vector<8x1xf32> to vector<8x1024xf32>
    %22 = arith.subf %14, %21 : vector<8x1024xf32>
    %23 = vector.broadcast %20 : vector<8x1xf32> to vector<8x1024xf32>
    %24 = arith.subf %14, %23 : vector<8x1024xf32>
    %25 = arith.mulf %22, %24 : vector<8x1024xf32>
    %cst_17 = arith.constant dense<0.000000e+00> : vector<8xf32>
    %26 = vector.multi_reduction <add>, %25, %cst_17 [1] : vector<8x1024xf32> to vector<8xf32>
    %27 = vector.shape_cast %26 : vector<8xf32> to vector<8x1xf32>
    %cst_18 = arith.constant 1.024000e+03 : f32
    %28 = vector.broadcast %cst_18 : f32 to vector<8x1xf32>
    %29 = arith.divf %27, %28 : vector<8x1xf32>
    %30 = vector.broadcast %20 : vector<8x1xf32> to vector<8x1024xf32>
    %31 = arith.subf %14, %30 : vector<8x1024xf32>
    %cst_19 = arith.constant 9.99999974E-6 : f32
    %32 = vector.broadcast %cst_19 : f32 to vector<8x1xf32>
    %33 = arith.addf %29, %32 : vector<8x1xf32>
    %34 = math.rsqrt %33 : vector<8x1xf32>
    %35 = vector.broadcast %34 : vector<8x1xf32> to vector<8x1024xf32>
    %36 = arith.mulf %31, %35 : vector<8x1024xf32>
    %37 = vector.broadcast %15 : vector<1x1024xf32> to vector<8x1024xf32>
    %38 = arith.mulf %36, %37 : vector<8x1024xf32>
    %39 = vector.broadcast %16 : vector<1x1024xf32> to vector<8x1024xf32>
    %40 = arith.addf %38, %39 : vector<8x1024xf32>
    %cst_20 = arith.constant 0.000000e+00 : f32
    %41 = vector.broadcast %cst_20 : f32 to vector<8x1024xf32>
    %42 = arith.maximumf %40, %41 : vector<8x1024xf32>
    %43 = arith.truncf %42 : vector<8x1024xf32> to vector<8x1024xbf16>
    %c0_21 = arith.constant 0 : index
    %c0_22 = arith.constant 0 : index
    %44 = vector.load %arg8[%c0_21, %c0_22] : memref<1024x1024xbf16, #tpu.memory_space<vmem>>, vector<1024x1024xbf16>
    %cst_23 = arith.constant dense<0.000000e+00> : vector<8x1024xf32>
    %45 = tpu.matmul %43, %44, %cst_23 {dimension_numbers = #tpu.dot_dimension_numbers<[1], [0], [0], [1], [0, 0, 1, 1], [], []>} : vector<8x1024xbf16>, vector<1024x1024xbf16>, vector<8x1024xf32> -> vector<8x1024xf32>
    %c0_24 = arith.constant 0 : index
    %c0_25 = arith.constant 0 : index
    %46 = vector.load %arg9[%c0_24, %c0_25] : memref<1x1024xf32, #tpu.memory_space<vmem>>, vector<1x1024xf32>
    %47 = vector.broadcast %46 : vector<1x1024xf32> to vector<8x1024xf32>
    %48 = arith.addf %45, %47 : vector<8x1024xf32>
    %c0_26 = arith.constant 0 : index
    %c0_27 = arith.constant 0 : index
    %49 = vector.load %arg10[%c0_26, %c0_27] : memref<1x1024xf32, #tpu.memory_space<vmem>>, vector<1x1024xf32>
    %c0_28 = arith.constant 0 : index
    %c0_29 = arith.constant 0 : index
    %50 = vector.load %arg11[%c0_28, %c0_29] : memref<1x1024xf32, #tpu.memory_space<vmem>>, vector<1x1024xf32>
    %cst_30 = arith.constant dense<0.000000e+00> : vector<8xf32>
    %51 = vector.multi_reduction <add>, %48, %cst_30 [1] : vector<8x1024xf32> to vector<8xf32>
    %52 = vector.shape_cast %51 : vector<8xf32> to vector<8x1xf32>
    %cst_31 = arith.constant 1.024000e+03 : f32
    %53 = vector.broadcast %cst_31 : f32 to vector<8x1xf32>
    %54 = arith.divf %52, %53 : vector<8x1xf32>
    %55 = vector.broadcast %54 : vector<8x1xf32> to vector<8x1024xf32>
    %56 = arith.subf %48, %55 : vector<8x1024xf32>
    %57 = vector.broadcast %54 : vector<8x1xf32> to vector<8x1024xf32>
    %58 = arith.subf %48, %57 : vector<8x1024xf32>
    %59 = arith.mulf %56, %58 : vector<8x1024xf32>
    %cst_32 = arith.constant dense<0.000000e+00> : vector<8xf32>
    %60 = vector.multi_reduction <add>, %59, %cst_32 [1] : vector<8x1024xf32> to vector<8xf32>
    %61 = vector.shape_cast %60 : vector<8xf32> to vector<8x1xf32>
    %cst_33 = arith.constant 1.024000e+03 : f32
    %62 = vector.broadcast %cst_33 : f32 to vector<8x1xf32>
    %63 = arith.divf %61, %62 : vector<8x1xf32>
    %64 = vector.broadcast %54 : vector<8x1xf32> to vector<8x1024xf32>
    %65 = arith.subf %48, %64 : vector<8x1024xf32>
    %cst_34 = arith.constant 9.99999974E-6 : f32
    %66 = vector.broadcast %cst_34 : f32 to vector<8x1xf32>
    %67 = arith.addf %63, %66 : vector<8x1xf32>
    %68 = math.rsqrt %67 : vector<8x1xf32>
    %69 = vector.broadcast %68 : vector<8x1xf32> to vector<8x1024xf32>
    %70 = arith.mulf %65, %69 : vector<8x1024xf32>
    %71 = vector.broadcast %49 : vector<1x1024xf32> to vector<8x1024xf32>
    %72 = arith.mulf %70, %71 : vector<8x1024xf32>
    %73 = vector.broadcast %50 : vector<1x1024xf32> to vector<8x1024xf32>
    %74 = arith.addf %72, %73 : vector<8x1024xf32>
    %75 = arith.addf %8, %74 : vector<8x1024xf32>
    %cst_35 = arith.constant 0.000000e+00 : f32
    %76 = vector.broadcast %cst_35 : f32 to vector<8x1024xf32>
    %77 = arith.maximumf %75, %76 : vector<8x1024xf32>
    %78 = arith.truncf %77 : vector<8x1024xf32> to vector<8x1024xbf16>
    %c0_36 = arith.constant 0 : index
    %c0_37 = arith.constant 0 : index
    %79 = vector.load %arg12[%c0_36, %c0_37] : memref<1024x10xbf16, #tpu.memory_space<vmem>>, vector<1024x10xbf16>
    %cst_38 = arith.constant dense<0.000000e+00> : vector<8x10xf32>
    %80 = tpu.matmul %78, %79, %cst_38 {dimension_numbers = #tpu.dot_dimension_numbers<[1], [0], [0], [1], [0, 0, 1, 1], [], []>} : vector<8x1024xbf16>, vector<1024x10xbf16>, vector<8x10xf32> -> vector<8x10xf32>
    %c0_39 = arith.constant 0 : index
    %c0_40 = arith.constant 0 : index
    %81 = vector.load %arg13[%c0_39, %c0_40] : memref<1x10xf32, #tpu.memory_space<vmem>>, vector<1x10xf32>
    %82 = vector.broadcast %81 : vector<1x10xf32> to vector<8x10xf32>
    %83 = arith.addf %80, %82 : vector<8x10xf32>
    %cst_41 = arith.constant dense<0xFF800000> : vector<8xf32>
    %84 = vector.multi_reduction <maximumf>, %83, %cst_41 [1] : vector<8x10xf32> to vector<8xf32>
    %85 = vector.shape_cast %84 : vector<8xf32> to vector<8x1xf32>
    %86 = vector.broadcast %85 : vector<8x1xf32> to vector<8x10xf32>
    %87 = arith.subf %83, %86 : vector<8x10xf32>
    %88 = math.exp %87 : vector<8x10xf32>
    %cst_42 = arith.constant dense<0.000000e+00> : vector<8xf32>
    %89 = vector.multi_reduction <add>, %88, %cst_42 [1] : vector<8x10xf32> to vector<8xf32>
    %90 = vector.shape_cast %89 : vector<8xf32> to vector<8x1xf32>
    %91 = vector.broadcast %90 : vector<8x1xf32> to vector<8x10xf32>
    %92 = arith.divf %88, %91 : vector<8x10xf32>
    %c0_43 = arith.constant 0 : index
    %c0_44 = arith.constant 0 : index
    %93 = vector.load %arg14[%c0_43, %c0_44] : memref<8x10xf32, #tpu.memory_space<vmem>>, vector<8x10xf32>
    tpu.vector_store %arg14[%c0_43, %c0_44], %92 {strides = array<i32>} : memref<8x10xf32, #tpu.memory_space<vmem>>, vector<8x10xf32>,
    return
  }
  func.func @transform_0(%arg0: i32) -> (i32, i32) {
    %c0_i32 = arith.constant 0 : i32
    %c0_i32_0 = arith.constant 0 : i32
    return %arg0, %c0_i32 : i32, i32
  }
  func.func @transform_1(%arg0: i32) -> (i32, i32) {
    %c0_i32 = arith.constant 0 : i32
    %c0_i32_0 = arith.constant 0 : i32
    %c0_i32_1 = arith.constant 0 : i32
    return %c0_i32, %c0_i32_0 : i32, i32
  }
  func.func @transform_2(%arg0: i32) -> (i32, i32) {
    %c0_i32 = arith.constant 0 : i32
    %c0_i32_0 = arith.constant 0 : i32
    %c0_i32_1 = arith.constant 0 : i32
    return %c0_i32, %c0_i32_0 : i32, i32
  }
  func.func @transform_3(%arg0: i32) -> (i32, i32) {
    %c0_i32 = arith.constant 0 : i32
    %c0_i32_0 = arith.constant 0 : i32
    %c0_i32_1 = arith.constant 0 : i32
    return %c0_i32, %c0_i32_0 : i32, i32
  }
  func.func @transform_4(%arg0: i32) -> (i32, i32) {
    %c0_i32 = arith.constant 0 : i32
    %c0_i32_0 = arith.constant 0 : i32
    %c0_i32_1 = arith.constant 0 : i32
    return %c0_i32, %c0_i32_0 : i32, i32
  }
  func.func @transform_5(%arg0: i32) -> (i32, i32) {
    %c0_i32 = arith.constant 0 : i32
    %c0_i32_0 = arith.constant 0 : i32
    %c0_i32_1 = arith.constant 0 : i32
    return %c0_i32, %c0_i32_0 : i32, i32
  }
  func.func @transform_6(%arg0: i32) -> (i32, i32) {
    %c0_i32 = arith.constant 0 : i32
    %c0_i32_0 = arith.constant 0 : i32
    %c0_i32_1 = arith.constant 0 : i32
    return %c0_i32, %c0_i32_0 : i32, i32
  }
  func.func @transform_7(%arg0: i32) -> (i32, i32) {
    %c0_i32 = arith.constant 0 : i32
    %c0_i32_0 = arith.constant 0 : i32
    %c0_i32_1 = arith.constant 0 : i32
    return %c0_i32, %c0_i32_0 : i32, i32
  }
  func.func @transform_8(%arg0: i32) -> (i32, i32) {
    %c0_i32 = arith.constant 0 : i32
    %c0_i32_0 = arith.constant 0 : i32
    %c0_i32_1 = arith.constant 0 : i32
    return %c0_i32, %c0_i32_0 : i32, i32
  }
  func.func @transform_9(%arg0: i32) -> (i32, i32) {
    %c0_i32 = arith.constant 0 : i32
    %c0_i32_0 = arith.constant 0 : i32
    %c0_i32_1 = arith.constant 0 : i32
    return %c0_i32, %c0_i32_0 : i32, i32
  }
  func.func @transform_10(%arg0: i32) -> (i32, i32) {
    %c0_i32 = arith.constant 0 : i32
    %c0_i32_0 = arith.constant 0 : i32
    %c0_i32_1 = arith.constant 0 : i32
    return %c0_i32, %c0_i32_0 : i32, i32
  }
  func.func @transform_11(%arg0: i32) -> (i32, i32) {
    %c0_i32 = arith.constant 0 : i32
    %c0_i32_0 = arith.constant 0 : i32
    %c0_i32_1 = arith.constant 0 : i32
    return %c0_i32, %c0_i32_0 : i32, i32
  }
  func.func @transform_12(%arg0: i32) -> (i32, i32) {
    %c0_i32 = arith.constant 0 : i32
    %c0_i32_0 = arith.constant 0 : i32
    %c0_i32_1 = arith.constant 0 : i32
    return %c0_i32, %c0_i32_0 : i32, i32
  }
  func.func @transform_13(%arg0: i32) -> (i32, i32) {
    %c0_i32 = arith.constant 0 : i32
    %c0_i32_0 = arith.constant 0 : i32
    return %arg0, %c0_i32 : i32, i32
  }
}

</mosaic_0001>

<llo_original>
// kernel: dropoff_lstm_forward.4
$region0: #{dropoff_lstm_forward.4}
  #allocation0 [shape = 'u32[]', space=smem, size = 0x4, offset = 0x4, fixed_abs, tag = 'smem constant byte address 0x4 - core index']
  #allocation1 [shape = 'u32[72,128]{1,0:T(1,128)}', space=vmem, size = 0x9000, scoped, tag = 'internal scratch']
  #allocation2 [shape = 'f32[1,1]{1,0:T(1,128)S(1)}', space=vmem, size = 0x200, scoped, tag = 'scoped memory for dropoff_lstm_forward.4']
  %s0 = inlined_call_operand.vmem [shape: f32[8,8,32], index: 0, kind: input, shape index: {}]
  %s1 = inlined_call_operand.vmem [shape: s32[8,1], index: 1, kind: input, shape index: {}]
  %s2 = inlined_call_operand.hbm [shape: bf16[32,32], index: 2, kind: input, shape index: {}]
  %s3 = inlined_call_operand.hbm [shape: f32[1,32], index: 3, kind: input, shape index: {}]
  %s4 = inlined_call_operand.hbm [shape: f32[1,32], index: 4, kind: input, shape index: {}]
  %s5 = inlined_call_operand.<no memory space> [shape: f32[1,1], index: 5, kind: input, shape index: {}]
  %s6 = inlined_call_operand.vmem [shape: f32[8,32], index: 6, kind: output, shape index: {}]
  %s7 = sld [smem:[#allocation0]]
  $region46: #{dropoff_lstm_forward.4} parent=0
    _
  %s9 = ssub.s32 1, %s7
  %s10 = scalar_select 0, %s9, %s7
  %v11 = vstv %s5
  %12 = vst [vmem:[#allocation2] sm:$0x1] %v11
  $region1: #{dropoff_lstm_forward.4} parent=0
    #allocation3 [shape = 'u8[8192]{0}', space=vmem, size = 0x2000, scoped, tag = 'input window, operand 2, single buffered']
    #allocation4 [shape = 's32[1]{0}', space=sflag, size = 0x4, scoped, tag = 'scoped memory for dropoff_lstm_forward.4']
    #allocation5 [shape = 'u8[512]{0}', space=vmem, size = 0x400, scoped, tag = 'input window, operand 3, single buffered']
    #allocation6 [shape = 's32[1]{0}', space=sflag, size = 0x4, scoped, tag = 'scoped memory for dropoff_lstm_forward.4']
    #allocation7 [shape = 'u8[512]{0}', space=vmem, size = 0x400, scoped, tag = 'input window, operand 4, single buffered']
    %13 = vsyncpa [#allocation4], 0
    %14 = vsyncpa [#allocation6], 0
    // Predicated region
    $region2: #{dropoff_lstm_forward.4} parent=1 // pred_check
      _
    $region3: #{dropoff_lstm_forward.4} parent=1 // pred_check_branch
      %16 = sbr.rel (0) target = $region5
    $region4: #{dropoff_lstm_forward.4} parent=1 // pred_region
      _
    $region5: #{dropoff_lstm_forward.4} parent=1 // pred_fallthru
      _
    // Predicated region
    $region6: #{dropoff_lstm_forward.4} parent=1 // pred_check
      _
    $region7: #{dropoff_lstm_forward.4} parent=1 // pred_check_branch
      %18 = sbr.rel (0) target = $region9
    $region8: #{dropoff_lstm_forward.4} parent=1 // pred_region
      _
    $region9: #{dropoff_lstm_forward.4} parent=1 // pred_fallthru
      _
    // Predicated region
    $region10: #{dropoff_lstm_forward.4} parent=1 // pred_check
      _
    $region11: #{dropoff_lstm_forward.4} parent=1 // pred_check_branch
      %20 = sbr.rel (0) target = $region13
    $region12: #{dropoff_lstm_forward.4} parent=1 // pred_region
      %22 = vsyncadd [#allocation4], 0
      %s23 = sshll.u32 %s2, 4
      %s24 = int_to_ptr.hbm [resolvable:$true] %s23
      %s25 = sshll.u32 [#allocation3], 4
      %s26 = int_to_ptr.vmem [resolvable:$true] %s25
      %31 = dma.hbm_to_vmem [thread:$0]  %s24, 256, %s26, [#allocation4], 64, 64, 4
    $region13: #{dropoff_lstm_forward.4} parent=1 // pred_fallthru
      _
    // Predicated region
    $region14: #{dropoff_lstm_forward.4} parent=1 // pred_check
      _
    $region15: #{dropoff_lstm_forward.4} parent=1 // pred_check_branch
      %33 = sbr.rel (0) target = $region17
    $region16: #{dropoff_lstm_forward.4} parent=1 // pred_region
      %35 = vsyncadd [#allocation6], 0
      %s37 = sshll.u32 %s3, 4
      %s38 = int_to_ptr.hbm [resolvable:$true] %s37
      %s39 = sshll.u32 [#allocation5], 4
      %s40 = int_to_ptr.vmem [resolvable:$true] %s39
      %42 = dma.hbm_to_vmem [thread:$0]  %s38, 16, %s40, [#allocation6]
    $region17: #{dropoff_lstm_forward.4} parent=1 // pred_fallthru
      _
    // Predicated region
    $region18: #{dropoff_lstm_forward.4} parent=1 // pred_check
      _
    $region19: #{dropoff_lstm_forward.4} parent=1 // pred_check_branch
      %44 = sbr.rel (0) target = $region21
    $region20: #{dropoff_lstm_forward.4} parent=1 // pred_region
      %46 = vsyncadd [#allocation6], 0
      %s48 = sshll.u32 %s4, 4
      %s49 = int_to_ptr.hbm [resolvable:$true] %s48
      %s50 = sshll.u32 [#allocation7], 4
      %s51 = int_to_ptr.vmem [resolvable:$true] %s50
      %53 = dma.hbm_to_vmem [thread:$0]  %s49, 16, %s51, [#allocation6]
    $region21: #{dropoff_lstm_forward.4} parent=1 // pred_fallthru
      _
    // Predicated region
    $region22: #{dropoff_lstm_forward.4} parent=1 // pred_check
      _
    $region23: #{dropoff_lstm_forward.4} parent=1 // pred_check_branch
      %55 = sbr.rel (0) target = $region25
    $region24: #{dropoff_lstm_forward.4} parent=1 // pred_region
      _
    $region25: #{dropoff_lstm_forward.4} parent=1 // pred_fallthru
      _
    // Predicated region
    $region26: #{dropoff_lstm_forward.4} parent=1 // pred_check
      _
    $region27: #{dropoff_lstm_forward.4} parent=1 // pred_check_branch
      %57 = sbr.rel (0) target = $region29
    $region28: #{dropoff_lstm_forward.4} parent=1 // pred_region
      %59 = dma.done [#allocation4], 256
    $region29: #{dropoff_lstm_forward.4} parent=1 // pred_fallthru
      _
    // Predicated region
    $region30: #{dropoff_lstm_forward.4} parent=1 // pred_check
      _
    $region31: #{dropoff_lstm_forward.4} parent=1 // pred_check_branch
      %61 = sbr.rel (0) target = $region33
    $region32: #{dropoff_lstm_forward.4} parent=1 // pred_region
      %63 = dma.done [#allocation6], 16
    $region33: #{dropoff_lstm_forward.4} parent=1 // pred_fallthru
      _
    // Predicated region
    $region34: #{dropoff_lstm_forward.4} parent=1 // pred_check
      _
    $region35: #{dropoff_lstm_forward.4} parent=1 // pred_check_branch
      %65 = sbr.rel (0) target = $region37
    $region36: #{dropoff_lstm_forward.4} parent=1 // pred_region
      %67 = dma.done [#allocation6], 16
    $region37: #{dropoff_lstm_forward.4} parent=1 // pred_fallthru
      _
    %v69 = vld [vmem:[%s0] sm:$0xff]
    %v70 = vld [vmem:[%s0 + $0x8] sm:$0xff]
    %v71 = vld [vmem:[%s0 + $0x10] sm:$0xff]
    %v72 = vld [vmem:[%s0 + $0x18] sm:$0xff]
    %v73 = vld [vmem:[%s0 + $0x20] sm:$0xff]
    %v74 = vld [vmem:[%s0 + $0x28] sm:$0xff]
    %v75 = vld [vmem:[%s0 + $0x30] sm:$0xff]
    %v76 = vld [vmem:[%s0 + $0x38] sm:$0xff]
    %v77 = vpack.c.bf16 %v70, %v69
    %v78 = vpack.c.bf16 %v72, %v71
    %v79 = vpack.c.bf16 %v74, %v73
    %v80 = vpack.c.bf16 %v76, %v75
    %v81 = vld [vmem:[#allocation3] sm:$0xf]
    %v82 = vld [vmem:[#allocation3 + $0x4] sm:$0xf]
    %v83 = vld [vmem:[#allocation3 + $0x8] sm:$0xf]
    %v84 = vld [vmem:[#allocation3 + $0xc] sm:$0xf]
    %v85 = vld [vmem:[#allocation5] sm:$0x1]
    %v87 = vperm.slane %v85, 0
    %v93 = vunpack.c.l.b16 %v81
    %v94 = vunpack.c.l.b16 %v82
    %v95 = vunpack.c.l.b16 %v83
    %v96 = vunpack.c.l.b16 %v84
    %v97 = vpack.c.b16 %v94, %v93
    %v98 = vpack.c.b16 %v96, %v95
    %vm101 = vcmask 261120
    %v103 = vsel %vm101, %v77, 0
    %v106 = vsel %vm101, %v78, 0
    %v109 = vsel %vm101, %v79, 0
    %v112 = vsel %vm101, %v80, 0
    %114 = vmatpush.bf16.msra.mxu0 0
    %115 = vmatpush.bf16.msra.mxu0 0
    %116 = vmatpush.bf16.msra.mxu0 0
    %117 = vmatpush.bf16.msra.mxu0 0
    %118 = vmatpush.bf16.msra.mxu0 0
    %119 = vmatpush.bf16.msra.mxu0 0
    %120 = vmatpush.bf16.msra.mxu0 %v98
    %121 = vmatpush.bf16.msra.mxu0 %v97
    %122 = vmatmul.bf16.gmra.mxu0 %v103
    %v123 = vpop.f32.mrf.mxu0
    %v124 = vadd.f32 %v87, %v123
    %v125 = vpop.f32.mrf.mxu0
    %v126 = vadd.f32 %v87, %v125
    %127 = vmatmul.bf16.gmra.mxu0 %v106
    %v128 = vpop.f32.mrf.mxu0
    %v129 = vadd.f32 %v87, %v128
    %v130 = vpop.f32.mrf.mxu0
    %v131 = vadd.f32 %v87, %v130
    %132 = vmatmul.bf16.gmra.mxu0 %v109
    %v133 = vpop.f32.mrf.mxu0
    %v134 = vadd.f32 %v87, %v133
    %v135 = vpop.f32.mrf.mxu0
    %v136 = vadd.f32 %v87, %v135
    %137 = vmatmul.bf16.gmra.mxu0 %v112
    %v138 = vpop.f32.mrf.mxu0
    %v139 = vadd.f32 %v87, %v138
    %v140 = vpop.f32.mrf.mxu0
    %v141 = vadd.f32 %v87, %v140
    %142 = vdwg.mxu0
    %v143 = vmax.f32 %v124, 0.0
    %v144 = vmax.f32 %v126, 0.0
    %v145 = vmax.f32 %v129, 0.0
    %v146 = vmax.f32 %v131, 0.0
    %v147 = vmax.f32 %v134, 0.0
    %v148 = vmax.f32 %v136, 0.0
    %v149 = vmax.f32 %v139, 0.0
    %v150 = vmax.f32 %v141, 0.0
    %v151 = vld [vmem:[#allocation7] sm:$0x1]
    %v153 = vperm.slane %v151, 0
    %v155 = vmul.f32 %v143, %v153
    %v156 = vmul.f32 %v144, %v153
    %v157 = vmul.f32 %v145, %v153
    %v158 = vmul.f32 %v146, %v153
    %v159 = vmul.f32 %v147, %v153
    %v160 = vmul.f32 %v148, %v153
    %v161 = vmul.f32 %v149, %v153
    %v162 = vmul.f32 %v150, %v153
    %v163 = vsel %vm101, %v155, 0.0
    %164 = vadd.xlane.f32.xlu0 %v163
    %v165 = vpop.xlane.xlu0 %164
    %v166 = vsel %vm101, %v156, 0.0
    %167 = vadd.xlane.f32.xlu0 %v166
    %v168 = vpop.xlane.xlu0 %167
    %v169 = vsel %vm101, %v157, 0.0
    %170 = vadd.xlane.f32.xlu0 %v169
    %v171 = vpop.xlane.xlu0 %170
    %v172 = vsel %vm101, %v158, 0.0
    %173 = vadd.xlane.f32.xlu0 %v172
    %v174 = vpop.xlane.xlu0 %173
    %v175 = vsel %vm101, %v159, 0.0
    %176 = vadd.xlane.f32.xlu0 %v175
    %v177 = vpop.xlane.xlu0 %176
    %v178 = vsel %vm101, %v160, 0.0
    %179 = vadd.xlane.f32.xlu0 %v178
    %v180 = vpop.xlane.xlu0 %179
    %v181 = vsel %vm101, %v161, 0.0
    %182 = vadd.xlane.f32.xlu0 %v181
    %v183 = vpop.xlane.xlu0 %182
    %v184 = vsel %vm101, %v162, 0.0
    %185 = vadd.xlane.f32.xlu0 %v184
    %v186 = vpop.xlane.xlu0 %185
    %v187 = vld [vmem:[#allocation2] sm:$0x1]
    %v189 = vperm.slane %v187, 0
    %190 = vset.pattern.permute.xlu0 0
    %191 = vperm.xlu0 %190, %v189
    %v192 = vpop.permute.xlu0 %191
    %v194 = vadd.f32 %v165, %v192
    %v195 = vadd.f32 %v168, %v192
    %v196 = vadd.f32 %v171, %v192
    %v197 = vadd.f32 %v174, %v192
    %v198 = vadd.f32 %v177, %v192
    %v199 = vadd.f32 %v180, %v192
    %v200 = vadd.f32 %v183, %v192
    %v201 = vadd.f32 %v186, %v192
    %v210 = vlaneseq
    %v211 = vand.u32 %v210, 127
    %v212 = vperm.slane %v194, %v211
    %v213 = vperm.slane %v195, %v211
    %v214 = vperm.slane %v196, %v211
    %v215 = vperm.slane %v197, %v211
    %v216 = vperm.slane %v198, %v211
    %v217 = vperm.slane %v199, %v211
    %v218 = vperm.slane %v200, %v211
    %v219 = vperm.slane %v201, %v211
    %vm220 = vcmask 1041409
    %v221 = vsel %vm220, %v213, %v212
    %vm222 = vcmask 1042434
    %v223 = vsel %vm222, %v214, %v221
    %vm224 = vcmask 1043459
    %v225 = vsel %vm224, %v215, %v223
    %vm226 = vcmask 1044484
    %v227 = vsel %vm226, %v216, %v225
    %vm228 = vcmask 1045509
    %v229 = vsel %vm228, %v217, %v227
    %vm230 = vcmask 1046534
    %v231 = vsel %vm230, %v218, %v229
    %vm232 = vcmask 1047559
    %v233 = vsel %vm232, %v219, %v231
    %235 = vxpose.xlu0.b32.start [1/16] %v233, 128
    %236 = vxpose.xlu0.b32.cont [2/16] 0.0, 128
    %237 = vxpose.xlu0.b32.cont [3/16] 0.0, 128
    %238 = vxpose.xlu0.b32.cont [4/16] 0.0, 128
    %239 = vxpose.xlu0.b32.cont [5/16] 0.0, 128
    %240 = vxpose.xlu0.b32.cont [6/16] 0.0, 128
    %241 = vxpose.xlu0.b32.cont [7/16] 0.0, 128
    %242 = vxpose.xlu0.b32.cont [8/16] 0.0, 128
    %243 = vxpose.xlu0.b32.cont [9/16] 0.0, 128
    %244 = vxpose.xlu0.b32.cont [10/16] 0.0, 128
    %245 = vxpose.xlu0.b32.cont [11/16] 0.0, 128
    %246 = vxpose.xlu0.b32.cont [12/16] 0.0, 128
    %247 = vxpose.xlu0.b32.cont [13/16] 0.0, 128
    %248 = vxpose.xlu0.b32.cont [14/16] 0.0, 128
    %249 = vxpose.xlu0.b32.cont [15/16] 0.0, 128
    %250 = vxpose.xlu0.b32.end [16/16] 0.0, 128
    %v251 = vpop.trf.xlu0
    %v252 = vpop.trf.xlu0
    %v253 = vpop.trf.xlu0
    %v254 = vpop.trf.xlu0
    %v255 = vpop.trf.xlu0
    %v256 = vpop.trf.xlu0
    %v257 = vpop.trf.xlu0
    %v258 = vpop.trf.xlu0
    %v259 = vpop.trf.xlu0
    %v260 = vpop.trf.xlu0
    %v261 = vpop.trf.xlu0
    %v262 = vpop.trf.xlu0
    %v263 = vpop.trf.xlu0
    %v264 = vpop.trf.xlu0
    %v265 = vpop.trf.xlu0
    %v266 = vpop.trf.xlu0
    %v267 = vld [vmem:[%s1] sm:$0xff]
    %268 = vset.pattern.permute.xlu0 0
    %269 = vperm.xlu0 %268, %v267
    %v270 = vpop.permute.xlu0 %269
    %vm271 = vcmp.lt.s32.totalorder %v211, %v270
    %v272 = vsel %vm271, %v251, -inf
    %vm273 = vcmask 64512
    %v274 = vsel %vm273, %v272, -inf
    %275 = vmax.xlane.f32.xlu0 %v274
    %v276 = vpop.xlane.xlu0 %275
    %v277 = vsub.f32 %v272, %v276
    %v278 = vmul.f32 %v277, 1.442695
    %v279 = vpow.pop %v278
    %v280 = vsel %vm273, %v279, 0.0
    %281 = vadd.xlane.f32.xlu0 %v280
    %v282 = vpop.xlane.xlu0 %281
    %v283 = vrcp.pop %v282
    %v284 = vmul.f32 %v279, %v283
    %285 = vxpose.xlu0.b32.start [1/16] %v284, 128
    %286 = vxpose.xlu0.b32.cont [2/16] 0.0, 128
    %287 = vxpose.xlu0.b32.cont [3/16] 0.0, 128
    %288 = vxpose.xlu0.b32.cont [4/16] 0.0, 128
    %289 = vxpose.xlu0.b32.cont [5/16] 0.0, 128
    %290 = vxpose.xlu0.b32.cont [6/16] 0.0, 128
    %291 = vxpose.xlu0.b32.cont [7/16] 0.0, 128
    %292 = vxpose.xlu0.b32.cont [8/16] 0.0, 128
    %293 = vxpose.xlu0.b32.cont [9/16] 0.0, 128
    %294 = vxpose.xlu0.b32.cont [10/16] 0.0, 128
    %295 = vxpose.xlu0.b32.cont [11/16] 0.0, 128
    %296 = vxpose.xlu0.b32.cont [12/16] 0.0, 128
    %297 = vxpose.xlu0.b32.cont [13/16] 0.0, 128
    %298 = vxpose.xlu0.b32.cont [14/16] 0.0, 128
    %299 = vxpose.xlu0.b32.cont [15/16] 0.0, 128
    %300 = vxpose.xlu0.b32.end [16/16] 0.0, 128
    %v301 = vpop.trf.xlu0
    %v302 = vpop.trf.xlu0
    %v303 = vpop.trf.xlu0
    %v304 = vpop.trf.xlu0
    %v305 = vpop.trf.xlu0
    %v306 = vpop.trf.xlu0
    %v307 = vpop.trf.xlu0
    %v308 = vpop.trf.xlu0
    %v309 = vpop.trf.xlu0
    %v310 = vpop.trf.xlu0
    %v311 = vpop.trf.xlu0
    %v312 = vpop.trf.xlu0
    %v313 = vpop.trf.xlu0
    %v314 = vpop.trf.xlu0
    %v315 = vpop.trf.xlu0
    %v316 = vpop.trf.xlu0
    %v317 = vperm.slane %v301, 0
    %v318 = vlaneseq
    %v319 = vshrl.u32 %v318, 7
    %321 = vset.pattern.permute.xlu0 %v319
    %322 = vperm.xlu0 %321, %v317
    %v323 = vpop.permute.xlu0 %322
    %v324 = vperm.slane %v301, 1
    %v325 = vlaneseq
    %v326 = vshrl.u32 %v325, 7
    %328 = vset.pattern.permute.xlu0 %v326
    %329 = vperm.xlu0 %328, %v324
    %v330 = vpop.permute.xlu0 %329
    %v331 = vperm.slane %v301, 2
    %v332 = vlaneseq
    %v333 = vshrl.u32 %v332, 7
    %335 = vset.pattern.permute.xlu0 %v333
    %336 = vperm.xlu0 %335, %v331
    %v337 = vpop.permute.xlu0 %336
    %v338 = vperm.slane %v301, 3
    %v339 = vlaneseq
    %v340 = vshrl.u32 %v339, 7
    %342 = vset.pattern.permute.xlu0 %v340
    %343 = vperm.xlu0 %342, %v338
    %v344 = vpop.permute.xlu0 %343
    %v345 = vperm.slane %v301, 4
    %v346 = vlaneseq
    %v347 = vshrl.u32 %v346, 7
    %349 = vset.pattern.permute.xlu0 %v347
    %350 = vperm.xlu0 %349, %v345
    %v351 = vpop.permute.xlu0 %350
    %v352 = vperm.slane %v301, 5
    %v353 = vlaneseq
    %v354 = vshrl.u32 %v353, 7
    %356 = vset.pattern.permute.xlu0 %v354
    %357 = vperm.xlu0 %356, %v352
    %v358 = vpop.permute.xlu0 %357
    %v359 = vperm.slane %v301, 6
    %v360 = vlaneseq
    %v361 = vshrl.u32 %v360, 7
    %363 = vset.pattern.permute.xlu0 %v361
    %364 = vperm.xlu0 %363, %v359
    %v365 = vpop.permute.xlu0 %364
    %v366 = vperm.slane %v301, 7
    %v367 = vlaneseq
    %v368 = vshrl.u32 %v367, 7
    %370 = vset.pattern.permute.xlu0 %v368
    %371 = vperm.xlu0 %370, %v366
    %v372 = vpop.permute.xlu0 %371
    %v373 = vmul.f32 %v69, %v323
    %v374 = vmul.f32 %v70, %v330
    %v375 = vmul.f32 %v71, %v337
    %v376 = vmul.f32 %v72, %v344
    %v377 = vmul.f32 %v73, %v351
    %v378 = vmul.f32 %v74, %v358
    %v379 = vmul.f32 %v75, %v365
    %v380 = vmul.f32 %v76, %v372
    %v381 = vsel %vm101, %v373, 0.0
    %v382 = vsel %vm101, %v374, 0.0
    %v383 = vadd.f32 %v381, %v382
    %v384 = vsel %vm101, %v375, 0.0
    %v385 = vadd.f32 %v383, %v384
    %v386 = vsel %vm101, %v376, 0.0
    %v387 = vadd.f32 %v385, %v386
    %v388 = vsel %vm101, %v377, 0.0
    %v389 = vadd.f32 %v387, %v388
    %v390 = vsel %vm101, %v378, 0.0
    %v391 = vadd.f32 %v389, %v390
    %v392 = vsel %vm101, %v379, 0.0
    %v393 = vadd.f32 %v391, %v392
    %v394 = vsel %vm101, %v380, 0.0
    %v395 = vadd.f32 %v393, %v394
    %396 = vst.msk [vmem:[%s6] sm:$0xff] %vm101, %v395
    // Predicated region
    $region38: #{dropoff_lstm_forward.4} parent=1 // pred_check
      _
    $region39: #{dropoff_lstm_forward.4} parent=1 // pred_check_branch
      %398 = sbr.rel (0) target = $region41
    $region40: #{dropoff_lstm_forward.4} parent=1 // pred_region
      _
    $region41: #{dropoff_lstm_forward.4} parent=1 // pred_fallthru
      _
    // Predicated region
    $region42: #{dropoff_lstm_forward.4} parent=1 // pred_check
      _
    $region43: #{dropoff_lstm_forward.4} parent=1 // pred_check_branch
      %400 = sbr.rel (0) target = $region45
    $region44: #{dropoff_lstm_forward.4} parent=1 // pred_region
      _
    $region45: #{dropoff_lstm_forward.4} parent=1 // pred_fallthru
      _
    %401 = vsyncpa [#allocation4], 1
    %402 = vsyncpa [#allocation6], 1

// kernel: dropoff_lstm_forward.3
$region0: #{dropoff_lstm_forward.3}
  #allocation0 [shape = 'u32[]', space=smem, size = 0x4, offset = 0x4, fixed_abs, tag = 'smem constant byte address 0x4 - core index']
  #allocation1 [shape = 'u32[72,128]{1,0:T(1,128)}', space=vmem, size = 0x9000, scoped, tag = 'internal scratch']
  #allocation2 [shape = 'f32[8,8,128]{2,1,0:T(8,128)}', space=vmem, size = 0x8000, scoped, tag = 'scratch operand']
  #allocation3 [shape = 'f32[8,8,32]{2,1,0:T(8,128)}', space=vmem, size = 0x8000, scoped, tag = 'scratch operand']
  %s0 = inlined_call_operand.vmem [shape: f32[8,8,4], index: 0, kind: input, shape index: {}]
  %s1 = inlined_call_operand.hbm [shape: bf16[4,128], index: 1, kind: input, shape index: {}]
  %s2 = inlined_call_operand.hbm [shape: bf16[32,128], index: 2, kind: input, shape index: {}]
  %s3 = inlined_call_operand.hbm [shape: f32[1,128], index: 3, kind: input, shape index: {}]
  %s4 = inlined_call_operand.hbm [shape: bf16[32,128], index: 4, kind: input, shape index: {}]
  %s5 = inlined_call_operand.hbm [shape: bf16[32,128], index: 5, kind: input, shape index: {}]
  %s6 = inlined_call_operand.hbm [shape: f32[1,128], index: 6, kind: input, shape index: {}]
  %s7 = inlined_call_operand.vmem [shape: f32[8,8,32], index: 7, kind: output, shape index: {}]
  %s8 = sld [smem:[#allocation0]]
  $region62: #{dropoff_lstm_forward.3} parent=0
    _
  %s10 = ssub.s32 1, %s8
  %s11 = scalar_select 0, %s10, %s8
  $region1: #{dropoff_lstm_forward.3} parent=0
    #allocation4 [shape = 'u8[1024]{0}', space=vmem, size = 0x400, scoped, tag = 'input window, operand 1, single buffered']
    #allocation5 [shape = 's32[1]{0}', space=sflag, size = 0x4, scoped, tag = 'scoped memory for dropoff_lstm_forward.3']
    #allocation6 [shape = 'u8[8192]{0}', space=vmem, size = 0x2000, scoped, tag = 'input window, operand 2, single buffered']
    #allocation7 [shape = 's32[1]{0}', space=sflag, size = 0x4, scoped, tag = 'scoped memory for dropoff_lstm_forward.3']
    #allocation8 [shape = 'u8[512]{0}', space=vmem, size = 0x400, scoped, tag = 'input window, operand 3, single buffered']
    #allocation9 [shape = 'u8[8192]{0}', space=vmem, size = 0x2000, scoped, tag = 'input window, operand 4, single buffered']
    #allocation10 [shape = 's32[1]{0}', space=sflag, size = 0x4, scoped, tag = 'scoped memory for dropoff_lstm_forward.3']
    #allocation11 [shape = 'u8[8192]{0}', space=vmem, size = 0x2000, scoped, tag = 'input window, operand 5, single buffered']
    #allocation12 [shape = 'u8[512]{0}', space=vmem, size = 0x400, scoped, tag = 'input window, operand 6, single buffered']
    #allocation13 [shape = 's32[1]{0}', space=sflag, size = 0x4, scoped, tag = 'scoped memory for dropoff_lstm_forward.3']
    %12 = vsyncpa [#allocation5], 0
    %13 = vsyncpa [#allocation7], 0
    %14 = vsyncpa [#allocation10], 0
    %15 = vsyncpa [#allocation13], 0
    // Predicated region
    $region2: #{dropoff_lstm_forward.3} parent=1 // pred_check
      _
    $region3: #{dropoff_lstm_forward.3} parent=1 // pred_check_branch
      %17 = sbr.rel (0) target = $region5
    $region4: #{dropoff_lstm_forward.3} parent=1 // pred_region
      _
    $region5: #{dropoff_lstm_forward.3} parent=1 // pred_fallthru
      _
    // Predicated region
    $region6: #{dropoff_lstm_forward.3} parent=1 // pred_check
      _
    $region7: #{dropoff_lstm_forward.3} parent=1 // pred_check_branch
      %19 = sbr.rel (0) target = $region9
    $region8: #{dropoff_lstm_forward.3} parent=1 // pred_region
      %21 = vsyncadd [#allocation5], 0
      %s23 = sshll.u32 %s1, 4
      %s24 = int_to_ptr.hbm [resolvable:$true] %s23
      %s25 = sshll.u32 [#allocation4], 4
      %s26 = int_to_ptr.vmem [resolvable:$true] %s25
      %28 = dma.hbm_to_vmem [thread:$0]  %s24, 32, %s26, [#allocation5]
    $region9: #{dropoff_lstm_forward.3} parent=1 // pred_fallthru
      _
    // Predicated region
    $region10: #{dropoff_lstm_forward.3} parent=1 // pred_check
      _
    $region11: #{dropoff_lstm_forward.3} parent=1 // pred_check_branch
      %30 = sbr.rel (0) target = $region13
    $region12: #{dropoff_lstm_forward.3} parent=1 // pred_region
      %32 = vsyncadd [#allocation7], 0
      %s33 = sshll.u32 %s2, 4
      %s34 = int_to_ptr.hbm [resolvable:$true] %s33
      %s35 = sshll.u32 [#allocation6], 4
      %s36 = int_to_ptr.vmem [resolvable:$true] %s35
      %41 = dma.hbm_to_vmem [thread:$0]  %s34, 256, %s36, [#allocation7], 64, 64, 4
    $region13: #{dropoff_lstm_forward.3} parent=1 // pred_fallthru
      _
    // Predicated region
    $region14: #{dropoff_lstm_forward.3} parent=1 // pred_check
      _
    $region15: #{dropoff_lstm_forward.3} parent=1 // pred_check_branch
      %43 = sbr.rel (0) target = $region17
    $region16: #{dropoff_lstm_forward.3} parent=1 // pred_region
      %45 = vsyncadd [#allocation7], 0
      %s47 = sshll.u32 %s3, 4
      %s48 = int_to_ptr.hbm [resolvable:$true] %s47
      %s49 = sshll.u32 [#allocation8], 4
      %s50 = int_to_ptr.vmem [resolvable:$true] %s49
      %52 = dma.hbm_to_vmem [thread:$0]  %s48, 16, %s50, [#allocation7]
    $region17: #{dropoff_lstm_forward.3} parent=1 // pred_fallthru
      _
    // Predicated region
    $region18: #{dropoff_lstm_forward.3} parent=1 // pred_check
      _
    $region19: #{dropoff_lstm_forward.3} parent=1 // pred_check_branch
      %54 = sbr.rel (0) target = $region21
    $region20: #{dropoff_lstm_forward.3} parent=1 // pred_region
      %56 = vsyncadd [#allocation10], 0
      %s57 = sshll.u32 %s4, 4
      %s58 = int_to_ptr.hbm [resolvable:$true] %s57
      %s59 = sshll.u32 [#allocation9], 4
      %s60 = int_to_ptr.vmem [resolvable:$true] %s59
      %65 = dma.hbm_to_vmem [thread:$0]  %s58, 256, %s60, [#allocation10], 64, 64, 4
    $region21: #{dropoff_lstm_forward.3} parent=1 // pred_fallthru
      _
    // Predicated region
    $region22: #{dropoff_lstm_forward.3} parent=1 // pred_check
      _
    $region23: #{dropoff_lstm_forward.3} parent=1 // pred_check_branch
      %67 = sbr.rel (0) target = $region25
    $region24: #{dropoff_lstm_forward.3} parent=1 // pred_region
      %69 = vsyncadd [#allocation10], 0
      %s70 = sshll.u32 %s5, 4
      %s71 = int_to_ptr.hbm [resolvable:$true] %s70
      %s72 = sshll.u32 [#allocation11], 4
      %s73 = int_to_ptr.vmem [resolvable:$true] %s72
      %78 = dma.hbm_to_vmem [thread:$0]  %s71, 256, %s73, [#allocation10], 64, 64, 4
    $region25: #{dropoff_lstm_forward.3} parent=1 // pred_fallthru
      _
    // Predicated region
    $region26: #{dropoff_lstm_forward.3} parent=1 // pred_check
      _
    $region27: #{dropoff_lstm_forward.3} parent=1 // pred_check_branch
      %80 = sbr.rel (0) target = $region29
    $region28: #{dropoff_lstm_forward.3} parent=1 // pred_region
      %82 = vsyncadd [#allocation13], 0
      %s84 = sshll.u32 %s6, 4
      %s85 = int_to_ptr.hbm [resolvable:$true] %s84
      %s86 = sshll.u32 [#allocation12], 4
      %s87 = int_to_ptr.vmem [resolvable:$true] %s86
      %89 = dma.hbm_to_vmem [thread:$0]  %s85, 16, %s87, [#allocation13]
    $region29: #{dropoff_lstm_forward.3} parent=1 // pred_fallthru
      _
    // Predicated region
    $region30: #{dropoff_lstm_forward.3} parent=1 // pred_check
      _
    $region31: #{dropoff_lstm_forward.3} parent=1 // pred_check_branch
      %91 = sbr.rel (0) target = $region33
    $region32: #{dropoff_lstm_forward.3} parent=1 // pred_region
      %93 = dma.done [#allocation5], 32
    $region33: #{dropoff_lstm_forward.3} parent=1 // pred_fallthru
      _
    // Predicated region
    $region34: #{dropoff_lstm_forward.3} parent=1 // pred_check
      _
    $region35: #{dropoff_lstm_forward.3} parent=1 // pred_check_branch
      %95 = sbr.rel (0) target = $region37
    $region36: #{dropoff_lstm_forward.3} parent=1 // pred_region
      %97 = dma.done [#allocation7], 256
    $region37: #{dropoff_lstm_forward.3} parent=1 // pred_fallthru
      _
    // Predicated region
    $region38: #{dropoff_lstm_forward.3} parent=1 // pred_check
      _
    $region39: #{dropoff_lstm_forward.3} parent=1 // pred_check_branch
      %99 = sbr.rel (0) target = $region41
    $region40: #{dropoff_lstm_forward.3} parent=1 // pred_region
      %101 = dma.done [#allocation7], 16
    $region41: #{dropoff_lstm_forward.3} parent=1 // pred_fallthru
      _
    // Predicated region
    $region42: #{dropoff_lstm_forward.3} parent=1 // pred_check
      _
    $region43: #{dropoff_lstm_forward.3} parent=1 // pred_check_branch
      %103 = sbr.rel (0) target = $region45
    $region44: #{dropoff_lstm_forward.3} parent=1 // pred_region
      %105 = dma.done [#allocation10], 256
    $region45: #{dropoff_lstm_forward.3} parent=1 // pred_fallthru
      _
    // Predicated region
    $region46: #{dropoff_lstm_forward.3} parent=1 // pred_check
      _
    $region47: #{dropoff_lstm_forward.3} parent=1 // pred_check_branch
      %107 = sbr.rel (0) target = $region49
    $region48: #{dropoff_lstm_forward.3} parent=1 // pred_region
      %109 = dma.done [#allocation10], 256
    $region49: #{dropoff_lstm_forward.3} parent=1 // pred_fallthru
      _
    // Predicated region
    $region50: #{dropoff_lstm_forward.3} parent=1 // pred_check
      _
    $region51: #{dropoff_lstm_forward.3} parent=1 // pred_check_branch
      %111 = sbr.rel (0) target = $region53
    $region52: #{dropoff_lstm_forward.3} parent=1 // pred_region
      %113 = dma.done [#allocation13], 16
    $region53: #{dropoff_lstm_forward.3} parent=1 // pred_fallthru
      _
    %v115 = vld [vmem:[#allocation4] sm:$0x3]
    %v116 = vld [vmem:[#allocation6] sm:$0xf]
    %v117 = vld [vmem:[#allocation6 + $0x4] sm:$0xf]
    %v118 = vld [vmem:[#allocation6 + $0x8] sm:$0xf]
    %v119 = vld [vmem:[#allocation6 + $0xc] sm:$0xf]
    %v120 = vld [vmem:[#allocation8] sm:$0x1]
    %v121 = vld [vmem:[%s0] sm:$0xff]
    %v122 = vld [vmem:[%s0 + $0x8] sm:$0xff]
    %v123 = vld [vmem:[%s0 + $0x10] sm:$0xff]
    %v124 = vld [vmem:[%s0 + $0x18] sm:$0xff]
    %v125 = vld [vmem:[%s0 + $0x20] sm:$0xff]
    %v126 = vld [vmem:[%s0 + $0x28] sm:$0xff]
    %v127 = vld [vmem:[%s0 + $0x30] sm:$0xff]
    %v128 = vld [vmem:[%s0 + $0x38] sm:$0xff]
    %v129 = vpack.c.bf16 %v122, %v121
    %v130 = vpack.c.bf16 %v124, %v123
    %v131 = vpack.c.bf16 %v126, %v125
    %v132 = vpack.c.bf16 %v128, %v127
    %v134 = vperm.slane %v120, 0
    %vm136 = vcmask 31744
    %v138 = vsel %vm136, %v129, 0
    %v141 = vsel %vm136, %v130, 0
    %v144 = vsel %vm136, %v131, 0
    %v147 = vsel %vm136, %v132, 0
    %vm149 = vcmask 1041408
    %v151 = vsel %vm149, %v115, 0
    %153 = vmatpush.bf16.msra.mxu0 0
    %154 = vmatpush.bf16.msra.mxu0 0
    %155 = vmatpush.bf16.msra.mxu0 0
    %156 = vmatpush.bf16.msra.mxu0 0
    %157 = vmatpush.bf16.msra.mxu0 0
    %158 = vmatpush.bf16.msra.mxu0 0
    %159 = vmatpush.bf16.msra.mxu0 0
    %160 = vmatpush.bf16.msra.mxu0 %v151
    %161 = vmatmul.bf16.gmra.mxu0 %v138
    %v162 = vpop.f32.mrf.mxu0
    %v163 = vadd.f32 %v134, %v162
    %v164 = vpop.f32.mrf.mxu0
    %v165 = vadd.f32 %v134, %v164
    %166 = vmatmul.bf16.gmra.mxu0 %v141
    %v167 = vpop.f32.mrf.mxu0
    %v168 = vadd.f32 %v134, %v167
    %v169 = vpop.f32.mrf.mxu0
    %v170 = vadd.f32 %v134, %v169
    %171 = vmatmul.bf16.gmra.mxu0 %v144
    %v172 = vpop.f32.mrf.mxu0
    %v173 = vadd.f32 %v134, %v172
    %v174 = vpop.f32.mrf.mxu0
    %v175 = vadd.f32 %v134, %v174
    %176 = vmatmul.bf16.gmra.mxu0 %v147
    %v177 = vpop.f32.mrf.mxu0
    %v178 = vadd.f32 %v134, %v177
    %v179 = vpop.f32.mrf.mxu0
    %v180 = vadd.f32 %v134, %v179
    %181 = vdwg.mxu0
    %182 = vst [vmem:[#allocation2] sm:$0xff] %v163
    %183 = vst [vmem:[#allocation2 + $0x8] sm:$0xff] %v165
    %184 = vst [vmem:[#allocation2 + $0x10] sm:$0xff] %v168
    %185 = vst [vmem:[#allocation2 + $0x18] sm:$0xff] %v170
    %186 = vst [vmem:[#allocation2 + $0x20] sm:$0xff] %v173
    %187 = vst [vmem:[#allocation2 + $0x28] sm:$0xff] %v175
    %188 = vst [vmem:[#allocation2 + $0x30] sm:$0xff] %v178
    %189 = vst [vmem:[#allocation2 + $0x38] sm:$0xff] %v180
    %v190 = vld [vmem:[#allocation2] sm:$0xff]
    %v195 = vunpack.c.l.b16 %v116
    %v196 = vunpack.c.l.b16 %v117
    %v197 = vunpack.c.l.b16 %v118
    %v198 = vunpack.c.l.b16 %v119
    %v199 = vpack.c.b16 %v196, %v195
    %v200 = vpack.c.b16 %v198, %v197
    %vm203 = vcmask 261120
    %v205 = vsel %vm203, 0, 0
    %207 = vmatpush.bf16.msra.mxu0 0
    %208 = vmatpush.bf16.msra.mxu0 0
    %209 = vmatpush.bf16.msra.mxu0 0
    %210 = vmatpush.bf16.msra.mxu0 0
    %211 = vmatpush.bf16.msra.mxu0 0
    %212 = vmatpush.bf16.msra.mxu0 0
    %213 = vmatpush.bf16.msra.mxu0 %v200
    %214 = vmatpush.bf16.msra.mxu0 %v199
    %215 = vmatmul.bf16.gmra.mxu0 %v205
    %v216 = vpop.f32.mrf.mxu0
    %v217 = vadd.f32 0.0, %v216
    %v218 = vpop.f32.mrf.mxu0
    %219 = vdwg.mxu0
    %v220 = vadd.f32 %v190, %v217
    %v221 = vxor.u32 %v220, 2147483648
    %v222 = vmul.f32 %v221, 1.442695
    %v223 = vpow.pop %v222
    %v224 = vadd.f32 %v223, 1.0
    %v225 = vrcp.pop %v224
    %v226 = vmul.f32 %v224, %v225
    %v227 = vsub.f32 1.0, %v226
    %v228 = vmul.f32 %v225, %v227
    %v229 = vadd.f32 %v225, %v228
    %vm230 = vweird.f32 %v224
    %vm231 = vweird.f32 %v225
    %vm232 = vmor %vm230, %vm231
    %v233 = vsel %vm232, %v225, %v229
    %v234 = vand.u32 2147483647, %v224
    %vm235 = vcmp.eq.f32.partialorder %v234, 8.507059e+37
    %v236 = vand.u32 %v224, 2147483648
    %v237 = vor.u32 1.1754944e-38, %v236
    %v238 = vsel %vm235, %v237, %v233
    %v239 = vmul.f32 1.0, %v238
    %v240 = vtanh.pop %v220
    %v241 = vmul.f32 %v239, 0.0
    %243 = vrot.lane.b32.xlu0 %v240, 64
    %v244 = vpop.permute.xlu0 %243
    %v246 = vmul.f32 %v239, %v244
    %248 = vrot.lane.b32.xlu0 %v246, 32
    %v249 = vpop.permute.xlu0 %248
    %v251 = vadd.f32 %v241, %v249
    %v252 = vtanh.pop %v251
    %254 = vrot.lane.b32.xlu0 %v252, 64
    %v255 = vpop.permute.xlu0 %254
    %v257 = vmul.f32 %v239, %v255
    %259 = vrot.lane.b32.xlu0 %v257, 32
    %v260 = vpop.permute.xlu0 %259
    %262 = vst.msk [vmem:[#allocation3] sm:$0xff] %vm203, %v260
    %s263 = scalar_lea.vmem [#allocation2], 8
    %v264 = vld [vmem:[%s263] sm:$0xff]
    %v265 = vpack.c.bf16 %v257, %v257
    %267 = vrot.lane.b32.xlu0 %v265, 32
    %v268 = vpop.permute.xlu0 %267
    %v270 = vsel %vm203, %v268, 0
    %272 = vmatpush.bf16.msra.mxu0 0
    %273 = vmatpush.bf16.msra.mxu0 0
    %274 = vmatpush.bf16.msra.mxu0 0
    %275 = vmatpush.bf16.msra.mxu0 0
    %276 = vmatpush.bf16.msra.mxu0 0
    %277 = vmatpush.bf16.msra.mxu0 0
    %278 = vmatpush.bf16.msra.mxu0 %v200
    %279 = vmatpush.bf16.msra.mxu0 %v199
    %280 = vmatmul.bf16.gmra.mxu0 %v270
    %v281 = vpop.f32.mrf.mxu0
    %v282 = vadd.f32 0.0, %v281
    %v283 = vpop.f32.mrf.mxu0
    %284 = vdwg.mxu0
    %v285 = vadd.f32 %v264, %v282
    %v286 = vxor.u32 %v285, 2147483648
    %v287 = vmul.f32 %v286, 1.442695
    %v288 = vpow.pop %v287
    %v289 = vadd.f32 %v288, 1.0
    %v290 = vrcp.pop %v289
    %v291 = vmul.f32 %v289, %v290
    %v292 = vsub.f32 1.0, %v291
    %v293 = vmul.f32 %v290, %v292
    %v294 = vadd.f32 %v290, %v293
    %vm295 = vweird.f32 %v289
    %vm296 = vweird.f32 %v290
    %vm297 = vmor %vm295, %vm296
    %v298 = vsel %vm297, %v290, %v294
    %v299 = vand.u32 2147483647, %v289
    %vm300 = vcmp.eq.f32.partialorder %v299, 8.507059e+37
    %v301 = vand.u32 %v289, 2147483648
    %v302 = vor.u32 1.1754944e-38, %v301
    %v303 = vsel %vm300, %v302, %v298
    %v304 = vmul.f32 1.0, %v303
    %v305 = vtanh.pop %v285
    %v306 = vmul.f32 %v304, %v251
    %308 = vrot.lane.b32.xlu0 %v305, 64
    %v309 = vpop.permute.xlu0 %308
    %v311 = vmul.f32 %v304, %v309
    %313 = vrot.lane.b32.xlu0 %v311, 32
    %v314 = vpop.permute.xlu0 %313
    %v316 = vadd.f32 %v306, %v314
    %v317 = vtanh.pop %v316
    %319 = vrot.lane.b32.xlu0 %v317, 64
    %v320 = vpop.permute.xlu0 %319
    %v322 = vmul.f32 %v304, %v320
    %324 = vrot.lane.b32.xlu0 %v322, 32
    %v325 = vpop.permute.xlu0 %324
    %s327 = scalar_lea.vmem [#allocation3], 8
    %328 = vst.msk [vmem:[%s327] sm:$0xff] %vm203, %v325
    %s329 = scalar_lea.vmem [#allocation2], 16
    %v330 = vld [vmem:[%s329] sm:$0xff]
    %v331 = vpack.c.bf16 %v322, %v322
    %333 = vrot.lane.b32.xlu0 %v331, 32
    %v334 = vpop.permute.xlu0 %333
    %v336 = vsel %vm203, %v334, 0
    %338 = vmatpush.bf16.msra.mxu0 0
    %339 = vmatpush.bf16.msra.mxu0 0
    %340 = vmatpush.bf16.msra.mxu0 0
    %341 = vmatpush.bf16.msra.mxu0 0
    %342 = vmatpush.bf16.msra.mxu0 0
    %343 = vmatpush.bf16.msra.mxu0 0
    %344 = vmatpush.bf16.msra.mxu0 %v200
    %345 = vmatpush.bf16.msra.mxu0 %v199
    %346 = vmatmul.bf16.gmra.mxu0 %v336
    %v347 = vpop.f32.mrf.mxu0
    %v348 = vadd.f32 0.0, %v347
    %v349 = vpop.f32.mrf.mxu0
    %350 = vdwg.mxu0
    %v351 = vadd.f32 %v330, %v348
    %v352 = vxor.u32 %v351, 2147483648
    %v353 = vmul.f32 %v352, 1.442695
    %v354 = vpow.pop %v353
    %v355 = vadd.f32 %v354, 1.0
    %v356 = vrcp.pop %v355
    %v357 = vmul.f32 %v355, %v356
    %v358 = vsub.f32 1.0, %v357
    %v359 = vmul.f32 %v356, %v358
    %v360 = vadd.f32 %v356, %v359
    %vm361 = vweird.f32 %v355
    %vm362 = vweird.f32 %v356
    %vm363 = vmor %vm361, %vm362
    %v364 = vsel %vm363, %v356, %v360
    %v365 = vand.u32 2147483647, %v355
    %vm366 = vcmp.eq.f32.partialorder %v365, 8.507059e+37
    %v367 = vand.u32 %v355, 2147483648
    %v368 = vor.u32 1.1754944e-38, %v367
    %v369 = vsel %vm366, %v368, %v364
    %v370 = vmul.f32 1.0, %v369
    %v371 = vtanh.pop %v351
    %v372 = vmul.f32 %v370, %v316
    %374 = vrot.lane.b32.xlu0 %v371, 64
    %v375 = vpop.permute.xlu0 %374
    %v377 = vmul.f32 %v370, %v375
    %379 = vrot.lane.b32.xlu0 %v377, 32
    %v380 = vpop.permute.xlu0 %379
    %v382 = vadd.f32 %v372, %v380
    %v383 = vtanh.pop %v382
    %385 = vrot.lane.b32.xlu0 %v383, 64
    %v386 = vpop.permute.xlu0 %385
    %v388 = vmul.f32 %v370, %v386
    %390 = vrot.lane.b32.xlu0 %v388, 32
    %v391 = vpop.permute.xlu0 %390
    %s393 = scalar_lea.vmem [#allocation3], 16
    %394 = vst.msk [vmem:[%s393] sm:$0xff] %vm203, %v391
    %s395 = scalar_lea.vmem [#allocation2], 24
    %v396 = vld [vmem:[%s395] sm:$0xff]
    %v397 = vpack.c.bf16 %v388, %v388
    %399 = vrot.lane.b32.xlu0 %v397, 32
    %v400 = vpop.permute.xlu0 %399
    %v402 = vsel %vm203, %v400, 0
    %404 = vmatpush.bf16.msra.mxu0 0
    %405 = vmatpush.bf16.msra.mxu0 0
    %406 = vmatpush.bf16.msra.mxu0 0
    %407 = vmatpush.bf16.msra.mxu0 0
    %408 = vmatpush.bf16.msra.mxu0 0
    %409 = vmatpush.bf16.msra.mxu0 0
    %410 = vmatpush.bf16.msra.mxu0 %v200
    %411 = vmatpush.bf16.msra.mxu0 %v199
    %412 = vmatmul.bf16.gmra.mxu0 %v402
    %v413 = vpop.f32.mrf.mxu0
    %v414 = vadd.f32 0.0, %v413
    %v415 = vpop.f32.mrf.mxu0
    %416 = vdwg.mxu0
    %v417 = vadd.f32 %v396, %v414
    %v418 = vxor.u32 %v417, 2147483648
    %v419 = vmul.f32 %v418, 1.442695
    %v420 = vpow.pop %v419
    %v421 = vadd.f32 %v420, 1.0
    %v422 = vrcp.pop %v421
    %v423 = vmul.f32 %v421, %v422
    %v424 = vsub.f32 1.0, %v423
    %v425 = vmul.f32 %v422, %v424
    %v426 = vadd.f32 %v422, %v425
    %vm427 = vweird.f32 %v421
    %vm428 = vweird.f32 %v422
    %vm429 = vmor %vm427, %vm428
    %v430 = vsel %vm429, %v422, %v426
    %v431 = vand.u32 2147483647, %v421
    %vm432 = vcmp.eq.f32.partialorder %v431, 8.507059e+37
    %v433 = vand.u32 %v421, 2147483648
    %v434 = vor.u32 1.1754944e-38, %v433
    %v435 = vsel %vm432, %v434, %v430
    %v436 = vmul.f32 1.0, %v435
    %v437 = vtanh.pop %v417
    %v438 = vmul.f32 %v436, %v382
    %440 = vrot.lane.b32.xlu0 %v437, 64
    %v441 = vpop.permute.xlu0 %440
    %v443 = vmul.f32 %v436, %v441
    %445 = vrot.lane.b32.xlu0 %v443, 32
    %v446 = vpop.permute.xlu0 %445
    %v448 = vadd.f32 %v438, %v446
    %v449 = vtanh.pop %v448
    %451 = vrot.lane.b32.xlu0 %v449, 64
    %v452 = vpop.permute.xlu0 %451
    %v454 = vmul.f32 %v436, %v452
    %456 = vrot.lane.b32.xlu0 %v454, 32
    %v457 = vpop.permute.xlu0 %456
    %s459 = scalar_lea.vmem [#allocation3], 24
    %460 = vst.msk [vmem:[%s459] sm:$0xff] %vm203, %v457
    %s461 = scalar_lea.vmem [#allocation2], 32
    %v462 = vld [vmem:[%s461] sm:$0xff]
    %v463 = vpack.c.bf16 %v454, %v454
    %465 = vrot.lane.b32.xlu0 %v463, 32
    %v466 = vpop.permute.xlu0 %465
    %v468 = vsel %vm203, %v466, 0
    %470 = vmatpush.bf16.msra.mxu0 0
    %471 = vmatpush.bf16.msra.mxu0 0
    %472 = vmatpush.bf16.msra.mxu0 0
    %473 = vmatpush.bf16.msra.mxu0 0
    %474 = vmatpush.bf16.msra.mxu0 0
    %475 = vmatpush.bf16.msra.mxu0 0
    %476 = vmatpush.bf16.msra.mxu0 %v200
    %477 = vmatpush.bf16.msra.mxu0 %v199
    %478 = vmatmul.bf16.gmra.mxu0 %v468
    %v479 = vpop.f32.mrf.mxu0
    %v480 = vadd.f32 0.0, %v479
    %v481 = vpop.f32.mrf.mxu0
    %482 = vdwg.mxu0
    %v483 = vadd.f32 %v462, %v480
    %v484 = vxor.u32 %v483, 2147483648
    %v485 = vmul.f32 %v484, 1.442695
    %v486 = vpow.pop %v485
    %v487 = vadd.f32 %v486, 1.0
    %v488 = vrcp.pop %v487
    %v489 = vmul.f32 %v487, %v488
    %v490 = vsub.f32 1.0, %v489
    %v491 = vmul.f32 %v488, %v490
    %v492 = vadd.f32 %v488, %v491
    %vm493 = vweird.f32 %v487
    %vm494 = vweird.f32 %v488
    %vm495 = vmor %vm493, %vm494
    %v496 = vsel %vm495, %v488, %v492
    %v497 = vand.u32 2147483647, %v487
    %vm498 = vcmp.eq.f32.partialorder %v497, 8.507059e+37
    %v499 = vand.u32 %v487, 2147483648
    %v500 = vor.u32 1.1754944e-38, %v499
    %v501 = vsel %vm498, %v500, %v496
    %v502 = vmul.f32 1.0, %v501
    %v503 = vtanh.pop %v483
    %v504 = vmul.f32 %v502, %v448
    %506 = vrot.lane.b32.xlu0 %v503, 64
    %v507 = vpop.permute.xlu0 %506
    %v509 = vmul.f32 %v502, %v507
    %511 = vrot.lane.b32.xlu0 %v509, 32
    %v512 = vpop.permute.xlu0 %511
    %v514 = vadd.f32 %v504, %v512
    %v515 = vtanh.pop %v514
    %517 = vrot.lane.b32.xlu0 %v515, 64
    %v518 = vpop.permute.xlu0 %517
    %v520 = vmul.f32 %v502, %v518
    %522 = vrot.lane.b32.xlu0 %v520, 32
    %v523 = vpop.permute.xlu0 %522
    %s525 = scalar_lea.vmem [#allocation3], 32
    %526 = vst.msk [vmem:[%s525] sm:$0xff] %vm203, %v523
    %s527 = scalar_lea.vmem [#allocation2], 40
    %v528 = vld [vmem:[%s527] sm:$0xff]
    %v529 = vpack.c.bf16 %v520, %v520
    %531 = vrot.lane.b32.xlu0 %v529, 32
    %v532 = vpop.permute.xlu0 %531
    %v534 = vsel %vm203, %v532, 0
    %536 = vmatpush.bf16.msra.mxu0 0
    %537 = vmatpush.bf16.msra.mxu0 0
    %538 = vmatpush.bf16.msra.mxu0 0
    %539 = vmatpush.bf16.msra.mxu0 0
    %540 = vmatpush.bf16.msra.mxu0 0
    %541 = vmatpush.bf16.msra.mxu0 0
    %542 = vmatpush.bf16.msra.mxu0 %v200
    %543 = vmatpush.bf16.msra.mxu0 %v199
    %544 = vmatmul.bf16.gmra.mxu0 %v534
    %v545 = vpop.f32.mrf.mxu0
    %v546 = vadd.f32 0.0, %v545
    %v547 = vpop.f32.mrf.mxu0
    %548 = vdwg.mxu0
    %v549 = vadd.f32 %v528, %v546
    %v550 = vxor.u32 %v549, 2147483648
    %v551 = vmul.f32 %v550, 1.442695
    %v552 = vpow.pop %v551
    %v553 = vadd.f32 %v552, 1.0
    %v554 = vrcp.pop %v553
    %v555 = vmul.f32 %v553, %v554
    %v556 = vsub.f32 1.0, %v555
    %v557 = vmul.f32 %v554, %v556
    %v558 = vadd.f32 %v554, %v557
    %vm559 = vweird.f32 %v553
    %vm560 = vweird.f32 %v554
    %vm561 = vmor %vm559, %vm560
    %v562 = vsel %vm561, %v554, %v558
    %v563 = vand.u32 2147483647, %v553
    %vm564 = vcmp.eq.f32.partialorder %v563, 8.507059e+37
    %v565 = vand.u32 %v553, 2147483648
    %v566 = vor.u32 1.1754944e-38, %v565
    %v567 = vsel %vm564, %v566, %v562
    %v568 = vmul.f32 1.0, %v567
    %v569 = vtanh.pop %v549
    %v570 = vmul.f32 %v568, %v514
    %572 = vrot.lane.b32.xlu0 %v569, 64
    %v573 = vpop.permute.xlu0 %572
    %v575 = vmul.f32 %v568, %v573
    %577 = vrot.lane.b32.xlu0 %v575, 32
    %v578 = vpop.permute.xlu0 %577
    %v580 = vadd.f32 %v570, %v578
    %v581 = vtanh.pop %v580
    %583 = vrot.lane.b32.xlu0 %v581, 64
    %v584 = vpop.permute.xlu0 %583
    %v586 = vmul.f32 %v568, %v584
    %588 = vrot.lane.b32.xlu0 %v586, 32
    %v589 = vpop.permute.xlu0 %588
    %s591 = scalar_lea.vmem [#allocation3], 40
    %592 = vst.msk [vmem:[%s591] sm:$0xff] %vm203, %v589
    %s593 = scalar_lea.vmem [#allocation2], 48
    %v594 = vld [vmem:[%s593] sm:$0xff]
    %v595 = vpack.c.bf16 %v586, %v586
    %597 = vrot.lane.b32.xlu0 %v595, 32
    %v598 = vpop.permute.xlu0 %597
    %v600 = vsel %vm203, %v598, 0
    %602 = vmatpush.bf16.msra.mxu0 0
    %603 = vmatpush.bf16.msra.mxu0 0
    %604 = vmatpush.bf16.msra.mxu0 0
    %605 = vmatpush.bf16.msra.mxu0 0
    %606 = vmatpush.bf16.msra.mxu0 0
    %607 = vmatpush.bf16.msra.mxu0 0
    %608 = vmatpush.bf16.msra.mxu0 %v200
    %609 = vmatpush.bf16.msra.mxu0 %v199
    %610 = vmatmul.bf16.gmra.mxu0 %v600
    %v611 = vpop.f32.mrf.mxu0
    %v612 = vadd.f32 0.0, %v611
    %v613 = vpop.f32.mrf.mxu0
    %614 = vdwg.mxu0
    %v615 = vadd.f32 %v594, %v612
    %v616 = vxor.u32 %v615, 2147483648
    %v617 = vmul.f32 %v616, 1.442695
    %v618 = vpow.pop %v617
    %v619 = vadd.f32 %v618, 1.0
    %v620 = vrcp.pop %v619
    %v621 = vmul.f32 %v619, %v620
    %v622 = vsub.f32 1.0, %v621
    %v623 = vmul.f32 %v620, %v622
    %v624 = vadd.f32 %v620, %v623
    %vm625 = vweird.f32 %v619
    %vm626 = vweird.f32 %v620
    %vm627 = vmor %vm625, %vm626
    %v628 = vsel %vm627, %v620, %v624
    %v629 = vand.u32 2147483647, %v619
    %vm630 = vcmp.eq.f32.partialorder %v629, 8.507059e+37
    %v631 = vand.u32 %v619, 2147483648
    %v632 = vor.u32 1.1754944e-38, %v631
    %v633 = vsel %vm630, %v632, %v628
    %v634 = vmul.f32 1.0, %v633
    %v635 = vtanh.pop %v615
    %v636 = vmul.f32 %v634, %v580
    %638 = vrot.lane.b32.xlu0 %v635, 64
    %v639 = vpop.permute.xlu0 %638
    %v641 = vmul.f32 %v634, %v639
    %643 = vrot.lane.b32.xlu0 %v641, 32
    %v644 = vpop.permute.xlu0 %643
    %v646 = vadd.f32 %v636, %v644
    %v647 = vtanh.pop %v646
    %649 = vrot.lane.b32.xlu0 %v647, 64
    %v650 = vpop.permute.xlu0 %649
    %v652 = vmul.f32 %v634, %v650
    %654 = vrot.lane.b32.xlu0 %v652, 32
    %v655 = vpop.permute.xlu0 %654
    %s657 = scalar_lea.vmem [#allocation3], 48
    %658 = vst.msk [vmem:[%s657] sm:$0xff] %vm203, %v655
    %s659 = scalar_lea.vmem [#allocation2], 56
    %v660 = vld [vmem:[%s659] sm:$0xff]
    %v661 = vpack.c.bf16 %v652, %v652
    %663 = vrot.lane.b32.xlu0 %v661, 32
    %v664 = vpop.permute.xlu0 %663
    %v666 = vsel %vm203, %v664, 0
    %668 = vmatpush.bf16.msra.mxu0 0
    %669 = vmatpush.bf16.msra.mxu0 0
    %670 = vmatpush.bf16.msra.mxu0 0
    %671 = vmatpush.bf16.msra.mxu0 0
    %672 = vmatpush.bf16.msra.mxu0 0
    %673 = vmatpush.bf16.msra.mxu0 0
    %674 = vmatpush.bf16.msra.mxu0 %v200
    %675 = vmatpush.bf16.msra.mxu0 %v199
    %676 = vmatmul.bf16.gmra.mxu0 %v666
    %v677 = vpop.f32.mrf.mxu0
    %v678 = vadd.f32 0.0, %v677
    %v679 = vpop.f32.mrf.mxu0
    %680 = vdwg.mxu0
    %v681 = vadd.f32 %v660, %v678
    %v682 = vxor.u32 %v681, 2147483648
    %v683 = vmul.f32 %v682, 1.442695
    %v684 = vpow.pop %v683
    %v685 = vadd.f32 %v684, 1.0
    %v686 = vrcp.pop %v685
    %v687 = vmul.f32 %v685, %v686
    %v688 = vsub.f32 1.0, %v687
    %v689 = vmul.f32 %v686, %v688
    %v690 = vadd.f32 %v686, %v689
    %vm691 = vweird.f32 %v685
    %vm692 = vweird.f32 %v686
    %vm693 = vmor %vm691, %vm692
    %v694 = vsel %vm693, %v686, %v690
    %v695 = vand.u32 2147483647, %v685
    %vm696 = vcmp.eq.f32.partialorder %v695, 8.507059e+37
    %v697 = vand.u32 %v685, 2147483648
    %v698 = vor.u32 1.1754944e-38, %v697
    %v699 = vsel %vm696, %v698, %v694
    %v700 = vmul.f32 1.0, %v699
    %v701 = vtanh.pop %v681
    %v702 = vmul.f32 %v700, %v646
    %704 = vrot.lane.b32.xlu0 %v701, 64
    %v705 = vpop.permute.xlu0 %704
    %v707 = vmul.f32 %v700, %v705
    %709 = vrot.lane.b32.xlu0 %v707, 32
    %v710 = vpop.permute.xlu0 %709
    %v712 = vadd.f32 %v702, %v710
    %v713 = vtanh.pop %v712
    %715 = vrot.lane.b32.xlu0 %v713, 64
    %v716 = vpop.permute.xlu0 %715
    %v718 = vmul.f32 %v700, %v716
    %720 = vrot.lane.b32.xlu0 %v718, 32
    %v721 = vpop.permute.xlu0 %720
    %s723 = scalar_lea.vmem [#allocation3], 56
    %724 = vst.msk [vmem:[%s723] sm:$0xff] %vm203, %v721
    %v725 = vld [vmem:[#allocation9] sm:$0xf]
    %v726 = vld [vmem:[#allocation9 + $0x4] sm:$0xf]
    %v727 = vld [vmem:[#allocation9 + $0x8] sm:$0xf]
    %v728 = vld [vmem:[#allocation9 + $0xc] sm:$0xf]
    %v729 = vld [vmem:[#allocation11] sm:$0xf]
    %v730 = vld [vmem:[#allocation11 + $0x4] sm:$0xf]
    %v731 = vld [vmem:[#allocation11 + $0x8] sm:$0xf]
    %v732 = vld [vmem:[#allocation11 + $0xc] sm:$0xf]
    %v733 = vld [vmem:[#allocation12] sm:$0x1]
    %v734 = vld [vmem:[#allocation3] sm:$0xff]
    %v735 = vld [vmem:[#allocation3 + $0x8] sm:$0xff]
    %v736 = vld [vmem:[#allocation3 + $0x10] sm:$0xff]
    %v737 = vld [vmem:[#allocation3 + $0x18] sm:$0xff]
    %v738 = vld [vmem:[#allocation3 + $0x20] sm:$0xff]
    %v739 = vld [vmem:[#allocation3 + $0x28] sm:$0xff]
    %v740 = vld [vmem:[#allocation3 + $0x30] sm:$0xff]
    %v741 = vld [vmem:[#allocation3 + $0x38] sm:$0xff]
    %v742 = vpack.c.bf16 %v735, %v734
    %v743 = vpack.c.bf16 %v737, %v736
    %v744 = vpack.c.bf16 %v739, %v738
    %v745 = vpack.c.bf16 %v741, %v740
    %v747 = vperm.slane %v733, 0
    %v753 = vunpack.c.l.b16 %v725
    %v754 = vunpack.c.l.b16 %v726
    %v755 = vunpack.c.l.b16 %v727
    %v756 = vunpack.c.l.b16 %v728
    %v757 = vpack.c.b16 %v754, %v753
    %v758 = vpack.c.b16 %v756, %v755
    %v762 = vsel %vm203, %v742, 0
    %v765 = vsel %vm203, %v743, 0
    %v768 = vsel %vm203, %v744, 0
    %v771 = vsel %vm203, %v745, 0
    %773 = vmatpush.bf16.msra.mxu0 0
    %774 = vmatpush.bf16.msra.mxu0 0
    %775 = vmatpush.bf16.msra.mxu0 0
    %776 = vmatpush.bf16.msra.mxu0 0
    %777 = vmatpush.bf16.msra.mxu0 0
    %778 = vmatpush.bf16.msra.mxu0 0
    %779 = vmatpush.bf16.msra.mxu0 %v758
    %780 = vmatpush.bf16.msra.mxu0 %v757
    %781 = vmatmul.bf16.gmra.mxu0 %v762
    %v782 = vpop.f32.mrf.mxu0
    %v783 = vadd.f32 %v747, %v782
    %v784 = vpop.f32.mrf.mxu0
    %v785 = vadd.f32 %v747, %v784
    %786 = vmatmul.bf16.gmra.mxu0 %v765
    %v787 = vpop.f32.mrf.mxu0
    %v788 = vadd.f32 %v747, %v787
    %v789 = vpop.f32.mrf.mxu0
    %v790 = vadd.f32 %v747, %v789
    %791 = vmatmul.bf16.gmra.mxu0 %v768
    %v792 = vpop.f32.mrf.mxu0
    %v793 = vadd.f32 %v747, %v792
    %v794 = vpop.f32.mrf.mxu0
    %v795 = vadd.f32 %v747, %v794
    %796 = vmatmul.bf16.gmra.mxu0 %v771
    %v797 = vpop.f32.mrf.mxu0
    %v798 = vadd.f32 %v747, %v797
    %v799 = vpop.f32.mrf.mxu0
    %v800 = vadd.f32 %v747, %v799
    %801 = vdwg.mxu0
    %802 = vst [vmem:[#allocation2] sm:$0xff] %v783
    %803 = vst [vmem:[#allocation2 + $0x8] sm:$0xff] %v785
    %804 = vst [vmem:[#allocation2 + $0x10] sm:$0xff] %v788
    %805 = vst [vmem:[#allocation2 + $0x18] sm:$0xff] %v790
    %806 = vst [vmem:[#allocation2 + $0x20] sm:$0xff] %v793
    %807 = vst [vmem:[#allocation2 + $0x28] sm:$0xff] %v795
    %808 = vst [vmem:[#allocation2 + $0x30] sm:$0xff] %v798
    %809 = vst [vmem:[#allocation2 + $0x38] sm:$0xff] %v800
    %v810 = vld [vmem:[#allocation2] sm:$0xff]
    %v815 = vunpack.c.l.b16 %v729
    %v816 = vunpack.c.l.b16 %v730
    %v817 = vunpack.c.l.b16 %v731
    %v818 = vunpack.c.l.b16 %v732
    %v819 = vpack.c.b16 %v816, %v815
    %v820 = vpack.c.b16 %v818, %v817
    %823 = vmatpush.bf16.msra.mxu0 0
    %824 = vmatpush.bf16.msra.mxu0 0
    %825 = vmatpush.bf16.msra.mxu0 0
    %826 = vmatpush.bf16.msra.mxu0 0
    %827 = vmatpush.bf16.msra.mxu0 0
    %828 = vmatpush.bf16.msra.mxu0 0
    %829 = vmatpush.bf16.msra.mxu0 %v820
    %830 = vmatpush.bf16.msra.mxu0 %v819
    %831 = vmatmul.bf16.gmra.mxu0 %v205
    %v832 = vpop.f32.mrf.mxu0
    %v833 = vadd.f32 0.0, %v832
    %v834 = vpop.f32.mrf.mxu0
    %835 = vdwg.mxu0
    %v836 = vadd.f32 %v810, %v833
    %v837 = vxor.u32 %v836, 2147483648
    %v838 = vmul.f32 %v837, 1.442695
    %v839 = vpow.pop %v838
    %v840 = vadd.f32 %v839, 1.0
    %v841 = vrcp.pop %v840
    %v842 = vmul.f32 %v840, %v841
    %v843 = vsub.f32 1.0, %v842
    %v844 = vmul.f32 %v841, %v843
    %v845 = vadd.f32 %v841, %v844
    %vm846 = vweird.f32 %v840
    %vm847 = vweird.f32 %v841
    %vm848 = vmor %vm846, %vm847
    %v849 = vsel %vm848, %v841, %v845
    %v850 = vand.u32 2147483647, %v840
    %vm851 = vcmp.eq.f32.partialorder %v850, 8.507059e+37
    %v852 = vand.u32 %v840, 2147483648
    %v853 = vor.u32 1.1754944e-38, %v852
    %v854 = vsel %vm851, %v853, %v849
    %v855 = vmul.f32 1.0, %v854
    %v856 = vtanh.pop %v836
    %v857 = vmul.f32 %v855, 0.0
    %859 = vrot.lane.b32.xlu0 %v856, 64
    %v860 = vpop.permute.xlu0 %859
    %v862 = vmul.f32 %v855, %v860
    %864 = vrot.lane.b32.xlu0 %v862, 32
    %v865 = vpop.permute.xlu0 %864
    %v867 = vadd.f32 %v857, %v865
    %v868 = vtanh.pop %v867
    %870 = vrot.lane.b32.xlu0 %v868, 64
    %v871 = vpop.permute.xlu0 %870
    %v873 = vmul.f32 %v855, %v871
    %875 = vrot.lane.b32.xlu0 %v873, 32
    %v876 = vpop.permute.xlu0 %875
    %878 = vst.msk [vmem:[%s7] sm:$0xff] %vm203, %v876
    %v879 = vld [vmem:[%s263] sm:$0xff]
    %v880 = vpack.c.bf16 %v873, %v873
    %882 = vrot.lane.b32.xlu0 %v880, 32
    %v883 = vpop.permute.xlu0 %882
    %v885 = vsel %vm203, %v883, 0
    %887 = vmatpush.bf16.msra.mxu0 0
    %888 = vmatpush.bf16.msra.mxu0 0
    %889 = vmatpush.bf16.msra.mxu0 0
    %890 = vmatpush.bf16.msra.mxu0 0
    %891 = vmatpush.bf16.msra.mxu0 0
    %892 = vmatpush.bf16.msra.mxu0 0
    %893 = vmatpush.bf16.msra.mxu0 %v820
    %894 = vmatpush.bf16.msra.mxu0 %v819
    %895 = vmatmul.bf16.gmra.mxu0 %v885
    %v896 = vpop.f32.mrf.mxu0
    %v897 = vadd.f32 0.0, %v896
    %v898 = vpop.f32.mrf.mxu0
    %899 = vdwg.mxu0
    %v900 = vadd.f32 %v879, %v897
    %v901 = vxor.u32 %v900, 2147483648
    %v902 = vmul.f32 %v901, 1.442695
    %v903 = vpow.pop %v902
    %v904 = vadd.f32 %v903, 1.0
    %v905 = vrcp.pop %v904
    %v906 = vmul.f32 %v904, %v905
    %v907 = vsub.f32 1.0, %v906
    %v908 = vmul.f32 %v905, %v907
    %v909 = vadd.f32 %v905, %v908
    %vm910 = vweird.f32 %v904
    %vm911 = vweird.f32 %v905
    %vm912 = vmor %vm910, %vm911
    %v913 = vsel %vm912, %v905, %v909
    %v914 = vand.u32 2147483647, %v904
    %vm915 = vcmp.eq.f32.partialorder %v914, 8.507059e+37
    %v916 = vand.u32 %v904, 2147483648
    %v917 = vor.u32 1.1754944e-38, %v916
    %v918 = vsel %vm915, %v917, %v913
    %v919 = vmul.f32 1.0, %v918
    %v920 = vtanh.pop %v900
    %v921 = vmul.f32 %v919, %v867
    %923 = vrot.lane.b32.xlu0 %v920, 64
    %v924 = vpop.permute.xlu0 %923
    %v926 = vmul.f32 %v919, %v924
    %928 = vrot.lane.b32.xlu0 %v926, 32
    %v929 = vpop.permute.xlu0 %928
    %v931 = vadd.f32 %v921, %v929
    %v932 = vtanh.pop %v931
    %934 = vrot.lane.b32.xlu0 %v932, 64
    %v935 = vpop.permute.xlu0 %934
    %v937 = vmul.f32 %v919, %v935
    %939 = vrot.lane.b32.xlu0 %v937, 32
    %v940 = vpop.permute.xlu0 %939
    %s942 = scalar_lea.vmem %s7, 8
    %943 = vst.msk [vmem:[%s942] sm:$0xff] %vm203, %v940
    %v944 = vld [vmem:[%s329] sm:$0xff]
    %v945 = vpack.c.bf16 %v937, %v937
    %947 = vrot.lane.b32.xlu0 %v945, 32
    %v948 = vpop.permute.xlu0 %947
    %v950 = vsel %vm203, %v948, 0
    %952 = vmatpush.bf16.msra.mxu0 0
    %953 = vmatpush.bf16.msra.mxu0 0
    %954 = vmatpush.bf16.msra.mxu0 0
    %955 = vmatpush.bf16.msra.mxu0 0
    %956 = vmatpush.bf16.msra.mxu0 0
    %957 = vmatpush.bf16.msra.mxu0 0
    %958 = vmatpush.bf16.msra.mxu0 %v820
    %959 = vmatpush.bf16.msra.mxu0 %v819
    %960 = vmatmul.bf16.gmra.mxu0 %v950
    %v961 = vpop.f32.mrf.mxu0
    %v962 = vadd.f32 0.0, %v961
    %v963 = vpop.f32.mrf.mxu0
    %964 = vdwg.mxu0
    %v965 = vadd.f32 %v944, %v962
    %v966 = vxor.u32 %v965, 2147483648
    %v967 = vmul.f32 %v966, 1.442695
    %v968 = vpow.pop %v967
    %v969 = vadd.f32 %v968, 1.0
    %v970 = vrcp.pop %v969
    %v971 = vmul.f32 %v969, %v970
    %v972 = vsub.f32 1.0, %v971
    %v973 = vmul.f32 %v970, %v972
    %v974 = vadd.f32 %v970, %v973
    %vm975 = vweird.f32 %v969
    %vm976 = vweird.f32 %v970
    %vm977 = vmor %vm975, %vm976
    %v978 = vsel %vm977, %v970, %v974
    %v979 = vand.u32 2147483647, %v969
    %vm980 = vcmp.eq.f32.partialorder %v979, 8.507059e+37
    %v981 = vand.u32 %v969, 2147483648
    %v982 = vor.u32 1.1754944e-38, %v981
    %v983 = vsel %vm980, %v982, %v978
    %v984 = vmul.f32 1.0, %v983
    %v985 = vtanh.pop %v965
    %v986 = vmul.f32 %v984, %v931
    %988 = vrot.lane.b32.xlu0 %v985, 64
    %v989 = vpop.permute.xlu0 %988
    %v991 = vmul.f32 %v984, %v989
    %993 = vrot.lane.b32.xlu0 %v991, 32
    %v994 = vpop.permute.xlu0 %993
    %v996 = vadd.f32 %v986, %v994
    %v997 = vtanh.pop %v996
    %999 = vrot.lane.b32.xlu0 %v997, 64
    %v1000 = vpop.permute.xlu0 %999
    %v1002 = vmul.f32 %v984, %v1000
    %1004 = vrot.lane.b32.xlu0 %v1002, 32
    %v1005 = vpop.permute.xlu0 %1004
    %s1007 = scalar_lea.vmem %s7, 16
    %1008 = vst.msk [vmem:[%s1007] sm:$0xff] %vm203, %v1005
    %v1009 = vld [vmem:[%s395] sm:$0xff]
    %v1010 = vpack.c.bf16 %v1002, %v1002
    %1012 = vrot.lane.b32.xlu0 %v1010, 32
    %v1013 = vpop.permute.xlu0 %1012
    %v1015 = vsel %vm203, %v1013, 0
    %1017 = vmatpush.bf16.msra.mxu0 0
    %1018 = vmatpush.bf16.msra.mxu0 0
    %1019 = vmatpush.bf16.msra.mxu0 0
    %1020 = vmatpush.bf16.msra.mxu0 0
    %1021 = vmatpush.bf16.msra.mxu0 0
    %1022 = vmatpush.bf16.msra.mxu0 0
    %1023 = vmatpush.bf16.msra.mxu0 %v820
    %1024 = vmatpush.bf16.msra.mxu0 %v819
    %1025 = vmatmul.bf16.gmra.mxu0 %v1015
    %v1026 = vpop.f32.mrf.mxu0
    %v1027 = vadd.f32 0.0, %v1026
    %v1028 = vpop.f32.mrf.mxu0
    %1029 = vdwg.mxu0
    %v1030 = vadd.f32 %v1009, %v1027
    %v1031 = vxor.u32 %v1030, 2147483648
    %v1032 = vmul.f32 %v1031, 1.442695
    %v1033 = vpow.pop %v1032
    %v1034 = vadd.f32 %v1033, 1.0
    %v1035 = vrcp.pop %v1034
    %v1036 = vmul.f32 %v1034, %v1035
    %v1037 = vsub.f32 1.0, %v1036
    %v1038 = vmul.f32 %v1035, %v1037
    %v1039 = vadd.f32 %v1035, %v1038
    %vm1040 = vweird.f32 %v1034
    %vm1041 = vweird.f32 %v1035
    %vm1042 = vmor %vm1040, %vm1041
    %v1043 = vsel %vm1042, %v1035, %v1039
    %v1044 = vand.u32 2147483647, %v1034
    %vm1045 = vcmp.eq.f32.partialorder %v1044, 8.507059e+37
    %v1046 = vand.u32 %v1034, 2147483648
    %v1047 = vor.u32 1.1754944e-38, %v1046
    %v1048 = vsel %vm1045, %v1047, %v1043
    %v1049 = vmul.f32 1.0, %v1048
    %v1050 = vtanh.pop %v1030
    %v1051 = vmul.f32 %v1049, %v996
    %1053 = vrot.lane.b32.xlu0 %v1050, 64
    %v1054 = vpop.permute.xlu0 %1053
    %v1056 = vmul.f32 %v1049, %v1054
    %1058 = vrot.lane.b32.xlu0 %v1056, 32
    %v1059 = vpop.permute.xlu0 %1058
    %v1061 = vadd.f32 %v1051, %v1059
    %v1062 = vtanh.pop %v1061
    %1064 = vrot.lane.b32.xlu0 %v1062, 64
    %v1065 = vpop.permute.xlu0 %1064
    %v1067 = vmul.f32 %v1049, %v1065
    %1069 = vrot.lane.b32.xlu0 %v1067, 32
    %v1070 = vpop.permute.xlu0 %1069
    %s1072 = scalar_lea.vmem %s7, 24
    %1073 = vst.msk [vmem:[%s1072] sm:$0xff] %vm203, %v1070
    %v1074 = vld [vmem:[%s461] sm:$0xff]
    %v1075 = vpack.c.bf16 %v1067, %v1067
    %1077 = vrot.lane.b32.xlu0 %v1075, 32
    %v1078 = vpop.permute.xlu0 %1077
    %v1080 = vsel %vm203, %v1078, 0
    %1082 = vmatpush.bf16.msra.mxu0 0
    %1083 = vmatpush.bf16.msra.mxu0 0
    %1084 = vmatpush.bf16.msra.mxu0 0
    %1085 = vmatpush.bf16.msra.mxu0 0
    %1086 = vmatpush.bf16.msra.mxu0 0
    %1087 = vmatpush.bf16.msra.mxu0 0
    %1088 = vmatpush.bf16.msra.mxu0 %v820
    %1089 = vmatpush.bf16.msra.mxu0 %v819
    %1090 = vmatmul.bf16.gmra.mxu0 %v1080
    %v1091 = vpop.f32.mrf.mxu0
    %v1092 = vadd.f32 0.0, %v1091
    %v1093 = vpop.f32.mrf.mxu0
    %1094 = vdwg.mxu0
    %v1095 = vadd.f32 %v1074, %v1092
    %v1096 = vxor.u32 %v1095, 2147483648
    %v1097 = vmul.f32 %v1096, 1.442695
    %v1098 = vpow.pop %v1097
    %v1099 = vadd.f32 %v1098, 1.0
    %v1100 = vrcp.pop %v1099
    %v1101 = vmul.f32 %v1099, %v1100
    %v1102 = vsub.f32 1.0, %v1101
    %v1103 = vmul.f32 %v1100, %v1102
    %v1104 = vadd.f32 %v1100, %v1103
    %vm1105 = vweird.f32 %v1099
    %vm1106 = vweird.f32 %v1100
    %vm1107 = vmor %vm1105, %vm1106
    %v1108 = vsel %vm1107, %v1100, %v1104
    %v1109 = vand.u32 2147483647, %v1099
    %vm1110 = vcmp.eq.f32.partialorder %v1109, 8.507059e+37
    %v1111 = vand.u32 %v1099, 2147483648
    %v1112 = vor.u32 1.1754944e-38, %v1111
    %v1113 = vsel %vm1110, %v1112, %v1108
    %v1114 = vmul.f32 1.0, %v1113
    %v1115 = vtanh.pop %v1095
    %v1116 = vmul.f32 %v1114, %v1061
    %1118 = vrot.lane.b32.xlu0 %v1115, 64
    %v1119 = vpop.permute.xlu0 %1118
    %v1121 = vmul.f32 %v1114, %v1119
    %1123 = vrot.lane.b32.xlu0 %v1121, 32
    %v1124 = vpop.permute.xlu0 %1123
    %v1126 = vadd.f32 %v1116, %v1124
    %v1127 = vtanh.pop %v1126
    %1129 = vrot.lane.b32.xlu0 %v1127, 64
    %v1130 = vpop.permute.xlu0 %1129
    %v1132 = vmul.f32 %v1114, %v1130
    %1134 = vrot.lane.b32.xlu0 %v1132, 32
    %v1135 = vpop.permute.xlu0 %1134
    %s1137 = scalar_lea.vmem %s7, 32
    %1138 = vst.msk [vmem:[%s1137] sm:$0xff] %vm203, %v1135
    %v1139 = vld [vmem:[%s527] sm:$0xff]
    %v1140 = vpack.c.bf16 %v1132, %v1132
    %1142 = vrot.lane.b32.xlu0 %v1140, 32
    %v1143 = vpop.permute.xlu0 %1142
    %v1145 = vsel %vm203, %v1143, 0
    %1147 = vmatpush.bf16.msra.mxu0 0
    %1148 = vmatpush.bf16.msra.mxu0 0
    %1149 = vmatpush.bf16.msra.mxu0 0
    %1150 = vmatpush.bf16.msra.mxu0 0
    %1151 = vmatpush.bf16.msra.mxu0 0
    %1152 = vmatpush.bf16.msra.mxu0 0
    %1153 = vmatpush.bf16.msra.mxu0 %v820
    %1154 = vmatpush.bf16.msra.mxu0 %v819
    %1155 = vmatmul.bf16.gmra.mxu0 %v1145
    %v1156 = vpop.f32.mrf.mxu0
    %v1157 = vadd.f32 0.0, %v1156
    %v1158 = vpop.f32.mrf.mxu0
    %1159 = vdwg.mxu0
    %v1160 = vadd.f32 %v1139, %v1157
    %v1161 = vxor.u32 %v1160, 2147483648
    %v1162 = vmul.f32 %v1161, 1.442695
    %v1163 = vpow.pop %v1162
    %v1164 = vadd.f32 %v1163, 1.0
    %v1165 = vrcp.pop %v1164
    %v1166 = vmul.f32 %v1164, %v1165
    %v1167 = vsub.f32 1.0, %v1166
    %v1168 = vmul.f32 %v1165, %v1167
    %v1169 = vadd.f32 %v1165, %v1168
    %vm1170 = vweird.f32 %v1164
    %vm1171 = vweird.f32 %v1165
    %vm1172 = vmor %vm1170, %vm1171
    %v1173 = vsel %vm1172, %v1165, %v1169
    %v1174 = vand.u32 2147483647, %v1164
    %vm1175 = vcmp.eq.f32.partialorder %v1174, 8.507059e+37
    %v1176 = vand.u32 %v1164, 2147483648
    %v1177 = vor.u32 1.1754944e-38, %v1176
    %v1178 = vsel %vm1175, %v1177, %v1173
    %v1179 = vmul.f32 1.0, %v1178
    %v1180 = vtanh.pop %v1160
    %v1181 = vmul.f32 %v1179, %v1126
    %1183 = vrot.lane.b32.xlu0 %v1180, 64
    %v1184 = vpop.permute.xlu0 %1183
    %v1186 = vmul.f32 %v1179, %v1184
    %1188 = vrot.lane.b32.xlu0 %v1186, 32
    %v1189 = vpop.permute.xlu0 %1188
    %v1191 = vadd.f32 %v1181, %v1189
    %v1192 = vtanh.pop %v1191
    %1194 = vrot.lane.b32.xlu0 %v1192, 64
    %v1195 = vpop.permute.xlu0 %1194
    %v1197 = vmul.f32 %v1179, %v1195
    %1199 = vrot.lane.b32.xlu0 %v1197, 32
    %v1200 = vpop.permute.xlu0 %1199
    %s1202 = scalar_lea.vmem %s7, 40
    %1203 = vst.msk [vmem:[%s1202] sm:$0xff] %vm203, %v1200
    %v1204 = vld [vmem:[%s593] sm:$0xff]
    %v1205 = vpack.c.bf16 %v1197, %v1197
    %1207 = vrot.lane.b32.xlu0 %v1205, 32
    %v1208 = vpop.permute.xlu0 %1207
    %v1210 = vsel %vm203, %v1208, 0
    %1212 = vmatpush.bf16.msra.mxu0 0
    %1213 = vmatpush.bf16.msra.mxu0 0
    %1214 = vmatpush.bf16.msra.mxu0 0
    %1215 = vmatpush.bf16.msra.mxu0 0
    %1216 = vmatpush.bf16.msra.mxu0 0
    %1217 = vmatpush.bf16.msra.mxu0 0
    %1218 = vmatpush.bf16.msra.mxu0 %v820
    %1219 = vmatpush.bf16.msra.mxu0 %v819
    %1220 = vmatmul.bf16.gmra.mxu0 %v1210
    %v1221 = vpop.f32.mrf.mxu0
    %v1222 = vadd.f32 0.0, %v1221
    %v1223 = vpop.f32.mrf.mxu0
    %1224 = vdwg.mxu0
    %v1225 = vadd.f32 %v1204, %v1222
    %v1226 = vxor.u32 %v1225, 2147483648
    %v1227 = vmul.f32 %v1226, 1.442695
    %v1228 = vpow.pop %v1227
    %v1229 = vadd.f32 %v1228, 1.0
    %v1230 = vrcp.pop %v1229
    %v1231 = vmul.f32 %v1229, %v1230
    %v1232 = vsub.f32 1.0, %v1231
    %v1233 = vmul.f32 %v1230, %v1232
    %v1234 = vadd.f32 %v1230, %v1233
    %vm1235 = vweird.f32 %v1229
    %vm1236 = vweird.f32 %v1230
    %vm1237 = vmor %vm1235, %vm1236
    %v1238 = vsel %vm1237, %v1230, %v1234
    %v1239 = vand.u32 2147483647, %v1229
    %vm1240 = vcmp.eq.f32.partialorder %v1239, 8.507059e+37
    %v1241 = vand.u32 %v1229, 2147483648
    %v1242 = vor.u32 1.1754944e-38, %v1241
    %v1243 = vsel %vm1240, %v1242, %v1238
    %v1244 = vmul.f32 1.0, %v1243
    %v1245 = vtanh.pop %v1225
    %v1246 = vmul.f32 %v1244, %v1191
    %1248 = vrot.lane.b32.xlu0 %v1245, 64
    %v1249 = vpop.permute.xlu0 %1248
    %v1251 = vmul.f32 %v1244, %v1249
    %1253 = vrot.lane.b32.xlu0 %v1251, 32
    %v1254 = vpop.permute.xlu0 %1253
    %v1256 = vadd.f32 %v1246, %v1254
    %v1257 = vtanh.pop %v1256
    %1259 = vrot.lane.b32.xlu0 %v1257, 64
    %v1260 = vpop.permute.xlu0 %1259
    %v1262 = vmul.f32 %v1244, %v1260
    %1264 = vrot.lane.b32.xlu0 %v1262, 32
    %v1265 = vpop.permute.xlu0 %1264
    %s1267 = scalar_lea.vmem %s7, 48
    %1268 = vst.msk [vmem:[%s1267] sm:$0xff] %vm203, %v1265
    %v1269 = vld [vmem:[%s659] sm:$0xff]
    %v1270 = vpack.c.bf16 %v1262, %v1262
    %1272 = vrot.lane.b32.xlu0 %v1270, 32
    %v1273 = vpop.permute.xlu0 %1272
    %v1275 = vsel %vm203, %v1273, 0
    %1277 = vmatpush.bf16.msra.mxu0 0
    %1278 = vmatpush.bf16.msra.mxu0 0
    %1279 = vmatpush.bf16.msra.mxu0 0
    %1280 = vmatpush.bf16.msra.mxu0 0
    %1281 = vmatpush.bf16.msra.mxu0 0
    %1282 = vmatpush.bf16.msra.mxu0 0
    %1283 = vmatpush.bf16.msra.mxu0 %v820
    %1284 = vmatpush.bf16.msra.mxu0 %v819
    %1285 = vmatmul.bf16.gmra.mxu0 %v1275
    %v1286 = vpop.f32.mrf.mxu0
    %v1287 = vadd.f32 0.0, %v1286
    %v1288 = vpop.f32.mrf.mxu0
    %1289 = vdwg.mxu0
    %v1290 = vadd.f32 %v1269, %v1287
    %v1291 = vxor.u32 %v1290, 2147483648
    %v1292 = vmul.f32 %v1291, 1.442695
    %v1293 = vpow.pop %v1292
    %v1294 = vadd.f32 %v1293, 1.0
    %v1295 = vrcp.pop %v1294
    %v1296 = vmul.f32 %v1294, %v1295
    %v1297 = vsub.f32 1.0, %v1296
    %v1298 = vmul.f32 %v1295, %v1297
    %v1299 = vadd.f32 %v1295, %v1298
    %vm1300 = vweird.f32 %v1294
    %vm1301 = vweird.f32 %v1295
    %vm1302 = vmor %vm1300, %vm1301
    %v1303 = vsel %vm1302, %v1295, %v1299
    %v1304 = vand.u32 2147483647, %v1294
    %vm1305 = vcmp.eq.f32.partialorder %v1304, 8.507059e+37
    %v1306 = vand.u32 %v1294, 2147483648
    %v1307 = vor.u32 1.1754944e-38, %v1306
    %v1308 = vsel %vm1305, %v1307, %v1303
    %v1309 = vmul.f32 1.0, %v1308
    %v1310 = vtanh.pop %v1290
    %v1311 = vmul.f32 %v1309, %v1256
    %1313 = vrot.lane.b32.xlu0 %v1310, 64
    %v1314 = vpop.permute.xlu0 %1313
    %v1316 = vmul.f32 %v1309, %v1314
    %1318 = vrot.lane.b32.xlu0 %v1316, 32
    %v1319 = vpop.permute.xlu0 %1318
    %v1321 = vadd.f32 %v1311, %v1319
    %v1322 = vtanh.pop %v1321
    %1324 = vrot.lane.b32.xlu0 %v1322, 64
    %v1325 = vpop.permute.xlu0 %1324
    %v1327 = vmul.f32 %v1309, %v1325
    %1329 = vrot.lane.b32.xlu0 %v1327, 32
    %v1330 = vpop.permute.xlu0 %1329
    %s1332 = scalar_lea.vmem %s7, 56
    %1333 = vst.msk [vmem:[%s1332] sm:$0xff] %vm203, %v1330
    // Predicated region
    $region54: #{dropoff_lstm_forward.3} parent=1 // pred_check
      _
    $region55: #{dropoff_lstm_forward.3} parent=1 // pred_check_branch
      %1335 = sbr.rel (0) target = $region57
    $region56: #{dropoff_lstm_forward.3} parent=1 // pred_region
      _
    $region57: #{dropoff_lstm_forward.3} parent=1 // pred_fallthru
      _
    // Predicated region
    $region58: #{dropoff_lstm_forward.3} parent=1 // pred_check
      _
    $region59: #{dropoff_lstm_forward.3} parent=1 // pred_check_branch
      %1337 = sbr.rel (0) target = $region61
    $region60: #{dropoff_lstm_forward.3} parent=1 // pred_region
      _
    $region61: #{dropoff_lstm_forward.3} parent=1 // pred_fallthru
      _
    %1338 = vsyncpa [#allocation5], 1
    %1339 = vsyncpa [#allocation7], 1
    %1340 = vsyncpa [#allocation10], 1
    %1341 = vsyncpa [#allocation13], 1

// kernel: dropoff_lstm_forward.5
$region0: #{dropoff_lstm_forward.5}
  #allocation0 [shape = 'u32[]', space=smem, size = 0x4, offset = 0x4, fixed_abs, tag = 'smem constant byte address 0x4 - core index']
  #allocation1 [shape = 'u32[72,128]{1,0:T(1,128)}', space=vmem, size = 0x9000, scoped, tag = 'internal scratch']
  %s0 = inlined_call_operand.vmem [shape: f32[8,35], index: 0, kind: input, shape index: {}]
  %s1 = inlined_call_operand.hbm [shape: bf16[35,1024], index: 1, kind: input, shape index: {}]
  %s2 = inlined_call_operand.hbm [shape: f32[1,1024], index: 2, kind: input, shape index: {}]
  %s3 = inlined_call_operand.hbm [shape: bf16[1024,1024], index: 3, kind: input, shape index: {}]
  %s4 = inlined_call_operand.hbm [shape: f32[1,1024], index: 4, kind: input, shape index: {}]
  %s5 = inlined_call_operand.hbm [shape: f32[1,1024], index: 5, kind: input, shape index: {}]
  %s6 = inlined_call_operand.hbm [shape: f32[1,1024], index: 6, kind: input, shape index: {}]
  %s7 = inlined_call_operand.hbm [shape: bf16[1024,1024], index: 7, kind: input, shape index: {}]
  %s8 = inlined_call_operand.hbm [shape: f32[1,1024], index: 8, kind: input, shape index: {}]
  %s9 = inlined_call_operand.hbm [shape: f32[1,1024], index: 9, kind: input, shape index: {}]
  %s10 = inlined_call_operand.hbm [shape: f32[1,1024], index: 10, kind: input, shape index: {}]
  %s11 = inlined_call_operand.vmem [shape: bf16[1024,10], index: 11, kind: input, shape index: {}]
  %s12 = inlined_call_operand.hbm [shape: f32[1,10], index: 12, kind: input, shape index: {}]
  %s13 = inlined_call_operand.vmem [shape: f32[8,10], index: 13, kind: output, shape index: {}]
  %s14 = sld [smem:[#allocation0]]
  $region106: #{dropoff_lstm_forward.5} parent=0
    _
  %s16 = ssub.s32 1, %s14
  %s17 = scalar_select 0, %s16, %s14
  $region1: #{dropoff_lstm_forward.5} parent=0
    #allocation2 [shape = 'u8[81920]{0}', space=vmem, size = 0x14000, scoped, tag = 'input window, operand 1, single buffered']
    #allocation3 [shape = 's32[1]{0}', space=sflag, size = 0x4, scoped, tag = 'scoped memory for dropoff_lstm_forward.5']
    #allocation4 [shape = 'u8[4096]{0}', space=vmem, size = 0x1000, scoped, tag = 'input window, operand 2, single buffered']
    #allocation5 [shape = 's32[1]{0}', space=sflag, size = 0x4, scoped, tag = 'scoped memory for dropoff_lstm_forward.5']
    #allocation6 [shape = 'u8[2097152]{0}', space=vmem, size = 0x200000, scoped, tag = 'input window, operand 3, single buffered']
    #allocation7 [shape = 'u8[4096]{0}', space=vmem, size = 0x1000, scoped, tag = 'input window, operand 4, single buffered']
    #allocation8 [shape = 's32[1]{0}', space=sflag, size = 0x4, scoped, tag = 'scoped memory for dropoff_lstm_forward.5']
    #allocation9 [shape = 'u8[4096]{0}', space=vmem, size = 0x1000, scoped, tag = 'input window, operand 5, single buffered']
    #allocation10 [shape = 'u8[4096]{0}', space=vmem, size = 0x1000, scoped, tag = 'input window, operand 6, single buffered']
    #allocation11 [shape = 's32[1]{0}', space=sflag, size = 0x4, scoped, tag = 'scoped memory for dropoff_lstm_forward.5']
    #allocation12 [shape = 'u8[2097152]{0}', space=vmem, size = 0x200000, scoped, tag = 'input window, operand 7, single buffered']
    #allocation13 [shape = 'u8[4096]{0}', space=vmem, size = 0x1000, scoped, tag = 'input window, operand 8, single buffered']
    #allocation14 [shape = 's32[1]{0}', space=sflag, size = 0x4, scoped, tag = 'scoped memory for dropoff_lstm_forward.5']
    #allocation15 [shape = 'u8[4096]{0}', space=vmem, size = 0x1000, scoped, tag = 'input window, operand 9, single buffered']
    #allocation16 [shape = 'u8[4096]{0}', space=vmem, size = 0x1000, scoped, tag = 'input window, operand 10, single buffered']
    #allocation17 [shape = 's32[1]{0}', space=sflag, size = 0x4, scoped, tag = 'scoped memory for dropoff_lstm_forward.5']
    #allocation18 [shape = 'u8[512]{0}', space=vmem, size = 0x400, scoped, tag = 'input window, operand 12, single buffered']
    %18 = vsyncpa [#allocation3], 0
    %19 = vsyncpa [#allocation5], 0
    %20 = vsyncpa [#allocation8], 0
    %21 = vsyncpa [#allocation11], 0
    %22 = vsyncpa [#allocation14], 0
    %23 = vsyncpa [#allocation17], 0
    // Predicated region
    $region2: #{dropoff_lstm_forward.5} parent=1 // pred_check
      _
    $region3: #{dropoff_lstm_forward.5} parent=1 // pred_check_branch
      %25 = sbr.rel (0) target = $region5
    $region4: #{dropoff_lstm_forward.5} parent=1 // pred_region
      _
    $region5: #{dropoff_lstm_forward.5} parent=1 // pred_fallthru
      _
    // Predicated region
    $region6: #{dropoff_lstm_forward.5} parent=1 // pred_check
      _
    $region7: #{dropoff_lstm_forward.5} parent=1 // pred_check_branch
      %27 = sbr.rel (0) target = $region9
    $region8: #{dropoff_lstm_forward.5} parent=1 // pred_region
      %29 = vsyncadd [#allocation3], 0
      %s30 = sshll.u32 %s1, 4
      %s31 = int_to_ptr.hbm [resolvable:$true] %s30
      %s32 = sshll.u32 [#allocation2], 4
      %s33 = int_to_ptr.vmem [resolvable:$true] %s32
      %38 = dma.hbm_to_vmem [thread:$0]  %s31, 2560, %s33, [#allocation3], 512, 512, 32
    $region9: #{dropoff_lstm_forward.5} parent=1 // pred_fallthru
      _
    // Predicated region
    $region10: #{dropoff_lstm_forward.5} parent=1 // pred_check
      _
    $region11: #{dropoff_lstm_forward.5} parent=1 // pred_check_branch
      %40 = sbr.rel (0) target = $region13
    $region12: #{dropoff_lstm_forward.5} parent=1 // pred_region
      %42 = vsyncadd [#allocation5], 0
      %s44 = sshll.u32 %s2, 4
      %s45 = int_to_ptr.hbm [resolvable:$true] %s44
      %s46 = sshll.u32 [#allocation4], 4
      %s47 = int_to_ptr.vmem [resolvable:$true] %s46
      %49 = dma.hbm_to_vmem [thread:$0]  %s45, 128, %s47, [#allocation5]
    $region13: #{dropoff_lstm_forward.5} parent=1 // pred_fallthru
      _
    // Predicated region
    $region14: #{dropoff_lstm_forward.5} parent=1 // pred_check
      _
    $region15: #{dropoff_lstm_forward.5} parent=1 // pred_check_branch
      %51 = sbr.rel (0) target = $region17
    $region16: #{dropoff_lstm_forward.5} parent=1 // pred_region
      %53 = vsyncadd [#allocation5], 0
      %s54 = sshll.u32 %s3, 4
      %s55 = int_to_ptr.hbm [resolvable:$true] %s54
      %s56 = sshll.u32 [#allocation6], 4
      %s57 = int_to_ptr.vmem [resolvable:$true] %s56
      %62 = dma.hbm_to_vmem [thread:$0]  %s55, 65536, %s57, [#allocation5], 512, 512, 32
    $region17: #{dropoff_lstm_forward.5} parent=1 // pred_fallthru
      _
    // Predicated region
    $region18: #{dropoff_lstm_forward.5} parent=1 // pred_check
      _
    $region19: #{dropoff_lstm_forward.5} parent=1 // pred_check_branch
      %64 = sbr.rel (0) target = $region21
    $region20: #{dropoff_lstm_forward.5} parent=1 // pred_region
      %66 = vsyncadd [#allocation8], 0
      %s68 = sshll.u32 %s4, 4
      %s69 = int_to_ptr.hbm [resolvable:$true] %s68
      %s70 = sshll.u32 [#allocation7], 4
      %s71 = int_to_ptr.vmem [resolvable:$true] %s70
      %73 = dma.hbm_to_vmem [thread:$0]  %s69, 128, %s71, [#allocation8]
    $region21: #{dropoff_lstm_forward.5} parent=1 // pred_fallthru
      _
    // Predicated region
    $region22: #{dropoff_lstm_forward.5} parent=1 // pred_check
      _
    $region23: #{dropoff_lstm_forward.5} parent=1 // pred_check_branch
      %75 = sbr.rel (0) target = $region25
    $region24: #{dropoff_lstm_forward.5} parent=1 // pred_region
      %77 = vsyncadd [#allocation8], 0
      %s79 = sshll.u32 %s5, 4
      %s80 = int_to_ptr.hbm [resolvable:$true] %s79
      %s81 = sshll.u32 [#allocation9], 4
      %s82 = int_to_ptr.vmem [resolvable:$true] %s81
      %84 = dma.hbm_to_vmem [thread:$0]  %s80, 128, %s82, [#allocation8]
    $region25: #{dropoff_lstm_forward.5} parent=1 // pred_fallthru
      _
    // Predicated region
    $region26: #{dropoff_lstm_forward.5} parent=1 // pred_check
      _
    $region27: #{dropoff_lstm_forward.5} parent=1 // pred_check_branch
      %86 = sbr.rel (0) target = $region29
    $region28: #{dropoff_lstm_forward.5} parent=1 // pred_region
      %88 = vsyncadd [#allocation11], 0
      %s90 = sshll.u32 %s6, 4
      %s91 = int_to_ptr.hbm [resolvable:$true] %s90
      %s92 = sshll.u32 [#allocation10], 4
      %s93 = int_to_ptr.vmem [resolvable:$true] %s92
      %95 = dma.hbm_to_vmem [thread:$0]  %s91, 128, %s93, [#allocation11]
    $region29: #{dropoff_lstm_forward.5} parent=1 // pred_fallthru
      _
    // Predicated region
    $region30: #{dropoff_lstm_forward.5} parent=1 // pred_check
      _
    $region31: #{dropoff_lstm_forward.5} parent=1 // pred_check_branch
      %97 = sbr.rel (0) target = $region33
    $region32: #{dropoff_lstm_forward.5} parent=1 // pred_region
      %99 = vsyncadd [#allocation11], 0
      %s100 = sshll.u32 %s7, 4
      %s101 = int_to_ptr.hbm [resolvable:$true] %s100
      %s102 = sshll.u32 [#allocation12], 4
      %s103 = int_to_ptr.vmem [resolvable:$true] %s102
      %108 = dma.hbm_to_vmem [thread:$0]  %s101, 65536, %s103, [#allocation11], 512, 512, 32
    $region33: #{dropoff_lstm_forward.5} parent=1 // pred_fallthru
      _
    // Predicated region
    $region34: #{dropoff_lstm_forward.5} parent=1 // pred_check
      _
    $region35: #{dropoff_lstm_forward.5} parent=1 // pred_check_branch
      %110 = sbr.rel (0) target = $region37
    $region36: #{dropoff_lstm_forward.5} parent=1 // pred_region
      %112 = vsyncadd [#allocation14], 0
      %s114 = sshll.u32 %s8, 4
      %s115 = int_to_ptr.hbm [resolvable:$true] %s114
      %s116 = sshll.u32 [#allocation13], 4
      %s117 = int_to_ptr.vmem [resolvable:$true] %s116
      %119 = dma.hbm_to_vmem [thread:$0]  %s115, 128, %s117, [#allocation14]
    $region37: #{dropoff_lstm_forward.5} parent=1 // pred_fallthru
      _
    // Predicated region
    $region38: #{dropoff_lstm_forward.5} parent=1 // pred_check
      _
    $region39: #{dropoff_lstm_forward.5} parent=1 // pred_check_branch
      %121 = sbr.rel (0) target = $region41
    $region40: #{dropoff_lstm_forward.5} parent=1 // pred_region
      %123 = vsyncadd [#allocation14], 0
      %s125 = sshll.u32 %s9, 4
      %s126 = int_to_ptr.hbm [resolvable:$true] %s125
      %s127 = sshll.u32 [#allocation15], 4
      %s128 = int_to_ptr.vmem [resolvable:$true] %s127
      %130 = dma.hbm_to_vmem [thread:$0]  %s126, 128, %s128, [#allocation14]
    $region41: #{dropoff_lstm_forward.5} parent=1 // pred_fallthru
      _
    // Predicated region
    $region42: #{dropoff_lstm_forward.5} parent=1 // pred_check
      _
    $region43: #{dropoff_lstm_forward.5} parent=1 // pred_check_branch
      %132 = sbr.rel (0) target = $region45
    $region44: #{dropoff_lstm_forward.5} parent=1 // pred_region
      %134 = vsyncadd [#allocation17], 0
      %s136 = sshll.u32 %s10, 4
      %s137 = int_to_ptr.hbm [resolvable:$true] %s136
      %s138 = sshll.u32 [#allocation16], 4
      %s139 = int_to_ptr.vmem [resolvable:$true] %s138
      %141 = dma.hbm_to_vmem [thread:$0]  %s137, 128, %s139, [#allocation17]
    $region45: #{dropoff_lstm_forward.5} parent=1 // pred_fallthru
      _
    // Predicated region
    $region46: #{dropoff_lstm_forward.5} parent=1 // pred_check
      _
    $region47: #{dropoff_lstm_forward.5} parent=1 // pred_check_branch
      %143 = sbr.rel (0) target = $region49
    $region48: #{dropoff_lstm_forward.5} parent=1 // pred_region
      _
    $region49: #{dropoff_lstm_forward.5} parent=1 // pred_fallthru
      _
    // Predicated region
    $region50: #{dropoff_lstm_forward.5} parent=1 // pred_check
      _
    $region51: #{dropoff_lstm_forward.5} parent=1 // pred_check_branch
      %145 = sbr.rel (0) target = $region53
    $region52: #{dropoff_lstm_forward.5} parent=1 // pred_region
      %147 = vsyncadd [#allocation17], 0
      %s149 = sshll.u32 %s12, 4
      %s150 = int_to_ptr.hbm [resolvable:$true] %s149
      %s151 = sshll.u32 [#allocation18], 4
      %s152 = int_to_ptr.vmem [resolvable:$true] %s151
      %154 = dma.hbm_to_vmem [thread:$0]  %s150, 16, %s152, [#allocation17]
    $region53: #{dropoff_lstm_forward.5} parent=1 // pred_fallthru
      _
    // Predicated region
    $region54: #{dropoff_lstm_forward.5} parent=1 // pred_check
      _
    $region55: #{dropoff_lstm_forward.5} parent=1 // pred_check_branch
      %156 = sbr.rel (0) target = $region57
    $region56: #{dropoff_lstm_forward.5} parent=1 // pred_region
      %158 = dma.done [#allocation3], 2560
    $region57: #{dropoff_lstm_forward.5} parent=1 // pred_fallthru
      _
    // Predicated region
    $region58: #{dropoff_lstm_forward.5} parent=1 // pred_check
      _
    $region59: #{dropoff_lstm_forward.5} parent=1 // pred_check_branch
      %160 = sbr.rel (0) target = $region61
    $region60: #{dropoff_lstm_forward.5} parent=1 // pred_region
      %162 = dma.done [#allocation5], 128
    $region61: #{dropoff_lstm_forward.5} parent=1 // pred_fallthru
      _
    // Predicated region
    $region62: #{dropoff_lstm_forward.5} parent=1 // pred_check
      _
    $region63: #{dropoff_lstm_forward.5} parent=1 // pred_check_branch
      %164 = sbr.rel (0) target = $region65
    $region64: #{dropoff_lstm_forward.5} parent=1 // pred_region
      %166 = dma.done [#allocation5], 65536
    $region65: #{dropoff_lstm_forward.5} parent=1 // pred_fallthru
      _
    // Predicated region
    $region66: #{dropoff_lstm_forward.5} parent=1 // pred_check
      _
    $region67: #{dropoff_lstm_forward.5} parent=1 // pred_check_branch
      %168 = sbr.rel (0) target = $region69
    $region68: #{dropoff_lstm_forward.5} parent=1 // pred_region
      %170 = dma.done [#allocation8], 128
    $region69: #{dropoff_lstm_forward.5} parent=1 // pred_fallthru
      _
    // Predicated region
    $region70: #{dropoff_lstm_forward.5} parent=1 // pred_check
      _
    $region71: #{dropoff_lstm_forward.5} parent=1 // pred_check_branch
      %172 = sbr.rel (0) target = $region73
    $region72: #{dropoff_lstm_forward.5} parent=1 // pred_region
      %174 = dma.done [#allocation8], 128
    $region73: #{dropoff_lstm_forward.5} parent=1 // pred_fallthru
      _
    // Predicated region
    $region74: #{dropoff_lstm_forward.5} parent=1 // pred_check
      _
    $region75: #{dropoff_lstm_forward.5} parent=1 // pred_check_branch
      %176 = sbr.rel (0) target = $region77
    $region76: #{dropoff_lstm_forward.5} parent=1 // pred_region
      %178 = dma.done [#allocation11], 128
    $region77: #{dropoff_lstm_forward.5} parent=1 // pred_fallthru
      _
    // Predicated region
    $region78: #{dropoff_lstm_forward.5} parent=1 // pred_check
      _
    $region79: #{dropoff_lstm_forward.5} parent=1 // pred_check_branch
      %180 = sbr.rel (0) target = $region81
    $region80: #{dropoff_lstm_forward.5} parent=1 // pred_region
      %182 = dma.done [#allocation11], 65536
    $region81: #{dropoff_lstm_forward.5} parent=1 // pred_fallthru
      _
    // Predicated region
    $region82: #{dropoff_lstm_forward.5} parent=1 // pred_check
      _
    $region83: #{dropoff_lstm_forward.5} parent=1 // pred_check_branch
      %184 = sbr.rel (0) target = $region85
    $region84: #{dropoff_lstm_forward.5} parent=1 // pred_region
      %186 = dma.done [#allocation14], 128
    $region85: #{dropoff_lstm_forward.5} parent=1 // pred_fallthru
      _
    // Predicated region
    $region86: #{dropoff_lstm_forward.5} parent=1 // pred_check
      _
    $region87: #{dropoff_lstm_forward.5} parent=1 // pred_check_branch
      %188 = sbr.rel (0) target = $region89
    $region88: #{dropoff_lstm_forward.5} parent=1 // pred_region
      %190 = dma.done [#allocation14], 128
    $region89: #{dropoff_lstm_forward.5} parent=1 // pred_fallthru
      _
    // Predicated region
    $region90: #{dropoff_lstm_forward.5} parent=1 // pred_check
      _
    $region91: #{dropoff_lstm_forward.5} parent=1 // pred_check_branch
      %192 = sbr.rel (0) target = $region93
    $region92: #{dropoff_lstm_forward.5} parent=1 // pred_region
      %194 = dma.done [#allocation17], 128
    $region93: #{dropoff_lstm_forward.5} parent=1 // pred_fallthru
      _
    // Predicated region
    $region94: #{dropoff_lstm_forward.5} parent=1 // pred_check
      _
    $region95: #{dropoff_lstm_forward.5} parent=1 // pred_check_branch
      %196 = sbr.rel (0) target = $region97
    $region96: #{dropoff_lstm_forward.5} parent=1 // pred_region
      %198 = dma.done [#allocation17], 16
    $region97: #{dropoff_lstm_forward.5} parent=1 // pred_fallthru
      _
    %v200 = vld [vmem:[%s0] sm:$0xff]
    %v201 = vpack.c.bf16 %v200, %v200
    %v202 = vld [vmem:[#allocation2] sm:$0xff]
    %v203 = vld [vmem:[#allocation2 + $0x8] sm:$0xff]
    %v204 = vld [vmem:[#allocation2 + $0x10] sm:$0xff]
    %v205 = vld [vmem:[#allocation2 + $0x18] sm:$0xff]
    %v206 = vld [vmem:[#allocation2 + $0x20] sm:$0xff]
    %v207 = vld [vmem:[#allocation2 + $0x28] sm:$0xff]
    %v208 = vld [vmem:[#allocation2 + $0x30] sm:$0xff]
    %v209 = vld [vmem:[#allocation2 + $0x38] sm:$0xff]
    %v210 = vld [vmem:[#allocation2 + $0x40] sm:$0xff]
    %v211 = vld [vmem:[#allocation2 + $0x48] sm:$0xff]
    %v212 = vld [vmem:[#allocation2 + $0x50] sm:$0xff]
    %v213 = vld [vmem:[#allocation2 + $0x58] sm:$0xff]
    %v214 = vld [vmem:[#allocation2 + $0x60] sm:$0xff]
    %v215 = vld [vmem:[#allocation2 + $0x68] sm:$0xff]
    %v216 = vld [vmem:[#allocation2 + $0x70] sm:$0xff]
    %v217 = vld [vmem:[#allocation2 + $0x78] sm:$0xff]
    %v218 = vld [vmem:[#allocation2 + $0x80] sm:$0x33]
    %v219 = vld [vmem:[#allocation2 + $0x88] sm:$0x33]
    %v220 = vld [vmem:[#allocation2 + $0x90] sm:$0x33]
    %v221 = vld [vmem:[#allocation2 + $0x98] sm:$0x33]
    %v222 = vld [vmem:[#allocation4] sm:$0xff]
    %v224 = vperm.slane %v222, 0
    %v225 = vperm.slane %v222, 1
    %v226 = vperm.slane %v222, 2
    %v227 = vperm.slane %v222, 3
    %v228 = vperm.slane %v222, 4
    %v229 = vperm.slane %v222, 5
    %v230 = vperm.slane %v222, 6
    %v231 = vperm.slane %v222, 7
    %v260 = vunpack.c.l.b16 %v202
    %v261 = vunpack.c.h.b16 %v202
    %v262 = vunpack.c.l.b16 %v203
    %v263 = vunpack.c.h.b16 %v203
    %v264 = vunpack.c.l.b16 %v204
    %v265 = vunpack.c.h.b16 %v204
    %v266 = vunpack.c.l.b16 %v205
    %v267 = vunpack.c.h.b16 %v205
    %v268 = vunpack.c.l.b16 %v206
    %v269 = vunpack.c.h.b16 %v206
    %v270 = vunpack.c.l.b16 %v207
    %v271 = vunpack.c.h.b16 %v207
    %v272 = vunpack.c.l.b16 %v208
    %v273 = vunpack.c.h.b16 %v208
    %v274 = vunpack.c.l.b16 %v209
    %v275 = vunpack.c.h.b16 %v209
    %v276 = vunpack.c.l.b16 %v210
    %v277 = vunpack.c.h.b16 %v210
    %v278 = vunpack.c.l.b16 %v211
    %v279 = vunpack.c.h.b16 %v211
    %v280 = vunpack.c.l.b16 %v212
    %v281 = vunpack.c.h.b16 %v212
    %v282 = vunpack.c.l.b16 %v213
    %v283 = vunpack.c.h.b16 %v213
    %v284 = vunpack.c.l.b16 %v214
    %v285 = vunpack.c.h.b16 %v214
    %v286 = vunpack.c.l.b16 %v215
    %v287 = vunpack.c.h.b16 %v215
    %v288 = vunpack.c.l.b16 %v216
    %v289 = vunpack.c.h.b16 %v216
    %v290 = vunpack.c.l.b16 %v217
    %v291 = vunpack.c.h.b16 %v217
    %v292 = vunpack.c.l.b16 %v218
    %v293 = vunpack.c.h.b16 %v218
    %v294 = vunpack.c.l.b16 %v219
    %v295 = vunpack.c.h.b16 %v219
    %v296 = vunpack.c.l.b16 %v220
    %v297 = vunpack.c.h.b16 %v220
    %v298 = vunpack.c.l.b16 %v221
    %v299 = vunpack.c.h.b16 %v221
    %v300 = vpack.c.b16 %v268, %v260
    %v301 = vpack.c.b16 %v269, %v261
    %v302 = vpack.c.b16 %v270, %v262
    %v303 = vpack.c.b16 %v271, %v263
    %v304 = vpack.c.b16 %v272, %v264
    %v305 = vpack.c.b16 %v273, %v265
    %v306 = vpack.c.b16 %v274, %v266
    %v307 = vpack.c.b16 %v275, %v267
    %v308 = vpack.c.b16 %v284, %v276
    %v309 = vpack.c.b16 %v285, %v277
    %v310 = vpack.c.b16 %v286, %v278
    %v311 = vpack.c.b16 %v287, %v279
    %v312 = vpack.c.b16 %v288, %v280
    %v313 = vpack.c.b16 %v289, %v281
    %v314 = vpack.c.b16 %v290, %v282
    %v315 = vpack.c.b16 %v291, %v283
    %v316 = vpack.c.b16 %v292, %v292
    %v317 = vpack.c.b16 %v293, %v293
    %v318 = vpack.c.b16 %v294, %v294
    %v319 = vpack.c.b16 %v295, %v295
    %v320 = vpack.c.b16 %v296, %v296
    %v321 = vpack.c.b16 %v297, %v297
    %v322 = vpack.c.b16 %v298, %v298
    %v323 = vpack.c.b16 %v299, %v299
    %vm340 = vcmask 285696
    %v342 = vsel %vm340, %v201, 0
    %vm344 = vcmask 1040384
    %vm345 = vcmask 1041408
    %v346 = vsel %vm344, 4294967295, 65535
    %v347 = vsel %vm345, %v346, 0
    %v349 = vand.u32 %v316, %v347
    %v352 = vand.u32 %v317, %v347
    %v355 = vand.u32 %v318, %v347
    %v358 = vand.u32 %v319, %v347
    %v361 = vand.u32 %v320, %v347
    %v364 = vand.u32 %v321, %v347
    %v367 = vand.u32 %v322, %v347
    %v370 = vand.u32 %v323, %v347
    %372 = vmatpush.bf16.msra.mxu0 0
    %373 = vmatpush.bf16.msra.mxu0 0
    %374 = vmatpush.bf16.msra.mxu0 0
    %375 = vmatpush.bf16.msra.mxu0 0
    %376 = vmatpush.bf16.msra.mxu0 0
    %377 = vmatpush.bf16.msra.mxu0 %v349
    %378 = vmatpush.bf16.msra.mxu0 %v308
    %379 = vmatpush.bf16.msra.mxu0 %v300
    %380 = vmatmul.bf16.gmra.mxu0 %v342
    %v381 = vpop.f32.mrf.mxu0
    %v382 = vadd.f32 %v224, %v381
    %v383 = vpop.f32.mrf.mxu0
    %384 = vdwg.mxu0
    %385 = vmatpush.bf16.msra.mxu0 0
    %386 = vmatpush.bf16.msra.mxu0 0
    %387 = vmatpush.bf16.msra.mxu0 0
    %388 = vmatpush.bf16.msra.mxu0 0
    %389 = vmatpush.bf16.msra.mxu0 0
    %390 = vmatpush.bf16.msra.mxu0 %v352
    %391 = vmatpush.bf16.msra.mxu0 %v309
    %392 = vmatpush.bf16.msra.mxu0 %v301
    %393 = vmatmul.bf16.gmra.mxu0 %v342
    %v394 = vpop.f32.mrf.mxu0
    %v395 = vadd.f32 %v225, %v394
    %v396 = vpop.f32.mrf.mxu0
    %397 = vdwg.mxu0
    %398 = vmatpush.bf16.msra.mxu0 0
    %399 = vmatpush.bf16.msra.mxu0 0
    %400 = vmatpush.bf16.msra.mxu0 0
    %401 = vmatpush.bf16.msra.mxu0 0
    %402 = vmatpush.bf16.msra.mxu0 0
    %403 = vmatpush.bf16.msra.mxu0 %v355
    %404 = vmatpush.bf16.msra.mxu0 %v310
    %405 = vmatpush.bf16.msra.mxu0 %v302
    %406 = vmatmul.bf16.gmra.mxu0 %v342
    %v407 = vpop.f32.mrf.mxu0
    %v408 = vadd.f32 %v226, %v407
    %v409 = vpop.f32.mrf.mxu0
    %410 = vdwg.mxu0
    %411 = vmatpush.bf16.msra.mxu0 0
    %412 = vmatpush.bf16.msra.mxu0 0
    %413 = vmatpush.bf16.msra.mxu0 0
    %414 = vmatpush.bf16.msra.mxu0 0
    %415 = vmatpush.bf16.msra.mxu0 0
    %416 = vmatpush.bf16.msra.mxu0 %v358
    %417 = vmatpush.bf16.msra.mxu0 %v311
    %418 = vmatpush.bf16.msra.mxu0 %v303
    %419 = vmatmul.bf16.gmra.mxu0 %v342
    %v420 = vpop.f32.mrf.mxu0
    %v421 = vadd.f32 %v227, %v420
    %v422 = vpop.f32.mrf.mxu0
    %423 = vdwg.mxu0
    %424 = vmatpush.bf16.msra.mxu0 0
    %425 = vmatpush.bf16.msra.mxu0 0
    %426 = vmatpush.bf16.msra.mxu0 0
    %427 = vmatpush.bf16.msra.mxu0 0
    %428 = vmatpush.bf16.msra.mxu0 0
    %429 = vmatpush.bf16.msra.mxu0 %v361
    %430 = vmatpush.bf16.msra.mxu0 %v312
    %431 = vmatpush.bf16.msra.mxu0 %v304
    %432 = vmatmul.bf16.gmra.mxu0 %v342
    %v433 = vpop.f32.mrf.mxu0
    %v434 = vadd.f32 %v228, %v433
    %v435 = vpop.f32.mrf.mxu0
    %436 = vdwg.mxu0
    %437 = vmatpush.bf16.msra.mxu0 0
    %438 = vmatpush.bf16.msra.mxu0 0
    %439 = vmatpush.bf16.msra.mxu0 0
    %440 = vmatpush.bf16.msra.mxu0 0
    %441 = vmatpush.bf16.msra.mxu0 0
    %442 = vmatpush.bf16.msra.mxu0 %v364
    %443 = vmatpush.bf16.msra.mxu0 %v313
    %444 = vmatpush.bf16.msra.mxu0 %v305
    %445 = vmatmul.bf16.gmra.mxu0 %v342
    %v446 = vpop.f32.mrf.mxu0
    %v447 = vadd.f32 %v229, %v446
    %v448 = vpop.f32.mrf.mxu0
    %449 = vdwg.mxu0
    %450 = vmatpush.bf16.msra.mxu0 0
    %451 = vmatpush.bf16.msra.mxu0 0
    %452 = vmatpush.bf16.msra.mxu0 0
    %453 = vmatpush.bf16.msra.mxu0 0
    %454 = vmatpush.bf16.msra.mxu0 0
    %455 = vmatpush.bf16.msra.mxu0 %v367
    %456 = vmatpush.bf16.msra.mxu0 %v314
    %457 = vmatpush.bf16.msra.mxu0 %v306
    %458 = vmatmul.bf16.gmra.mxu0 %v342
    %v459 = vpop.f32.mrf.mxu0
    %v460 = vadd.f32 %v230, %v459
    %v461 = vpop.f32.mrf.mxu0
    %462 = vdwg.mxu0
    %463 = vmatpush.bf16.msra.mxu0 0
    %464 = vmatpush.bf16.msra.mxu0 0
    %465 = vmatpush.bf16.msra.mxu0 0
    %466 = vmatpush.bf16.msra.mxu0 0
    %467 = vmatpush.bf16.msra.mxu0 0
    %468 = vmatpush.bf16.msra.mxu0 %v370
    %469 = vmatpush.bf16.msra.mxu0 %v315
    %470 = vmatpush.bf16.msra.mxu0 %v307
    %471 = vmatmul.bf16.gmra.mxu0 %v342
    %v472 = vpop.f32.mrf.mxu0
    %v473 = vadd.f32 %v231, %v472
    %v474 = vpop.f32.mrf.mxu0
    %475 = vdwg.mxu0
    %v476 = vmax.f32 %v382, 0.0
    %v477 = vmax.f32 %v395, 0.0
    %v478 = vmax.f32 %v408, 0.0
    %v479 = vmax.f32 %v421, 0.0
    %v480 = vmax.f32 %v434, 0.0
    %v481 = vmax.f32 %v447, 0.0
    %v482 = vmax.f32 %v460, 0.0
    %v483 = vmax.f32 %v473, 0.0
    %v484 = vpack.c.bf16 %v476, %v476
    %v485 = vpack.c.bf16 %v477, %v477
    %v486 = vpack.c.bf16 %v478, %v478
    %v487 = vpack.c.bf16 %v479, %v479
    %v488 = vpack.c.bf16 %v480, %v480
    %v489 = vpack.c.bf16 %v481, %v481
    %v490 = vpack.c.bf16 %v482, %v482
    %v491 = vpack.c.bf16 %v483, %v483
    %v492 = vld [vmem:[#allocation6] sm:$0xff]
    %v493 = vld [vmem:[#allocation6 + $0x8] sm:$0xff]
    %v494 = vld [vmem:[#allocation6 + $0x10] sm:$0xff]
    %v495 = vld [vmem:[#allocation6 + $0x18] sm:$0xff]
    %v496 = vld [vmem:[#allocation6 + $0x20] sm:$0xff]
    %v497 = vld [vmem:[#allocation6 + $0x28] sm:$0xff]
    %v498 = vld [vmem:[#allocation6 + $0x30] sm:$0xff]
    %v499 = vld [vmem:[#allocation6 + $0x38] sm:$0xff]
    %v500 = vld [vmem:[#allocation6 + $0x40] sm:$0xff]
    %v501 = vld [vmem:[#allocation6 + $0x48] sm:$0xff]
    %v502 = vld [vmem:[#allocation6 + $0x50] sm:$0xff]
    %v503 = vld [vmem:[#allocation6 + $0x58] sm:$0xff]
    %v504 = vld [vmem:[#allocation6 + $0x60] sm:$0xff]
    %v505 = vld [vmem:[#allocation6 + $0x68] sm:$0xff]
    %v506 = vld [vmem:[#allocation6 + $0x70] sm:$0xff]
    %v507 = vld [vmem:[#allocation6 + $0x78] sm:$0xff]
    %v508 = vld [vmem:[#allocation6 + $0x80] sm:$0xff]
    %v509 = vld [vmem:[#allocation6 + $0x88] sm:$0xff]
    %v510 = vld [vmem:[#allocation6 + $0x90] sm:$0xff]
    %v511 = vld [vmem:[#allocation6 + $0x98] sm:$0xff]
    %v512 = vld [vmem:[#allocation6 + $0xa0] sm:$0xff]
    %v513 = vld [vmem:[#allocation6 + $0xa8] sm:$0xff]
    %v514 = vld [vmem:[#allocation6 + $0xb0] sm:$0xff]
    %v515 = vld [vmem:[#allocation6 + $0xb8] sm:$0xff]
    %v516 = vld [vmem:[#allocation6 + $0xc0] sm:$0xff]
    %v517 = vld [vmem:[#allocation6 + $0xc8] sm:$0xff]
    %v518 = vld [vmem:[#allocation6 + $0xd0] sm:$0xff]
    %v519 = vld [vmem:[#allocation6 + $0xd8] sm:$0xff]
    %v520 = vld [vmem:[#allocation6 + $0xe0] sm:$0xff]
    %v521 = vld [vmem:[#allocation6 + $0xe8] sm:$0xff]
    %v522 = vld [vmem:[#allocation6 + $0xf0] sm:$0xff]
    %v523 = vld [vmem:[#allocation6 + $0xf8] sm:$0xff]
    %v524 = vld [vmem:[#allocation6 + $0x100] sm:$0xff]
    %v525 = vld [vmem:[#allocation6 + $0x108] sm:$0xff]
    %v526 = vld [vmem:[#allocation6 + $0x110] sm:$0xff]
    %v527 = vld [vmem:[#allocation6 + $0x118] sm:$0xff]
    %v528 = vld [vmem:[#allocation6 + $0x120] sm:$0xff]
    %v529 = vld [vmem:[#allocation6 + $0x128] sm:$0xff]
    %v530 = vld [vmem:[#allocation6 + $0x130] sm:$0xff]
    %v531 = vld [vmem:[#allocation6 + $0x138] sm:$0xff]
    %v532 = vld [vmem:[#allocation6 + $0x140] sm:$0xff]
    %v533 = vld [vmem:[#allocation6 + $0x148] sm:$0xff]
    %v534 = vld [vmem:[#allocation6 + $0x150] sm:$0xff]
    %v535 = vld [vmem:[#allocation6 + $0x158] sm:$0xff]
    %v536 = vld [vmem:[#allocation6 + $0x160] sm:$0xff]
    %v537 = vld [vmem:[#allocation6 + $0x168] sm:$0xff]
    %v538 = vld [vmem:[#allocation6 + $0x170] sm:$0xff]
    %v539 = vld [vmem:[#allocation6 + $0x178] sm:$0xff]
    %v540 = vld [vmem:[#allocation6 + $0x180] sm:$0xff]
    %v541 = vld [vmem:[#allocation6 + $0x188] sm:$0xff]
    %v542 = vld [vmem:[#allocation6 + $0x190] sm:$0xff]
    %v543 = vld [vmem:[#allocation6 + $0x198] sm:$0xff]
    %v544 = vld [vmem:[#allocation6 + $0x1a0] sm:$0xff]
    %v545 = vld [vmem:[#allocation6 + $0x1a8] sm:$0xff]
    %v546 = vld [vmem:[#allocation6 + $0x1b0] sm:$0xff]
    %v547 = vld [vmem:[#allocation6 + $0x1b8] sm:$0xff]
    %v548 = vld [vmem:[#allocation6 + $0x1c0] sm:$0xff]
    %v549 = vld [vmem:[#allocation6 + $0x1c8] sm:$0xff]
    %v550 = vld [vmem:[#allocation6 + $0x1d0] sm:$0xff]
    %v551 = vld [vmem:[#allocation6 + $0x1d8] sm:$0xff]
    %v552 = vld [vmem:[#allocation6 + $0x1e0] sm:$0xff]
    %v553 = vld [vmem:[#allocation6 + $0x1e8] sm:$0xff]
    %v554 = vld [vmem:[#allocation6 + $0x1f0] sm:$0xff]
    %v555 = vld [vmem:[#allocation6 + $0x1f8] sm:$0xff]
    %v556 = vld [vmem:[#allocation6 + $0x200] sm:$0xff]
    %v557 = vld [vmem:[#allocation6 + $0x208] sm:$0xff]
    %v558 = vld [vmem:[#allocation6 + $0x210] sm:$0xff]
    %v559 = vld [vmem:[#allocation6 + $0x218] sm:$0xff]
    %v560 = vld [vmem:[#allocation6 + $0x220] sm:$0xff]
    %v561 = vld [vmem:[#allocation6 + $0x228] sm:$0xff]
    %v562 = vld [vmem:[#allocation6 + $0x230] sm:$0xff]
    %v563 = vld [vmem:[#allocation6 + $0x238] sm:$0xff]
    %v564 = vld [vmem:[#allocation6 + $0x240] sm:$0xff]
    %v565 = vld [vmem:[#allocation6 + $0x248] sm:$0xff]
    %v566 = vld [vmem:[#allocation6 + $0x250] sm:$0xff]
    %v567 = vld [vmem:[#allocation6 + $0x258] sm:$0xff]
    %v568 = vld [vmem:[#allocation6 + $0x260] sm:$0xff]
    %v569 = vld [vmem:[#allocation6 + $0x268] sm:$0xff]
    %v570 = vld [vmem:[#allocation6 + $0x270] sm:$0xff]
    %v571 = vld [vmem:[#allocation6 + $0x278] sm:$0xff]
    %v572 = vld [vmem:[#allocation6 + $0x280] sm:$0xff]
    %v573 = vld [vmem:[#allocation6 + $0x288] sm:$0xff]
    %v574 = vld [vmem:[#allocation6 + $0x290] sm:$0xff]
    %v575 = vld [vmem:[#allocation6 + $0x298] sm:$0xff]
    %v576 = vld [vmem:[#allocation6 + $0x2a0] sm:$0xff]
    %v577 = vld [vmem:[#allocation6 + $0x2a8] sm:$0xff]
    %v578 = vld [vmem:[#allocation6 + $0x2b0] sm:$0xff]
    %v579 = vld [vmem:[#allocation6 + $0x2b8] sm:$0xff]
    %v580 = vld [vmem:[#allocation6 + $0x2c0] sm:$0xff]
    %v581 = vld [vmem:[#allocation6 + $0x2c8] sm:$0xff]
    %v582 = vld [vmem:[#allocation6 + $0x2d0] sm:$0xff]
    %v583 = vld [vmem:[#allocation6 + $0x2d8] sm:$0xff]
    %v584 = vld [vmem:[#allocation6 + $0x2e0] sm:$0xff]
    %v585 = vld [vmem:[#allocation6 + $0x2e8] sm:$0xff]
    %v586 = vld [vmem:[#allocation6 + $0x2f0] sm:$0xff]
    %v587 = vld [vmem:[#allocation6 + $0x2f8] sm:$0xff]
    %v588 = vld [vmem:[#allocation6 + $0x300] sm:$0xff]
    %v589 = vld [vmem:[#allocation6 + $0x308] sm:$0xff]
    %v590 = vld [vmem:[#allocation6 + $0x310] sm:$0xff]
    %v591 = vld [vmem:[#allocation6 + $0x318] sm:$0xff]
    %v592 = vld [vmem:[#allocation6 + $0x320] sm:$0xff]
    %v593 = vld [vmem:[#allocation6 + $0x328] sm:$0xff]
    %v594 = vld [vmem:[#allocation6 + $0x330] sm:$0xff]
    %v595 = vld [vmem:[#allocation6 + $0x338] sm:$0xff]
    %v596 = vld [vmem:[#allocation6 + $0x340] sm:$0xff]
    %v597 = vld [vmem:[#allocation6 + $0x348] sm:$0xff]
    %v598 = vld [vmem:[#allocation6 + $0x350] sm:$0xff]
    %v599 = vld [vmem:[#allocation6 + $0x358] sm:$0xff]
    %v600 = vld [vmem:[#allocation6 + $0x360] sm:$0xff]
    %v601 = vld [vmem:[#allocation6 + $0x368] sm:$0xff]
    %v602 = vld [vmem:[#allocation6 + $0x370] sm:$0xff]
    %v603 = vld [vmem:[#allocation6 + $0x378] sm:$0xff]
    %v604 = vld [vmem:[#allocation6 + $0x380] sm:$0xff]
    %v605 = vld [vmem:[#allocation6 + $0x388] sm:$0xff]
    %v606 = vld [vmem:[#allocation6 + $0x390] sm:$0xff]
    %v607 = vld [vmem:[#allocation6 + $0x398] sm:$0xff]
    %v608 = vld [vmem:[#allocation6 + $0x3a0] sm:$0xff]
    %v609 = vld [vmem:[#allocation6 + $0x3a8] sm:$0xff]
    %v610 = vld [vmem:[#allocation6 + $0x3b0] sm:$0xff]
    %v611 = vld [vmem:[#allocation6 + $0x3b8] sm:$0xff]
    %v612 = vld [vmem:[#allocation6 + $0x3c0] sm:$0xff]
    %v613 = vld [vmem:[#allocation6 + $0x3c8] sm:$0xff]
    %v614 = vld [vmem:[#allocation6 + $0x3d0] sm:$0xff]
    %v615 = vld [vmem:[#allocation6 + $0x3d8] sm:$0xff]
    %v616 = vld [vmem:[#allocation6 + $0x3e0] sm:$0xff]
    %v617 = vld [vmem:[#allocation6 + $0x3e8] sm:$0xff]
    %v618 = vld [vmem:[#allocation6 + $0x3f0] sm:$0xff]
    %v619 = vld [vmem:[#allocation6 + $0x3f8] sm:$0xff]
    %v620 = vld [vmem:[#allocation6 + $0x400] sm:$0xff]
    %v621 = vld [vmem:[#allocation6 + $0x408] sm:$0xff]
    %v622 = vld [vmem:[#allocation6 + $0x410] sm:$0xff]
    %v623 = vld [vmem:[#allocation6 + $0x418] sm:$0xff]
    %v624 = vld [vmem:[#allocation6 + $0x420] sm:$0xff]
    %v625 = vld [vmem:[#allocation6 + $0x428] sm:$0xff]
    %v626 = vld [vmem:[#allocation6 + $0x430] sm:$0xff]
    %v627 = vld [vmem:[#allocation6 + $0x438] sm:$0xff]
    %v628 = vld [vmem:[#allocation6 + $0x440] sm:$0xff]
    %v629 = vld [vmem:[#allocation6 + $0x448] sm:$0xff]
    %v630 = vld [vmem:[#allocation6 + $0x450] sm:$0xff]
    %v631 = vld [vmem:[#allocation6 + $0x458] sm:$0xff]
    %v632 = vld [vmem:[#allocation6 + $0x460] sm:$0xff]
    %v633 = vld [vmem:[#allocation6 + $0x468] sm:$0xff]
    %v634 = vld [vmem:[#allocation6 + $0x470] sm:$0xff]
    %v635 = vld [vmem:[#allocation6 + $0x478] sm:$0xff]
    %v636 = vld [vmem:[#allocation6 + $0x480] sm:$0xff]
    %v637 = vld [vmem:[#allocation6 + $0x488] sm:$0xff]
    %v638 = vld [vmem:[#allocation6 + $0x490] sm:$0xff]
    %v639 = vld [vmem:[#allocation6 + $0x498] sm:$0xff]
    %v640 = vld [vmem:[#allocation6 + $0x4a0] sm:$0xff]
    %v641 = vld [vmem:[#allocation6 + $0x4a8] sm:$0xff]
    %v642 = vld [vmem:[#allocation6 + $0x4b0] sm:$0xff]
    %v643 = vld [vmem:[#allocation6 + $0x4b8] sm:$0xff]
    %v644 = vld [vmem:[#allocation6 + $0x4c0] sm:$0xff]
    %v645 = vld [vmem:[#allocation6 + $0x4c8] sm:$0xff]
    %v646 = vld [vmem:[#allocation6 + $0x4d0] sm:$0xff]
    %v647 = vld [vmem:[#allocation6 + $0x4d8] sm:$0xff]
    %v648 = vld [vmem:[#allocation6 + $0x4e0] sm:$0xff]
    %v649 = vld [vmem:[#allocation6 + $0x4e8] sm:$0xff]
    %v650 = vld [vmem:[#allocation6 + $0x4f0] sm:$0xff]
    %v651 = vld [vmem:[#allocation6 + $0x4f8] sm:$0xff]
    %v652 = vld [vmem:[#allocation6 + $0x500] sm:$0xff]
    %v653 = vld [vmem:[#allocation6 + $0x508] sm:$0xff]
    %v654 = vld [vmem:[#allocation6 + $0x510] sm:$0xff]
    %v655 = vld [vmem:[#allocation6 + $0x518] sm:$0xff]
    %v656 = vld [vmem:[#allocation6 + $0x520] sm:$0xff]
    %v657 = vld [vmem:[#allocation6 + $0x528] sm:$0xff]
    %v658 = vld [vmem:[#allocation6 + $0x530] sm:$0xff]
    %v659 = vld [vmem:[#allocation6 + $0x538] sm:$0xff]
    %v660 = vld [vmem:[#allocation6 + $0x540] sm:$0xff]
    %v661 = vld [vmem:[#allocation6 + $0x548] sm:$0xff]
    %v662 = vld [vmem:[#allocation6 + $0x550] sm:$0xff]
    %v663 = vld [vmem:[#allocation6 + $0x558] sm:$0xff]
    %v664 = vld [vmem:[#allocation6 + $0x560] sm:$0xff]
    %v665 = vld [vmem:[#allocation6 + $0x568] sm:$0xff]
    %v666 = vld [vmem:[#allocation6 + $0x570] sm:$0xff]
    %v667 = vld [vmem:[#allocation6 + $0x578] sm:$0xff]
    %v668 = vld [vmem:[#allocation6 + $0x580] sm:$0xff]
    %v669 = vld [vmem:[#allocation6 + $0x588] sm:$0xff]
    %v670 = vld [vmem:[#allocation6 + $0x590] sm:$0xff]
    %v671 = vld [vmem:[#allocation6 + $0x598] sm:$0xff]
    %v672 = vld [vmem:[#allocation6 + $0x5a0] sm:$0xff]
    %v673 = vld [vmem:[#allocation6 + $0x5a8] sm:$0xff]
    %v674 = vld [vmem:[#allocation6 + $0x5b0] sm:$0xff]
    %v675 = vld [vmem:[#allocation6 + $0x5b8] sm:$0xff]
    %v676 = vld [vmem:[#allocation6 + $0x5c0] sm:$0xff]
    %v677 = vld [vmem:[#allocation6 + $0x5c8] sm:$0xff]
    %v678 = vld [vmem:[#allocation6 + $0x5d0] sm:$0xff]
    %v679 = vld [vmem:[#allocation6 + $0x5d8] sm:$0xff]
    %v680 = vld [vmem:[#allocation6 + $0x5e0] sm:$0xff]
    %v681 = vld [vmem:[#allocation6 + $0x5e8] sm:$0xff]
    %v682 = vld [vmem:[#allocation6 + $0x5f0] sm:$0xff]
    %v683 = vld [vmem:[#allocation6 + $0x5f8] sm:$0xff]
    %v684 = vld [vmem:[#allocation6 + $0x600] sm:$0xff]
    %v685 = vld [vmem:[#allocation6 + $0x608] sm:$0xff]
    %v686 = vld [vmem:[#allocation6 + $0x610] sm:$0xff]
    %v687 = vld [vmem:[#allocation6 + $0x618] sm:$0xff]
    %v688 = vld [vmem:[#allocation6 + $0x620] sm:$0xff]
    %v689 = vld [vmem:[#allocation6 + $0x628] sm:$0xff]
    %v690 = vld [vmem:[#allocation6 + $0x630] sm:$0xff]
    %v691 = vld [vmem:[#allocation6 + $0x638] sm:$0xff]
    %v692 = vld [vmem:[#allocation6 + $0x640] sm:$0xff]
    %v693 = vld [vmem:[#allocation6 + $0x648] sm:$0xff]
    %v694 = vld [vmem:[#allocation6 + $0x650] sm:$0xff]
    %v695 = vld [vmem:[#allocation6 + $0x658] sm:$0xff]
    %v696 = vld [vmem:[#allocation6 + $0x660] sm:$0xff]
    %v697 = vld [vmem:[#allocation6 + $0x668] sm:$0xff]
    %v698 = vld [vmem:[#allocation6 + $0x670] sm:$0xff]
    %v699 = vld [vmem:[#allocation6 + $0x678] sm:$0xff]
    %v700 = vld [vmem:[#allocation6 + $0x680] sm:$0xff]
    %v701 = vld [vmem:[#allocation6 + $0x688] sm:$0xff]
    %v702 = vld [vmem:[#allocation6 + $0x690] sm:$0xff]
    %v703 = vld [vmem:[#allocation6 + $0x698] sm:$0xff]
    %v704 = vld [vmem:[#allocation6 + $0x6a0] sm:$0xff]
    %v705 = vld [vmem:[#allocation6 + $0x6a8] sm:$0xff]
    %v706 = vld [vmem:[#allocation6 + $0x6b0] sm:$0xff]
    %v707 = vld [vmem:[#allocation6 + $0x6b8] sm:$0xff]
    %v708 = vld [vmem:[#allocation6 + $0x6c0] sm:$0xff]
    %v709 = vld [vmem:[#allocation6 + $0x6c8] sm:$0xff]
    %v710 = vld [vmem:[#allocation6 + $0x6d0] sm:$0xff]
    %v711 = vld [vmem:[#allocation6 + $0x6d8] sm:$0xff]
    %v712 = vld [vmem:[#allocation6 + $0x6e0] sm:$0xff]
    %v713 = vld [vmem:[#allocation6 + $0x6e8] sm:$0xff]
    %v714 = vld [vmem:[#allocation6 + $0x6f0] sm:$0xff]
    %v715 = vld [vmem:[#allocation6 + $0x6f8] sm:$0xff]
    %v716 = vld [vmem:[#allocation6 + $0x700] sm:$0xff]
    %v717 = vld [vmem:[#allocation6 + $0x708] sm:$0xff]
    %v718 = vld [vmem:[#allocation6 + $0x710] sm:$0xff]
    %v719 = vld [vmem:[#allocation6 + $0x718] sm:$0xff]
    %v720 = vld [vmem:[#allocation6 + $0x720] sm:$0xff]
    %v721 = vld [vmem:[#allocation6 + $0x728] sm:$0xff]
    %v722 = vld [vmem:[#allocation6 + $0x730] sm:$0xff]
    %v723 = vld [vmem:[#allocation6 + $0x738] sm:$0xff]
    %v724 = vld [vmem:[#allocation6 + $0x740] sm:$0xff]
    %v725 = vld [vmem:[#allocation6 + $0x748] sm:$0xff]
    %v726 = vld [vmem:[#allocation6 + $0x750] sm:$0xff]
    %v727 = vld [vmem:[#allocation6 + $0x758] sm:$0xff]
    %v728 = vld [vmem:[#allocation6 + $0x760] sm:$0xff]
    %v729 = vld [vmem:[#allocation6 + $0x768] sm:$0xff]
    %v730 = vld [vmem:[#allocation6 + $0x770] sm:$0xff]
    %v731 = vld [vmem:[#allocation6 + $0x778] sm:$0xff]
    %v732 = vld [vmem:[#allocation6 + $0x780] sm:$0xff]
    %v733 = vld [vmem:[#allocation6 + $0x788] sm:$0xff]
    %v734 = vld [vmem:[#allocation6 + $0x790] sm:$0xff]
    %v735 = vld [vmem:[#allocation6 + $0x798] sm:$0xff]
    %v736 = vld [vmem:[#allocation6 + $0x7a0] sm:$0xff]
    %v737 = vld [vmem:[#allocation6 + $0x7a8] sm:$0xff]
    %v738 = vld [vmem:[#allocation6 + $0x7b0] sm:$0xff]
    %v739 = vld [vmem:[#allocation6 + $0x7b8] sm:$0xff]
    %v740 = vld [vmem:[#allocation6 + $0x7c0] sm:$0xff]
    %v741 = vld [vmem:[#allocation6 + $0x7c8] sm:$0xff]
    %v742 = vld [vmem:[#allocation6 + $0x7d0] sm:$0xff]
    %v743 = vld [vmem:[#allocation6 + $0x7d8] sm:$0xff]
    %v744 = vld [vmem:[#allocation6 + $0x7e0] sm:$0xff]
    %v745 = vld [vmem:[#allocation6 + $0x7e8] sm:$0xff]
    %v746 = vld [vmem:[#allocation6 + $0x7f0] sm:$0xff]
    %v747 = vld [vmem:[#allocation6 + $0x7f8] sm:$0xff]
    %v748 = vld [vmem:[#allocation6 + $0x800] sm:$0xff]
    %v749 = vld [vmem:[#allocation6 + $0x808] sm:$0xff]
    %v750 = vld [vmem:[#allocation6 + $0x810] sm:$0xff]
    %v751 = vld [vmem:[#allocation6 + $0x818] sm:$0xff]
    %v752 = vld [vmem:[#allocation6 + $0x820] sm:$0xff]
    %v753 = vld [vmem:[#allocation6 + $0x828] sm:$0xff]
    %v754 = vld [vmem:[#allocation6 + $0x830] sm:$0xff]
    %v755 = vld [vmem:[#allocation6 + $0x838] sm:$0xff]
    %v756 = vld [vmem:[#allocation6 + $0x840] sm:$0xff]
    %v757 = vld [vmem:[#allocation6 + $0x848] sm:$0xff]
    %v758 = vld [vmem:[#allocation6 + $0x850] sm:$0xff]
    %v759 = vld [vmem:[#allocation6 + $0x858] sm:$0xff]
    %v760 = vld [vmem:[#allocation6 + $0x860] sm:$0xff]
    %v761 = vld [vmem:[#allocation6 + $0x868] sm:$0xff]
    %v762 = vld [vmem:[#allocation6 + $0x870] sm:$0xff]
    %v763 = vld [vmem:[#allocation6 + $0x878] sm:$0xff]
    %v764 = vld [vmem:[#allocation6 + $0x880] sm:$0xff]
    %v765 = vld [vmem:[#allocation6 + $0x888] sm:$0xff]
    %v766 = vld [vmem:[#allocation6 + $0x890] sm:$0xff]
    %v767 = vld [vmem:[#allocation6 + $0x898] sm:$0xff]
    %v768 = vld [vmem:[#allocation6 + $0x8a0] sm:$0xff]
    %v769 = vld [vmem:[#allocation6 + $0x8a8] sm:$0xff]
    %v770 = vld [vmem:[#allocation6 + $0x8b0] sm:$0xff]
    %v771 = vld [vmem:[#allocation6 + $0x8b8] sm:$0xff]
    %v772 = vld [vmem:[#allocation6 + $0x8c0] sm:$0xff]
    %v773 = vld [vmem:[#allocation6 + $0x8c8] sm:$0xff]
    %v774 = vld [vmem:[#allocation6 + $0x8d0] sm:$0xff]
    %v775 = vld [vmem:[#allocation6 + $0x8d8] sm:$0xff]
    %v776 = vld [vmem:[#allocation6 + $0x8e0] sm:$0xff]
    %v777 = vld [vmem:[#allocation6 + $0x8e8] sm:$0xff]
    %v778 = vld [vmem:[#allocation6 + $0x8f0] sm:$0xff]
    %v779 = vld [vmem:[#allocation6 + $0x8f8] sm:$0xff]
    %v780 = vld [vmem:[#allocation6 + $0x900] sm:$0xff]
    %v781 = vld [vmem:[#allocation6 + $0x908] sm:$0xff]
    %v782 = vld [vmem:[#allocation6 + $0x910] sm:$0xff]
    %v783 = vld [vmem:[#allocation6 + $0x918] sm:$0xff]
    %v784 = vld [vmem:[#allocation6 + $0x920] sm:$0xff]
    %v785 = vld [vmem:[#allocation6 + $0x928] sm:$0xff]
    %v786 = vld [vmem:[#allocation6 + $0x930] sm:$0xff]
    %v787 = vld [vmem:[#allocation6 + $0x938] sm:$0xff]
    %v788 = vld [vmem:[#allocation6 + $0x940] sm:$0xff]
    %v789 = vld [vmem:[#allocation6 + $0x948] sm:$0xff]
    %v790 = vld [vmem:[#allocation6 + $0x950] sm:$0xff]
    %v791 = vld [vmem:[#allocation6 + $0x958] sm:$0xff]
    %v792 = vld [vmem:[#allocation6 + $0x960] sm:$0xff]
    %v793 = vld [vmem:[#allocation6 + $0x968] sm:$0xff]
    %v794 = vld [vmem:[#allocation6 + $0x970] sm:$0xff]
    %v795 = vld [vmem:[#allocation6 + $0x978] sm:$0xff]
    %v796 = vld [vmem:[#allocation6 + $0x980] sm:$0xff]
    %v797 = vld [vmem:[#allocation6 + $0x988] sm:$0xff]
    %v798 = vld [vmem:[#allocation6 + $0x990] sm:$0xff]
    %v799 = vld [vmem:[#allocation6 + $0x998] sm:$0xff]
    %v800 = vld [vmem:[#allocation6 + $0x9a0] sm:$0xff]
    %v801 = vld [vmem:[#allocation6 + $0x9a8] sm:$0xff]
    %v802 = vld [vmem:[#allocation6 + $0x9b0] sm:$0xff]
    %v803 = vld [vmem:[#allocation6 + $0x9b8] sm:$0xff]
    %v804 = vld [vmem:[#allocation6 + $0x9c0] sm:$0xff]
    %v805 = vld [vmem:[#allocation6 + $0x9c8] sm:$0xff]
    %v806 = vld [vmem:[#allocation6 + $0x9d0] sm:$0xff]
    %v807 = vld [vmem:[#allocation6 + $0x9d8] sm:$0xff]
    %v808 = vld [vmem:[#allocation6 + $0x9e0] sm:$0xff]
    %v809 = vld [vmem:[#allocation6 + $0x9e8] sm:$0xff]
    %v810 = vld [vmem:[#allocation6 + $0x9f0] sm:$0xff]
    %v811 = vld [vmem:[#allocation6 + $0x9f8] sm:$0xff]
    %v812 = vld [vmem:[#allocation6 + $0xa00] sm:$0xff]
    %v813 = vld [vmem:[#allocation6 + $0xa08] sm:$0xff]
    %v814 = vld [vmem:[#allocation6 + $0xa10] sm:$0xff]
    %v815 = vld [vmem:[#allocation6 + $0xa18] sm:$0xff]
    %v816 = vld [vmem:[#allocation6 + $0xa20] sm:$0xff]
    %v817 = vld [vmem:[#allocation6 + $0xa28] sm:$0xff]
    %v818 = vld [vmem:[#allocation6 + $0xa30] sm:$0xff]
    %v819 = vld [vmem:[#allocation6 + $0xa38] sm:$0xff]
    %v820 = vld [vmem:[#allocation6 + $0xa40] sm:$0xff]
    %v821 = vld [vmem:[#allocation6 + $0xa48] sm:$0xff]
    %v822 = vld [vmem:[#allocation6 + $0xa50] sm:$0xff]
    %v823 = vld [vmem:[#allocation6 + $0xa58] sm:$0xff]
    %v824 = vld [vmem:[#allocation6 + $0xa60] sm:$0xff]
    %v825 = vld [vmem:[#allocation6 + $0xa68] sm:$0xff]
    %v826 = vld [vmem:[#allocation6 + $0xa70] sm:$0xff]
    %v827 = vld [vmem:[#allocation6 + $0xa78] sm:$0xff]
    %v828 = vld [vmem:[#allocation6 + $0xa80] sm:$0xff]
    %v829 = vld [vmem:[#allocation6 + $0xa88] sm:$0xff]
    %v830 = vld [vmem:[#allocation6 + $0xa90] sm:$0xff]
    %v831 = vld [vmem:[#allocation6 + $0xa98] sm:$0xff]
    %v832 = vld [vmem:[#allocation6 + $0xaa0] sm:$0xff]
    %v833 = vld [vmem:[#allocation6 + $0xaa8] sm:$0xff]
    %v834 = vld [vmem:[#allocation6 + $0xab0] sm:$0xff]
    %v835 = vld [vmem:[#allocation6 + $0xab8] sm:$0xff]
    %v836 = vld [vmem:[#allocation6 + $0xac0] sm:$0xff]
    %v837 = vld [vmem:[#allocation6 + $0xac8] sm:$0xff]
    %v838 = vld [vmem:[#allocation6 + $0xad0] sm:$0xff]
    %v839 = vld [vmem:[#allocation6 + $0xad8] sm:$0xff]
    %v840 = vld [vmem:[#allocation6 + $0xae0] sm:$0xff]
    %v841 = vld [vmem:[#allocation6 + $0xae8] sm:$0xff]
    %v842 = vld [vmem:[#allocation6 + $0xaf0] sm:$0xff]
    %v843 = vld [vmem:[#allocation6 + $0xaf8] sm:$0xff]
    %v844 = vld [vmem:[#allocation6 + $0xb00] sm:$0xff]
    %v845 = vld [vmem:[#allocation6 + $0xb08] sm:$0xff]
    %v846 = vld [vmem:[#allocation6 + $0xb10] sm:$0xff]
    %v847 = vld [vmem:[#allocation6 + $0xb18] sm:$0xff]
    %v848 = vld [vmem:[#allocation6 + $0xb20] sm:$0xff]
    %v849 = vld [vmem:[#allocation6 + $0xb28] sm:$0xff]
    %v850 = vld [vmem:[#allocation6 + $0xb30] sm:$0xff]
    %v851 = vld [vmem:[#allocation6 + $0xb38] sm:$0xff]
    %v852 = vld [vmem:[#allocation6 + $0xb40] sm:$0xff]
    %v853 = vld [vmem:[#allocation6 + $0xb48] sm:$0xff]
    %v854 = vld [vmem:[#allocation6 + $0xb50] sm:$0xff]
    %v855 = vld [vmem:[#allocation6 + $0xb58] sm:$0xff]
    %v856 = vld [vmem:[#allocation6 + $0xb60] sm:$0xff]
    %v857 = vld [vmem:[#allocation6 + $0xb68] sm:$0xff]
    %v858 = vld [vmem:[#allocation6 + $0xb70] sm:$0xff]
    %v859 = vld [vmem:[#allocation6 + $0xb78] sm:$0xff]
    %v860 = vld [vmem:[#allocation6 + $0xb80] sm:$0xff]
    %v861 = vld [vmem:[#allocation6 + $0xb88] sm:$0xff]
    %v862 = vld [vmem:[#allocation6 + $0xb90] sm:$0xff]
    %v863 = vld [vmem:[#allocation6 + $0xb98] sm:$0xff]
    %v864 = vld [vmem:[#allocation6 + $0xba0] sm:$0xff]
    %v865 = vld [vmem:[#allocation6 + $0xba8] sm:$0xff]
    %v866 = vld [vmem:[#allocation6 + $0xbb0] sm:$0xff]
    %v867 = vld [vmem:[#allocation6 + $0xbb8] sm:$0xff]
    %v868 = vld [vmem:[#allocation6 + $0xbc0] sm:$0xff]
    %v869 = vld [vmem:[#allocation6 + $0xbc8] sm:$0xff]
    %v870 = vld [vmem:[#allocation6 + $0xbd0] sm:$0xff]
    %v871 = vld [vmem:[#allocation6 + $0xbd8] sm:$0xff]
    %v872 = vld [vmem:[#allocation6 + $0xbe0] sm:$0xff]
    %v873 = vld [vmem:[#allocation6 + $0xbe8] sm:$0xff]
    %v874 = vld [vmem:[#allocation6 + $0xbf0] sm:$0xff]
    %v875 = vld [vmem:[#allocation6 + $0xbf8] sm:$0xff]
    %v876 = vld [vmem:[#allocation6 + $0xc00] sm:$0xff]
    %v877 = vld [vmem:[#allocation6 + $0xc08] sm:$0xff]
    %v878 = vld [vmem:[#allocation6 + $0xc10] sm:$0xff]
    %v879 = vld [vmem:[#allocation6 + $0xc18] sm:$0xff]
    %v880 = vld [vmem:[#allocation6 + $0xc20] sm:$0xff]
    %v881 = vld [vmem:[#allocation6 + $0xc28] sm:$0xff]
    %v882 = vld [vmem:[#allocation6 + $0xc30] sm:$0xff]
    %v883 = vld [vmem:[#allocation6 + $0xc38] sm:$0xff]
    %v884 = vld [vmem:[#allocation6 + $0xc40] sm:$0xff]
    %v885 = vld [vmem:[#allocation6 + $0xc48] sm:$0xff]
    %v886 = vld [vmem:[#allocation6 + $0xc50] sm:$0xff]
    %v887 = vld [vmem:[#allocation6 + $0xc58] sm:$0xff]
    %v888 = vld [vmem:[#allocation6 + $0xc60] sm:$0xff]
    %v889 = vld [vmem:[#allocation6 + $0xc68] sm:$0xff]
    %v890 = vld [vmem:[#allocation6 + $0xc70] sm:$0xff]
    %v891 = vld [vmem:[#allocation6 + $0xc78] sm:$0xff]
    %v892 = vld [vmem:[#allocation6 + $0xc80] sm:$0xff]
    %v893 = vld [vmem:[#allocation6 + $0xc88] sm:$0xff]
    %v894 = vld [vmem:[#allocation6 + $0xc90] sm:$0xff]
    %v895 = vld [vmem:[#allocation6 + $0xc98] sm:$0xff]
    %v896 = vld [vmem:[#allocation6 + $0xca0] sm:$0xff]
    %v897 = vld [vmem:[#allocation6 + $0xca8] sm:$0xff]
    %v898 = vld [vmem:[#allocation6 + $0xcb0] sm:$0xff]
    %v899 = vld [vmem:[#allocation6 + $0xcb8] sm:$0xff]
    %v900 = vld [vmem:[#allocation6 + $0xcc0] sm:$0xff]
    %v901 = vld [vmem:[#allocation6 + $0xcc8] sm:$0xff]
    %v902 = vld [vmem:[#allocation6 + $0xcd0] sm:$0xff]
    %v903 = vld [vmem:[#allocation6 + $0xcd8] sm:$0xff]
    %v904 = vld [vmem:[#allocation6 + $0xce0] sm:$0xff]
    %v905 = vld [vmem:[#allocation6 + $0xce8] sm:$0xff]
    %v906 = vld [vmem:[#allocation6 + $0xcf0] sm:$0xff]
    %v907 = vld [vmem:[#allocation6 + $0xcf8] sm:$0xff]
    %v908 = vld [vmem:[#allocation6 + $0xd00] sm:$0xff]
    %v909 = vld [vmem:[#allocation6 + $0xd08] sm:$0xff]
    %v910 = vld [vmem:[#allocation6 + $0xd10] sm:$0xff]
    %v911 = vld [vmem:[#allocation6 + $0xd18] sm:$0xff]
    %v912 = vld [vmem:[#allocation6 + $0xd20] sm:$0xff]
    %v913 = vld [vmem:[#allocation6 + $0xd28] sm:$0xff]
    %v914 = vld [vmem:[#allocation6 + $0xd30] sm:$0xff]
    %v915 = vld [vmem:[#allocation6 + $0xd38] sm:$0xff]
    %v916 = vld [vmem:[#allocation6 + $0xd40] sm:$0xff]
    %v917 = vld [vmem:[#allocation6 + $0xd48] sm:$0xff]
    %v918 = vld [vmem:[#allocation6 + $0xd50] sm:$0xff]
    %v919 = vld [vmem:[#allocation6 + $0xd58] sm:$0xff]
    %v920 = vld [vmem:[#allocation6 + $0xd60] sm:$0xff]
    %v921 = vld [vmem:[#allocation6 + $0xd68] sm:$0xff]
    %v922 = vld [vmem:[#allocation6 + $0xd70] sm:$0xff]
    %v923 = vld [vmem:[#allocation6 + $0xd78] sm:$0xff]
    %v924 = vld [vmem:[#allocation6 + $0xd80] sm:$0xff]
    %v925 = vld [vmem:[#allocation6 + $0xd88] sm:$0xff]
    %v926 = vld [vmem:[#allocation6 + $0xd90] sm:$0xff]
    %v927 = vld [vmem:[#allocation6 + $0xd98] sm:$0xff]
    %v928 = vld [vmem:[#allocation6 + $0xda0] sm:$0xff]
    %v929 = vld [vmem:[#allocation6 + $0xda8] sm:$0xff]
    %v930 = vld [vmem:[#allocation6 + $0xdb0] sm:$0xff]
    %v931 = vld [vmem:[#allocation6 + $0xdb8] sm:$0xff]
    %v932 = vld [vmem:[#allocation6 + $0xdc0] sm:$0xff]
    %v933 = vld [vmem:[#allocation6 + $0xdc8] sm:$0xff]
    %v934 = vld [vmem:[#allocation6 + $0xdd0] sm:$0xff]
    %v935 = vld [vmem:[#allocation6 + $0xdd8] sm:$0xff]
    %v936 = vld [vmem:[#allocation6 + $0xde0] sm:$0xff]
    %v937 = vld [vmem:[#allocation6 + $0xde8] sm:$0xff]
    %v938 = vld [vmem:[#allocation6 + $0xdf0] sm:$0xff]
    %v939 = vld [vmem:[#allocation6 + $0xdf8] sm:$0xff]
    %v940 = vld [vmem:[#allocation6 + $0xe00] sm:$0xff]
    %v941 = vld [vmem:[#allocation6 + $0xe08] sm:$0xff]
    %v942 = vld [vmem:[#allocation6 + $0xe10] sm:$0xff]
    %v943 = vld [vmem:[#allocation6 + $0xe18] sm:$0xff]
    %v944 = vld [vmem:[#allocation6 + $0xe20] sm:$0xff]
    %v945 = vld [vmem:[#allocation6 + $0xe28] sm:$0xff]
    %v946 = vld [vmem:[#allocation6 + $0xe30] sm:$0xff]
    %v947 = vld [vmem:[#allocation6 + $0xe38] sm:$0xff]
    %v948 = vld [vmem:[#allocation6 + $0xe40] sm:$0xff]
    %v949 = vld [vmem:[#allocation6 + $0xe48] sm:$0xff]
    %v950 = vld [vmem:[#allocation6 + $0xe50] sm:$0xff]
    %v951 = vld [vmem:[#allocation6 + $0xe58] sm:$0xff]
    %v952 = vld [vmem:[#allocation6 + $0xe60] sm:$0xff]
    %v953 = vld [vmem:[#allocation6 + $0xe68] sm:$0xff]
    %v954 = vld [vmem:[#allocation6 + $0xe70] sm:$0xff]
    %v955 = vld [vmem:[#allocation6 + $0xe78] sm:$0xff]
    %v956 = vld [vmem:[#allocation6 + $0xe80] sm:$0xff]
    %v957 = vld [vmem:[#allocation6 + $0xe88] sm:$0xff]
    %v958 = vld [vmem:[#allocation6 + $0xe90] sm:$0xff]
    %v959 = vld [vmem:[#allocation6 + $0xe98] sm:$0xff]
    %v960 = vld [vmem:[#allocation6 + $0xea0] sm:$0xff]
    %v961 = vld [vmem:[#allocation6 + $0xea8] sm:$0xff]
    %v962 = vld [vmem:[#allocation6 + $0xeb0] sm:$0xff]
    %v963 = vld [vmem:[#allocation6 + $0xeb8] sm:$0xff]
    %v964 = vld [vmem:[#allocation6 + $0xec0] sm:$0xff]
    %v965 = vld [vmem:[#allocation6 + $0xec8] sm:$0xff]
    %v966 = vld [vmem:[#allocation6 + $0xed0] sm:$0xff]
    %v967 = vld [vmem:[#allocation6 + $0xed8] sm:$0xff]
    %v968 = vld [vmem:[#allocation6 + $0xee0] sm:$0xff]
    %v969 = vld [vmem:[#allocation6 + $0xee8] sm:$0xff]
    %v970 = vld [vmem:[#allocation6 + $0xef0] sm:$0xff]
    %v971 = vld [vmem:[#allocation6 + $0xef8] sm:$0xff]
    %v972 = vld [vmem:[#allocation6 + $0xf00] sm:$0xff]
    %v973 = vld [vmem:[#allocation6 + $0xf08] sm:$0xff]
    %v974 = vld [vmem:[#allocation6 + $0xf10] sm:$0xff]
    %v975 = vld [vmem:[#allocation6 + $0xf18] sm:$0xff]
    %v976 = vld [vmem:[#allocation6 + $0xf20] sm:$0xff]
    %v977 = vld [vmem:[#allocation6 + $0xf28] sm:$0xff]
    %v978 = vld [vmem:[#allocation6 + $0xf30] sm:$0xff]
    %v979 = vld [vmem:[#allocation6 + $0xf38] sm:$0xff]
    %v980 = vld [vmem:[#allocation6 + $0xf40] sm:$0xff]
    %v981 = vld [vmem:[#allocation6 + $0xf48] sm:$0xff]
    %v982 = vld [vmem:[#allocation6 + $0xf50] sm:$0xff]
    %v983 = vld [vmem:[#allocation6 + $0xf58] sm:$0xff]
    %v984 = vld [vmem:[#allocation6 + $0xf60] sm:$0xff]
    %v985 = vld [vmem:[#allocation6 + $0xf68] sm:$0xff]
    %v986 = vld [vmem:[#allocation6 + $0xf70] sm:$0xff]
    %v987 = vld [vmem:[#allocation6 + $0xf78] sm:$0xff]
    %v988 = vld [vmem:[#allocation6 + $0xf80] sm:$0xff]
    %v989 = vld [vmem:[#allocation6 + $0xf88] sm:$0xff]
    %v990 = vld [vmem:[#allocation6 + $0xf90] sm:$0xff]
    %v991 = vld [vmem:[#allocation6 + $0xf98] sm:$0xff]
    %v992 = vld [vmem:[#allocation6 + $0xfa0] sm:$0xff]
    %v993 = vld [vmem:[#allocation6 + $0xfa8] sm:$0xff]
    %v994 = vld [vmem:[#allocation6 + $0xfb0] sm:$0xff]
    %v995 = vld [vmem:[#allocation6 + $0xfb8] sm:$0xff]
    %v996 = vld [vmem:[#allocation6 + $0xfc0] sm:$0xff]
    %v997 = vld [vmem:[#allocation6 + $0xfc8] sm:$0xff]
    %v998 = vld [vmem:[#allocation6 + $0xfd0] sm:$0xff]
    %v999 = vld [vmem:[#allocation6 + $0xfd8] sm:$0xff]
    %v1000 = vld [vmem:[#allocation6 + $0xfe0] sm:$0xff]
    %v1001 = vld [vmem:[#allocation6 + $0xfe8] sm:$0xff]
    %v1002 = vld [vmem:[#allocation6 + $0xff0] sm:$0xff]
    %v1003 = vld [vmem:[#allocation6 + $0xff8] sm:$0xff]
    %v1004 = vld [vmem:[#allocation7] sm:$0xff]
    %v1006 = vperm.slane %v1004, 0
    %v1007 = vperm.slane %v1004, 1
    %v1008 = vperm.slane %v1004, 2
    %v1009 = vperm.slane %v1004, 3
    %v1010 = vperm.slane %v1004, 4
    %v1011 = vperm.slane %v1004, 5
    %v1012 = vperm.slane %v1004, 6
    %v1013 = vperm.slane %v1004, 7
    %v1534 = vunpack.c.l.b16 %v492
    %v1535 = vunpack.c.h.b16 %v492
    %v1536 = vunpack.c.l.b16 %v493
    %v1537 = vunpack.c.h.b16 %v493
    %v1538 = vunpack.c.l.b16 %v494
    %v1539 = vunpack.c.h.b16 %v494
    %v1540 = vunpack.c.l.b16 %v495
    %v1541 = vunpack.c.h.b16 %v495
    %v1542 = vunpack.c.l.b16 %v496
    %v1543 = vunpack.c.h.b16 %v496
    %v1544 = vunpack.c.l.b16 %v497
    %v1545 = vunpack.c.h.b16 %v497
    %v1546 = vunpack.c.l.b16 %v498
    %v1547 = vunpack.c.h.b16 %v498
    %v1548 = vunpack.c.l.b16 %v499
    %v1549 = vunpack.c.h.b16 %v499
    %v1550 = vunpack.c.l.b16 %v500
    %v1551 = vunpack.c.h.b16 %v500
    %v1552 = vunpack.c.l.b16 %v501
    %v1553 = vunpack.c.h.b16 %v501
    %v1554 = vunpack.c.l.b16 %v502
    %v1555 = vunpack.c.h.b16 %v502
    %v1556 = vunpack.c.l.b16 %v503
    %v1557 = vunpack.c.h.b16 %v503
    %v1558 = vunpack.c.l.b16 %v504
    %v1559 = vunpack.c.h.b16 %v504
    %v1560 = vunpack.c.l.b16 %v505
    %v1561 = vunpack.c.h.b16 %v505
    %v1562 = vunpack.c.l.b16 %v506
    %v1563 = vunpack.c.h.b16 %v506
    %v1564 = vunpack.c.l.b16 %v507
    %v1565 = vunpack.c.h.b16 %v507
    %v1566 = vunpack.c.l.b16 %v508
    %v1567 = vunpack.c.h.b16 %v508
    %v1568 = vunpack.c.l.b16 %v509
    %v1569 = vunpack.c.h.b16 %v509
    %v1570 = vunpack.c.l.b16 %v510
    %v1571 = vunpack.c.h.b16 %v510
    %v1572 = vunpack.c.l.b16 %v511
    %v1573 = vunpack.c.h.b16 %v511
    %v1574 = vunpack.c.l.b16 %v512
    %v1575 = vunpack.c.h.b16 %v512
    %v1576 = vunpack.c.l.b16 %v513
    %v1577 = vunpack.c.h.b16 %v513
    %v1578 = vunpack.c.l.b16 %v514
    %v1579 = vunpack.c.h.b16 %v514
    %v1580 = vunpack.c.l.b16 %v515
    %v1581 = vunpack.c.h.b16 %v515
    %v1582 = vunpack.c.l.b16 %v516
    %v1583 = vunpack.c.h.b16 %v516
    %v1584 = vunpack.c.l.b16 %v517
    %v1585 = vunpack.c.h.b16 %v517
    %v1586 = vunpack.c.l.b16 %v518
    %v1587 = vunpack.c.h.b16 %v518
    %v1588 = vunpack.c.l.b16 %v519
    %v1589 = vunpack.c.h.b16 %v519
    %v1590 = vunpack.c.l.b16 %v520
    %v1591 = vunpack.c.h.b16 %v520
    %v1592 = vunpack.c.l.b16 %v521
    %v1593 = vunpack.c.h.b16 %v521
    %v1594 = vunpack.c.l.b16 %v522
    %v1595 = vunpack.c.h.b16 %v522
    %v1596 = vunpack.c.l.b16 %v523
    %v1597 = vunpack.c.h.b16 %v523
    %v1598 = vunpack.c.l.b16 %v524
    %v1599 = vunpack.c.h.b16 %v524
    %v1600 = vunpack.c.l.b16 %v525
    %v1601 = vunpack.c.h.b16 %v525
    %v1602 = vunpack.c.l.b16 %v526
    %v1603 = vunpack.c.h.b16 %v526
    %v1604 = vunpack.c.l.b16 %v527
    %v1605 = vunpack.c.h.b16 %v527
    %v1606 = vunpack.c.l.b16 %v528
    %v1607 = vunpack.c.h.b16 %v528
    %v1608 = vunpack.c.l.b16 %v529
    %v1609 = vunpack.c.h.b16 %v529
    %v1610 = vunpack.c.l.b16 %v530
    %v1611 = vunpack.c.h.b16 %v530
    %v1612 = vunpack.c.l.b16 %v531
    %v1613 = vunpack.c.h.b16 %v531
    %v1614 = vunpack.c.l.b16 %v532
    %v1615 = vunpack.c.h.b16 %v532
    %v1616 = vunpack.c.l.b16 %v533
    %v1617 = vunpack.c.h.b16 %v533
    %v1618 = vunpack.c.l.b16 %v534
    %v1619 = vunpack.c.h.b16 %v534
    %v1620 = vunpack.c.l.b16 %v535
    %v1621 = vunpack.c.h.b16 %v535
    %v1622 = vunpack.c.l.b16 %v536
    %v1623 = vunpack.c.h.b16 %v536
    %v1624 = vunpack.c.l.b16 %v537
    %v1625 = vunpack.c.h.b16 %v537
    %v1626 = vunpack.c.l.b16 %v538
    %v1627 = vunpack.c.h.b16 %v538
    %v1628 = vunpack.c.l.b16 %v539
    %v1629 = vunpack.c.h.b16 %v539
    %v1630 = vunpack.c.l.b16 %v540
    %v1631 = vunpack.c.h.b16 %v540
    %v1632 = vunpack.c.l.b16 %v541
    %v1633 = vunpack.c.h.b16 %v541
    %v1634 = vunpack.c.l.b16 %v542
    %v1635 = vunpack.c.h.b16 %v542
    %v1636 = vunpack.c.l.b16 %v543
    %v1637 = vunpack.c.h.b16 %v543
    %v1638 = vunpack.c.l.b16 %v544
    %v1639 = vunpack.c.h.b16 %v544
    %v1640 = vunpack.c.l.b16 %v545
    %v1641 = vunpack.c.h.b16 %v545
    %v1642 = vunpack.c.l.b16 %v546
    %v1643 = vunpack.c.h.b16 %v546
    %v1644 = vunpack.c.l.b16 %v547
    %v1645 = vunpack.c.h.b16 %v547
    %v1646 = vunpack.c.l.b16 %v548
    %v1647 = vunpack.c.h.b16 %v548
    %v1648 = vunpack.c.l.b16 %v549
    %v1649 = vunpack.c.h.b16 %v549
    %v1650 = vunpack.c.l.b16 %v550
    %v1651 = vunpack.c.h.b16 %v550
    %v1652 = vunpack.c.l.b16 %v551
    %v1653 = vunpack.c.h.b16 %v551
    %v1654 = vunpack.c.l.b16 %v552
    %v1655 = vunpack.c.h.b16 %v552
    %v1656 = vunpack.c.l.b16 %v553
    %v1657 = vunpack.c.h.b16 %v553
    %v1658 = vunpack.c.l.b16 %v554
    %v1659 = vunpack.c.h.b16 %v554
    %v1660 = vunpack.c.l.b16 %v555
    %v1661 = vunpack.c.h.b16 %v555
    %v1662 = vunpack.c.l.b16 %v556
    %v1663 = vunpack.c.h.b16 %v556
    %v1664 = vunpack.c.l.b16 %v557
    %v1665 = vunpack.c.h.b16 %v557
    %v1666 = vunpack.c.l.b16 %v558
    %v1667 = vunpack.c.h.b16 %v558
    %v1668 = vunpack.c.l.b16 %v559
    %v1669 = vunpack.c.h.b16 %v559
    %v1670 = vunpack.c.l.b16 %v560
    %v1671 = vunpack.c.h.b16 %v560
    %v1672 = vunpack.c.l.b16 %v561
    %v1673 = vunpack.c.h.b16 %v561
    %v1674 = vunpack.c.l.b16 %v562
    %v1675 = vunpack.c.h.b16 %v562
    %v1676 = vunpack.c.l.b16 %v563
    %v1677 = vunpack.c.h.b16 %v563
    %v1678 = vunpack.c.l.b16 %v564
    %v1679 = vunpack.c.h.b16 %v564
    %v1680 = vunpack.c.l.b16 %v565
    %v1681 = vunpack.c.h.b16 %v565
    %v1682 = vunpack.c.l.b16 %v566
    %v1683 = vunpack.c.h.b16 %v566
    %v1684 = vunpack.c.l.b16 %v567
    %v1685 = vunpack.c.h.b16 %v567
    %v1686 = vunpack.c.l.b16 %v568
    %v1687 = vunpack.c.h.b16 %v568
    %v1688 = vunpack.c.l.b16 %v569
    %v1689 = vunpack.c.h.b16 %v569
    %v1690 = vunpack.c.l.b16 %v570
    %v1691 = vunpack.c.h.b16 %v570
    %v1692 = vunpack.c.l.b16 %v571
    %v1693 = vunpack.c.h.b16 %v571
    %v1694 = vunpack.c.l.b16 %v572
    %v1695 = vunpack.c.h.b16 %v572
    %v1696 = vunpack.c.l.b16 %v573
    %v1697 = vunpack.c.h.b16 %v573
    %v1698 = vunpack.c.l.b16 %v574
    %v1699 = vunpack.c.h.b16 %v574
    %v1700 = vunpack.c.l.b16 %v575
    %v1701 = vunpack.c.h.b16 %v575
    %v1702 = vunpack.c.l.b16 %v576
    %v1703 = vunpack.c.h.b16 %v576
    %v1704 = vunpack.c.l.b16 %v577
    %v1705 = vunpack.c.h.b16 %v577
    %v1706 = vunpack.c.l.b16 %v578
    %v1707 = vunpack.c.h.b16 %v578
    %v1708 = vunpack.c.l.b16 %v579
    %v1709 = vunpack.c.h.b16 %v579
    %v1710 = vunpack.c.l.b16 %v580
    %v1711 = vunpack.c.h.b16 %v580
    %v1712 = vunpack.c.l.b16 %v581
    %v1713 = vunpack.c.h.b16 %v581
    %v1714 = vunpack.c.l.b16 %v582
    %v1715 = vunpack.c.h.b16 %v582
    %v1716 = vunpack.c.l.b16 %v583
    %v1717 = vunpack.c.h.b16 %v583
    %v1718 = vunpack.c.l.b16 %v584
    %v1719 = vunpack.c.h.b16 %v584
    %v1720 = vunpack.c.l.b16 %v585
    %v1721 = vunpack.c.h.b16 %v585
    %v1722 = vunpack.c.l.b16 %v586
    %v1723 = vunpack.c.h.b16 %v586
    %v1724 = vunpack.c.l.b16 %v587
    %v1725 = vunpack.c.h.b16 %v587
    %v1726 = vunpack.c.l.b16 %v588
    %v1727 = vunpack.c.h.b16 %v588
    %v1728 = vunpack.c.l.b16 %v589
    %v1729 = vunpack.c.h.b16 %v589
    %v1730 = vunpack.c.l.b16 %v590
    %v1731 = vunpack.c.h.b16 %v590
    %v1732 = vunpack.c.l.b16 %v591
    %v1733 = vunpack.c.h.b16 %v591
    %v1734 = vunpack.c.l.b16 %v592
    %v1735 = vunpack.c.h.b16 %v592
    %v1736 = vunpack.c.l.b16 %v593
    %v1737 = vunpack.c.h.b16 %v593
    %v1738 = vunpack.c.l.b16 %v594
    %v1739 = vunpack.c.h.b16 %v594
    %v1740 = vunpack.c.l.b16 %v595
    %v1741 = vunpack.c.h.b16 %v595
    %v1742 = vunpack.c.l.b16 %v596
    %v1743 = vunpack.c.h.b16 %v596
    %v1744 = vunpack.c.l.b16 %v597
    %v1745 = vunpack.c.h.b16 %v597
    %v1746 = vunpack.c.l.b16 %v598
    %v1747 = vunpack.c.h.b16 %v598
    %v1748 = vunpack.c.l.b16 %v599
    %v1749 = vunpack.c.h.b16 %v599
    %v1750 = vunpack.c.l.b16 %v600
    %v1751 = vunpack.c.h.b16 %v600
    %v1752 = vunpack.c.l.b16 %v601
    %v1753 = vunpack.c.h.b16 %v601
    %v1754 = vunpack.c.l.b16 %v602
    %v1755 = vunpack.c.h.b16 %v602
    %v1756 = vunpack.c.l.b16 %v603
    %v1757 = vunpack.c.h.b16 %v603
    %v1758 = vunpack.c.l.b16 %v604
    %v1759 = vunpack.c.h.b16 %v604
    %v1760 = vunpack.c.l.b16 %v605
    %v1761 = vunpack.c.h.b16 %v605
    %v1762 = vunpack.c.l.b16 %v606
    %v1763 = vunpack.c.h.b16 %v606
    %v1764 = vunpack.c.l.b16 %v607
    %v1765 = vunpack.c.h.b16 %v607
    %v1766 = vunpack.c.l.b16 %v608
    %v1767 = vunpack.c.h.b16 %v608
    %v1768 = vunpack.c.l.b16 %v609
    %v1769 = vunpack.c.h.b16 %v609
    %v1770 = vunpack.c.l.b16 %v610
    %v1771 = vunpack.c.h.b16 %v610
    %v1772 = vunpack.c.l.b16 %v611
    %v1773 = vunpack.c.h.b16 %v611
    %v1774 = vunpack.c.l.b16 %v612
    %v1775 = vunpack.c.h.b16 %v612
    %v1776 = vunpack.c.l.b16 %v613
    %v1777 = vunpack.c.h.b16 %v613
    %v1778 = vunpack.c.l.b16 %v614
    %v1779 = vunpack.c.h.b16 %v614
    %v1780 = vunpack.c.l.b16 %v615
    %v1781 = vunpack.c.h.b16 %v615
    %v1782 = vunpack.c.l.b16 %v616
    %v1783 = vunpack.c.h.b16 %v616
    %v1784 = vunpack.c.l.b16 %v617
    %v1785 = vunpack.c.h.b16 %v617
    %v1786 = vunpack.c.l.b16 %v618
    %v1787 = vunpack.c.h.b16 %v618
    %v1788 = vunpack.c.l.b16 %v619
    %v1789 = vunpack.c.h.b16 %v619
    %v1790 = vunpack.c.l.b16 %v620
    %v1791 = vunpack.c.h.b16 %v620
    %v1792 = vunpack.c.l.b16 %v621
    %v1793 = vunpack.c.h.b16 %v621
    %v1794 = vunpack.c.l.b16 %v622
    %v1795 = vunpack.c.h.b16 %v622
    %v1796 = vunpack.c.l.b16 %v623
    %v1797 = vunpack.c.h.b16 %v623
    %v1798 = vunpack.c.l.b16 %v624
    %v1799 = vunpack.c.h.b16 %v624
    %v1800 = vunpack.c.l.b16 %v625
    %v1801 = vunpack.c.h.b16 %v625
    %v1802 = vunpack.c.l.b16 %v626
    %v1803 = vunpack.c.h.b16 %v626
    %v1804 = vunpack.c.l.b16 %v627
    %v1805 = vunpack.c.h.b16 %v627
    %v1806 = vunpack.c.l.b16 %v628
    %v1807 = vunpack.c.h.b16 %v628
    %v1808 = vunpack.c.l.b16 %v629
    %v1809 = vunpack.c.h.b16 %v629
    %v1810 = vunpack.c.l.b16 %v630
    %v1811 = vunpack.c.h.b16 %v630
    %v1812 = vunpack.c.l.b16 %v631
    %v1813 = vunpack.c.h.b16 %v631
    %v1814 = vunpack.c.l.b16 %v632
    %v1815 = vunpack.c.h.b16 %v632
    %v1816 = vunpack.c.l.b16 %v633
    %v1817 = vunpack.c.h.b16 %v633
    %v1818 = vunpack.c.l.b16 %v634
    %v1819 = vunpack.c.h.b16 %v634
    %v1820 = vunpack.c.l.b16 %v635
    %v1821 = vunpack.c.h.b16 %v635
    %v1822 = vunpack.c.l.b16 %v636
    %v1823 = vunpack.c.h.b16 %v636
    %v1824 = vunpack.c.l.b16 %v637
    %v1825 = vunpack.c.h.b16 %v637
    %v1826 = vunpack.c.l.b16 %v638
    %v1827 = vunpack.c.h.b16 %v638
    %v1828 = vunpack.c.l.b16 %v639
    %v1829 = vunpack.c.h.b16 %v639
    %v1830 = vunpack.c.l.b16 %v640
    %v1831 = vunpack.c.h.b16 %v640
    %v1832 = vunpack.c.l.b16 %v641
    %v1833 = vunpack.c.h.b16 %v641
    %v1834 = vunpack.c.l.b16 %v642
    %v1835 = vunpack.c.h.b16 %v642
    %v1836 = vunpack.c.l.b16 %v643
    %v1837 = vunpack.c.h.b16 %v643
    %v1838 = vunpack.c.l.b16 %v644
    %v1839 = vunpack.c.h.b16 %v644
    %v1840 = vunpack.c.l.b16 %v645
    %v1841 = vunpack.c.h.b16 %v645
    %v1842 = vunpack.c.l.b16 %v646
    %v1843 = vunpack.c.h.b16 %v646
    %v1844 = vunpack.c.l.b16 %v647
    %v1845 = vunpack.c.h.b16 %v647
    %v1846 = vunpack.c.l.b16 %v648
    %v1847 = vunpack.c.h.b16 %v648
    %v1848 = vunpack.c.l.b16 %v649
    %v1849 = vunpack.c.h.b16 %v649
    %v1850 = vunpack.c.l.b16 %v650
    %v1851 = vunpack.c.h.b16 %v650
    %v1852 = vunpack.c.l.b16 %v651
    %v1853 = vunpack.c.h.b16 %v651
    %v1854 = vunpack.c.l.b16 %v652
    %v1855 = vunpack.c.h.b16 %v652
    %v1856 = vunpack.c.l.b16 %v653
    %v1857 = vunpack.c.h.b16 %v653
    %v1858 = vunpack.c.l.b16 %v654
    %v1859 = vunpack.c.h.b16 %v654
    %v1860 = vunpack.c.l.b16 %v655
    %v1861 = vunpack.c.h.b16 %v655
    %v1862 = vunpack.c.l.b16 %v656
    %v1863 = vunpack.c.h.b16 %v656
    %v1864 = vunpack.c.l.b16 %v657
    %v1865 = vunpack.c.h.b16 %v657
    %v1866 = vunpack.c.l.b16 %v658
    %v1867 = vunpack.c.h.b16 %v658
    %v1868 = vunpack.c.l.b16 %v659
    %v1869 = vunpack.c.h.b16 %v659
    %v1870 = vunpack.c.l.b16 %v660
    %v1871 = vunpack.c.h.b16 %v660
    %v1872 = vunpack.c.l.b16 %v661
    %v1873 = vunpack.c.h.b16 %v661
    %v1874 = vunpack.c.l.b16 %v662
    %v1875 = vunpack.c.h.b16 %v662
    %v1876 = vunpack.c.l.b16 %v663
    %v1877 = vunpack.c.h.b16 %v663
    %v1878 = vunpack.c.l.b16 %v664
    %v1879 = vunpack.c.h.b16 %v664
    %v1880 = vunpack.c.l.b16 %v665
    %v1881 = vunpack.c.h.b16 %v665
    %v1882 = vunpack.c.l.b16 %v666
    %v1883 = vunpack.c.h.b16 %v666
    %v1884 = vunpack.c.l.b16 %v667
    %v1885 = vunpack.c.h.b16 %v667
    %v1886 = vunpack.c.l.b16 %v668
    %v1887 = vunpack.c.h.b16 %v668
    %v1888 = vunpack.c.l.b16 %v669
    %v1889 = vunpack.c.h.b16 %v669
    %v1890 = vunpack.c.l.b16 %v670
    %v1891 = vunpack.c.h.b16 %v670
    %v1892 = vunpack.c.l.b16 %v671
    %v1893 = vunpack.c.h.b16 %v671
    %v1894 = vunpack.c.l.b16 %v672
    %v1895 = vunpack.c.h.b16 %v672
    %v1896 = vunpack.c.l.b16 %v673
    %v1897 = vunpack.c.h.b16 %v673
    %v1898 = vunpack.c.l.b16 %v674
    %v1899 = vunpack.c.h.b16 %v674
    %v1900 = vunpack.c.l.b16 %v675
    %v1901 = vunpack.c.h.b16 %v675
    %v1902 = vunpack.c.l.b16 %v676
    %v1903 = vunpack.c.h.b16 %v676
    %v1904 = vunpack.c.l.b16 %v677
    %v1905 = vunpack.c.h.b16 %v677
    %v1906 = vunpack.c.l.b16 %v678
    %v1907 = vunpack.c.h.b16 %v678
    %v1908 = vunpack.c.l.b16 %v679
    %v1909 = vunpack.c.h.b16 %v679
    %v1910 = vunpack.c.l.b16 %v680
    %v1911 = vunpack.c.h.b16 %v680
    %v1912 = vunpack.c.l.b16 %v681
    %v1913 = vunpack.c.h.b16 %v681
    %v1914 = vunpack.c.l.b16 %v682
    %v1915 = vunpack.c.h.b16 %v682
    %v1916 = vunpack.c.l.b16 %v683
    %v1917 = vunpack.c.h.b16 %v683
    %v1918 = vunpack.c.l.b16 %v684
    %v1919 = vunpack.c.h.b16 %v684
    %v1920 = vunpack.c.l.b16 %v685
    %v1921 = vunpack.c.h.b16 %v685
    %v1922 = vunpack.c.l.b16 %v686
    %v1923 = vunpack.c.h.b16 %v686
    %v1924 = vunpack.c.l.b16 %v687
    %v1925 = vunpack.c.h.b16 %v687
    %v1926 = vunpack.c.l.b16 %v688
    %v1927 = vunpack.c.h.b16 %v688
    %v1928 = vunpack.c.l.b16 %v689
    %v1929 = vunpack.c.h.b16 %v689
    %v1930 = vunpack.c.l.b16 %v690
    %v1931 = vunpack.c.h.b16 %v690
    %v1932 = vunpack.c.l.b16 %v691
    %v1933 = vunpack.c.h.b16 %v691
    %v1934 = vunpack.c.l.b16 %v692
    %v1935 = vunpack.c.h.b16 %v692
    %v1936 = vunpack.c.l.b16 %v693
    %v1937 = vunpack.c.h.b16 %v693
    %v1938 = vunpack.c.l.b16 %v694
    %v1939 = vunpack.c.h.b16 %v694
    %v1940 = vunpack.c.l.b16 %v695
    %v1941 = vunpack.c.h.b16 %v695
    %v1942 = vunpack.c.l.b16 %v696
    %v1943 = vunpack.c.h.b16 %v696
    %v1944 = vunpack.c.l.b16 %v697
    %v1945 = vunpack.c.h.b16 %v697
    %v1946 = vunpack.c.l.b16 %v698
    %v1947 = vunpack.c.h.b16 %v698
    %v1948 = vunpack.c.l.b16 %v699
    %v1949 = vunpack.c.h.b16 %v699
    %v1950 = vunpack.c.l.b16 %v700
    %v1951 = vunpack.c.h.b16 %v700
    %v1952 = vunpack.c.l.b16 %v701
    %v1953 = vunpack.c.h.b16 %v701
    %v1954 = vunpack.c.l.b16 %v702
    %v1955 = vunpack.c.h.b16 %v702
    %v1956 = vunpack.c.l.b16 %v703
    %v1957 = vunpack.c.h.b16 %v703
    %v1958 = vunpack.c.l.b16 %v704
    %v1959 = vunpack.c.h.b16 %v704
    %v1960 = vunpack.c.l.b16 %v705
    %v1961 = vunpack.c.h.b16 %v705
    %v1962 = vunpack.c.l.b16 %v706
    %v1963 = vunpack.c.h.b16 %v706
    %v1964 = vunpack.c.l.b16 %v707
    %v1965 = vunpack.c.h.b16 %v707
    %v1966 = vunpack.c.l.b16 %v708
    %v1967 = vunpack.c.h.b16 %v708
    %v1968 = vunpack.c.l.b16 %v709
    %v1969 = vunpack.c.h.b16 %v709
    %v1970 = vunpack.c.l.b16 %v710
    %v1971 = vunpack.c.h.b16 %v710
    %v1972 = vunpack.c.l.b16 %v711
    %v1973 = vunpack.c.h.b16 %v711
    %v1974 = vunpack.c.l.b16 %v712
    %v1975 = vunpack.c.h.b16 %v712
    %v1976 = vunpack.c.l.b16 %v713
    %v1977 = vunpack.c.h.b16 %v713
    %v1978 = vunpack.c.l.b16 %v714
    %v1979 = vunpack.c.h.b16 %v714
    %v1980 = vunpack.c.l.b16 %v715
    %v1981 = vunpack.c.h.b16 %v715
    %v1982 = vunpack.c.l.b16 %v716
    %v1983 = vunpack.c.h.b16 %v716
    %v1984 = vunpack.c.l.b16 %v717
    %v1985 = vunpack.c.h.b16 %v717
    %v1986 = vunpack.c.l.b16 %v718
    %v1987 = vunpack.c.h.b16 %v718
    %v1988 = vunpack.c.l.b16 %v719
    %v1989 = vunpack.c.h.b16 %v719
    %v1990 = vunpack.c.l.b16 %v720
    %v1991 = vunpack.c.h.b16 %v720
    %v1992 = vunpack.c.l.b16 %v721
    %v1993 = vunpack.c.h.b16 %v721
    %v1994 = vunpack.c.l.b16 %v722
    %v1995 = vunpack.c.h.b16 %v722
    %v1996 = vunpack.c.l.b16 %v723
    %v1997 = vunpack.c.h.b16 %v723
    %v1998 = vunpack.c.l.b16 %v724
    %v1999 = vunpack.c.h.b16 %v724
    %v2000 = vunpack.c.l.b16 %v725
    %v2001 = vunpack.c.h.b16 %v725
    %v2002 = vunpack.c.l.b16 %v726
    %v2003 = vunpack.c.h.b16 %v726
    %v2004 = vunpack.c.l.b16 %v727
    %v2005 = vunpack.c.h.b16 %v727
    %v2006 = vunpack.c.l.b16 %v728
    %v2007 = vunpack.c.h.b16 %v728
    %v2008 = vunpack.c.l.b16 %v729
    %v2009 = vunpack.c.h.b16 %v729
    %v2010 = vunpack.c.l.b16 %v730
    %v2011 = vunpack.c.h.b16 %v730
    %v2012 = vunpack.c.l.b16 %v731
    %v2013 = vunpack.c.h.b16 %v731
    %v2014 = vunpack.c.l.b16 %v732
    %v2015 = vunpack.c.h.b16 %v732
    %v2016 = vunpack.c.l.b16 %v733
    %v2017 = vunpack.c.h.b16 %v733
    %v2018 = vunpack.c.l.b16 %v734
    %v2019 = vunpack.c.h.b16 %v734
    %v2020 = vunpack.c.l.b16 %v735
    %v2021 = vunpack.c.h.b16 %v735
    %v2022 = vunpack.c.l.b16 %v736
    %v2023 = vunpack.c.h.b16 %v736
    %v2024 = vunpack.c.l.b16 %v737
    %v2025 = vunpack.c.h.b16 %v737
    %v2026 = vunpack.c.l.b16 %v738
    %v2027 = vunpack.c.h.b16 %v738
    %v2028 = vunpack.c.l.b16 %v739
    %v2029 = vunpack.c.h.b16 %v739
    %v2030 = vunpack.c.l.b16 %v740
    %v2031 = vunpack.c.h.b16 %v740
    %v2032 = vunpack.c.l.b16 %v741
    %v2033 = vunpack.c.h.b16 %v741
    %v2034 = vunpack.c.l.b16 %v742
    %v2035 = vunpack.c.h.b16 %v742
    %v2036 = vunpack.c.l.b16 %v743
    %v2037 = vunpack.c.h.b16 %v743
    %v2038 = vunpack.c.l.b16 %v744
    %v2039 = vunpack.c.h.b16 %v744
    %v2040 = vunpack.c.l.b16 %v745
    %v2041 = vunpack.c.h.b16 %v745
    %v2042 = vunpack.c.l.b16 %v746
    %v2043 = vunpack.c.h.b16 %v746
    %v2044 = vunpack.c.l.b16 %v747
    %v2045 = vunpack.c.h.b16 %v747
    %v2046 = vunpack.c.l.b16 %v748
    %v2047 = vunpack.c.h.b16 %v748
    %v2048 = vunpack.c.l.b16 %v749
    %v2049 = vunpack.c.h.b16 %v749
    %v2050 = vunpack.c.l.b16 %v750
    %v2051 = vunpack.c.h.b16 %v750
    %v2052 = vunpack.c.l.b16 %v751
    %v2053 = vunpack.c.h.b16 %v751
    %v2054 = vunpack.c.l.b16 %v752
    %v2055 = vunpack.c.h.b16 %v752
    %v2056 = vunpack.c.l.b16 %v753
    %v2057 = vunpack.c.h.b16 %v753
    %v2058 = vunpack.c.l.b16 %v754
    %v2059 = vunpack.c.h.b16 %v754
    %v2060 = vunpack.c.l.b16 %v755
    %v2061 = vunpack.c.h.b16 %v755
    %v2062 = vunpack.c.l.b16 %v756
    %v2063 = vunpack.c.h.b16 %v756
    %v2064 = vunpack.c.l.b16 %v757
    %v2065 = vunpack.c.h.b16 %v757
    %v2066 = vunpack.c.l.b16 %v758
    %v2067 = vunpack.c.h.b16 %v758
    %v2068 = vunpack.c.l.b16 %v759
    %v2069 = vunpack.c.h.b16 %v759
    %v2070 = vunpack.c.l.b16 %v760
    %v2071 = vunpack.c.h.b16 %v760
    %v2072 = vunpack.c.l.b16 %v761
    %v2073 = vunpack.c.h.b16 %v761
    %v2074 = vunpack.c.l.b16 %v762
    %v2075 = vunpack.c.h.b16 %v762
    %v2076 = vunpack.c.l.b16 %v763
    %v2077 = vunpack.c.h.b16 %v763
    %v2078 = vunpack.c.l.b16 %v764
    %v2079 = vunpack.c.h.b16 %v764
    %v2080 = vunpack.c.l.b16 %v765
    %v2081 = vunpack.c.h.b16 %v765
    %v2082 = vunpack.c.l.b16 %v766
    %v2083 = vunpack.c.h.b16 %v766
    %v2084 = vunpack.c.l.b16 %v767
    %v2085 = vunpack.c.h.b16 %v767
    %v2086 = vunpack.c.l.b16 %v768
    %v2087 = vunpack.c.h.b16 %v768
    %v2088 = vunpack.c.l.b16 %v769
    %v2089 = vunpack.c.h.b16 %v769
    %v2090 = vunpack.c.l.b16 %v770
    %v2091 = vunpack.c.h.b16 %v770
    %v2092 = vunpack.c.l.b16 %v771
    %v2093 = vunpack.c.h.b16 %v771
    %v2094 = vunpack.c.l.b16 %v772
    %v2095 = vunpack.c.h.b16 %v772
    %v2096 = vunpack.c.l.b16 %v773
    %v2097 = vunpack.c.h.b16 %v773
    %v2098 = vunpack.c.l.b16 %v774
    %v2099 = vunpack.c.h.b16 %v774
    %v2100 = vunpack.c.l.b16 %v775
    %v2101 = vunpack.c.h.b16 %v775
    %v2102 = vunpack.c.l.b16 %v776
    %v2103 = vunpack.c.h.b16 %v776
    %v2104 = vunpack.c.l.b16 %v777
    %v2105 = vunpack.c.h.b16 %v777
    %v2106 = vunpack.c.l.b16 %v778
    %v2107 = vunpack.c.h.b16 %v778
    %v2108 = vunpack.c.l.b16 %v779
    %v2109 = vunpack.c.h.b16 %v779
    %v2110 = vunpack.c.l.b16 %v780
    %v2111 = vunpack.c.h.b16 %v780
    %v2112 = vunpack.c.l.b16 %v781
    %v2113 = vunpack.c.h.b16 %v781
    %v2114 = vunpack.c.l.b16 %v782
    %v2115 = vunpack.c.h.b16 %v782
    %v2116 = vunpack.c.l.b16 %v783
    %v2117 = vunpack.c.h.b16 %v783
    %v2118 = vunpack.c.l.b16 %v784
    %v2119 = vunpack.c.h.b16 %v784
    %v2120 = vunpack.c.l.b16 %v785
    %v2121 = vunpack.c.h.b16 %v785
    %v2122 = vunpack.c.l.b16 %v786
    %v2123 = vunpack.c.h.b16 %v786
    %v2124 = vunpack.c.l.b16 %v787
    %v2125 = vunpack.c.h.b16 %v787
    %v2126 = vunpack.c.l.b16 %v788
    %v2127 = vunpack.c.h.b16 %v788
    %v2128 = vunpack.c.l.b16 %v789
    %v2129 = vunpack.c.h.b16 %v789
    %v2130 = vunpack.c.l.b16 %v790
    %v2131 = vunpack.c.h.b16 %v790
    %v2132 = vunpack.c.l.b16 %v791
    %v2133 = vunpack.c.h.b16 %v791
    %v2134 = vunpack.c.l.b16 %v792
    %v2135 = vunpack.c.h.b16 %v792
    %v2136 = vunpack.c.l.b16 %v793
    %v2137 = vunpack.c.h.b16 %v793
    %v2138 = vunpack.c.l.b16 %v794
    %v2139 = vunpack.c.h.b16 %v794
    %v2140 = vunpack.c.l.b16 %v795
    %v2141 = vunpack.c.h.b16 %v795
    %v2142 = vunpack.c.l.b16 %v796
    %v2143 = vunpack.c.h.b16 %v796
    %v2144 = vunpack.c.l.b16 %v797
    %v2145 = vunpack.c.h.b16 %v797
    %v2146 = vunpack.c.l.b16 %v798
    %v2147 = vunpack.c.h.b16 %v798
    %v2148 = vunpack.c.l.b16 %v799
    %v2149 = vunpack.c.h.b16 %v799
    %v2150 = vunpack.c.l.b16 %v800
    %v2151 = vunpack.c.h.b16 %v800
    %v2152 = vunpack.c.l.b16 %v801
    %v2153 = vunpack.c.h.b16 %v801
    %v2154 = vunpack.c.l.b16 %v802
    %v2155 = vunpack.c.h.b16 %v802
    %v2156 = vunpack.c.l.b16 %v803
    %v2157 = vunpack.c.h.b16 %v803
    %v2158 = vunpack.c.l.b16 %v804
    %v2159 = vunpack.c.h.b16 %v804
    %v2160 = vunpack.c.l.b16 %v805
    %v2161 = vunpack.c.h.b16 %v805
    %v2162 = vunpack.c.l.b16 %v806
    %v2163 = vunpack.c.h.b16 %v806
    %v2164 = vunpack.c.l.b16 %v807
    %v2165 = vunpack.c.h.b16 %v807
    %v2166 = vunpack.c.l.b16 %v808
    %v2167 = vunpack.c.h.b16 %v808
    %v2168 = vunpack.c.l.b16 %v809
    %v2169 = vunpack.c.h.b16 %v809
    %v2170 = vunpack.c.l.b16 %v810
    %v2171 = vunpack.c.h.b16 %v810
    %v2172 = vunpack.c.l.b16 %v811
    %v2173 = vunpack.c.h.b16 %v811
    %v2174 = vunpack.c.l.b16 %v812
    %v2175 = vunpack.c.h.b16 %v812
    %v2176 = vunpack.c.l.b16 %v813
    %v2177 = vunpack.c.h.b16 %v813
    %v2178 = vunpack.c.l.b16 %v814
    %v2179 = vunpack.c.h.b16 %v814
    %v2180 = vunpack.c.l.b16 %v815
    %v2181 = vunpack.c.h.b16 %v815
    %v2182 = vunpack.c.l.b16 %v816
    %v2183 = vunpack.c.h.b16 %v816
    %v2184 = vunpack.c.l.b16 %v817
    %v2185 = vunpack.c.h.b16 %v817
    %v2186 = vunpack.c.l.b16 %v818
    %v2187 = vunpack.c.h.b16 %v818
    %v2188 = vunpack.c.l.b16 %v819
    %v2189 = vunpack.c.h.b16 %v819
    %v2190 = vunpack.c.l.b16 %v820
    %v2191 = vunpack.c.h.b16 %v820
    %v2192 = vunpack.c.l.b16 %v821
    %v2193 = vunpack.c.h.b16 %v821
    %v2194 = vunpack.c.l.b16 %v822
    %v2195 = vunpack.c.h.b16 %v822
    %v2196 = vunpack.c.l.b16 %v823
    %v2197 = vunpack.c.h.b16 %v823
    %v2198 = vunpack.c.l.b16 %v824
    %v2199 = vunpack.c.h.b16 %v824
    %v2200 = vunpack.c.l.b16 %v825
    %v2201 = vunpack.c.h.b16 %v825
    %v2202 = vunpack.c.l.b16 %v826
    %v2203 = vunpack.c.h.b16 %v826
    %v2204 = vunpack.c.l.b16 %v827
    %v2205 = vunpack.c.h.b16 %v827
    %v2206 = vunpack.c.l.b16 %v828
    %v2207 = vunpack.c.h.b16 %v828
    %v2208 = vunpack.c.l.b16 %v829
    %v2209 = vunpack.c.h.b16 %v829
    %v2210 = vunpack.c.l.b16 %v830
    %v2211 = vunpack.c.h.b16 %v830
    %v2212 = vunpack.c.l.b16 %v831
    %v2213 = vunpack.c.h.b16 %v831
    %v2214 = vunpack.c.l.b16 %v832
    %v2215 = vunpack.c.h.b16 %v832
    %v2216 = vunpack.c.l.b16 %v833
    %v2217 = vunpack.c.h.b16 %v833
    %v2218 = vunpack.c.l.b16 %v834
    %v2219 = vunpack.c.h.b16 %v834
    %v2220 = vunpack.c.l.b16 %v835
    %v2221 = vunpack.c.h.b16 %v835
    %v2222 = vunpack.c.l.b16 %v836
    %v2223 = vunpack.c.h.b16 %v836
    %v2224 = vunpack.c.l.b16 %v837
    %v2225 = vunpack.c.h.b16 %v837
    %v2226 = vunpack.c.l.b16 %v838
    %v2227 = vunpack.c.h.b16 %v838
    %v2228 = vunpack.c.l.b16 %v839
    %v2229 = vunpack.c.h.b16 %v839
    %v2230 = vunpack.c.l.b16 %v840
    %v2231 = vunpack.c.h.b16 %v840
    %v2232 = vunpack.c.l.b16 %v841
    %v2233 = vunpack.c.h.b16 %v841
    %v2234 = vunpack.c.l.b16 %v842
    %v2235 = vunpack.c.h.b16 %v842
    %v2236 = vunpack.c.l.b16 %v843
    %v2237 = vunpack.c.h.b16 %v843
    %v2238 = vunpack.c.l.b16 %v844
    %v2239 = vunpack.c.h.b16 %v844
    %v2240 = vunpack.c.l.b16 %v845
    %v2241 = vunpack.c.h.b16 %v845
    %v2242 = vunpack.c.l.b16 %v846
    %v2243 = vunpack.c.h.b16 %v846
    %v2244 = vunpack.c.l.b16 %v847
    %v2245 = vunpack.c.h.b16 %v847
    %v2246 = vunpack.c.l.b16 %v848
    %v2247 = vunpack.c.h.b16 %v848
    %v2248 = vunpack.c.l.b16 %v849
    %v2249 = vunpack.c.h.b16 %v849
    %v2250 = vunpack.c.l.b16 %v850
    %v2251 = vunpack.c.h.b16 %v850
    %v2252 = vunpack.c.l.b16 %v851
    %v2253 = vunpack.c.h.b16 %v851
    %v2254 = vunpack.c.l.b16 %v852
    %v2255 = vunpack.c.h.b16 %v852
    %v2256 = vunpack.c.l.b16 %v853
    %v2257 = vunpack.c.h.b16 %v853
    %v2258 = vunpack.c.l.b16 %v854
    %v2259 = vunpack.c.h.b16 %v854
    %v2260 = vunpack.c.l.b16 %v855
    %v2261 = vunpack.c.h.b16 %v855
    %v2262 = vunpack.c.l.b16 %v856
    %v2263 = vunpack.c.h.b16 %v856
    %v2264 = vunpack.c.l.b16 %v857
    %v2265 = vunpack.c.h.b16 %v857
    %v2266 = vunpack.c.l.b16 %v858
    %v2267 = vunpack.c.h.b16 %v858
    %v2268 = vunpack.c.l.b16 %v859
    %v2269 = vunpack.c.h.b16 %v859
    %v2270 = vunpack.c.l.b16 %v860
    %v2271 = vunpack.c.h.b16 %v860
    %v2272 = vunpack.c.l.b16 %v861
    %v2273 = vunpack.c.h.b16 %v861
    %v2274 = vunpack.c.l.b16 %v862
    %v2275 = vunpack.c.h.b16 %v862
    %v2276 = vunpack.c.l.b16 %v863
    %v2277 = vunpack.c.h.b16 %v863
    %v2278 = vunpack.c.l.b16 %v864
    %v2279 = vunpack.c.h.b16 %v864
    %v2280 = vunpack.c.l.b16 %v865
    %v2281 = vunpack.c.h.b16 %v865
    %v2282 = vunpack.c.l.b16 %v866
    %v2283 = vunpack.c.h.b16 %v866
    %v2284 = vunpack.c.l.b16 %v867
    %v2285 = vunpack.c.h.b16 %v867
    %v2286 = vunpack.c.l.b16 %v868
    %v2287 = vunpack.c.h.b16 %v868
    %v2288 = vunpack.c.l.b16 %v869
    %v2289 = vunpack.c.h.b16 %v869
    %v2290 = vunpack.c.l.b16 %v870
    %v2291 = vunpack.c.h.b16 %v870
    %v2292 = vunpack.c.l.b16 %v871
    %v2293 = vunpack.c.h.b16 %v871
    %v2294 = vunpack.c.l.b16 %v872
    %v2295 = vunpack.c.h.b16 %v872
    %v2296 = vunpack.c.l.b16 %v873
    %v2297 = vunpack.c.h.b16 %v873
    %v2298 = vunpack.c.l.b16 %v874
    %v2299 = vunpack.c.h.b16 %v874
    %v2300 = vunpack.c.l.b16 %v875
    %v2301 = vunpack.c.h.b16 %v875
    %v2302 = vunpack.c.l.b16 %v876
    %v2303 = vunpack.c.h.b16 %v876
    %v2304 = vunpack.c.l.b16 %v877
    %v2305 = vunpack.c.h.b16 %v877
    %v2306 = vunpack.c.l.b16 %v878
    %v2307 = vunpack.c.h.b16 %v878
    %v2308 = vunpack.c.l.b16 %v879
    %v2309 = vunpack.c.h.b16 %v879
    %v2310 = vunpack.c.l.b16 %v880
    %v2311 = vunpack.c.h.b16 %v880
    %v2312 = vunpack.c.l.b16 %v881
    %v2313 = vunpack.c.h.b16 %v881
    %v2314 = vunpack.c.l.b16 %v882
    %v2315 = vunpack.c.h.b16 %v882
    %v2316 = vunpack.c.l.b16 %v883
    %v2317 = vunpack.c.h.b16 %v883
    %v2318 = vunpack.c.l.b16 %v884
    %v2319 = vunpack.c.h.b16 %v884
    %v2320 = vunpack.c.l.b16 %v885
    %v2321 = vunpack.c.h.b16 %v885
    %v2322 = vunpack.c.l.b16 %v886
    %v2323 = vunpack.c.h.b16 %v886
    %v2324 = vunpack.c.l.b16 %v887
    %v2325 = vunpack.c.h.b16 %v887
    %v2326 = vunpack.c.l.b16 %v888
    %v2327 = vunpack.c.h.b16 %v888
    %v2328 = vunpack.c.l.b16 %v889
    %v2329 = vunpack.c.h.b16 %v889
    %v2330 = vunpack.c.l.b16 %v890
    %v2331 = vunpack.c.h.b16 %v890
    %v2332 = vunpack.c.l.b16 %v891
    %v2333 = vunpack.c.h.b16 %v891
    %v2334 = vunpack.c.l.b16 %v892
    %v2335 = vunpack.c.h.b16 %v892
    %v2336 = vunpack.c.l.b16 %v893
    %v2337 = vunpack.c.h.b16 %v893
    %v2338 = vunpack.c.l.b16 %v894
    %v2339 = vunpack.c.h.b16 %v894
    %v2340 = vunpack.c.l.b16 %v895
    %v2341 = vunpack.c.h.b16 %v895
    %v2342 = vunpack.c.l.b16 %v896
    %v2343 = vunpack.c.h.b16 %v896
    %v2344 = vunpack.c.l.b16 %v897
    %v2345 = vunpack.c.h.b16 %v897
    %v2346 = vunpack.c.l.b16 %v898
    %v2347 = vunpack.c.h.b16 %v898
    %v2348 = vunpack.c.l.b16 %v899
    %v2349 = vunpack.c.h.b16 %v899
    %v2350 = vunpack.c.l.b16 %v900
    %v2351 = vunpack.c.h.b16 %v900
    %v2352 = vunpack.c.l.b16 %v901
    %v2353 = vunpack.c.h.b16 %v901
    %v2354 = vunpack.c.l.b16 %v902
    %v2355 = vunpack.c.h.b16 %v902
    %v2356 = vunpack.c.l.b16 %v903
    %v2357 = vunpack.c.h.b16 %v903
    %v2358 = vunpack.c.l.b16 %v904
    %v2359 = vunpack.c.h.b16 %v904
    %v2360 = vunpack.c.l.b16 %v905
    %v2361 = vunpack.c.h.b16 %v905
    %v2362 = vunpack.c.l.b16 %v906
    %v2363 = vunpack.c.h.b16 %v906
    %v2364 = vunpack.c.l.b16 %v907
    %v2365 = vunpack.c.h.b16 %v907
    %v2366 = vunpack.c.l.b16 %v908
    %v2367 = vunpack.c.h.b16 %v908
    %v2368 = vunpack.c.l.b16 %v909
    %v2369 = vunpack.c.h.b16 %v909
    %v2370 = vunpack.c.l.b16 %v910
    %v2371 = vunpack.c.h.b16 %v910
    %v2372 = vunpack.c.l.b16 %v911
    %v2373 = vunpack.c.h.b16 %v911
    %v2374 = vunpack.c.l.b16 %v912
    %v2375 = vunpack.c.h.b16 %v912
    %v2376 = vunpack.c.l.b16 %v913
    %v2377 = vunpack.c.h.b16 %v913
    %v2378 = vunpack.c.l.b16 %v914
    %v2379 = vunpack.c.h.b16 %v914
    %v2380 = vunpack.c.l.b16 %v915
    %v2381 = vunpack.c.h.b16 %v915
    %v2382 = vunpack.c.l.b16 %v916
    %v2383 = vunpack.c.h.b16 %v916
    %v2384 = vunpack.c.l.b16 %v917
    %v2385 = vunpack.c.h.b16 %v917
    %v2386 = vunpack.c.l.b16 %v918
    %v2387 = vunpack.c.h.b16 %v918
    %v2388 = vunpack.c.l.b16 %v919
    %v2389 = vunpack.c.h.b16 %v919
    %v2390 = vunpack.c.l.b16 %v920
    %v2391 = vunpack.c.h.b16 %v920
    %v2392 = vunpack.c.l.b16 %v921
    %v2393 = vunpack.c.h.b16 %v921
    %v2394 = vunpack.c.l.b16 %v922
    %v2395 = vunpack.c.h.b16 %v922
    %v2396 = vunpack.c.l.b16 %v923
    %v2397 = vunpack.c.h.b16 %v923
    %v2398 = vunpack.c.l.b16 %v924
    %v2399 = vunpack.c.h.b16 %v924
    %v2400 = vunpack.c.l.b16 %v925
    %v2401 = vunpack.c.h.b16 %v925
    %v2402 = vunpack.c.l.b16 %v926
    %v2403 = vunpack.c.h.b16 %v926
    %v2404 = vunpack.c.l.b16 %v927
    %v2405 = vunpack.c.h.b16 %v927
    %v2406 = vunpack.c.l.b16 %v928
    %v2407 = vunpack.c.h.b16 %v928
    %v2408 = vunpack.c.l.b16 %v929
    %v2409 = vunpack.c.h.b16 %v929
    %v2410 = vunpack.c.l.b16 %v930
    %v2411 = vunpack.c.h.b16 %v930
    %v2412 = vunpack.c.l.b16 %v931
    %v2413 = vunpack.c.h.b16 %v931
    %v2414 = vunpack.c.l.b16 %v932
    %v2415 = vunpack.c.h.b16 %v932
    %v2416 = vunpack.c.l.b16 %v933
    %v2417 = vunpack.c.h.b16 %v933
    %v2418 = vunpack.c.l.b16 %v934
    %v2419 = vunpack.c.h.b16 %v934
    %v2420 = vunpack.c.l.b16 %v935
    %v2421 = vunpack.c.h.b16 %v935
    %v2422 = vunpack.c.l.b16 %v936
    %v2423 = vunpack.c.h.b16 %v936
    %v2424 = vunpack.c.l.b16 %v937
    %v2425 = vunpack.c.h.b16 %v937
    %v2426 = vunpack.c.l.b16 %v938
    %v2427 = vunpack.c.h.b16 %v938
    %v2428 = vunpack.c.l.b16 %v939
    %v2429 = vunpack.c.h.b16 %v939
    %v2430 = vunpack.c.l.b16 %v940
    %v2431 = vunpack.c.h.b16 %v940
    %v2432 = vunpack.c.l.b16 %v941
    %v2433 = vunpack.c.h.b16 %v941
    %v2434 = vunpack.c.l.b16 %v942
    %v2435 = vunpack.c.h.b16 %v942
    %v2436 = vunpack.c.l.b16 %v943
    %v2437 = vunpack.c.h.b16 %v943
    %v2438 = vunpack.c.l.b16 %v944
    %v2439 = vunpack.c.h.b16 %v944
    %v2440 = vunpack.c.l.b16 %v945
    %v2441 = vunpack.c.h.b16 %v945
    %v2442 = vunpack.c.l.b16 %v946
    %v2443 = vunpack.c.h.b16 %v946
    %v2444 = vunpack.c.l.b16 %v947
    %v2445 = vunpack.c.h.b16 %v947
    %v2446 = vunpack.c.l.b16 %v948
    %v2447 = vunpack.c.h.b16 %v948
    %v2448 = vunpack.c.l.b16 %v949
    %v2449 = vunpack.c.h.b16 %v949
    %v2450 = vunpack.c.l.b16 %v950
    %v2451 = vunpack.c.h.b16 %v950
    %v2452 = vunpack.c.l.b16 %v951
    %v2453 = vunpack.c.h.b16 %v951
    %v2454 = vunpack.c.l.b16 %v952
    %v2455 = vunpack.c.h.b16 %v952
    %v2456 = vunpack.c.l.b16 %v953
    %v2457 = vunpack.c.h.b16 %v953
    %v2458 = vunpack.c.l.b16 %v954
    %v2459 = vunpack.c.h.b16 %v954
    %v2460 = vunpack.c.l.b16 %v955
    %v2461 = vunpack.c.h.b16 %v955
    %v2462 = vunpack.c.l.b16 %v956
    %v2463 = vunpack.c.h.b16 %v956
    %v2464 = vunpack.c.l.b16 %v957
    %v2465 = vunpack.c.h.b16 %v957
    %v2466 = vunpack.c.l.b16 %v958
    %v2467 = vunpack.c.h.b16 %v958
    %v2468 = vunpack.c.l.b16 %v959
    %v2469 = vunpack.c.h.b16 %v959
    %v2470 = vunpack.c.l.b16 %v960
    %v2471 = vunpack.c.h.b16 %v960
    %v2472 = vunpack.c.l.b16 %v961
    %v2473 = vunpack.c.h.b16 %v961
    %v2474 = vunpack.c.l.b16 %v962
    %v2475 = vunpack.c.h.b16 %v962
    %v2476 = vunpack.c.l.b16 %v963
    %v2477 = vunpack.c.h.b16 %v963
    %v2478 = vunpack.c.l.b16 %v964
    %v2479 = vunpack.c.h.b16 %v964
    %v2480 = vunpack.c.l.b16 %v965
    %v2481 = vunpack.c.h.b16 %v965
    %v2482 = vunpack.c.l.b16 %v966
    %v2483 = vunpack.c.h.b16 %v966
    %v2484 = vunpack.c.l.b16 %v967
    %v2485 = vunpack.c.h.b16 %v967
    %v2486 = vunpack.c.l.b16 %v968
    %v2487 = vunpack.c.h.b16 %v968
    %v2488 = vunpack.c.l.b16 %v969
    %v2489 = vunpack.c.h.b16 %v969
    %v2490 = vunpack.c.l.b16 %v970
    %v2491 = vunpack.c.h.b16 %v970
    %v2492 = vunpack.c.l.b16 %v971
    %v2493 = vunpack.c.h.b16 %v971
    %v2494 = vunpack.c.l.b16 %v972
    %v2495 = vunpack.c.h.b16 %v972
    %v2496 = vunpack.c.l.b16 %v973
    %v2497 = vunpack.c.h.b16 %v973
    %v2498 = vunpack.c.l.b16 %v974
    %v2499 = vunpack.c.h.b16 %v974
    %v2500 = vunpack.c.l.b16 %v975
    %v2501 = vunpack.c.h.b16 %v975
    %v2502 = vunpack.c.l.b16 %v976
    %v2503 = vunpack.c.h.b16 %v976
    %v2504 = vunpack.c.l.b16 %v977
    %v2505 = vunpack.c.h.b16 %v977
    %v2506 = vunpack.c.l.b16 %v978
    %v2507 = vunpack.c.h.b16 %v978
    %v2508 = vunpack.c.l.b16 %v979
    %v2509 = vunpack.c.h.b16 %v979
    %v2510 = vunpack.c.l.b16 %v980
    %v2511 = vunpack.c.h.b16 %v980
    %v2512 = vunpack.c.l.b16 %v981
    %v2513 = vunpack.c.h.b16 %v981
    %v2514 = vunpack.c.l.b16 %v982
    %v2515 = vunpack.c.h.b16 %v982
    %v2516 = vunpack.c.l.b16 %v983
    %v2517 = vunpack.c.h.b16 %v983
    %v2518 = vunpack.c.l.b16 %v984
    %v2519 = vunpack.c.h.b16 %v984
    %v2520 = vunpack.c.l.b16 %v985
    %v2521 = vunpack.c.h.b16 %v985
    %v2522 = vunpack.c.l.b16 %v986
    %v2523 = vunpack.c.h.b16 %v986
    %v2524 = vunpack.c.l.b16 %v987
    %v2525 = vunpack.c.h.b16 %v987
    %v2526 = vunpack.c.l.b16 %v988
    %v2527 = vunpack.c.h.b16 %v988
    %v2528 = vunpack.c.l.b16 %v989
    %v2529 = vunpack.c.h.b16 %v989
    %v2530 = vunpack.c.l.b16 %v990
    %v2531 = vunpack.c.h.b16 %v990
    %v2532 = vunpack.c.l.b16 %v991
    %v2533 = vunpack.c.h.b16 %v991
    %v2534 = vunpack.c.l.b16 %v992
    %v2535 = vunpack.c.h.b16 %v992
    %v2536 = vunpack.c.l.b16 %v993
    %v2537 = vunpack.c.h.b16 %v993
    %v2538 = vunpack.c.l.b16 %v994
    %v2539 = vunpack.c.h.b16 %v994
    %v2540 = vunpack.c.l.b16 %v995
    %v2541 = vunpack.c.h.b16 %v995
    %v2542 = vunpack.c.l.b16 %v996
    %v2543 = vunpack.c.h.b16 %v996
    %v2544 = vunpack.c.l.b16 %v997
    %v2545 = vunpack.c.h.b16 %v997
    %v2546 = vunpack.c.l.b16 %v998
    %v2547 = vunpack.c.h.b16 %v998
    %v2548 = vunpack.c.l.b16 %v999
    %v2549 = vunpack.c.h.b16 %v999
    %v2550 = vunpack.c.l.b16 %v1000
    %v2551 = vunpack.c.h.b16 %v1000
    %v2552 = vunpack.c.l.b16 %v1001
    %v2553 = vunpack.c.h.b16 %v1001
    %v2554 = vunpack.c.l.b16 %v1002
    %v2555 = vunpack.c.h.b16 %v1002
    %v2556 = vunpack.c.l.b16 %v1003
    %v2557 = vunpack.c.h.b16 %v1003
    %v2558 = vpack.c.b16 %v1542, %v1534
    %v2559 = vpack.c.b16 %v1543, %v1535
    %v2560 = vpack.c.b16 %v1544, %v1536
    %v2561 = vpack.c.b16 %v1545, %v1537
    %v2562 = vpack.c.b16 %v1546, %v1538
    %v2563 = vpack.c.b16 %v1547, %v1539
    %v2564 = vpack.c.b16 %v1548, %v1540
    %v2565 = vpack.c.b16 %v1549, %v1541
    %v2566 = vpack.c.b16 %v1558, %v1550
    %v2567 = vpack.c.b16 %v1559, %v1551
    %v2568 = vpack.c.b16 %v1560, %v1552
    %v2569 = vpack.c.b16 %v1561, %v1553
    %v2570 = vpack.c.b16 %v1562, %v1554
    %v2571 = vpack.c.b16 %v1563, %v1555
    %v2572 = vpack.c.b16 %v1564, %v1556
    %v2573 = vpack.c.b16 %v1565, %v1557
    %v2574 = vpack.c.b16 %v1574, %v1566
    %v2575 = vpack.c.b16 %v1575, %v1567
    %v2576 = vpack.c.b16 %v1576, %v1568
    %v2577 = vpack.c.b16 %v1577, %v1569
    %v2578 = vpack.c.b16 %v1578, %v1570
    %v2579 = vpack.c.b16 %v1579, %v1571
    %v2580 = vpack.c.b16 %v1580, %v1572
    %v2581 = vpack.c.b16 %v1581, %v1573
    %v2582 = vpack.c.b16 %v1590, %v1582
    %v2583 = vpack.c.b16 %v1591, %v1583
    %v2584 = vpack.c.b16 %v1592, %v1584
    %v2585 = vpack.c.b16 %v1593, %v1585
    %v2586 = vpack.c.b16 %v1594, %v1586
    %v2587 = vpack.c.b16 %v1595, %v1587
    %v2588 = vpack.c.b16 %v1596, %v1588
    %v2589 = vpack.c.b16 %v1597, %v1589
    %v2590 = vpack.c.b16 %v1606, %v1598
    %v2591 = vpack.c.b16 %v1607, %v1599
    %v2592 = vpack.c.b16 %v1608, %v1600
    %v2593 = vpack.c.b16 %v1609, %v1601
    %v2594 = vpack.c.b16 %v1610, %v1602
    %v2595 = vpack.c.b16 %v1611, %v1603
    %v2596 = vpack.c.b16 %v1612, %v1604
    %v2597 = vpack.c.b16 %v1613, %v1605
    %v2598 = vpack.c.b16 %v1622, %v1614
    %v2599 = vpack.c.b16 %v1623, %v1615
    %v2600 = vpack.c.b16 %v1624, %v1616
    %v2601 = vpack.c.b16 %v1625, %v1617
    %v2602 = vpack.c.b16 %v1626, %v1618
    %v2603 = vpack.c.b16 %v1627, %v1619
    %v2604 = vpack.c.b16 %v1628, %v1620
    %v2605 = vpack.c.b16 %v1629, %v1621
    %v2606 = vpack.c.b16 %v1638, %v1630
    %v2607 = vpack.c.b16 %v1639, %v1631
    %v2608 = vpack.c.b16 %v1640, %v1632
    %v2609 = vpack.c.b16 %v1641, %v1633
    %v2610 = vpack.c.b16 %v1642, %v1634
    %v2611 = vpack.c.b16 %v1643, %v1635
    %v2612 = vpack.c.b16 %v1644, %v1636
    %v2613 = vpack.c.b16 %v1645, %v1637
    %v2614 = vpack.c.b16 %v1654, %v1646
    %v2615 = vpack.c.b16 %v1655, %v1647
    %v2616 = vpack.c.b16 %v1656, %v1648
    %v2617 = vpack.c.b16 %v1657, %v1649
    %v2618 = vpack.c.b16 %v1658, %v1650
    %v2619 = vpack.c.b16 %v1659, %v1651
    %v2620 = vpack.c.b16 %v1660, %v1652
    %v2621 = vpack.c.b16 %v1661, %v1653
    %v2622 = vpack.c.b16 %v1670, %v1662
    %v2623 = vpack.c.b16 %v1671, %v1663
    %v2624 = vpack.c.b16 %v1672, %v1664
    %v2625 = vpack.c.b16 %v1673, %v1665
    %v2626 = vpack.c.b16 %v1674, %v1666
    %v2627 = vpack.c.b16 %v1675, %v1667
    %v2628 = vpack.c.b16 %v1676, %v1668
    %v2629 = vpack.c.b16 %v1677, %v1669
    %v2630 = vpack.c.b16 %v1686, %v1678
    %v2631 = vpack.c.b16 %v1687, %v1679
    %v2632 = vpack.c.b16 %v1688, %v1680
    %v2633 = vpack.c.b16 %v1689, %v1681
    %v2634 = vpack.c.b16 %v1690, %v1682
    %v2635 = vpack.c.b16 %v1691, %v1683
    %v2636 = vpack.c.b16 %v1692, %v1684
    %v2637 = vpack.c.b16 %v1693, %v1685
    %v2638 = vpack.c.b16 %v1702, %v1694
    %v2639 = vpack.c.b16 %v1703, %v1695
    %v2640 = vpack.c.b16 %v1704, %v1696
    %v2641 = vpack.c.b16 %v1705, %v1697
    %v2642 = vpack.c.b16 %v1706, %v1698
    %v2643 = vpack.c.b16 %v1707, %v1699
    %v2644 = vpack.c.b16 %v1708, %v1700
    %v2645 = vpack.c.b16 %v1709, %v1701
    %v2646 = vpack.c.b16 %v1718, %v1710
    %v2647 = vpack.c.b16 %v1719, %v1711
    %v2648 = vpack.c.b16 %v1720, %v1712
    %v2649 = vpack.c.b16 %v1721, %v1713
    %v2650 = vpack.c.b16 %v1722, %v1714
    %v2651 = vpack.c.b16 %v1723, %v1715
    %v2652 = vpack.c.b16 %v1724, %v1716
    %v2653 = vpack.c.b16 %v1725, %v1717
    %v2654 = vpack.c.b16 %v1734, %v1726
    %v2655 = vpack.c.b16 %v1735, %v1727
    %v2656 = vpack.c.b16 %v1736, %v1728
    %v2657 = vpack.c.b16 %v1737, %v1729
    %v2658 = vpack.c.b16 %v1738, %v1730
    %v2659 = vpack.c.b16 %v1739, %v1731
    %v2660 = vpack.c.b16 %v1740, %v1732
    %v2661 = vpack.c.b16 %v1741, %v1733
    %v2662 = vpack.c.b16 %v1750, %v1742
    %v2663 = vpack.c.b16 %v1751, %v1743
    %v2664 = vpack.c.b16 %v1752, %v1744
    %v2665 = vpack.c.b16 %v1753, %v1745
    %v2666 = vpack.c.b16 %v1754, %v1746
    %v2667 = vpack.c.b16 %v1755, %v1747
    %v2668 = vpack.c.b16 %v1756, %v1748
    %v2669 = vpack.c.b16 %v1757, %v1749
    %v2670 = vpack.c.b16 %v1766, %v1758
    %v2671 = vpack.c.b16 %v1767, %v1759
    %v2672 = vpack.c.b16 %v1768, %v1760
    %v2673 = vpack.c.b16 %v1769, %v1761
    %v2674 = vpack.c.b16 %v1770, %v1762
    %v2675 = vpack.c.b16 %v1771, %v1763
    %v2676 = vpack.c.b16 %v1772, %v1764
    %v2677 = vpack.c.b16 %v1773, %v1765
    %v2678 = vpack.c.b16 %v1782, %v1774
    %v2679 = vpack.c.b16 %v1783, %v1775
    %v2680 = vpack.c.b16 %v1784, %v1776
    %v2681 = vpack.c.b16 %v1785, %v1777
    %v2682 = vpack.c.b16 %v1786, %v1778
    %v2683 = vpack.c.b16 %v1787, %v1779
    %v2684 = vpack.c.b16 %v1788, %v1780
    %v2685 = vpack.c.b16 %v1789, %v1781
    %v2686 = vpack.c.b16 %v1798, %v1790
    %v2687 = vpack.c.b16 %v1799, %v1791
    %v2688 = vpack.c.b16 %v1800, %v1792
    %v2689 = vpack.c.b16 %v1801, %v1793
    %v2690 = vpack.c.b16 %v1802, %v1794
    %v2691 = vpack.c.b16 %v1803, %v1795
    %v2692 = vpack.c.b16 %v1804, %v1796
    %v2693 = vpack.c.b16 %v1805, %v1797
    %v2694 = vpack.c.b16 %v1814, %v1806
    %v2695 = vpack.c.b16 %v1815, %v1807
    %v2696 = vpack.c.b16 %v1816, %v1808
    %v2697 = vpack.c.b16 %v1817, %v1809
    %v2698 = vpack.c.b16 %v1818, %v1810
    %v2699 = vpack.c.b16 %v1819, %v1811
    %v2700 = vpack.c.b16 %v1820, %v1812
    %v2701 = vpack.c.b16 %v1821, %v1813
    %v2702 = vpack.c.b16 %v1830, %v1822
    %v2703 = vpack.c.b16 %v1831, %v1823
    %v2704 = vpack.c.b16 %v1832, %v1824
    %v2705 = vpack.c.b16 %v1833, %v1825
    %v2706 = vpack.c.b16 %v1834, %v1826
    %v2707 = vpack.c.b16 %v1835, %v1827
    %v2708 = vpack.c.b16 %v1836, %v1828
    %v2709 = vpack.c.b16 %v1837, %v1829
    %v2710 = vpack.c.b16 %v1846, %v1838
    %v2711 = vpack.c.b16 %v1847, %v1839
    %v2712 = vpack.c.b16 %v1848, %v1840
    %v2713 = vpack.c.b16 %v1849, %v1841
    %v2714 = vpack.c.b16 %v1850, %v1842
    %v2715 = vpack.c.b16 %v1851, %v1843
    %v2716 = vpack.c.b16 %v1852, %v1844
    %v2717 = vpack.c.b16 %v1853, %v1845
    %v2718 = vpack.c.b16 %v1862, %v1854
    %v2719 = vpack.c.b16 %v1863, %v1855
    %v2720 = vpack.c.b16 %v1864, %v1856
    %v2721 = vpack.c.b16 %v1865, %v1857
    %v2722 = vpack.c.b16 %v1866, %v1858
    %v2723 = vpack.c.b16 %v1867, %v1859
    %v2724 = vpack.c.b16 %v1868, %v1860
    %v2725 = vpack.c.b16 %v1869, %v1861
    %v2726 = vpack.c.b16 %v1878, %v1870
    %v2727 = vpack.c.b16 %v1879, %v1871
    %v2728 = vpack.c.b16 %v1880, %v1872
    %v2729 = vpack.c.b16 %v1881, %v1873
    %v2730 = vpack.c.b16 %v1882, %v1874
    %v2731 = vpack.c.b16 %v1883, %v1875
    %v2732 = vpack.c.b16 %v1884, %v1876
    %v2733 = vpack.c.b16 %v1885, %v1877
    %v2734 = vpack.c.b16 %v1894, %v1886
    %v2735 = vpack.c.b16 %v1895, %v1887
    %v2736 = vpack.c.b16 %v1896, %v1888
    %v2737 = vpack.c.b16 %v1897, %v1889
    %v2738 = vpack.c.b16 %v1898, %v1890
    %v2739 = vpack.c.b16 %v1899, %v1891
    %v2740 = vpack.c.b16 %v1900, %v1892
    %v2741 = vpack.c.b16 %v1901, %v1893
    %v2742 = vpack.c.b16 %v1910, %v1902
    %v2743 = vpack.c.b16 %v1911, %v1903
    %v2744 = vpack.c.b16 %v1912, %v1904
    %v2745 = vpack.c.b16 %v1913, %v1905
    %v2746 = vpack.c.b16 %v1914, %v1906
    %v2747 = vpack.c.b16 %v1915, %v1907
    %v2748 = vpack.c.b16 %v1916, %v1908
    %v2749 = vpack.c.b16 %v1917, %v1909
    %v2750 = vpack.c.b16 %v1926, %v1918
    %v2751 = vpack.c.b16 %v1927, %v1919
    %v2752 = vpack.c.b16 %v1928, %v1920
    %v2753 = vpack.c.b16 %v1929, %v1921
    %v2754 = vpack.c.b16 %v1930, %v1922
    %v2755 = vpack.c.b16 %v1931, %v1923
    %v2756 = vpack.c.b16 %v1932, %v1924
    %v2757 = vpack.c.b16 %v1933, %v1925
    %v2758 = vpack.c.b16 %v1942, %v1934
    %v2759 = vpack.c.b16 %v1943, %v1935
    %v2760 = vpack.c.b16 %v1944, %v1936
    %v2761 = vpack.c.b16 %v1945, %v1937
    %v2762 = vpack.c.b16 %v1946, %v1938
    %v2763 = vpack.c.b16 %v1947, %v1939
    %v2764 = vpack.c.b16 %v1948, %v1940
    %v2765 = vpack.c.b16 %v1949, %v1941
    %v2766 = vpack.c.b16 %v1958, %v1950
    %v2767 = vpack.c.b16 %v1959, %v1951
    %v2768 = vpack.c.b16 %v1960, %v1952
    %v2769 = vpack.c.b16 %v1961, %v1953
    %v2770 = vpack.c.b16 %v1962, %v1954
    %v2771 = vpack.c.b16 %v1963, %v1955
    %v2772 = vpack.c.b16 %v1964, %v1956
    %v2773 = vpack.c.b16 %v1965, %v1957
    %v2774 = vpack.c.b16 %v1974, %v1966
    %v2775 = vpack.c.b16 %v1975, %v1967
    %v2776 = vpack.c.b16 %v1976, %v1968
    %v2777 = vpack.c.b16 %v1977, %v1969
    %v2778 = vpack.c.b16 %v1978, %v1970
    %v2779 = vpack.c.b16 %v1979, %v1971
    %v2780 = vpack.c.b16 %v1980, %v1972
    %v2781 = vpack.c.b16 %v1981, %v1973
    %v2782 = vpack.c.b16 %v1990, %v1982
    %v2783 = vpack.c.b16 %v1991, %v1983
    %v2784 = vpack.c.b16 %v1992, %v1984
    %v2785 = vpack.c.b16 %v1993, %v1985
    %v2786 = vpack.c.b16 %v1994, %v1986
    %v2787 = vpack.c.b16 %v1995, %v1987
    %v2788 = vpack.c.b16 %v1996, %v1988
    %v2789 = vpack.c.b16 %v1997, %v1989
    %v2790 = vpack.c.b16 %v2006, %v1998
    %v2791 = vpack.c.b16 %v2007, %v1999
    %v2792 = vpack.c.b16 %v2008, %v2000
    %v2793 = vpack.c.b16 %v2009, %v2001
    %v2794 = vpack.c.b16 %v2010, %v2002
    %v2795 = vpack.c.b16 %v2011, %v2003
    %v2796 = vpack.c.b16 %v2012, %v2004
    %v2797 = vpack.c.b16 %v2013, %v2005
    %v2798 = vpack.c.b16 %v2022, %v2014
    %v2799 = vpack.c.b16 %v2023, %v2015
    %v2800 = vpack.c.b16 %v2024, %v2016
    %v2801 = vpack.c.b16 %v2025, %v2017
    %v2802 = vpack.c.b16 %v2026, %v2018
    %v2803 = vpack.c.b16 %v2027, %v2019
    %v2804 = vpack.c.b16 %v2028, %v2020
    %v2805 = vpack.c.b16 %v2029, %v2021
    %v2806 = vpack.c.b16 %v2038, %v2030
    %v2807 = vpack.c.b16 %v2039, %v2031
    %v2808 = vpack.c.b16 %v2040, %v2032
    %v2809 = vpack.c.b16 %v2041, %v2033
    %v2810 = vpack.c.b16 %v2042, %v2034
    %v2811 = vpack.c.b16 %v2043, %v2035
    %v2812 = vpack.c.b16 %v2044, %v2036
    %v2813 = vpack.c.b16 %v2045, %v2037
    %v2814 = vpack.c.b16 %v2054, %v2046
    %v2815 = vpack.c.b16 %v2055, %v2047
    %v2816 = vpack.c.b16 %v2056, %v2048
    %v2817 = vpack.c.b16 %v2057, %v2049
    %v2818 = vpack.c.b16 %v2058, %v2050
    %v2819 = vpack.c.b16 %v2059, %v2051
    %v2820 = vpack.c.b16 %v2060, %v2052
    %v2821 = vpack.c.b16 %v2061, %v2053
    %v2822 = vpack.c.b16 %v2070, %v2062
    %v2823 = vpack.c.b16 %v2071, %v2063
    %v2824 = vpack.c.b16 %v2072, %v2064
    %v2825 = vpack.c.b16 %v2073, %v2065
    %v2826 = vpack.c.b16 %v2074, %v2066
    %v2827 = vpack.c.b16 %v2075, %v2067
    %v2828 = vpack.c.b16 %v2076, %v2068
    %v2829 = vpack.c.b16 %v2077, %v2069
    %v2830 = vpack.c.b16 %v2086, %v2078
    %v2831 = vpack.c.b16 %v2087, %v2079
    %v2832 = vpack.c.b16 %v2088, %v2080
    %v2833 = vpack.c.b16 %v2089, %v2081
    %v2834 = vpack.c.b16 %v2090, %v2082
    %v2835 = vpack.c.b16 %v2091, %v2083
    %v2836 = vpack.c.b16 %v2092, %v2084
    %v2837 = vpack.c.b16 %v2093, %v2085
    %v2838 = vpack.c.b16 %v2102, %v2094
    %v2839 = vpack.c.b16 %v2103, %v2095
    %v2840 = vpack.c.b16 %v2104, %v2096
    %v2841 = vpack.c.b16 %v2105, %v2097
    %v2842 = vpack.c.b16 %v2106, %v2098
    %v2843 = vpack.c.b16 %v2107, %v2099
    %v2844 = vpack.c.b16 %v2108, %v2100
    %v2845 = vpack.c.b16 %v2109, %v2101
    %v2846 = vpack.c.b16 %v2118, %v2110
    %v2847 = vpack.c.b16 %v2119, %v2111
    %v2848 = vpack.c.b16 %v2120, %v2112
    %v2849 = vpack.c.b16 %v2121, %v2113
    %v2850 = vpack.c.b16 %v2122, %v2114
    %v2851 = vpack.c.b16 %v2123, %v2115
    %v2852 = vpack.c.b16 %v2124, %v2116
    %v2853 = vpack.c.b16 %v2125, %v2117
    %v2854 = vpack.c.b16 %v2134, %v2126
    %v2855 = vpack.c.b16 %v2135, %v2127
    %v2856 = vpack.c.b16 %v2136, %v2128
    %v2857 = vpack.c.b16 %v2137, %v2129
    %v2858 = vpack.c.b16 %v2138, %v2130
    %v2859 = vpack.c.b16 %v2139, %v2131
    %v2860 = vpack.c.b16 %v2140, %v2132
    %v2861 = vpack.c.b16 %v2141, %v2133
    %v2862 = vpack.c.b16 %v2150, %v2142
    %v2863 = vpack.c.b16 %v2151, %v2143
    %v2864 = vpack.c.b16 %v2152, %v2144
    %v2865 = vpack.c.b16 %v2153, %v2145
    %v2866 = vpack.c.b16 %v2154, %v2146
    %v2867 = vpack.c.b16 %v2155, %v2147
    %v2868 = vpack.c.b16 %v2156, %v2148
    %v2869 = vpack.c.b16 %v2157, %v2149
    %v2870 = vpack.c.b16 %v2166, %v2158
    %v2871 = vpack.c.b16 %v2167, %v2159
    %v2872 = vpack.c.b16 %v2168, %v2160
    %v2873 = vpack.c.b16 %v2169, %v2161
    %v2874 = vpack.c.b16 %v2170, %v2162
    %v2875 = vpack.c.b16 %v2171, %v2163
    %v2876 = vpack.c.b16 %v2172, %v2164
    %v2877 = vpack.c.b16 %v2173, %v2165
    %v2878 = vpack.c.b16 %v2182, %v2174
    %v2879 = vpack.c.b16 %v2183, %v2175
    %v2880 = vpack.c.b16 %v2184, %v2176
    %v2881 = vpack.c.b16 %v2185, %v2177
    %v2882 = vpack.c.b16 %v2186, %v2178
    %v2883 = vpack.c.b16 %v2187, %v2179
    %v2884 = vpack.c.b16 %v2188, %v2180
    %v2885 = vpack.c.b16 %v2189, %v2181
    %v2886 = vpack.c.b16 %v2198, %v2190
    %v2887 = vpack.c.b16 %v2199, %v2191
    %v2888 = vpack.c.b16 %v2200, %v2192
    %v2889 = vpack.c.b16 %v2201, %v2193
    %v2890 = vpack.c.b16 %v2202, %v2194
    %v2891 = vpack.c.b16 %v2203, %v2195
    %v2892 = vpack.c.b16 %v2204, %v2196
    %v2893 = vpack.c.b16 %v2205, %v2197
    %v2894 = vpack.c.b16 %v2214, %v2206
    %v2895 = vpack.c.b16 %v2215, %v2207
    %v2896 = vpack.c.b16 %v2216, %v2208
    %v2897 = vpack.c.b16 %v2217, %v2209
    %v2898 = vpack.c.b16 %v2218, %v2210
    %v2899 = vpack.c.b16 %v2219, %v2211
    %v2900 = vpack.c.b16 %v2220, %v2212
    %v2901 = vpack.c.b16 %v2221, %v2213
    %v2902 = vpack.c.b16 %v2230, %v2222
    %v2903 = vpack.c.b16 %v2231, %v2223
    %v2904 = vpack.c.b16 %v2232, %v2224
    %v2905 = vpack.c.b16 %v2233, %v2225
    %v2906 = vpack.c.b16 %v2234, %v2226
    %v2907 = vpack.c.b16 %v2235, %v2227
    %v2908 = vpack.c.b16 %v2236, %v2228
    %v2909 = vpack.c.b16 %v2237, %v2229
    %v2910 = vpack.c.b16 %v2246, %v2238
    %v2911 = vpack.c.b16 %v2247, %v2239
    %v2912 = vpack.c.b16 %v2248, %v2240
    %v2913 = vpack.c.b16 %v2249, %v2241
    %v2914 = vpack.c.b16 %v2250, %v2242
    %v2915 = vpack.c.b16 %v2251, %v2243
    %v2916 = vpack.c.b16 %v2252, %v2244
    %v2917 = vpack.c.b16 %v2253, %v2245
    %v2918 = vpack.c.b16 %v2262, %v2254
    %v2919 = vpack.c.b16 %v2263, %v2255
    %v2920 = vpack.c.b16 %v2264, %v2256
    %v2921 = vpack.c.b16 %v2265, %v2257
    %v2922 = vpack.c.b16 %v2266, %v2258
    %v2923 = vpack.c.b16 %v2267, %v2259
    %v2924 = vpack.c.b16 %v2268, %v2260
    %v2925 = vpack.c.b16 %v2269, %v2261
    %v2926 = vpack.c.b16 %v2278, %v2270
    %v2927 = vpack.c.b16 %v2279, %v2271
    %v2928 = vpack.c.b16 %v2280, %v2272
    %v2929 = vpack.c.b16 %v2281, %v2273
    %v2930 = vpack.c.b16 %v2282, %v2274
    %v2931 = vpack.c.b16 %v2283, %v2275
    %v2932 = vpack.c.b16 %v2284, %v2276
    %v2933 = vpack.c.b16 %v2285, %v2277
    %v2934 = vpack.c.b16 %v2294, %v2286
    %v2935 = vpack.c.b16 %v2295, %v2287
    %v2936 = vpack.c.b16 %v2296, %v2288
    %v2937 = vpack.c.b16 %v2297, %v2289
    %v2938 = vpack.c.b16 %v2298, %v2290
    %v2939 = vpack.c.b16 %v2299, %v2291
    %v2940 = vpack.c.b16 %v2300, %v2292
    %v2941 = vpack.c.b16 %v2301, %v2293
    %v2942 = vpack.c.b16 %v2310, %v2302
    %v2943 = vpack.c.b16 %v2311, %v2303
    %v2944 = vpack.c.b16 %v2312, %v2304
    %v2945 = vpack.c.b16 %v2313, %v2305
    %v2946 = vpack.c.b16 %v2314, %v2306
    %v2947 = vpack.c.b16 %v2315, %v2307
    %v2948 = vpack.c.b16 %v2316, %v2308
    %v2949 = vpack.c.b16 %v2317, %v2309
    %v2950 = vpack.c.b16 %v2326, %v2318
    %v2951 = vpack.c.b16 %v2327, %v2319
    %v2952 = vpack.c.b16 %v2328, %v2320
    %v2953 = vpack.c.b16 %v2329, %v2321
    %v2954 = vpack.c.b16 %v2330, %v2322
    %v2955 = vpack.c.b16 %v2331, %v2323
    %v2956 = vpack.c.b16 %v2332, %v2324
    %v2957 = vpack.c.b16 %v2333, %v2325
    %v2958 = vpack.c.b16 %v2342, %v2334
    %v2959 = vpack.c.b16 %v2343, %v2335
    %v2960 = vpack.c.b16 %v2344, %v2336
    %v2961 = vpack.c.b16 %v2345, %v2337
    %v2962 = vpack.c.b16 %v2346, %v2338
    %v2963 = vpack.c.b16 %v2347, %v2339
    %v2964 = vpack.c.b16 %v2348, %v2340
    %v2965 = vpack.c.b16 %v2349, %v2341
    %v2966 = vpack.c.b16 %v2358, %v2350
    %v2967 = vpack.c.b16 %v2359, %v2351
    %v2968 = vpack.c.b16 %v2360, %v2352
    %v2969 = vpack.c.b16 %v2361, %v2353
    %v2970 = vpack.c.b16 %v2362, %v2354
    %v2971 = vpack.c.b16 %v2363, %v2355
    %v2972 = vpack.c.b16 %v2364, %v2356
    %v2973 = vpack.c.b16 %v2365, %v2357
    %v2974 = vpack.c.b16 %v2374, %v2366
    %v2975 = vpack.c.b16 %v2375, %v2367
    %v2976 = vpack.c.b16 %v2376, %v2368
    %v2977 = vpack.c.b16 %v2377, %v2369
    %v2978 = vpack.c.b16 %v2378, %v2370
    %v2979 = vpack.c.b16 %v2379, %v2371
    %v2980 = vpack.c.b16 %v2380, %v2372
    %v2981 = vpack.c.b16 %v2381, %v2373
    %v2982 = vpack.c.b16 %v2390, %v2382
    %v2983 = vpack.c.b16 %v2391, %v2383
    %v2984 = vpack.c.b16 %v2392, %v2384
    %v2985 = vpack.c.b16 %v2393, %v2385
    %v2986 = vpack.c.b16 %v2394, %v2386
    %v2987 = vpack.c.b16 %v2395, %v2387
    %v2988 = vpack.c.b16 %v2396, %v2388
    %v2989 = vpack.c.b16 %v2397, %v2389
    %v2990 = vpack.c.b16 %v2406, %v2398
    %v2991 = vpack.c.b16 %v2407, %v2399
    %v2992 = vpack.c.b16 %v2408, %v2400
    %v2993 = vpack.c.b16 %v2409, %v2401
    %v2994 = vpack.c.b16 %v2410, %v2402
    %v2995 = vpack.c.b16 %v2411, %v2403
    %v2996 = vpack.c.b16 %v2412, %v2404
    %v2997 = vpack.c.b16 %v2413, %v2405
    %v2998 = vpack.c.b16 %v2422, %v2414
    %v2999 = vpack.c.b16 %v2423, %v2415
    %v3000 = vpack.c.b16 %v2424, %v2416
    %v3001 = vpack.c.b16 %v2425, %v2417
    %v3002 = vpack.c.b16 %v2426, %v2418
    %v3003 = vpack.c.b16 %v2427, %v2419
    %v3004 = vpack.c.b16 %v2428, %v2420
    %v3005 = vpack.c.b16 %v2429, %v2421
    %v3006 = vpack.c.b16 %v2438, %v2430
    %v3007 = vpack.c.b16 %v2439, %v2431
    %v3008 = vpack.c.b16 %v2440, %v2432
    %v3009 = vpack.c.b16 %v2441, %v2433
    %v3010 = vpack.c.b16 %v2442, %v2434
    %v3011 = vpack.c.b16 %v2443, %v2435
    %v3012 = vpack.c.b16 %v2444, %v2436
    %v3013 = vpack.c.b16 %v2445, %v2437
    %v3014 = vpack.c.b16 %v2454, %v2446
    %v3015 = vpack.c.b16 %v2455, %v2447
    %v3016 = vpack.c.b16 %v2456, %v2448
    %v3017 = vpack.c.b16 %v2457, %v2449
    %v3018 = vpack.c.b16 %v2458, %v2450
    %v3019 = vpack.c.b16 %v2459, %v2451
    %v3020 = vpack.c.b16 %v2460, %v2452
    %v3021 = vpack.c.b16 %v2461, %v2453
    %v3022 = vpack.c.b16 %v2470, %v2462
    %v3023 = vpack.c.b16 %v2471, %v2463
    %v3024 = vpack.c.b16 %v2472, %v2464
    %v3025 = vpack.c.b16 %v2473, %v2465
    %v3026 = vpack.c.b16 %v2474, %v2466
    %v3027 = vpack.c.b16 %v2475, %v2467
    %v3028 = vpack.c.b16 %v2476, %v2468
    %v3029 = vpack.c.b16 %v2477, %v2469
    %v3030 = vpack.c.b16 %v2486, %v2478
    %v3031 = vpack.c.b16 %v2487, %v2479
    %v3032 = vpack.c.b16 %v2488, %v2480
    %v3033 = vpack.c.b16 %v2489, %v2481
    %v3034 = vpack.c.b16 %v2490, %v2482
    %v3035 = vpack.c.b16 %v2491, %v2483
    %v3036 = vpack.c.b16 %v2492, %v2484
    %v3037 = vpack.c.b16 %v2493, %v2485
    %v3038 = vpack.c.b16 %v2502, %v2494
    %v3039 = vpack.c.b16 %v2503, %v2495
    %v3040 = vpack.c.b16 %v2504, %v2496
    %v3041 = vpack.c.b16 %v2505, %v2497
    %v3042 = vpack.c.b16 %v2506, %v2498
    %v3043 = vpack.c.b16 %v2507, %v2499
    %v3044 = vpack.c.b16 %v2508, %v2500
    %v3045 = vpack.c.b16 %v2509, %v2501
    %v3046 = vpack.c.b16 %v2518, %v2510
    %v3047 = vpack.c.b16 %v2519, %v2511
    %v3048 = vpack.c.b16 %v2520, %v2512
    %v3049 = vpack.c.b16 %v2521, %v2513
    %v3050 = vpack.c.b16 %v2522, %v2514
    %v3051 = vpack.c.b16 %v2523, %v2515
    %v3052 = vpack.c.b16 %v2524, %v2516
    %v3053 = vpack.c.b16 %v2525, %v2517
    %v3054 = vpack.c.b16 %v2534, %v2526
    %v3055 = vpack.c.b16 %v2535, %v2527
    %v3056 = vpack.c.b16 %v2536, %v2528
    %v3057 = vpack.c.b16 %v2537, %v2529
    %v3058 = vpack.c.b16 %v2538, %v2530
    %v3059 = vpack.c.b16 %v2539, %v2531
    %v3060 = vpack.c.b16 %v2540, %v2532
    %v3061 = vpack.c.b16 %v2541, %v2533
    %v3062 = vpack.c.b16 %v2550, %v2542
    %v3063 = vpack.c.b16 %v2551, %v2543
    %v3064 = vpack.c.b16 %v2552, %v2544
    %v3065 = vpack.c.b16 %v2553, %v2545
    %v3066 = vpack.c.b16 %v2554, %v2546
    %v3067 = vpack.c.b16 %v2555, %v2547
    %v3068 = vpack.c.b16 %v2556, %v2548
    %v3069 = vpack.c.b16 %v2557, %v2549
    %3582 = vmatpush.bf16.msra.mxu0 %v2614
    %3583 = vmatpush.bf16.msra.mxu0 %v2606
    %3584 = vmatpush.bf16.msra.mxu0 %v2598
    %3585 = vmatpush.bf16.msra.mxu0 %v2590
    %3586 = vmatpush.bf16.msra.mxu0 %v2582
    %3587 = vmatpush.bf16.msra.mxu0 %v2574
    %3588 = vmatpush.bf16.msra.mxu0 %v2566
    %3589 = vmatpush.bf16.msra.mxu0 %v2558
    %3590 = vmatmul.bf16.gmra.mxu0 %v484
    %v3591 = vpop.f32.mrf.mxu0
    %v3592 = vadd.f32 %v1006, %v3591
    %v3593 = vpop.f32.mrf.mxu0
    %3594 = vdwg.mxu0
    %3595 = vmatpush.bf16.msra.mxu0 %v2678
    %3596 = vmatpush.bf16.msra.mxu0 %v2670
    %3597 = vmatpush.bf16.msra.mxu0 %v2662
    %3598 = vmatpush.bf16.msra.mxu0 %v2654
    %3599 = vmatpush.bf16.msra.mxu0 %v2646
    %3600 = vmatpush.bf16.msra.mxu0 %v2638
    %3601 = vmatpush.bf16.msra.mxu0 %v2630
    %3602 = vmatpush.bf16.msra.mxu0 %v2622
    %3603 = vmatmul.bf16.gmra.mxu0 %v485
    %v3604 = vpop.f32.mrf.mxu0
    %v3605 = vadd.f32 %v3592, %v3604
    %v3606 = vpop.f32.mrf.mxu0
    %3607 = vdwg.mxu0
    %3608 = vmatpush.bf16.msra.mxu0 %v2742
    %3609 = vmatpush.bf16.msra.mxu0 %v2734
    %3610 = vmatpush.bf16.msra.mxu0 %v2726
    %3611 = vmatpush.bf16.msra.mxu0 %v2718
    %3612 = vmatpush.bf16.msra.mxu0 %v2710
    %3613 = vmatpush.bf16.msra.mxu0 %v2702
    %3614 = vmatpush.bf16.msra.mxu0 %v2694
    %3615 = vmatpush.bf16.msra.mxu0 %v2686
    %3616 = vmatmul.bf16.gmra.mxu0 %v486
    %v3617 = vpop.f32.mrf.mxu0
    %v3618 = vadd.f32 %v3605, %v3617
    %v3619 = vpop.f32.mrf.mxu0
    %3620 = vdwg.mxu0
    %3621 = vmatpush.bf16.msra.mxu0 %v2806
    %3622 = vmatpush.bf16.msra.mxu0 %v2798
    %3623 = vmatpush.bf16.msra.mxu0 %v2790
    %3624 = vmatpush.bf16.msra.mxu0 %v2782
    %3625 = vmatpush.bf16.msra.mxu0 %v2774
    %3626 = vmatpush.bf16.msra.mxu0 %v2766
    %3627 = vmatpush.bf16.msra.mxu0 %v2758
    %3628 = vmatpush.bf16.msra.mxu0 %v2750
    %3629 = vmatmul.bf16.gmra.mxu0 %v487
    %v3630 = vpop.f32.mrf.mxu0
    %v3631 = vadd.f32 %v3618, %v3630
    %v3632 = vpop.f32.mrf.mxu0
    %3633 = vdwg.mxu0
    %3634 = vmatpush.bf16.msra.mxu0 %v2870
    %3635 = vmatpush.bf16.msra.mxu0 %v2862
    %3636 = vmatpush.bf16.msra.mxu0 %v2854
    %3637 = vmatpush.bf16.msra.mxu0 %v2846
    %3638 = vmatpush.bf16.msra.mxu0 %v2838
    %3639 = vmatpush.bf16.msra.mxu0 %v2830
    %3640 = vmatpush.bf16.msra.mxu0 %v2822
    %3641 = vmatpush.bf16.msra.mxu0 %v2814
    %3642 = vmatmul.bf16.gmra.mxu0 %v488
    %v3643 = vpop.f32.mrf.mxu0
    %v3644 = vadd.f32 %v3631, %v3643
    %v3645 = vpop.f32.mrf.mxu0
    %3646 = vdwg.mxu0
    %3647 = vmatpush.bf16.msra.mxu0 %v2934
    %3648 = vmatpush.bf16.msra.mxu0 %v2926
    %3649 = vmatpush.bf16.msra.mxu0 %v2918
    %3650 = vmatpush.bf16.msra.mxu0 %v2910
    %3651 = vmatpush.bf16.msra.mxu0 %v2902
    %3652 = vmatpush.bf16.msra.mxu0 %v2894
    %3653 = vmatpush.bf16.msra.mxu0 %v2886
    %3654 = vmatpush.bf16.msra.mxu0 %v2878
    %3655 = vmatmul.bf16.gmra.mxu0 %v489
    %v3656 = vpop.f32.mrf.mxu0
    %v3657 = vadd.f32 %v3644, %v3656
    %v3658 = vpop.f32.mrf.mxu0
    %3659 = vdwg.mxu0
    %3660 = vmatpush.bf16.msra.mxu0 %v2998
    %3661 = vmatpush.bf16.msra.mxu0 %v2990
    %3662 = vmatpush.bf16.msra.mxu0 %v2982
    %3663 = vmatpush.bf16.msra.mxu0 %v2974
    %3664 = vmatpush.bf16.msra.mxu0 %v2966
    %3665 = vmatpush.bf16.msra.mxu0 %v2958
    %3666 = vmatpush.bf16.msra.mxu0 %v2950
    %3667 = vmatpush.bf16.msra.mxu0 %v2942
    %3668 = vmatmul.bf16.gmra.mxu0 %v490
    %v3669 = vpop.f32.mrf.mxu0
    %v3670 = vadd.f32 %v3657, %v3669
    %v3671 = vpop.f32.mrf.mxu0
    %3672 = vdwg.mxu0
    %3673 = vmatpush.bf16.msra.mxu0 %v3062
    %3674 = vmatpush.bf16.msra.mxu0 %v3054
    %3675 = vmatpush.bf16.msra.mxu0 %v3046
    %3676 = vmatpush.bf16.msra.mxu0 %v3038
    %3677 = vmatpush.bf16.msra.mxu0 %v3030
    %3678 = vmatpush.bf16.msra.mxu0 %v3022
    %3679 = vmatpush.bf16.msra.mxu0 %v3014
    %3680 = vmatpush.bf16.msra.mxu0 %v3006
    %3681 = vmatmul.bf16.gmra.mxu0 %v491
    %v3682 = vpop.f32.mrf.mxu0
    %v3683 = vadd.f32 %v3670, %v3682
    %v3684 = vpop.f32.mrf.mxu0
    %3685 = vdwg.mxu0
    %3686 = vmatpush.bf16.msra.mxu0 %v2615
    %3687 = vmatpush.bf16.msra.mxu0 %v2607
    %3688 = vmatpush.bf16.msra.mxu0 %v2599
    %3689 = vmatpush.bf16.msra.mxu0 %v2591
    %3690 = vmatpush.bf16.msra.mxu0 %v2583
    %3691 = vmatpush.bf16.msra.mxu0 %v2575
    %3692 = vmatpush.bf16.msra.mxu0 %v2567
    %3693 = vmatpush.bf16.msra.mxu0 %v2559
    %3694 = vmatmul.bf16.gmra.mxu0 %v484
    %v3695 = vpop.f32.mrf.mxu0
    %v3696 = vadd.f32 %v1007, %v3695
    %v3697 = vpop.f32.mrf.mxu0
    %3698 = vdwg.mxu0
    %3699 = vmatpush.bf16.msra.mxu0 %v2679
    %3700 = vmatpush.bf16.msra.mxu0 %v2671
    %3701 = vmatpush.bf16.msra.mxu0 %v2663
    %3702 = vmatpush.bf16.msra.mxu0 %v2655
    %3703 = vmatpush.bf16.msra.mxu0 %v2647
    %3704 = vmatpush.bf16.msra.mxu0 %v2639
    %3705 = vmatpush.bf16.msra.mxu0 %v2631
    %3706 = vmatpush.bf16.msra.mxu0 %v2623
    %3707 = vmatmul.bf16.gmra.mxu0 %v485
    %v3708 = vpop.f32.mrf.mxu0
    %v3709 = vadd.f32 %v3696, %v3708
    %v3710 = vpop.f32.mrf.mxu0
    %3711 = vdwg.mxu0
    %3712 = vmatpush.bf16.msra.mxu0 %v2743
    %3713 = vmatpush.bf16.msra.mxu0 %v2735
    %3714 = vmatpush.bf16.msra.mxu0 %v2727
    %3715 = vmatpush.bf16.msra.mxu0 %v2719
    %3716 = vmatpush.bf16.msra.mxu0 %v2711
    %3717 = vmatpush.bf16.msra.mxu0 %v2703
    %3718 = vmatpush.bf16.msra.mxu0 %v2695
    %3719 = vmatpush.bf16.msra.mxu0 %v2687
    %3720 = vmatmul.bf16.gmra.mxu0 %v486
    %v3721 = vpop.f32.mrf.mxu0
    %v3722 = vadd.f32 %v3709, %v3721
    %v3723 = vpop.f32.mrf.mxu0
    %3724 = vdwg.mxu0
    %3725 = vmatpush.bf16.msra.mxu0 %v2807
    %3726 = vmatpush.bf16.msra.mxu0 %v2799
    %3727 = vmatpush.bf16.msra.mxu0 %v2791
    %3728 = vmatpush.bf16.msra.mxu0 %v2783
    %3729 = vmatpush.bf16.msra.mxu0 %v2775
    %3730 = vmatpush.bf16.msra.mxu0 %v2767
    %3731 = vmatpush.bf16.msra.mxu0 %v2759
    %3732 = vmatpush.bf16.msra.mxu0 %v2751
    %3733 = vmatmul.bf16.gmra.mxu0 %v487
    %v3734 = vpop.f32.mrf.mxu0
    %v3735 = vadd.f32 %v3722, %v3734
    %v3736 = vpop.f32.mrf.mxu0
    %3737 = vdwg.mxu0
    %3738 = vmatpush.bf16.msra.mxu0 %v2871
    %3739 = vmatpush.bf16.msra.mxu0 %v2863
    %3740 = vmatpush.bf16.msra.mxu0 %v2855
    %3741 = vmatpush.bf16.msra.mxu0 %v2847
    %3742 = vmatpush.bf16.msra.mxu0 %v2839
    %3743 = vmatpush.bf16.msra.mxu0 %v2831
    %3744 = vmatpush.bf16.msra.mxu0 %v2823
    %3745 = vmatpush.bf16.msra.mxu0 %v2815
    %3746 = vmatmul.bf16.gmra.mxu0 %v488
    %v3747 = vpop.f32.mrf.mxu0
    %v3748 = vadd.f32 %v3735, %v3747
    %v3749 = vpop.f32.mrf.mxu0
    %3750 = vdwg.mxu0
    %3751 = vmatpush.bf16.msra.mxu0 %v2935
    %3752 = vmatpush.bf16.msra.mxu0 %v2927
    %3753 = vmatpush.bf16.msra.mxu0 %v2919
    %3754 = vmatpush.bf16.msra.mxu0 %v2911
    %3755 = vmatpush.bf16.msra.mxu0 %v2903
    %3756 = vmatpush.bf16.msra.mxu0 %v2895
    %3757 = vmatpush.bf16.msra.mxu0 %v2887
    %3758 = vmatpush.bf16.msra.mxu0 %v2879
    %3759 = vmatmul.bf16.gmra.mxu0 %v489
    %v3760 = vpop.f32.mrf.mxu0
    %v3761 = vadd.f32 %v3748, %v3760
    %v3762 = vpop.f32.mrf.mxu0
    %3763 = vdwg.mxu0
    %3764 = vmatpush.bf16.msra.mxu0 %v2999
    %3765 = vmatpush.bf16.msra.mxu0 %v2991
    %3766 = vmatpush.bf16.msra.mxu0 %v2983
    %3767 = vmatpush.bf16.msra.mxu0 %v2975
    %3768 = vmatpush.bf16.msra.mxu0 %v2967
    %3769 = vmatpush.bf16.msra.mxu0 %v2959
    %3770 = vmatpush.bf16.msra.mxu0 %v2951
    %3771 = vmatpush.bf16.msra.mxu0 %v2943
    %3772 = vmatmul.bf16.gmra.mxu0 %v490
    %v3773 = vpop.f32.mrf.mxu0
    %v3774 = vadd.f32 %v3761, %v3773
    %v3775 = vpop.f32.mrf.mxu0
    %3776 = vdwg.mxu0
    %3777 = vmatpush.bf16.msra.mxu0 %v3063
    %3778 = vmatpush.bf16.msra.mxu0 %v3055
    %3779 = vmatpush.bf16.msra.mxu0 %v3047
    %3780 = vmatpush.bf16.msra.mxu0 %v3039
    %3781 = vmatpush.bf16.msra.mxu0 %v3031
    %3782 = vmatpush.bf16.msra.mxu0 %v3023
    %3783 = vmatpush.bf16.msra.mxu0 %v3015
    %3784 = vmatpush.bf16.msra.mxu0 %v3007
    %3785 = vmatmul.bf16.gmra.mxu0 %v491
    %v3786 = vpop.f32.mrf.mxu0
    %v3787 = vadd.f32 %v3774, %v3786
    %v3788 = vpop.f32.mrf.mxu0
    %3789 = vdwg.mxu0
    %3790 = vmatpush.bf16.msra.mxu0 %v2616
    %3791 = vmatpush.bf16.msra.mxu0 %v2608
    %3792 = vmatpush.bf16.msra.mxu0 %v2600
    %3793 = vmatpush.bf16.msra.mxu0 %v2592
    %3794 = vmatpush.bf16.msra.mxu0 %v2584
    %3795 = vmatpush.bf16.msra.mxu0 %v2576
    %3796 = vmatpush.bf16.msra.mxu0 %v2568
    %3797 = vmatpush.bf16.msra.mxu0 %v2560
    %3798 = vmatmul.bf16.gmra.mxu0 %v484
    %v3799 = vpop.f32.mrf.mxu0
    %v3800 = vadd.f32 %v1008, %v3799
    %v3801 = vpop.f32.mrf.mxu0
    %3802 = vdwg.mxu0
    %3803 = vmatpush.bf16.msra.mxu0 %v2680
    %3804 = vmatpush.bf16.msra.mxu0 %v2672
    %3805 = vmatpush.bf16.msra.mxu0 %v2664
    %3806 = vmatpush.bf16.msra.mxu0 %v2656
    %3807 = vmatpush.bf16.msra.mxu0 %v2648
    %3808 = vmatpush.bf16.msra.mxu0 %v2640
    %3809 = vmatpush.bf16.msra.mxu0 %v2632
    %3810 = vmatpush.bf16.msra.mxu0 %v2624
    %3811 = vmatmul.bf16.gmra.mxu0 %v485
    %v3812 = vpop.f32.mrf.mxu0
    %v3813 = vadd.f32 %v3800, %v3812
    %v3814 = vpop.f32.mrf.mxu0
    %3815 = vdwg.mxu0
    %3816 = vmatpush.bf16.msra.mxu0 %v2744
    %3817 = vmatpush.bf16.msra.mxu0 %v2736
    %3818 = vmatpush.bf16.msra.mxu0 %v2728
    %3819 = vmatpush.bf16.msra.mxu0 %v2720
    %3820 = vmatpush.bf16.msra.mxu0 %v2712
    %3821 = vmatpush.bf16.msra.mxu0 %v2704
    %3822 = vmatpush.bf16.msra.mxu0 %v2696
    %3823 = vmatpush.bf16.msra.mxu0 %v2688
    %3824 = vmatmul.bf16.gmra.mxu0 %v486
    %v3825 = vpop.f32.mrf.mxu0
    %v3826 = vadd.f32 %v3813, %v3825
    %v3827 = vpop.f32.mrf.mxu0
    %3828 = vdwg.mxu0
    %3829 = vmatpush.bf16.msra.mxu0 %v2808
    %3830 = vmatpush.bf16.msra.mxu0 %v2800
    %3831 = vmatpush.bf16.msra.mxu0 %v2792
    %3832 = vmatpush.bf16.msra.mxu0 %v2784
    %3833 = vmatpush.bf16.msra.mxu0 %v2776
    %3834 = vmatpush.bf16.msra.mxu0 %v2768
    %3835 = vmatpush.bf16.msra.mxu0 %v2760
    %3836 = vmatpush.bf16.msra.mxu0 %v2752
    %3837 = vmatmul.bf16.gmra.mxu0 %v487
    %v3838 = vpop.f32.mrf.mxu0
    %v3839 = vadd.f32 %v3826, %v3838
    %v3840 = vpop.f32.mrf.mxu0
    %3841 = vdwg.mxu0
    %3842 = vmatpush.bf16.msra.mxu0 %v2872
    %3843 = vmatpush.bf16.msra.mxu0 %v2864
    %3844 = vmatpush.bf16.msra.mxu0 %v2856
    %3845 = vmatpush.bf16.msra.mxu0 %v2848
    %3846 = vmatpush.bf16.msra.mxu0 %v2840
    %3847 = vmatpush.bf16.msra.mxu0 %v2832
    %3848 = vmatpush.bf16.msra.mxu0 %v2824
    %3849 = vmatpush.bf16.msra.mxu0 %v2816
    %3850 = vmatmul.bf16.gmra.mxu0 %v488
    %v3851 = vpop.f32.mrf.mxu0
    %v3852 = vadd.f32 %v3839, %v3851
    %v3853 = vpop.f32.mrf.mxu0
    %3854 = vdwg.mxu0
    %3855 = vmatpush.bf16.msra.mxu0 %v2936
    %3856 = vmatpush.bf16.msra.mxu0 %v2928
    %3857 = vmatpush.bf16.msra.mxu0 %v2920
    %3858 = vmatpush.bf16.msra.mxu0 %v2912
    %3859 = vmatpush.bf16.msra.mxu0 %v2904
    %3860 = vmatpush.bf16.msra.mxu0 %v2896
    %3861 = vmatpush.bf16.msra.mxu0 %v2888
    %3862 = vmatpush.bf16.msra.mxu0 %v2880
    %3863 = vmatmul.bf16.gmra.mxu0 %v489
    %v3864 = vpop.f32.mrf.mxu0
    %v3865 = vadd.f32 %v3852, %v3864
    %v3866 = vpop.f32.mrf.mxu0
    %3867 = vdwg.mxu0
    %3868 = vmatpush.bf16.msra.mxu0 %v3000
    %3869 = vmatpush.bf16.msra.mxu0 %v2992
    %3870 = vmatpush.bf16.msra.mxu0 %v2984
    %3871 = vmatpush.bf16.msra.mxu0 %v2976
    %3872 = vmatpush.bf16.msra.mxu0 %v2968
    %3873 = vmatpush.bf16.msra.mxu0 %v2960
    %3874 = vmatpush.bf16.msra.mxu0 %v2952
    %3875 = vmatpush.bf16.msra.mxu0 %v2944
    %3876 = vmatmul.bf16.gmra.mxu0 %v490
    %v3877 = vpop.f32.mrf.mxu0
    %v3878 = vadd.f32 %v3865, %v3877
    %v3879 = vpop.f32.mrf.mxu0
    %3880 = vdwg.mxu0
    %3881 = vmatpush.bf16.msra.mxu0 %v3064
    %3882 = vmatpush.bf16.msra.mxu0 %v3056
    %3883 = vmatpush.bf16.msra.mxu0 %v3048
    %3884 = vmatpush.bf16.msra.mxu0 %v3040
    %3885 = vmatpush.bf16.msra.mxu0 %v3032
    %3886 = vmatpush.bf16.msra.mxu0 %v3024
    %3887 = vmatpush.bf16.msra.mxu0 %v3016
    %3888 = vmatpush.bf16.msra.mxu0 %v3008
    %3889 = vmatmul.bf16.gmra.mxu0 %v491
    %v3890 = vpop.f32.mrf.mxu0
    %v3891 = vadd.f32 %v3878, %v3890
    %v3892 = vpop.f32.mrf.mxu0
    %3893 = vdwg.mxu0
    %3894 = vmatpush.bf16.msra.mxu0 %v2617
    %3895 = vmatpush.bf16.msra.mxu0 %v2609
    %3896 = vmatpush.bf16.msra.mxu0 %v2601
    %3897 = vmatpush.bf16.msra.mxu0 %v2593
    %3898 = vmatpush.bf16.msra.mxu0 %v2585
    %3899 = vmatpush.bf16.msra.mxu0 %v2577
    %3900 = vmatpush.bf16.msra.mxu0 %v2569
    %3901 = vmatpush.bf16.msra.mxu0 %v2561
    %3902 = vmatmul.bf16.gmra.mxu0 %v484
    %v3903 = vpop.f32.mrf.mxu0
    %v3904 = vadd.f32 %v1009, %v3903
    %v3905 = vpop.f32.mrf.mxu0
    %3906 = vdwg.mxu0
    %3907 = vmatpush.bf16.msra.mxu0 %v2681
    %3908 = vmatpush.bf16.msra.mxu0 %v2673
    %3909 = vmatpush.bf16.msra.mxu0 %v2665
    %3910 = vmatpush.bf16.msra.mxu0 %v2657
    %3911 = vmatpush.bf16.msra.mxu0 %v2649
    %3912 = vmatpush.bf16.msra.mxu0 %v2641
    %3913 = vmatpush.bf16.msra.mxu0 %v2633
    %3914 = vmatpush.bf16.msra.mxu0 %v2625
    %3915 = vmatmul.bf16.gmra.mxu0 %v485
    %v3916 = vpop.f32.mrf.mxu0
    %v3917 = vadd.f32 %v3904, %v3916
    %v3918 = vpop.f32.mrf.mxu0
    %3919 = vdwg.mxu0
    %3920 = vmatpush.bf16.msra.mxu0 %v2745
    %3921 = vmatpush.bf16.msra.mxu0 %v2737
    %3922 = vmatpush.bf16.msra.mxu0 %v2729
    %3923 = vmatpush.bf16.msra.mxu0 %v2721
    %3924 = vmatpush.bf16.msra.mxu0 %v2713
    %3925 = vmatpush.bf16.msra.mxu0 %v2705
    %3926 = vmatpush.bf16.msra.mxu0 %v2697
    %3927 = vmatpush.bf16.msra.mxu0 %v2689
    %3928 = vmatmul.bf16.gmra.mxu0 %v486
    %v3929 = vpop.f32.mrf.mxu0
    %v3930 = vadd.f32 %v3917, %v3929
    %v3931 = vpop.f32.mrf.mxu0
    %3932 = vdwg.mxu0
    %3933 = vmatpush.bf16.msra.mxu0 %v2809
    %3934 = vmatpush.bf16.msra.mxu0 %v2801
    %3935 = vmatpush.bf16.msra.mxu0 %v2793
    %3936 = vmatpush.bf16.msra.mxu0 %v2785
    %3937 = vmatpush.bf16.msra.mxu0 %v2777
    %3938 = vmatpush.bf16.msra.mxu0 %v2769
    %3939 = vmatpush.bf16.msra.mxu0 %v2761
    %3940 = vmatpush.bf16.msra.mxu0 %v2753
    %3941 = vmatmul.bf16.gmra.mxu0 %v487
    %v3942 = vpop.f32.mrf.mxu0
    %v3943 = vadd.f32 %v3930, %v3942
    %v3944 = vpop.f32.mrf.mxu0
    %3945 = vdwg.mxu0
    %3946 = vmatpush.bf16.msra.mxu0 %v2873
    %3947 = vmatpush.bf16.msra.mxu0 %v2865
    %3948 = vmatpush.bf16.msra.mxu0 %v2857
    %3949 = vmatpush.bf16.msra.mxu0 %v2849
    %3950 = vmatpush.bf16.msra.mxu0 %v2841
    %3951 = vmatpush.bf16.msra.mxu0 %v2833
    %3952 = vmatpush.bf16.msra.mxu0 %v2825
    %3953 = vmatpush.bf16.msra.mxu0 %v2817
    %3954 = vmatmul.bf16.gmra.mxu0 %v488
    %v3955 = vpop.f32.mrf.mxu0
    %v3956 = vadd.f32 %v3943, %v3955
    %v3957 = vpop.f32.mrf.mxu0
    %3958 = vdwg.mxu0
    %3959 = vmatpush.bf16.msra.mxu0 %v2937
    %3960 = vmatpush.bf16.msra.mxu0 %v2929
    %3961 = vmatpush.bf16.msra.mxu0 %v2921
    %3962 = vmatpush.bf16.msra.mxu0 %v2913
    %3963 = vmatpush.bf16.msra.mxu0 %v2905
    %3964 = vmatpush.bf16.msra.mxu0 %v2897
    %3965 = vmatpush.bf16.msra.mxu0 %v2889
    %3966 = vmatpush.bf16.msra.mxu0 %v2881
    %3967 = vmatmul.bf16.gmra.mxu0 %v489
    %v3968 = vpop.f32.mrf.mxu0
    %v3969 = vadd.f32 %v3956, %v3968
    %v3970 = vpop.f32.mrf.mxu0
    %3971 = vdwg.mxu0
    %3972 = vmatpush.bf16.msra.mxu0 %v3001
    %3973 = vmatpush.bf16.msra.mxu0 %v2993
    %3974 = vmatpush.bf16.msra.mxu0 %v2985
    %3975 = vmatpush.bf16.msra.mxu0 %v2977
    %3976 = vmatpush.bf16.msra.mxu0 %v2969
    %3977 = vmatpush.bf16.msra.mxu0 %v2961
    %3978 = vmatpush.bf16.msra.mxu0 %v2953
    %3979 = vmatpush.bf16.msra.mxu0 %v2945
    %3980 = vmatmul.bf16.gmra.mxu0 %v490
    %v3981 = vpop.f32.mrf.mxu0
    %v3982 = vadd.f32 %v3969, %v3981
    %v3983 = vpop.f32.mrf.mxu0
    %3984 = vdwg.mxu0
    %3985 = vmatpush.bf16.msra.mxu0 %v3065
    %3986 = vmatpush.bf16.msra.mxu0 %v3057
    %3987 = vmatpush.bf16.msra.mxu0 %v3049
    %3988 = vmatpush.bf16.msra.mxu0 %v3041
    %3989 = vmatpush.bf16.msra.mxu0 %v3033
    %3990 = vmatpush.bf16.msra.mxu0 %v3025
    %3991 = vmatpush.bf16.msra.mxu0 %v3017
    %3992 = vmatpush.bf16.msra.mxu0 %v3009
    %3993 = vmatmul.bf16.gmra.mxu0 %v491
    %v3994 = vpop.f32.mrf.mxu0
    %v3995 = vadd.f32 %v3982, %v3994
    %v3996 = vpop.f32.mrf.mxu0
    %3997 = vdwg.mxu0
    %3998 = vmatpush.bf16.msra.mxu0 %v2618
    %3999 = vmatpush.bf16.msra.mxu0 %v2610
    %4000 = vmatpush.bf16.msra.mxu0 %v2602
    %4001 = vmatpush.bf16.msra.mxu0 %v2594
    %4002 = vmatpush.bf16.msra.mxu0 %v2586
    %4003 = vmatpush.bf16.msra.mxu0 %v2578
    %4004 = vmatpush.bf16.msra.mxu0 %v2570
    %4005 = vmatpush.bf16.msra.mxu0 %v2562
    %4006 = vmatmul.bf16.gmra.mxu0 %v484
    %v4007 = vpop.f32.mrf.mxu0
    %v4008 = vadd.f32 %v1010, %v4007
    %v4009 = vpop.f32.mrf.mxu0
    %4010 = vdwg.mxu0
    %4011 = vmatpush.bf16.msra.mxu0 %v2682
    %4012 = vmatpush.bf16.msra.mxu0 %v2674
    %4013 = vmatpush.bf16.msra.mxu0 %v2666
    %4014 = vmatpush.bf16.msra.mxu0 %v2658
    %4015 = vmatpush.bf16.msra.mxu0 %v2650
    %4016 = vmatpush.bf16.msra.mxu0 %v2642
    %4017 = vmatpush.bf16.msra.mxu0 %v2634
    %4018 = vmatpush.bf16.msra.mxu0 %v2626
    %4019 = vmatmul.bf16.gmra.mxu0 %v485
    %v4020 = vpop.f32.mrf.mxu0
    %v4021 = vadd.f32 %v4008, %v4020
    %v4022 = vpop.f32.mrf.mxu0
    %4023 = vdwg.mxu0
    %4024 = vmatpush.bf16.msra.mxu0 %v2746
    %4025 = vmatpush.bf16.msra.mxu0 %v2738
    %4026 = vmatpush.bf16.msra.mxu0 %v2730
    %4027 = vmatpush.bf16.msra.mxu0 %v2722
    %4028 = vmatpush.bf16.msra.mxu0 %v2714
    %4029 = vmatpush.bf16.msra.mxu0 %v2706
    %4030 = vmatpush.bf16.msra.mxu0 %v2698
    %4031 = vmatpush.bf16.msra.mxu0 %v2690
    %4032 = vmatmul.bf16.gmra.mxu0 %v486
    %v4033 = vpop.f32.mrf.mxu0
    %v4034 = vadd.f32 %v4021, %v4033
    %v4035 = vpop.f32.mrf.mxu0
    %4036 = vdwg.mxu0
    %4037 = vmatpush.bf16.msra.mxu0 %v2810
    %4038 = vmatpush.bf16.msra.mxu0 %v2802
    %4039 = vmatpush.bf16.msra.mxu0 %v2794
    %4040 = vmatpush.bf16.msra.mxu0 %v2786
    %4041 = vmatpush.bf16.msra.mxu0 %v2778
    %4042 = vmatpush.bf16.msra.mxu0 %v2770
    %4043 = vmatpush.bf16.msra.mxu0 %v2762
    %4044 = vmatpush.bf16.msra.mxu0 %v2754
    %4045 = vmatmul.bf16.gmra.mxu0 %v487
    %v4046 = vpop.f32.mrf.mxu0
    %v4047 = vadd.f32 %v4034, %v4046
    %v4048 = vpop.f32.mrf.mxu0
    %4049 = vdwg.mxu0
    %4050 = vmatpush.bf16.msra.mxu0 %v2874
    %4051 = vmatpush.bf16.msra.mxu0 %v2866
    %4052 = vmatpush.bf16.msra.mxu0 %v2858
    %4053 = vmatpush.bf16.msra.mxu0 %v2850
    %4054 = vmatpush.bf16.msra.mxu0 %v2842
    %4055 = vmatpush.bf16.msra.mxu0 %v2834
    %4056 = vmatpush.bf16.msra.mxu0 %v2826
    %4057 = vmatpush.bf16.msra.mxu0 %v2818
    %4058 = vmatmul.bf16.gmra.mxu0 %v488
    %v4059 = vpop.f32.mrf.mxu0
    %v4060 = vadd.f32 %v4047, %v4059
    %v4061 = vpop.f32.mrf.mxu0
    %4062 = vdwg.mxu0
    %4063 = vmatpush.bf16.msra.mxu0 %v2938
    %4064 = vmatpush.bf16.msra.mxu0 %v2930
    %4065 = vmatpush.bf16.msra.mxu0 %v2922
    %4066 = vmatpush.bf16.msra.mxu0 %v2914
    %4067 = vmatpush.bf16.msra.mxu0 %v2906
    %4068 = vmatpush.bf16.msra.mxu0 %v2898
    %4069 = vmatpush.bf16.msra.mxu0 %v2890
    %4070 = vmatpush.bf16.msra.mxu0 %v2882
    %4071 = vmatmul.bf16.gmra.mxu0 %v489
    %v4072 = vpop.f32.mrf.mxu0
    %v4073 = vadd.f32 %v4060, %v4072
    %v4074 = vpop.f32.mrf.mxu0
    %4075 = vdwg.mxu0
    %4076 = vmatpush.bf16.msra.mxu0 %v3002
    %4077 = vmatpush.bf16.msra.mxu0 %v2994
    %4078 = vmatpush.bf16.msra.mxu0 %v2986
    %4079 = vmatpush.bf16.msra.mxu0 %v2978
    %4080 = vmatpush.bf16.msra.mxu0 %v2970
    %4081 = vmatpush.bf16.msra.mxu0 %v2962
    %4082 = vmatpush.bf16.msra.mxu0 %v2954
    %4083 = vmatpush.bf16.msra.mxu0 %v2946
    %4084 = vmatmul.bf16.gmra.mxu0 %v490
    %v4085 = vpop.f32.mrf.mxu0
    %v4086 = vadd.f32 %v4073, %v4085
    %v4087 = vpop.f32.mrf.mxu0
    %4088 = vdwg.mxu0
    %4089 = vmatpush.bf16.msra.mxu0 %v3066
    %4090 = vmatpush.bf16.msra.mxu0 %v3058
    %4091 = vmatpush.bf16.msra.mxu0 %v3050
    %4092 = vmatpush.bf16.msra.mxu0 %v3042
    %4093 = vmatpush.bf16.msra.mxu0 %v3034
    %4094 = vmatpush.bf16.msra.mxu0 %v3026
    %4095 = vmatpush.bf16.msra.mxu0 %v3018
    %4096 = vmatpush.bf16.msra.mxu0 %v3010
    %4097 = vmatmul.bf16.gmra.mxu0 %v491
    %v4098 = vpop.f32.mrf.mxu0
    %v4099 = vadd.f32 %v4086, %v4098
    %v4100 = vpop.f32.mrf.mxu0
    %4101 = vdwg.mxu0
    %4102 = vmatpush.bf16.msra.mxu0 %v2619
    %4103 = vmatpush.bf16.msra.mxu0 %v2611
    %4104 = vmatpush.bf16.msra.mxu0 %v2603
    %4105 = vmatpush.bf16.msra.mxu0 %v2595
    %4106 = vmatpush.bf16.msra.mxu0 %v2587
    %4107 = vmatpush.bf16.msra.mxu0 %v2579
    %4108 = vmatpush.bf16.msra.mxu0 %v2571
    %4109 = vmatpush.bf16.msra.mxu0 %v2563
    %4110 = vmatmul.bf16.gmra.mxu0 %v484
    %v4111 = vpop.f32.mrf.mxu0
    %v4112 = vadd.f32 %v1011, %v4111
    %v4113 = vpop.f32.mrf.mxu0
    %4114 = vdwg.mxu0
    %4115 = vmatpush.bf16.msra.mxu0 %v2683
    %4116 = vmatpush.bf16.msra.mxu0 %v2675
    %4117 = vmatpush.bf16.msra.mxu0 %v2667
    %4118 = vmatpush.bf16.msra.mxu0 %v2659
    %4119 = vmatpush.bf16.msra.mxu0 %v2651
    %4120 = vmatpush.bf16.msra.mxu0 %v2643
    %4121 = vmatpush.bf16.msra.mxu0 %v2635
    %4122 = vmatpush.bf16.msra.mxu0 %v2627
    %4123 = vmatmul.bf16.gmra.mxu0 %v485
    %v4124 = vpop.f32.mrf.mxu0
    %v4125 = vadd.f32 %v4112, %v4124
    %v4126 = vpop.f32.mrf.mxu0
    %4127 = vdwg.mxu0
    %4128 = vmatpush.bf16.msra.mxu0 %v2747
    %4129 = vmatpush.bf16.msra.mxu0 %v2739
    %4130 = vmatpush.bf16.msra.mxu0 %v2731
    %4131 = vmatpush.bf16.msra.mxu0 %v2723
    %4132 = vmatpush.bf16.msra.mxu0 %v2715
    %4133 = vmatpush.bf16.msra.mxu0 %v2707
    %4134 = vmatpush.bf16.msra.mxu0 %v2699
    %4135 = vmatpush.bf16.msra.mxu0 %v2691
    %4136 = vmatmul.bf16.gmra.mxu0 %v486
    %v4137 = vpop.f32.mrf.mxu0
    %v4138 = vadd.f32 %v4125, %v4137
    %v4139 = vpop.f32.mrf.mxu0
    %4140 = vdwg.mxu0
    %4141 = vmatpush.bf16.msra.mxu0 %v2811
    %4142 = vmatpush.bf16.msra.mxu0 %v2803
    %4143 = vmatpush.bf16.msra.mxu0 %v2795
    %4144 = vmatpush.bf16.msra.mxu0 %v2787
    %4145 = vmatpush.bf16.msra.mxu0 %v2779
    %4146 = vmatpush.bf16.msra.mxu0 %v2771
    %4147 = vmatpush.bf16.msra.mxu0 %v2763
    %4148 = vmatpush.bf16.msra.mxu0 %v2755
    %4149 = vmatmul.bf16.gmra.mxu0 %v487
    %v4150 = vpop.f32.mrf.mxu0
    %v4151 = vadd.f32 %v4138, %v4150
    %v4152 = vpop.f32.mrf.mxu0
    %4153 = vdwg.mxu0
    %4154 = vmatpush.bf16.msra.mxu0 %v2875
    %4155 = vmatpush.bf16.msra.mxu0 %v2867
    %4156 = vmatpush.bf16.msra.mxu0 %v2859
    %4157 = vmatpush.bf16.msra.mxu0 %v2851
    %4158 = vmatpush.bf16.msra.mxu0 %v2843
    %4159 = vmatpush.bf16.msra.mxu0 %v2835
    %4160 = vmatpush.bf16.msra.mxu0 %v2827
    %4161 = vmatpush.bf16.msra.mxu0 %v2819
    %4162 = vmatmul.bf16.gmra.mxu0 %v488
    %v4163 = vpop.f32.mrf.mxu0
    %v4164 = vadd.f32 %v4151, %v4163
    %v4165 = vpop.f32.mrf.mxu0
    %4166 = vdwg.mxu0
    %4167 = vmatpush.bf16.msra.mxu0 %v2939
    %4168 = vmatpush.bf16.msra.mxu0 %v2931
    %4169 = vmatpush.bf16.msra.mxu0 %v2923
    %4170 = vmatpush.bf16.msra.mxu0 %v2915
    %4171 = vmatpush.bf16.msra.mxu0 %v2907
    %4172 = vmatpush.bf16.msra.mxu0 %v2899
    %4173 = vmatpush.bf16.msra.mxu0 %v2891
    %4174 = vmatpush.bf16.msra.mxu0 %v2883
    %4175 = vmatmul.bf16.gmra.mxu0 %v489
    %v4176 = vpop.f32.mrf.mxu0
    %v4177 = vadd.f32 %v4164, %v4176
    %v4178 = vpop.f32.mrf.mxu0
    %4179 = vdwg.mxu0
    %4180 = vmatpush.bf16.msra.mxu0 %v3003
    %4181 = vmatpush.bf16.msra.mxu0 %v2995
    %4182 = vmatpush.bf16.msra.mxu0 %v2987
    %4183 = vmatpush.bf16.msra.mxu0 %v2979
    %4184 = vmatpush.bf16.msra.mxu0 %v2971
    %4185 = vmatpush.bf16.msra.mxu0 %v2963
    %4186 = vmatpush.bf16.msra.mxu0 %v2955
    %4187 = vmatpush.bf16.msra.mxu0 %v2947
    %4188 = vmatmul.bf16.gmra.mxu0 %v490
    %v4189 = vpop.f32.mrf.mxu0
    %v4190 = vadd.f32 %v4177, %v4189
    %v4191 = vpop.f32.mrf.mxu0
    %4192 = vdwg.mxu0
    %4193 = vmatpush.bf16.msra.mxu0 %v3067
    %4194 = vmatpush.bf16.msra.mxu0 %v3059
    %4195 = vmatpush.bf16.msra.mxu0 %v3051
    %4196 = vmatpush.bf16.msra.mxu0 %v3043
    %4197 = vmatpush.bf16.msra.mxu0 %v3035
    %4198 = vmatpush.bf16.msra.mxu0 %v3027
    %4199 = vmatpush.bf16.msra.mxu0 %v3019
    %4200 = vmatpush.bf16.msra.mxu0 %v3011
    %4201 = vmatmul.bf16.gmra.mxu0 %v491
    %v4202 = vpop.f32.mrf.mxu0
    %v4203 = vadd.f32 %v4190, %v4202
    %v4204 = vpop.f32.mrf.mxu0
    %4205 = vdwg.mxu0
    %4206 = vmatpush.bf16.msra.mxu0 %v2620
    %4207 = vmatpush.bf16.msra.mxu0 %v2612
    %4208 = vmatpush.bf16.msra.mxu0 %v2604
    %4209 = vmatpush.bf16.msra.mxu0 %v2596
    %4210 = vmatpush.bf16.msra.mxu0 %v2588
    %4211 = vmatpush.bf16.msra.mxu0 %v2580
    %4212 = vmatpush.bf16.msra.mxu0 %v2572
    %4213 = vmatpush.bf16.msra.mxu0 %v2564
    %4214 = vmatmul.bf16.gmra.mxu0 %v484
    %v4215 = vpop.f32.mrf.mxu0
    %v4216 = vadd.f32 %v1012, %v4215
    %v4217 = vpop.f32.mrf.mxu0
    %4218 = vdwg.mxu0
    %4219 = vmatpush.bf16.msra.mxu0 %v2684
    %4220 = vmatpush.bf16.msra.mxu0 %v2676
    %4221 = vmatpush.bf16.msra.mxu0 %v2668
    %4222 = vmatpush.bf16.msra.mxu0 %v2660
    %4223 = vmatpush.bf16.msra.mxu0 %v2652
    %4224 = vmatpush.bf16.msra.mxu0 %v2644
    %4225 = vmatpush.bf16.msra.mxu0 %v2636
    %4226 = vmatpush.bf16.msra.mxu0 %v2628
    %4227 = vmatmul.bf16.gmra.mxu0 %v485
    %v4228 = vpop.f32.mrf.mxu0
    %v4229 = vadd.f32 %v4216, %v4228
    %v4230 = vpop.f32.mrf.mxu0
    %4231 = vdwg.mxu0
    %4232 = vmatpush.bf16.msra.mxu0 %v2748
    %4233 = vmatpush.bf16.msra.mxu0 %v2740
    %4234 = vmatpush.bf16.msra.mxu0 %v2732
    %4235 = vmatpush.bf16.msra.mxu0 %v2724
    %4236 = vmatpush.bf16.msra.mxu0 %v2716
    %4237 = vmatpush.bf16.msra.mxu0 %v2708
    %4238 = vmatpush.bf16.msra.mxu0 %v2700
    %4239 = vmatpush.bf16.msra.mxu0 %v2692
    %4240 = vmatmul.bf16.gmra.mxu0 %v486
    %v4241 = vpop.f32.mrf.mxu0
    %v4242 = vadd.f32 %v4229, %v4241
    %v4243 = vpop.f32.mrf.mxu0
    %4244 = vdwg.mxu0
    %4245 = vmatpush.bf16.msra.mxu0 %v2812
    %4246 = vmatpush.bf16.msra.mxu0 %v2804
    %4247 = vmatpush.bf16.msra.mxu0 %v2796
    %4248 = vmatpush.bf16.msra.mxu0 %v2788
    %4249 = vmatpush.bf16.msra.mxu0 %v2780
    %4250 = vmatpush.bf16.msra.mxu0 %v2772
    %4251 = vmatpush.bf16.msra.mxu0 %v2764
    %4252 = vmatpush.bf16.msra.mxu0 %v2756
    %4253 = vmatmul.bf16.gmra.mxu0 %v487
    %v4254 = vpop.f32.mrf.mxu0
    %v4255 = vadd.f32 %v4242, %v4254
    %v4256 = vpop.f32.mrf.mxu0
    %4257 = vdwg.mxu0
    %4258 = vmatpush.bf16.msra.mxu0 %v2876
    %4259 = vmatpush.bf16.msra.mxu0 %v2868
    %4260 = vmatpush.bf16.msra.mxu0 %v2860
    %4261 = vmatpush.bf16.msra.mxu0 %v2852
    %4262 = vmatpush.bf16.msra.mxu0 %v2844
    %4263 = vmatpush.bf16.msra.mxu0 %v2836
    %4264 = vmatpush.bf16.msra.mxu0 %v2828
    %4265 = vmatpush.bf16.msra.mxu0 %v2820
    %4266 = vmatmul.bf16.gmra.mxu0 %v488
    %v4267 = vpop.f32.mrf.mxu0
    %v4268 = vadd.f32 %v4255, %v4267
    %v4269 = vpop.f32.mrf.mxu0
    %4270 = vdwg.mxu0
    %4271 = vmatpush.bf16.msra.mxu0 %v2940
    %4272 = vmatpush.bf16.msra.mxu0 %v2932
    %4273 = vmatpush.bf16.msra.mxu0 %v2924
    %4274 = vmatpush.bf16.msra.mxu0 %v2916
    %4275 = vmatpush.bf16.msra.mxu0 %v2908
    %4276 = vmatpush.bf16.msra.mxu0 %v2900
    %4277 = vmatpush.bf16.msra.mxu0 %v2892
    %4278 = vmatpush.bf16.msra.mxu0 %v2884
    %4279 = vmatmul.bf16.gmra.mxu0 %v489
    %v4280 = vpop.f32.mrf.mxu0
    %v4281 = vadd.f32 %v4268, %v4280
    %v4282 = vpop.f32.mrf.mxu0
    %4283 = vdwg.mxu0
    %4284 = vmatpush.bf16.msra.mxu0 %v3004
    %4285 = vmatpush.bf16.msra.mxu0 %v2996
    %4286 = vmatpush.bf16.msra.mxu0 %v2988
    %4287 = vmatpush.bf16.msra.mxu0 %v2980
    %4288 = vmatpush.bf16.msra.mxu0 %v2972
    %4289 = vmatpush.bf16.msra.mxu0 %v2964
    %4290 = vmatpush.bf16.msra.mxu0 %v2956
    %4291 = vmatpush.bf16.msra.mxu0 %v2948
    %4292 = vmatmul.bf16.gmra.mxu0 %v490
    %v4293 = vpop.f32.mrf.mxu0
    %v4294 = vadd.f32 %v4281, %v4293
    %v4295 = vpop.f32.mrf.mxu0
    %4296 = vdwg.mxu0
    %4297 = vmatpush.bf16.msra.mxu0 %v3068
    %4298 = vmatpush.bf16.msra.mxu0 %v3060
    %4299 = vmatpush.bf16.msra.mxu0 %v3052
    %4300 = vmatpush.bf16.msra.mxu0 %v3044
    %4301 = vmatpush.bf16.msra.mxu0 %v3036
    %4302 = vmatpush.bf16.msra.mxu0 %v3028
    %4303 = vmatpush.bf16.msra.mxu0 %v3020
    %4304 = vmatpush.bf16.msra.mxu0 %v3012
    %4305 = vmatmul.bf16.gmra.mxu0 %v491
    %v4306 = vpop.f32.mrf.mxu0
    %v4307 = vadd.f32 %v4294, %v4306
    %v4308 = vpop.f32.mrf.mxu0
    %4309 = vdwg.mxu0
    %4310 = vmatpush.bf16.msra.mxu0 %v2621
    %4311 = vmatpush.bf16.msra.mxu0 %v2613
    %4312 = vmatpush.bf16.msra.mxu0 %v2605
    %4313 = vmatpush.bf16.msra.mxu0 %v2597
    %4314 = vmatpush.bf16.msra.mxu0 %v2589
    %4315 = vmatpush.bf16.msra.mxu0 %v2581
    %4316 = vmatpush.bf16.msra.mxu0 %v2573
    %4317 = vmatpush.bf16.msra.mxu0 %v2565
    %4318 = vmatmul.bf16.gmra.mxu0 %v484
    %v4319 = vpop.f32.mrf.mxu0
    %v4320 = vadd.f32 %v1013, %v4319
    %v4321 = vpop.f32.mrf.mxu0
    %4322 = vdwg.mxu0
    %4323 = vmatpush.bf16.msra.mxu0 %v2685
    %4324 = vmatpush.bf16.msra.mxu0 %v2677
    %4325 = vmatpush.bf16.msra.mxu0 %v2669
    %4326 = vmatpush.bf16.msra.mxu0 %v2661
    %4327 = vmatpush.bf16.msra.mxu0 %v2653
    %4328 = vmatpush.bf16.msra.mxu0 %v2645
    %4329 = vmatpush.bf16.msra.mxu0 %v2637
    %4330 = vmatpush.bf16.msra.mxu0 %v2629
    %4331 = vmatmul.bf16.gmra.mxu0 %v485
    %v4332 = vpop.f32.mrf.mxu0
    %v4333 = vadd.f32 %v4320, %v4332
    %v4334 = vpop.f32.mrf.mxu0
    %4335 = vdwg.mxu0
    %4336 = vmatpush.bf16.msra.mxu0 %v2749
    %4337 = vmatpush.bf16.msra.mxu0 %v2741
    %4338 = vmatpush.bf16.msra.mxu0 %v2733
    %4339 = vmatpush.bf16.msra.mxu0 %v2725
    %4340 = vmatpush.bf16.msra.mxu0 %v2717
    %4341 = vmatpush.bf16.msra.mxu0 %v2709
    %4342 = vmatpush.bf16.msra.mxu0 %v2701
    %4343 = vmatpush.bf16.msra.mxu0 %v2693
    %4344 = vmatmul.bf16.gmra.mxu0 %v486
    %v4345 = vpop.f32.mrf.mxu0
    %v4346 = vadd.f32 %v4333, %v4345
    %v4347 = vpop.f32.mrf.mxu0
    %4348 = vdwg.mxu0
    %4349 = vmatpush.bf16.msra.mxu0 %v2813
    %4350 = vmatpush.bf16.msra.mxu0 %v2805
    %4351 = vmatpush.bf16.msra.mxu0 %v2797
    %4352 = vmatpush.bf16.msra.mxu0 %v2789
    %4353 = vmatpush.bf16.msra.mxu0 %v2781
    %4354 = vmatpush.bf16.msra.mxu0 %v2773
    %4355 = vmatpush.bf16.msra.mxu0 %v2765
    %4356 = vmatpush.bf16.msra.mxu0 %v2757
    %4357 = vmatmul.bf16.gmra.mxu0 %v487
    %v4358 = vpop.f32.mrf.mxu0
    %v4359 = vadd.f32 %v4346, %v4358
    %v4360 = vpop.f32.mrf.mxu0
    %4361 = vdwg.mxu0
    %4362 = vmatpush.bf16.msra.mxu0 %v2877
    %4363 = vmatpush.bf16.msra.mxu0 %v2869
    %4364 = vmatpush.bf16.msra.mxu0 %v2861
    %4365 = vmatpush.bf16.msra.mxu0 %v2853
    %4366 = vmatpush.bf16.msra.mxu0 %v2845
    %4367 = vmatpush.bf16.msra.mxu0 %v2837
    %4368 = vmatpush.bf16.msra.mxu0 %v2829
    %4369 = vmatpush.bf16.msra.mxu0 %v2821
    %4370 = vmatmul.bf16.gmra.mxu0 %v488
    %v4371 = vpop.f32.mrf.mxu0
    %v4372 = vadd.f32 %v4359, %v4371
    %v4373 = vpop.f32.mrf.mxu0
    %4374 = vdwg.mxu0
    %4375 = vmatpush.bf16.msra.mxu0 %v2941
    %4376 = vmatpush.bf16.msra.mxu0 %v2933
    %4377 = vmatpush.bf16.msra.mxu0 %v2925
    %4378 = vmatpush.bf16.msra.mxu0 %v2917
    %4379 = vmatpush.bf16.msra.mxu0 %v2909
    %4380 = vmatpush.bf16.msra.mxu0 %v2901
    %4381 = vmatpush.bf16.msra.mxu0 %v2893
    %4382 = vmatpush.bf16.msra.mxu0 %v2885
    %4383 = vmatmul.bf16.gmra.mxu0 %v489
    %v4384 = vpop.f32.mrf.mxu0
    %v4385 = vadd.f32 %v4372, %v4384
    %v4386 = vpop.f32.mrf.mxu0
    %4387 = vdwg.mxu0
    %4388 = vmatpush.bf16.msra.mxu0 %v3005
    %4389 = vmatpush.bf16.msra.mxu0 %v2997
    %4390 = vmatpush.bf16.msra.mxu0 %v2989
    %4391 = vmatpush.bf16.msra.mxu0 %v2981
    %4392 = vmatpush.bf16.msra.mxu0 %v2973
    %4393 = vmatpush.bf16.msra.mxu0 %v2965
    %4394 = vmatpush.bf16.msra.mxu0 %v2957
    %4395 = vmatpush.bf16.msra.mxu0 %v2949
    %4396 = vmatmul.bf16.gmra.mxu0 %v490
    %v4397 = vpop.f32.mrf.mxu0
    %v4398 = vadd.f32 %v4385, %v4397
    %v4399 = vpop.f32.mrf.mxu0
    %4400 = vdwg.mxu0
    %4401 = vmatpush.bf16.msra.mxu0 %v3069
    %4402 = vmatpush.bf16.msra.mxu0 %v3061
    %4403 = vmatpush.bf16.msra.mxu0 %v3053
    %4404 = vmatpush.bf16.msra.mxu0 %v3045
    %4405 = vmatpush.bf16.msra.mxu0 %v3037
    %4406 = vmatpush.bf16.msra.mxu0 %v3029
    %4407 = vmatpush.bf16.msra.mxu0 %v3021
    %4408 = vmatpush.bf16.msra.mxu0 %v3013
    %4409 = vmatmul.bf16.gmra.mxu0 %v491
    %v4410 = vpop.f32.mrf.mxu0
    %v4411 = vadd.f32 %v4398, %v4410
    %v4412 = vpop.f32.mrf.mxu0
    %4413 = vdwg.mxu0
    %v4414 = vld [vmem:[#allocation9] sm:$0xff]
    %v4415 = vld [vmem:[#allocation10] sm:$0xff]
    %v4416 = vadd.f32 %v3683, %v3787
    %v4417 = vadd.f32 %v4416, %v3891
    %v4418 = vadd.f32 %v4417, %v3995
    %v4419 = vadd.f32 %v4418, %v4099
    %v4420 = vadd.f32 %v4419, %v4203
    %v4421 = vadd.f32 %v4420, %v4307
    %v4422 = vadd.f32 %v4421, %v4411
    %4423 = vadd.xlane.f32.xlu0 %v4422
    %v4424 = vpop.xlane.xlu0 %4423
    %v4425 = vrcp.pop 1024.0
    %v4426 = vmul.f32 1024.0, %v4425
    %v4427 = vsub.f32 1.0, %v4426
    %v4428 = vmul.f32 %v4425, %v4427
    %v4429 = vadd.f32 %v4425, %v4428
    %vm4430 = vweird.f32 %v4425
    %v4431 = vsel %vm4430, %v4425, %v4429
    %v4432 = vmul.f32 %v4424, %v4431
    %v4433 = vsub.f32 %v3683, %v4432
    %v4434 = vsub.f32 %v3787, %v4432
    %v4435 = vsub.f32 %v3891, %v4432
    %v4436 = vsub.f32 %v3995, %v4432
    %v4437 = vsub.f32 %v4099, %v4432
    %v4438 = vsub.f32 %v4203, %v4432
    %v4439 = vsub.f32 %v4307, %v4432
    %v4440 = vsub.f32 %v4411, %v4432
    %v4441 = vmul.f32 %v4433, %v4433
    %v4442 = vmul.f32 %v4434, %v4434
    %v4443 = vmul.f32 %v4435, %v4435
    %v4444 = vmul.f32 %v4436, %v4436
    %v4445 = vmul.f32 %v4437, %v4437
    %v4446 = vmul.f32 %v4438, %v4438
    %v4447 = vmul.f32 %v4439, %v4439
    %v4448 = vmul.f32 %v4440, %v4440
    %v4449 = vadd.f32 %v4441, %v4442
    %v4450 = vadd.f32 %v4449, %v4443
    %v4451 = vadd.f32 %v4450, %v4444
    %v4452 = vadd.f32 %v4451, %v4445
    %v4453 = vadd.f32 %v4452, %v4446
    %v4454 = vadd.f32 %v4453, %v4447
    %v4455 = vadd.f32 %v4454, %v4448
    %4456 = vadd.xlane.f32.xlu0 %v4455
    %v4457 = vpop.xlane.xlu0 %4456
    %v4458 = vmul.f32 %v4457, %v4431
    %v4459 = vadd.f32 %v4458, 1e-05
    %v4460 = vrsqrt.pop %v4459
    %v4461 = vmul.f32 %v4460, %v4459
    %v4462 = vmul.f32 %v4461, %v4460
    %v4463 = vmul.f32 0.5, %v4462
    %v4464 = vsub.f32 1.5, %v4463
    %v4465 = vmul.f32 %v4460, %v4464
    %vm4466 = vweird.f32 %v4459
    %vm4467 = vweird.f32 %v4460
    %vm4468 = vmor %vm4466, %vm4467
    %v4469 = vsel %vm4468, %v4460, %v4465
    %v4470 = vmul.f32 %v4433, %v4469
    %v4471 = vmul.f32 %v4434, %v4469
    %v4472 = vmul.f32 %v4435, %v4469
    %v4473 = vmul.f32 %v4436, %v4469
    %v4474 = vmul.f32 %v4437, %v4469
    %v4475 = vmul.f32 %v4438, %v4469
    %v4476 = vmul.f32 %v4439, %v4469
    %v4477 = vmul.f32 %v4440, %v4469
    %v4479 = vperm.slane %v4414, 0
    %v4480 = vperm.slane %v4414, 1
    %v4481 = vperm.slane %v4414, 2
    %v4482 = vperm.slane %v4414, 3
    %v4483 = vperm.slane %v4414, 4
    %v4484 = vperm.slane %v4414, 5
    %v4485 = vperm.slane %v4414, 6
    %v4486 = vperm.slane %v4414, 7
    %v4495 = vmul.f32 %v4470, %v4479
    %v4496 = vmul.f32 %v4471, %v4480
    %v4497 = vmul.f32 %v4472, %v4481
    %v4498 = vmul.f32 %v4473, %v4482
    %v4499 = vmul.f32 %v4474, %v4483
    %v4500 = vmul.f32 %v4475, %v4484
    %v4501 = vmul.f32 %v4476, %v4485
    %v4502 = vmul.f32 %v4477, %v4486
    %v4504 = vperm.slane %v4415, 0
    %v4505 = vperm.slane %v4415, 1
    %v4506 = vperm.slane %v4415, 2
    %v4507 = vperm.slane %v4415, 3
    %v4508 = vperm.slane %v4415, 4
    %v4509 = vperm.slane %v4415, 5
    %v4510 = vperm.slane %v4415, 6
    %v4511 = vperm.slane %v4415, 7
    %v4520 = vadd.f32 %v4495, %v4504
    %v4521 = vadd.f32 %v4496, %v4505
    %v4522 = vadd.f32 %v4497, %v4506
    %v4523 = vadd.f32 %v4498, %v4507
    %v4524 = vadd.f32 %v4499, %v4508
    %v4525 = vadd.f32 %v4500, %v4509
    %v4526 = vadd.f32 %v4501, %v4510
    %v4527 = vadd.f32 %v4502, %v4511
    %v4528 = vmax.f32 %v4520, 0.0
    %v4529 = vmax.f32 %v4521, 0.0
    %v4530 = vmax.f32 %v4522, 0.0
    %v4531 = vmax.f32 %v4523, 0.0
    %v4532 = vmax.f32 %v4524, 0.0
    %v4533 = vmax.f32 %v4525, 0.0
    %v4534 = vmax.f32 %v4526, 0.0
    %v4535 = vmax.f32 %v4527, 0.0
    %v4536 = vpack.c.bf16 %v4528, %v4528
    %v4537 = vpack.c.bf16 %v4529, %v4529
    %v4538 = vpack.c.bf16 %v4530, %v4530
    %v4539 = vpack.c.bf16 %v4531, %v4531
    %v4540 = vpack.c.bf16 %v4532, %v4532
    %v4541 = vpack.c.bf16 %v4533, %v4533
    %v4542 = vpack.c.bf16 %v4534, %v4534
    %v4543 = vpack.c.bf16 %v4535, %v4535
    %v4544 = vld [vmem:[#allocation12] sm:$0xff]
    %v4545 = vld [vmem:[#allocation12 + $0x8] sm:$0xff]
    %v4546 = vld [vmem:[#allocation12 + $0x10] sm:$0xff]
    %v4547 = vld [vmem:[#allocation12 + $0x18] sm:$0xff]
    %v4548 = vld [vmem:[#allocation12 + $0x20] sm:$0xff]
    %v4549 = vld [vmem:[#allocation12 + $0x28] sm:$0xff]
    %v4550 = vld [vmem:[#allocation12 + $0x30] sm:$0xff]
    %v4551 = vld [vmem:[#allocation12 + $0x38] sm:$0xff]
    %v4552 = vld [vmem:[#allocation12 + $0x40] sm:$0xff]
    %v4553 = vld [vmem:[#allocation12 + $0x48] sm:$0xff]
    %v4554 = vld [vmem:[#allocation12 + $0x50] sm:$0xff]
    %v4555 = vld [vmem:[#allocation12 + $0x58] sm:$0xff]
    %v4556 = vld [vmem:[#allocation12 + $0x60] sm:$0xff]
    %v4557 = vld [vmem:[#allocation12 + $0x68] sm:$0xff]
    %v4558 = vld [vmem:[#allocation12 + $0x70] sm:$0xff]
    %v4559 = vld [vmem:[#allocation12 + $0x78] sm:$0xff]
    %v4560 = vld [vmem:[#allocation12 + $0x80] sm:$0xff]
    %v4561 = vld [vmem:[#allocation12 + $0x88] sm:$0xff]
    %v4562 = vld [vmem:[#allocation12 + $0x90] sm:$0xff]
    %v4563 = vld [vmem:[#allocation12 + $0x98] sm:$0xff]
    %v4564 = vld [vmem:[#allocation12 + $0xa0] sm:$0xff]
    %v4565 = vld [vmem:[#allocation12 + $0xa8] sm:$0xff]
    %v4566 = vld [vmem:[#allocation12 + $0xb0] sm:$0xff]
    %v4567 = vld [vmem:[#allocation12 + $0xb8] sm:$0xff]
    %v4568 = vld [vmem:[#allocation12 + $0xc0] sm:$0xff]
    %v4569 = vld [vmem:[#allocation12 + $0xc8] sm:$0xff]
    %v4570 = vld [vmem:[#allocation12 + $0xd0] sm:$0xff]
    %v4571 = vld [vmem:[#allocation12 + $0xd8] sm:$0xff]
    %v4572 = vld [vmem:[#allocation12 + $0xe0] sm:$0xff]
    %v4573 = vld [vmem:[#allocation12 + $0xe8] sm:$0xff]
    %v4574 = vld [vmem:[#allocation12 + $0xf0] sm:$0xff]
    %v4575 = vld [vmem:[#allocation12 + $0xf8] sm:$0xff]
    %v4576 = vld [vmem:[#allocation12 + $0x100] sm:$0xff]
    %v4577 = vld [vmem:[#allocation12 + $0x108] sm:$0xff]
    %v4578 = vld [vmem:[#allocation12 + $0x110] sm:$0xff]
    %v4579 = vld [vmem:[#allocation12 + $0x118] sm:$0xff]
    %v4580 = vld [vmem:[#allocation12 + $0x120] sm:$0xff]
    %v4581 = vld [vmem:[#allocation12 + $0x128] sm:$0xff]
    %v4582 = vld [vmem:[#allocation12 + $0x130] sm:$0xff]
    %v4583 = vld [vmem:[#allocation12 + $0x138] sm:$0xff]
    %v4584 = vld [vmem:[#allocation12 + $0x140] sm:$0xff]
    %v4585 = vld [vmem:[#allocation12 + $0x148] sm:$0xff]
    %v4586 = vld [vmem:[#allocation12 + $0x150] sm:$0xff]
    %v4587 = vld [vmem:[#allocation12 + $0x158] sm:$0xff]
    %v4588 = vld [vmem:[#allocation12 + $0x160] sm:$0xff]
    %v4589 = vld [vmem:[#allocation12 + $0x168] sm:$0xff]
    %v4590 = vld [vmem:[#allocation12 + $0x170] sm:$0xff]
    %v4591 = vld [vmem:[#allocation12 + $0x178] sm:$0xff]
    %v4592 = vld [vmem:[#allocation12 + $0x180] sm:$0xff]
    %v4593 = vld [vmem:[#allocation12 + $0x188] sm:$0xff]
    %v4594 = vld [vmem:[#allocation12 + $0x190] sm:$0xff]
    %v4595 = vld [vmem:[#allocation12 + $0x198] sm:$0xff]
    %v4596 = vld [vmem:[#allocation12 + $0x1a0] sm:$0xff]
    %v4597 = vld [vmem:[#allocation12 + $0x1a8] sm:$0xff]
    %v4598 = vld [vmem:[#allocation12 + $0x1b0] sm:$0xff]
    %v4599 = vld [vmem:[#allocation12 + $0x1b8] sm:$0xff]
    %v4600 = vld [vmem:[#allocation12 + $0x1c0] sm:$0xff]
    %v4601 = vld [vmem:[#allocation12 + $0x1c8] sm:$0xff]
    %v4602 = vld [vmem:[#allocation12 + $0x1d0] sm:$0xff]
    %v4603 = vld [vmem:[#allocation12 + $0x1d8] sm:$0xff]
    %v4604 = vld [vmem:[#allocation12 + $0x1e0] sm:$0xff]
    %v4605 = vld [vmem:[#allocation12 + $0x1e8] sm:$0xff]
    %v4606 = vld [vmem:[#allocation12 + $0x1f0] sm:$0xff]
    %v4607 = vld [vmem:[#allocation12 + $0x1f8] sm:$0xff]
    %v4608 = vld [vmem:[#allocation12 + $0x200] sm:$0xff]
    %v4609 = vld [vmem:[#allocation12 + $0x208] sm:$0xff]
    %v4610 = vld [vmem:[#allocation12 + $0x210] sm:$0xff]
    %v4611 = vld [vmem:[#allocation12 + $0x218] sm:$0xff]
    %v4612 = vld [vmem:[#allocation12 + $0x220] sm:$0xff]
    %v4613 = vld [vmem:[#allocation12 + $0x228] sm:$0xff]
    %v4614 = vld [vmem:[#allocation12 + $0x230] sm:$0xff]
    %v4615 = vld [vmem:[#allocation12 + $0x238] sm:$0xff]
    %v4616 = vld [vmem:[#allocation12 + $0x240] sm:$0xff]
    %v4617 = vld [vmem:[#allocation12 + $0x248] sm:$0xff]
    %v4618 = vld [vmem:[#allocation12 + $0x250] sm:$0xff]
    %v4619 = vld [vmem:[#allocation12 + $0x258] sm:$0xff]
    %v4620 = vld [vmem:[#allocation12 + $0x260] sm:$0xff]
    %v4621 = vld [vmem:[#allocation12 + $0x268] sm:$0xff]
    %v4622 = vld [vmem:[#allocation12 + $0x270] sm:$0xff]
    %v4623 = vld [vmem:[#allocation12 + $0x278] sm:$0xff]
    %v4624 = vld [vmem:[#allocation12 + $0x280] sm:$0xff]
    %v4625 = vld [vmem:[#allocation12 + $0x288] sm:$0xff]
    %v4626 = vld [vmem:[#allocation12 + $0x290] sm:$0xff]
    %v4627 = vld [vmem:[#allocation12 + $0x298] sm:$0xff]
    %v4628 = vld [vmem:[#allocation12 + $0x2a0] sm:$0xff]
    %v4629 = vld [vmem:[#allocation12 + $0x2a8] sm:$0xff]
    %v4630 = vld [vmem:[#allocation12 + $0x2b0] sm:$0xff]
    %v4631 = vld [vmem:[#allocation12 + $0x2b8] sm:$0xff]
    %v4632 = vld [vmem:[#allocation12 + $0x2c0] sm:$0xff]
    %v4633 = vld [vmem:[#allocation12 + $0x2c8] sm:$0xff]
    %v4634 = vld [vmem:[#allocation12 + $0x2d0] sm:$0xff]
    %v4635 = vld [vmem:[#allocation12 + $0x2d8] sm:$0xff]
    %v4636 = vld [vmem:[#allocation12 + $0x2e0] sm:$0xff]
    %v4637 = vld [vmem:[#allocation12 + $0x2e8] sm:$0xff]
    %v4638 = vld [vmem:[#allocation12 + $0x2f0] sm:$0xff]
    %v4639 = vld [vmem:[#allocation12 + $0x2f8] sm:$0xff]
    %v4640 = vld [vmem:[#allocation12 + $0x300] sm:$0xff]
    %v4641 = vld [vmem:[#allocation12 + $0x308] sm:$0xff]
    %v4642 = vld [vmem:[#allocation12 + $0x310] sm:$0xff]
    %v4643 = vld [vmem:[#allocation12 + $0x318] sm:$0xff]
    %v4644 = vld [vmem:[#allocation12 + $0x320] sm:$0xff]
    %v4645 = vld [vmem:[#allocation12 + $0x328] sm:$0xff]
    %v4646 = vld [vmem:[#allocation12 + $0x330] sm:$0xff]
    %v4647 = vld [vmem:[#allocation12 + $0x338] sm:$0xff]
    %v4648 = vld [vmem:[#allocation12 + $0x340] sm:$0xff]
    %v4649 = vld [vmem:[#allocation12 + $0x348] sm:$0xff]
    %v4650 = vld [vmem:[#allocation12 + $0x350] sm:$0xff]
    %v4651 = vld [vmem:[#allocation12 + $0x358] sm:$0xff]
    %v4652 = vld [vmem:[#allocation12 + $0x360] sm:$0xff]
    %v4653 = vld [vmem:[#allocation12 + $0x368] sm:$0xff]
    %v4654 = vld [vmem:[#allocation12 + $0x370] sm:$0xff]
    %v4655 = vld [vmem:[#allocation12 + $0x378] sm:$0xff]
    %v4656 = vld [vmem:[#allocation12 + $0x380] sm:$0xff]
    %v4657 = vld [vmem:[#allocation12 + $0x388] sm:$0xff]
    %v4658 = vld [vmem:[#allocation12 + $0x390] sm:$0xff]
    %v4659 = vld [vmem:[#allocation12 + $0x398] sm:$0xff]
    %v4660 = vld [vmem:[#allocation12 + $0x3a0] sm:$0xff]
    %v4661 = vld [vmem:[#allocation12 + $0x3a8] sm:$0xff]
    %v4662 = vld [vmem:[#allocation12 + $0x3b0] sm:$0xff]
    %v4663 = vld [vmem:[#allocation12 + $0x3b8] sm:$0xff]
    %v4664 = vld [vmem:[#allocation12 + $0x3c0] sm:$0xff]
    %v4665 = vld [vmem:[#allocation12 + $0x3c8] sm:$0xff]
    %v4666 = vld [vmem:[#allocation12 + $0x3d0] sm:$0xff]
    %v4667 = vld [vmem:[#allocation12 + $0x3d8] sm:$0xff]
    %v4668 = vld [vmem:[#allocation12 + $0x3e0] sm:$0xff]
    %v4669 = vld [vmem:[#allocation12 + $0x3e8] sm:$0xff]
    %v4670 = vld [vmem:[#allocation12 + $0x3f0] sm:$0xff]
    %v4671 = vld [vmem:[#allocation12 + $0x3f8] sm:$0xff]
    %v4672 = vld [vmem:[#allocation12 + $0x400] sm:$0xff]
    %v4673 = vld [vmem:[#allocation12 + $0x408] sm:$0xff]
    %v4674 = vld [vmem:[#allocation12 + $0x410] sm:$0xff]
    %v4675 = vld [vmem:[#allocation12 + $0x418] sm:$0xff]
    %v4676 = vld [vmem:[#allocation12 + $0x420] sm:$0xff]
    %v4677 = vld [vmem:[#allocation12 + $0x428] sm:$0xff]
    %v4678 = vld [vmem:[#allocation12 + $0x430] sm:$0xff]
    %v4679 = vld [vmem:[#allocation12 + $0x438] sm:$0xff]
    %v4680 = vld [vmem:[#allocation12 + $0x440] sm:$0xff]
    %v4681 = vld [vmem:[#allocation12 + $0x448] sm:$0xff]
    %v4682 = vld [vmem:[#allocation12 + $0x450] sm:$0xff]
    %v4683 = vld [vmem:[#allocation12 + $0x458] sm:$0xff]
    %v4684 = vld [vmem:[#allocation12 + $0x460] sm:$0xff]
    %v4685 = vld [vmem:[#allocation12 + $0x468] sm:$0xff]
    %v4686 = vld [vmem:[#allocation12 + $0x470] sm:$0xff]
    %v4687 = vld [vmem:[#allocation12 + $0x478] sm:$0xff]
    %v4688 = vld [vmem:[#allocation12 + $0x480] sm:$0xff]
    %v4689 = vld [vmem:[#allocation12 + $0x488] sm:$0xff]
    %v4690 = vld [vmem:[#allocation12 + $0x490] sm:$0xff]
    %v4691 = vld [vmem:[#allocation12 + $0x498] sm:$0xff]
    %v4692 = vld [vmem:[#allocation12 + $0x4a0] sm:$0xff]
    %v4693 = vld [vmem:[#allocation12 + $0x4a8] sm:$0xff]
    %v4694 = vld [vmem:[#allocation12 + $0x4b0] sm:$0xff]
    %v4695 = vld [vmem:[#allocation12 + $0x4b8] sm:$0xff]
    %v4696 = vld [vmem:[#allocation12 + $0x4c0] sm:$0xff]
    %v4697 = vld [vmem:[#allocation12 + $0x4c8] sm:$0xff]
    %v4698 = vld [vmem:[#allocation12 + $0x4d0] sm:$0xff]
    %v4699 = vld [vmem:[#allocation12 + $0x4d8] sm:$0xff]
    %v4700 = vld [vmem:[#allocation12 + $0x4e0] sm:$0xff]
    %v4701 = vld [vmem:[#allocation12 + $0x4e8] sm:$0xff]
    %v4702 = vld [vmem:[#allocation12 + $0x4f0] sm:$0xff]
    %v4703 = vld [vmem:[#allocation12 + $0x4f8] sm:$0xff]
    %v4704 = vld [vmem:[#allocation12 + $0x500] sm:$0xff]
    %v4705 = vld [vmem:[#allocation12 + $0x508] sm:$0xff]
    %v4706 = vld [vmem:[#allocation12 + $0x510] sm:$0xff]
    %v4707 = vld [vmem:[#allocation12 + $0x518] sm:$0xff]
    %v4708 = vld [vmem:[#allocation12 + $0x520] sm:$0xff]
    %v4709 = vld [vmem:[#allocation12 + $0x528] sm:$0xff]
    %v4710 = vld [vmem:[#allocation12 + $0x530] sm:$0xff]
    %v4711 = vld [vmem:[#allocation12 + $0x538] sm:$0xff]
    %v4712 = vld [vmem:[#allocation12 + $0x540] sm:$0xff]
    %v4713 = vld [vmem:[#allocation12 + $0x548] sm:$0xff]
    %v4714 = vld [vmem:[#allocation12 + $0x550] sm:$0xff]
    %v4715 = vld [vmem:[#allocation12 + $0x558] sm:$0xff]
    %v4716 = vld [vmem:[#allocation12 + $0x560] sm:$0xff]
    %v4717 = vld [vmem:[#allocation12 + $0x568] sm:$0xff]
    %v4718 = vld [vmem:[#allocation12 + $0x570] sm:$0xff]
    %v4719 = vld [vmem:[#allocation12 + $0x578] sm:$0xff]
    %v4720 = vld [vmem:[#allocation12 + $0x580] sm:$0xff]
    %v4721 = vld [vmem:[#allocation12 + $0x588] sm:$0xff]
    %v4722 = vld [vmem:[#allocation12 + $0x590] sm:$0xff]
    %v4723 = vld [vmem:[#allocation12 + $0x598] sm:$0xff]
    %v4724 = vld [vmem:[#allocation12 + $0x5a0] sm:$0xff]
    %v4725 = vld [vmem:[#allocation12 + $0x5a8] sm:$0xff]
    %v4726 = vld [vmem:[#allocation12 + $0x5b0] sm:$0xff]
    %v4727 = vld [vmem:[#allocation12 + $0x5b8] sm:$0xff]
    %v4728 = vld [vmem:[#allocation12 + $0x5c0] sm:$0xff]
    %v4729 = vld [vmem:[#allocation12 + $0x5c8] sm:$0xff]
    %v4730 = vld [vmem:[#allocation12 + $0x5d0] sm:$0xff]
    %v4731 = vld [vmem:[#allocation12 + $0x5d8] sm:$0xff]
    %v4732 = vld [vmem:[#allocation12 + $0x5e0] sm:$0xff]
    %v4733 = vld [vmem:[#allocation12 + $0x5e8] sm:$0xff]
    %v4734 = vld [vmem:[#allocation12 + $0x5f0] sm:$0xff]
    %v4735 = vld [vmem:[#allocation12 + $0x5f8] sm:$0xff]
    %v4736 = vld [vmem:[#allocation12 + $0x600] sm:$0xff]
    %v4737 = vld [vmem:[#allocation12 + $0x608] sm:$0xff]
    %v4738 = vld [vmem:[#allocation12 + $0x610] sm:$0xff]
    %v4739 = vld [vmem:[#allocation12 + $0x618] sm:$0xff]
    %v4740 = vld [vmem:[#allocation12 + $0x620] sm:$0xff]
    %v4741 = vld [vmem:[#allocation12 + $0x628] sm:$0xff]
    %v4742 = vld [vmem:[#allocation12 + $0x630] sm:$0xff]
    %v4743 = vld [vmem:[#allocation12 + $0x638] sm:$0xff]
    %v4744 = vld [vmem:[#allocation12 + $0x640] sm:$0xff]
    %v4745 = vld [vmem:[#allocation12 + $0x648] sm:$0xff]
    %v4746 = vld [vmem:[#allocation12 + $0x650] sm:$0xff]
    %v4747 = vld [vmem:[#allocation12 + $0x658] sm:$0xff]
    %v4748 = vld [vmem:[#allocation12 + $0x660] sm:$0xff]
    %v4749 = vld [vmem:[#allocation12 + $0x668] sm:$0xff]
    %v4750 = vld [vmem:[#allocation12 + $0x670] sm:$0xff]
    %v4751 = vld [vmem:[#allocation12 + $0x678] sm:$0xff]
    %v4752 = vld [vmem:[#allocation12 + $0x680] sm:$0xff]
    %v4753 = vld [vmem:[#allocation12 + $0x688] sm:$0xff]
    %v4754 = vld [vmem:[#allocation12 + $0x690] sm:$0xff]
    %v4755 = vld [vmem:[#allocation12 + $0x698] sm:$0xff]
    %v4756 = vld [vmem:[#allocation12 + $0x6a0] sm:$0xff]
    %v4757 = vld [vmem:[#allocation12 + $0x6a8] sm:$0xff]
    %v4758 = vld [vmem:[#allocation12 + $0x6b0] sm:$0xff]
    %v4759 = vld [vmem:[#allocation12 + $0x6b8] sm:$0xff]
    %v4760 = vld [vmem:[#allocation12 + $0x6c0] sm:$0xff]
    %v4761 = vld [vmem:[#allocation12 + $0x6c8] sm:$0xff]
    %v4762 = vld [vmem:[#allocation12 + $0x6d0] sm:$0xff]
    %v4763 = vld [vmem:[#allocation12 + $0x6d8] sm:$0xff]
    %v4764 = vld [vmem:[#allocation12 + $0x6e0] sm:$0xff]
    %v4765 = vld [vmem:[#allocation12 + $0x6e8] sm:$0xff]
    %v4766 = vld [vmem:[#allocation12 + $0x6f0] sm:$0xff]
    %v4767 = vld [vmem:[#allocation12 + $0x6f8] sm:$0xff]
    %v4768 = vld [vmem:[#allocation12 + $0x700] sm:$0xff]
    %v4769 = vld [vmem:[#allocation12 + $0x708] sm:$0xff]
    %v4770 = vld [vmem:[#allocation12 + $0x710] sm:$0xff]
    %v4771 = vld [vmem:[#allocation12 + $0x718] sm:$0xff]
    %v4772 = vld [vmem:[#allocation12 + $0x720] sm:$0xff]
    %v4773 = vld [vmem:[#allocation12 + $0x728] sm:$0xff]
    %v4774 = vld [vmem:[#allocation12 + $0x730] sm:$0xff]
    %v4775 = vld [vmem:[#allocation12 + $0x738] sm:$0xff]
    %v4776 = vld [vmem:[#allocation12 + $0x740] sm:$0xff]
    %v4777 = vld [vmem:[#allocation12 + $0x748] sm:$0xff]
    %v4778 = vld [vmem:[#allocation12 + $0x750] sm:$0xff]
    %v4779 = vld [vmem:[#allocation12 + $0x758] sm:$0xff]
    %v4780 = vld [vmem:[#allocation12 + $0x760] sm:$0xff]
    %v4781 = vld [vmem:[#allocation12 + $0x768] sm:$0xff]
    %v4782 = vld [vmem:[#allocation12 + $0x770] sm:$0xff]
    %v4783 = vld [vmem:[#allocation12 + $0x778] sm:$0xff]
    %v4784 = vld [vmem:[#allocation12 + $0x780] sm:$0xff]
    %v4785 = vld [vmem:[#allocation12 + $0x788] sm:$0xff]
    %v4786 = vld [vmem:[#allocation12 + $0x790] sm:$0xff]
    %v4787 = vld [vmem:[#allocation12 + $0x798] sm:$0xff]
    %v4788 = vld [vmem:[#allocation12 + $0x7a0] sm:$0xff]
    %v4789 = vld [vmem:[#allocation12 + $0x7a8] sm:$0xff]
    %v4790 = vld [vmem:[#allocation12 + $0x7b0] sm:$0xff]
    %v4791 = vld [vmem:[#allocation12 + $0x7b8] sm:$0xff]
    %v4792 = vld [vmem:[#allocation12 + $0x7c0] sm:$0xff]
    %v4793 = vld [vmem:[#allocation12 + $0x7c8] sm:$0xff]
    %v4794 = vld [vmem:[#allocation12 + $0x7d0] sm:$0xff]
    %v4795 = vld [vmem:[#allocation12 + $0x7d8] sm:$0xff]
    %v4796 = vld [vmem:[#allocation12 + $0x7e0] sm:$0xff]
    %v4797 = vld [vmem:[#allocation12 + $0x7e8] sm:$0xff]
    %v4798 = vld [vmem:[#allocation12 + $0x7f0] sm:$0xff]
    %v4799 = vld [vmem:[#allocation12 + $0x7f8] sm:$0xff]
    %v4800 = vld [vmem:[#allocation12 + $0x800] sm:$0xff]
    %v4801 = vld [vmem:[#allocation12 + $0x808] sm:$0xff]
    %v4802 = vld [vmem:[#allocation12 + $0x810] sm:$0xff]
    %v4803 = vld [vmem:[#allocation12 + $0x818] sm:$0xff]
    %v4804 = vld [vmem:[#allocation12 + $0x820] sm:$0xff]
    %v4805 = vld [vmem:[#allocation12 + $0x828] sm:$0xff]
    %v4806 = vld [vmem:[#allocation12 + $0x830] sm:$0xff]
    %v4807 = vld [vmem:[#allocation12 + $0x838] sm:$0xff]
    %v4808 = vld [vmem:[#allocation12 + $0x840] sm:$0xff]
    %v4809 = vld [vmem:[#allocation12 + $0x848] sm:$0xff]
    %v4810 = vld [vmem:[#allocation12 + $0x850] sm:$0xff]
    %v4811 = vld [vmem:[#allocation12 + $0x858] sm:$0xff]
    %v4812 = vld [vmem:[#allocation12 + $0x860] sm:$0xff]
    %v4813 = vld [vmem:[#allocation12 + $0x868] sm:$0xff]
    %v4814 = vld [vmem:[#allocation12 + $0x870] sm:$0xff]
    %v4815 = vld [vmem:[#allocation12 + $0x878] sm:$0xff]
    %v4816 = vld [vmem:[#allocation12 + $0x880] sm:$0xff]
    %v4817 = vld [vmem:[#allocation12 + $0x888] sm:$0xff]
    %v4818 = vld [vmem:[#allocation12 + $0x890] sm:$0xff]
    %v4819 = vld [vmem:[#allocation12 + $0x898] sm:$0xff]
    %v4820 = vld [vmem:[#allocation12 + $0x8a0] sm:$0xff]
    %v4821 = vld [vmem:[#allocation12 + $0x8a8] sm:$0xff]
    %v4822 = vld [vmem:[#allocation12 + $0x8b0] sm:$0xff]
    %v4823 = vld [vmem:[#allocation12 + $0x8b8] sm:$0xff]
    %v4824 = vld [vmem:[#allocation12 + $0x8c0] sm:$0xff]
    %v4825 = vld [vmem:[#allocation12 + $0x8c8] sm:$0xff]
    %v4826 = vld [vmem:[#allocation12 + $0x8d0] sm:$0xff]
    %v4827 = vld [vmem:[#allocation12 + $0x8d8] sm:$0xff]
    %v4828 = vld [vmem:[#allocation12 + $0x8e0] sm:$0xff]
    %v4829 = vld [vmem:[#allocation12 + $0x8e8] sm:$0xff]
    %v4830 = vld [vmem:[#allocation12 + $0x8f0] sm:$0xff]
    %v4831 = vld [vmem:[#allocation12 + $0x8f8] sm:$0xff]
    %v4832 = vld [vmem:[#allocation12 + $0x900] sm:$0xff]
    %v4833 = vld [vmem:[#allocation12 + $0x908] sm:$0xff]
    %v4834 = vld [vmem:[#allocation12 + $0x910] sm:$0xff]
    %v4835 = vld [vmem:[#allocation12 + $0x918] sm:$0xff]
    %v4836 = vld [vmem:[#allocation12 + $0x920] sm:$0xff]
    %v4837 = vld [vmem:[#allocation12 + $0x928] sm:$0xff]
    %v4838 = vld [vmem:[#allocation12 + $0x930] sm:$0xff]
    %v4839 = vld [vmem:[#allocation12 + $0x938] sm:$0xff]
    %v4840 = vld [vmem:[#allocation12 + $0x940] sm:$0xff]
    %v4841 = vld [vmem:[#allocation12 + $0x948] sm:$0xff]
    %v4842 = vld [vmem:[#allocation12 + $0x950] sm:$0xff]
    %v4843 = vld [vmem:[#allocation12 + $0x958] sm:$0xff]
    %v4844 = vld [vmem:[#allocation12 + $0x960] sm:$0xff]
    %v4845 = vld [vmem:[#allocation12 + $0x968] sm:$0xff]
    %v4846 = vld [vmem:[#allocation12 + $0x970] sm:$0xff]
    %v4847 = vld [vmem:[#allocation12 + $0x978] sm:$0xff]
    %v4848 = vld [vmem:[#allocation12 + $0x980] sm:$0xff]
    %v4849 = vld [vmem:[#allocation12 + $0x988] sm:$0xff]
    %v4850 = vld [vmem:[#allocation12 + $0x990] sm:$0xff]
    %v4851 = vld [vmem:[#allocation12 + $0x998] sm:$0xff]
    %v4852 = vld [vmem:[#allocation12 + $0x9a0] sm:$0xff]
    %v4853 = vld [vmem:[#allocation12 + $0x9a8] sm:$0xff]
    %v4854 = vld [vmem:[#allocation12 + $0x9b0] sm:$0xff]
    %v4855 = vld [vmem:[#allocation12 + $0x9b8] sm:$0xff]
    %v4856 = vld [vmem:[#allocation12 + $0x9c0] sm:$0xff]
    %v4857 = vld [vmem:[#allocation12 + $0x9c8] sm:$0xff]
    %v4858 = vld [vmem:[#allocation12 + $0x9d0] sm:$0xff]
    %v4859 = vld [vmem:[#allocation12 + $0x9d8] sm:$0xff]
    %v4860 = vld [vmem:[#allocation12 + $0x9e0] sm:$0xff]
    %v4861 = vld [vmem:[#allocation12 + $0x9e8] sm:$0xff]
    %v4862 = vld [vmem:[#allocation12 + $0x9f0] sm:$0xff]
    %v4863 = vld [vmem:[#allocation12 + $0x9f8] sm:$0xff]
    %v4864 = vld [vmem:[#allocation12 + $0xa00] sm:$0xff]
    %v4865 = vld [vmem:[#allocation12 + $0xa08] sm:$0xff]
    %v4866 = vld [vmem:[#allocation12 + $0xa10] sm:$0xff]
    %v4867 = vld [vmem:[#allocation12 + $0xa18] sm:$0xff]
    %v4868 = vld [vmem:[#allocation12 + $0xa20] sm:$0xff]
    %v4869 = vld [vmem:[#allocation12 + $0xa28] sm:$0xff]
    %v4870 = vld [vmem:[#allocation12 + $0xa30] sm:$0xff]
    %v4871 = vld [vmem:[#allocation12 + $0xa38] sm:$0xff]
    %v4872 = vld [vmem:[#allocation12 + $0xa40] sm:$0xff]
    %v4873 = vld [vmem:[#allocation12 + $0xa48] sm:$0xff]
    %v4874 = vld [vmem:[#allocation12 + $0xa50] sm:$0xff]
    %v4875 = vld [vmem:[#allocation12 + $0xa58] sm:$0xff]
    %v4876 = vld [vmem:[#allocation12 + $0xa60] sm:$0xff]
    %v4877 = vld [vmem:[#allocation12 + $0xa68] sm:$0xff]
    %v4878 = vld [vmem:[#allocation12 + $0xa70] sm:$0xff]
    %v4879 = vld [vmem:[#allocation12 + $0xa78] sm:$0xff]
    %v4880 = vld [vmem:[#allocation12 + $0xa80] sm:$0xff]
    %v4881 = vld [vmem:[#allocation12 + $0xa88] sm:$0xff]
    %v4882 = vld [vmem:[#allocation12 + $0xa90] sm:$0xff]
    %v4883 = vld [vmem:[#allocation12 + $0xa98] sm:$0xff]
    %v4884 = vld [vmem:[#allocation12 + $0xaa0] sm:$0xff]
    %v4885 = vld [vmem:[#allocation12 + $0xaa8] sm:$0xff]
    %v4886 = vld [vmem:[#allocation12 + $0xab0] sm:$0xff]
    %v4887 = vld [vmem:[#allocation12 + $0xab8] sm:$0xff]
    %v4888 = vld [vmem:[#allocation12 + $0xac0] sm:$0xff]
    %v4889 = vld [vmem:[#allocation12 + $0xac8] sm:$0xff]
    %v4890 = vld [vmem:[#allocation12 + $0xad0] sm:$0xff]
    %v4891 = vld [vmem:[#allocation12 + $0xad8] sm:$0xff]
    %v4892 = vld [vmem:[#allocation12 + $0xae0] sm:$0xff]
    %v4893 = vld [vmem:[#allocation12 + $0xae8] sm:$0xff]
    %v4894 = vld [vmem:[#allocation12 + $0xaf0] sm:$0xff]
    %v4895 = vld [vmem:[#allocation12 + $0xaf8] sm:$0xff]
    %v4896 = vld [vmem:[#allocation12 + $0xb00] sm:$0xff]
    %v4897 = vld [vmem:[#allocation12 + $0xb08] sm:$0xff]
    %v4898 = vld [vmem:[#allocation12 + $0xb10] sm:$0xff]
    %v4899 = vld [vmem:[#allocation12 + $0xb18] sm:$0xff]
    %v4900 = vld [vmem:[#allocation12 + $0xb20] sm:$0xff]
    %v4901 = vld [vmem:[#allocation12 + $0xb28] sm:$0xff]
    %v4902 = vld [vmem:[#allocation12 + $0xb30] sm:$0xff]
    %v4903 = vld [vmem:[#allocation12 + $0xb38] sm:$0xff]
    %v4904 = vld [vmem:[#allocation12 + $0xb40] sm:$0xff]
    %v4905 = vld [vmem:[#allocation12 + $0xb48] sm:$0xff]
    %v4906 = vld [vmem:[#allocation12 + $0xb50] sm:$0xff]
    %v4907 = vld [vmem:[#allocation12 + $0xb58] sm:$0xff]
    %v4908 = vld [vmem:[#allocation12 + $0xb60] sm:$0xff]
    %v4909 = vld [vmem:[#allocation12 + $0xb68] sm:$0xff]
    %v4910 = vld [vmem:[#allocation12 + $0xb70] sm:$0xff]
    %v4911 = vld [vmem:[#allocation12 + $0xb78] sm:$0xff]
    %v4912 = vld [vmem:[#allocation12 + $0xb80] sm:$0xff]
    %v4913 = vld [vmem:[#allocation12 + $0xb88] sm:$0xff]
    %v4914 = vld [vmem:[#allocation12 + $0xb90] sm:$0xff]
    %v4915 = vld [vmem:[#allocation12 + $0xb98] sm:$0xff]
    %v4916 = vld [vmem:[#allocation12 + $0xba0] sm:$0xff]
    %v4917 = vld [vmem:[#allocation12 + $0xba8] sm:$0xff]
    %v4918 = vld [vmem:[#allocation12 + $0xbb0] sm:$0xff]
    %v4919 = vld [vmem:[#allocation12 + $0xbb8] sm:$0xff]
    %v4920 = vld [vmem:[#allocation12 + $0xbc0] sm:$0xff]
    %v4921 = vld [vmem:[#allocation12 + $0xbc8] sm:$0xff]
    %v4922 = vld [vmem:[#allocation12 + $0xbd0] sm:$0xff]
    %v4923 = vld [vmem:[#allocation12 + $0xbd8] sm:$0xff]
    %v4924 = vld [vmem:[#allocation12 + $0xbe0] sm:$0xff]
    %v4925 = vld [vmem:[#allocation12 + $0xbe8] sm:$0xff]
    %v4926 = vld [vmem:[#allocation12 + $0xbf0] sm:$0xff]
    %v4927 = vld [vmem:[#allocation12 + $0xbf8] sm:$0xff]
    %v4928 = vld [vmem:[#allocation12 + $0xc00] sm:$0xff]
    %v4929 = vld [vmem:[#allocation12 + $0xc08] sm:$0xff]
    %v4930 = vld [vmem:[#allocation12 + $0xc10] sm:$0xff]
    %v4931 = vld [vmem:[#allocation12 + $0xc18] sm:$0xff]
    %v4932 = vld [vmem:[#allocation12 + $0xc20] sm:$0xff]
    %v4933 = vld [vmem:[#allocation12 + $0xc28] sm:$0xff]
    %v4934 = vld [vmem:[#allocation12 + $0xc30] sm:$0xff]
    %v4935 = vld [vmem:[#allocation12 + $0xc38] sm:$0xff]
    %v4936 = vld [vmem:[#allocation12 + $0xc40] sm:$0xff]
    %v4937 = vld [vmem:[#allocation12 + $0xc48] sm:$0xff]
    %v4938 = vld [vmem:[#allocation12 + $0xc50] sm:$0xff]
    %v4939 = vld [vmem:[#allocation12 + $0xc58] sm:$0xff]
    %v4940 = vld [vmem:[#allocation12 + $0xc60] sm:$0xff]
    %v4941 = vld [vmem:[#allocation12 + $0xc68] sm:$0xff]
    %v4942 = vld [vmem:[#allocation12 + $0xc70] sm:$0xff]
    %v4943 = vld [vmem:[#allocation12 + $0xc78] sm:$0xff]
    %v4944 = vld [vmem:[#allocation12 + $0xc80] sm:$0xff]
    %v4945 = vld [vmem:[#allocation12 + $0xc88] sm:$0xff]
    %v4946 = vld [vmem:[#allocation12 + $0xc90] sm:$0xff]
    %v4947 = vld [vmem:[#allocation12 + $0xc98] sm:$0xff]
    %v4948 = vld [vmem:[#allocation12 + $0xca0] sm:$0xff]
    %v4949 = vld [vmem:[#allocation12 + $0xca8] sm:$0xff]
    %v4950 = vld [vmem:[#allocation12 + $0xcb0] sm:$0xff]
    %v4951 = vld [vmem:[#allocation12 + $0xcb8] sm:$0xff]
    %v4952 = vld [vmem:[#allocation12 + $0xcc0] sm:$0xff]
    %v4953 = vld [vmem:[#allocation12 + $0xcc8] sm:$0xff]
    %v4954 = vld [vmem:[#allocation12 + $0xcd0] sm:$0xff]
    %v4955 = vld [vmem:[#allocation12 + $0xcd8] sm:$0xff]
    %v4956 = vld [vmem:[#allocation12 + $0xce0] sm:$0xff]
    %v4957 = vld [vmem:[#allocation12 + $0xce8] sm:$0xff]
    %v4958 = vld [vmem:[#allocation12 + $0xcf0] sm:$0xff]
    %v4959 = vld [vmem:[#allocation12 + $0xcf8] sm:$0xff]
    %v4960 = vld [vmem:[#allocation12 + $0xd00] sm:$0xff]
    %v4961 = vld [vmem:[#allocation12 + $0xd08] sm:$0xff]
    %v4962 = vld [vmem:[#allocation12 + $0xd10] sm:$0xff]
    %v4963 = vld [vmem:[#allocation12 + $0xd18] sm:$0xff]
    %v4964 = vld [vmem:[#allocation12 + $0xd20] sm:$0xff]
    %v4965 = vld [vmem:[#allocation12 + $0xd28] sm:$0xff]
    %v4966 = vld [vmem:[#allocation12 + $0xd30] sm:$0xff]
    %v4967 = vld [vmem:[#allocation12 + $0xd38] sm:$0xff]
    %v4968 = vld [vmem:[#allocation12 + $0xd40] sm:$0xff]
    %v4969 = vld [vmem:[#allocation12 + $0xd48] sm:$0xff]
    %v4970 = vld [vmem:[#allocation12 + $0xd50] sm:$0xff]
    %v4971 = vld [vmem:[#allocation12 + $0xd58] sm:$0xff]
    %v4972 = vld [vmem:[#allocation12 + $0xd60] sm:$0xff]
    %v4973 = vld [vmem:[#allocation12 + $0xd68] sm:$0xff]
    %v4974 = vld [vmem:[#allocation12 + $0xd70] sm:$0xff]
    %v4975 = vld [vmem:[#allocation12 + $0xd78] sm:$0xff]
    %v4976 = vld [vmem:[#allocation12 + $0xd80] sm:$0xff]
    %v4977 = vld [vmem:[#allocation12 + $0xd88] sm:$0xff]
    %v4978 = vld [vmem:[#allocation12 + $0xd90] sm:$0xff]
    %v4979 = vld [vmem:[#allocation12 + $0xd98] sm:$0xff]
    %v4980 = vld [vmem:[#allocation12 + $0xda0] sm:$0xff]
    %v4981 = vld [vmem:[#allocation12 + $0xda8] sm:$0xff]
    %v4982 = vld [vmem:[#allocation12 + $0xdb0] sm:$0xff]
    %v4983 = vld [vmem:[#allocation12 + $0xdb8] sm:$0xff]
    %v4984 = vld [vmem:[#allocation12 + $0xdc0] sm:$0xff]
    %v4985 = vld [vmem:[#allocation12 + $0xdc8] sm:$0xff]
    %v4986 = vld [vmem:[#allocation12 + $0xdd0] sm:$0xff]
    %v4987 = vld [vmem:[#allocation12 + $0xdd8] sm:$0xff]
    %v4988 = vld [vmem:[#allocation12 + $0xde0] sm:$0xff]
    %v4989 = vld [vmem:[#allocation12 + $0xde8] sm:$0xff]
    %v4990 = vld [vmem:[#allocation12 + $0xdf0] sm:$0xff]
    %v4991 = vld [vmem:[#allocation12 + $0xdf8] sm:$0xff]
    %v4992 = vld [vmem:[#allocation12 + $0xe00] sm:$0xff]
    %v4993 = vld [vmem:[#allocation12 + $0xe08] sm:$0xff]
    %v4994 = vld [vmem:[#allocation12 + $0xe10] sm:$0xff]
    %v4995 = vld [vmem:[#allocation12 + $0xe18] sm:$0xff]
    %v4996 = vld [vmem:[#allocation12 + $0xe20] sm:$0xff]
    %v4997 = vld [vmem:[#allocation12 + $0xe28] sm:$0xff]
    %v4998 = vld [vmem:[#allocation12 + $0xe30] sm:$0xff]
    %v4999 = vld [vmem:[#allocation12 + $0xe38] sm:$0xff]
    %v5000 = vld [vmem:[#allocation12 + $0xe40] sm:$0xff]
    %v5001 = vld [vmem:[#allocation12 + $0xe48] sm:$0xff]
    %v5002 = vld [vmem:[#allocation12 + $0xe50] sm:$0xff]
    %v5003 = vld [vmem:[#allocation12 + $0xe58] sm:$0xff]
    %v5004 = vld [vmem:[#allocation12 + $0xe60] sm:$0xff]
    %v5005 = vld [vmem:[#allocation12 + $0xe68] sm:$0xff]
    %v5006 = vld [vmem:[#allocation12 + $0xe70] sm:$0xff]
    %v5007 = vld [vmem:[#allocation12 + $0xe78] sm:$0xff]
    %v5008 = vld [vmem:[#allocation12 + $0xe80] sm:$0xff]
    %v5009 = vld [vmem:[#allocation12 + $0xe88] sm:$0xff]
    %v5010 = vld [vmem:[#allocation12 + $0xe90] sm:$0xff]
    %v5011 = vld [vmem:[#allocation12 + $0xe98] sm:$0xff]
    %v5012 = vld [vmem:[#allocation12 + $0xea0] sm:$0xff]
    %v5013 = vld [vmem:[#allocation12 + $0xea8] sm:$0xff]
    %v5014 = vld [vmem:[#allocation12 + $0xeb0] sm:$0xff]
    %v5015 = vld [vmem:[#allocation12 + $0xeb8] sm:$0xff]
    %v5016 = vld [vmem:[#allocation12 + $0xec0] sm:$0xff]
    %v5017 = vld [vmem:[#allocation12 + $0xec8] sm:$0xff]
    %v5018 = vld [vmem:[#allocation12 + $0xed0] sm:$0xff]
    %v5019 = vld [vmem:[#allocation12 + $0xed8] sm:$0xff]
    %v5020 = vld [vmem:[#allocation12 + $0xee0] sm:$0xff]
    %v5021 = vld [vmem:[#allocation12 + $0xee8] sm:$0xff]
    %v5022 = vld [vmem:[#allocation12 + $0xef0] sm:$0xff]
    %v5023 = vld [vmem:[#allocation12 + $0xef8] sm:$0xff]
    %v5024 = vld [vmem:[#allocation12 + $0xf00] sm:$0xff]
    %v5025 = vld [vmem:[#allocation12 + $0xf08] sm:$0xff]
    %v5026 = vld [vmem:[#allocation12 + $0xf10] sm:$0xff]
    %v5027 = vld [vmem:[#allocation12 + $0xf18] sm:$0xff]
    %v5028 = vld [vmem:[#allocation12 + $0xf20] sm:$0xff]
    %v5029 = vld [vmem:[#allocation12 + $0xf28] sm:$0xff]
    %v5030 = vld [vmem:[#allocation12 + $0xf30] sm:$0xff]
    %v5031 = vld [vmem:[#allocation12 + $0xf38] sm:$0xff]
    %v5032 = vld [vmem:[#allocation12 + $0xf40] sm:$0xff]
    %v5033 = vld [vmem:[#allocation12 + $0xf48] sm:$0xff]
    %v5034 = vld [vmem:[#allocation12 + $0xf50] sm:$0xff]
    %v5035 = vld [vmem:[#allocation12 + $0xf58] sm:$0xff]
    %v5036 = vld [vmem:[#allocation12 + $0xf60] sm:$0xff]
    %v5037 = vld [vmem:[#allocation12 + $0xf68] sm:$0xff]
    %v5038 = vld [vmem:[#allocation12 + $0xf70] sm:$0xff]
    %v5039 = vld [vmem:[#allocation12 + $0xf78] sm:$0xff]
    %v5040 = vld [vmem:[#allocation12 + $0xf80] sm:$0xff]
    %v5041 = vld [vmem:[#allocation12 + $0xf88] sm:$0xff]
    %v5042 = vld [vmem:[#allocation12 + $0xf90] sm:$0xff]
    %v5043 = vld [vmem:[#allocation12 + $0xf98] sm:$0xff]
    %v5044 = vld [vmem:[#allocation12 + $0xfa0] sm:$0xff]
    %v5045 = vld [vmem:[#allocation12 + $0xfa8] sm:$0xff]
    %v5046 = vld [vmem:[#allocation12 + $0xfb0] sm:$0xff]
    %v5047 = vld [vmem:[#allocation12 + $0xfb8] sm:$0xff]
    %v5048 = vld [vmem:[#allocation12 + $0xfc0] sm:$0xff]
    %v5049 = vld [vmem:[#allocation12 + $0xfc8] sm:$0xff]
    %v5050 = vld [vmem:[#allocation12 + $0xfd0] sm:$0xff]
    %v5051 = vld [vmem:[#allocation12 + $0xfd8] sm:$0xff]
    %v5052 = vld [vmem:[#allocation12 + $0xfe0] sm:$0xff]
    %v5053 = vld [vmem:[#allocation12 + $0xfe8] sm:$0xff]
    %v5054 = vld [vmem:[#allocation12 + $0xff0] sm:$0xff]
    %v5055 = vld [vmem:[#allocation12 + $0xff8] sm:$0xff]
    %v5056 = vld [vmem:[#allocation13] sm:$0xff]
    %v5058 = vperm.slane %v5056, 0
    %v5059 = vperm.slane %v5056, 1
    %v5060 = vperm.slane %v5056, 2
    %v5061 = vperm.slane %v5056, 3
    %v5062 = vperm.slane %v5056, 4
    %v5063 = vperm.slane %v5056, 5
    %v5064 = vperm.slane %v5056, 6
    %v5065 = vperm.slane %v5056, 7
    %v5586 = vunpack.c.l.b16 %v4544
    %v5587 = vunpack.c.h.b16 %v4544
    %v5588 = vunpack.c.l.b16 %v4545
    %v5589 = vunpack.c.h.b16 %v4545
    %v5590 = vunpack.c.l.b16 %v4546
    %v5591 = vunpack.c.h.b16 %v4546
    %v5592 = vunpack.c.l.b16 %v4547
    %v5593 = vunpack.c.h.b16 %v4547
    %v5594 = vunpack.c.l.b16 %v4548
    %v5595 = vunpack.c.h.b16 %v4548
    %v5596 = vunpack.c.l.b16 %v4549
    %v5597 = vunpack.c.h.b16 %v4549
    %v5598 = vunpack.c.l.b16 %v4550
    %v5599 = vunpack.c.h.b16 %v4550
    %v5600 = vunpack.c.l.b16 %v4551
    %v5601 = vunpack.c.h.b16 %v4551
    %v5602 = vunpack.c.l.b16 %v4552
    %v5603 = vunpack.c.h.b16 %v4552
    %v5604 = vunpack.c.l.b16 %v4553
    %v5605 = vunpack.c.h.b16 %v4553
    %v5606 = vunpack.c.l.b16 %v4554
    %v5607 = vunpack.c.h.b16 %v4554
    %v5608 = vunpack.c.l.b16 %v4555
    %v5609 = vunpack.c.h.b16 %v4555
    %v5610 = vunpack.c.l.b16 %v4556
    %v5611 = vunpack.c.h.b16 %v4556
    %v5612 = vunpack.c.l.b16 %v4557
    %v5613 = vunpack.c.h.b16 %v4557
    %v5614 = vunpack.c.l.b16 %v4558
    %v5615 = vunpack.c.h.b16 %v4558
    %v5616 = vunpack.c.l.b16 %v4559
    %v5617 = vunpack.c.h.b16 %v4559
    %v5618 = vunpack.c.l.b16 %v4560
    %v5619 = vunpack.c.h.b16 %v4560
    %v5620 = vunpack.c.l.b16 %v4561
    %v5621 = vunpack.c.h.b16 %v4561
    %v5622 = vunpack.c.l.b16 %v4562
    %v5623 = vunpack.c.h.b16 %v4562
    %v5624 = vunpack.c.l.b16 %v4563
    %v5625 = vunpack.c.h.b16 %v4563
    %v5626 = vunpack.c.l.b16 %v4564
    %v5627 = vunpack.c.h.b16 %v4564
    %v5628 = vunpack.c.l.b16 %v4565
    %v5629 = vunpack.c.h.b16 %v4565
    %v5630 = vunpack.c.l.b16 %v4566
    %v5631 = vunpack.c.h.b16 %v4566
    %v5632 = vunpack.c.l.b16 %v4567
    %v5633 = vunpack.c.h.b16 %v4567
    %v5634 = vunpack.c.l.b16 %v4568
    %v5635 = vunpack.c.h.b16 %v4568
    %v5636 = vunpack.c.l.b16 %v4569
    %v5637 = vunpack.c.h.b16 %v4569
    %v5638 = vunpack.c.l.b16 %v4570
    %v5639 = vunpack.c.h.b16 %v4570
    %v5640 = vunpack.c.l.b16 %v4571
    %v5641 = vunpack.c.h.b16 %v4571
    %v5642 = vunpack.c.l.b16 %v4572
    %v5643 = vunpack.c.h.b16 %v4572
    %v5644 = vunpack.c.l.b16 %v4573
    %v5645 = vunpack.c.h.b16 %v4573
    %v5646 = vunpack.c.l.b16 %v4574
    %v5647 = vunpack.c.h.b16 %v4574
    %v5648 = vunpack.c.l.b16 %v4575
    %v5649 = vunpack.c.h.b16 %v4575
    %v5650 = vunpack.c.l.b16 %v4576
    %v5651 = vunpack.c.h.b16 %v4576
    %v5652 = vunpack.c.l.b16 %v4577
    %v5653 = vunpack.c.h.b16 %v4577
    %v5654 = vunpack.c.l.b16 %v4578
    %v5655 = vunpack.c.h.b16 %v4578
    %v5656 = vunpack.c.l.b16 %v4579
    %v5657 = vunpack.c.h.b16 %v4579
    %v5658 = vunpack.c.l.b16 %v4580
    %v5659 = vunpack.c.h.b16 %v4580
    %v5660 = vunpack.c.l.b16 %v4581
    %v5661 = vunpack.c.h.b16 %v4581
    %v5662 = vunpack.c.l.b16 %v4582
    %v5663 = vunpack.c.h.b16 %v4582
    %v5664 = vunpack.c.l.b16 %v4583
    %v5665 = vunpack.c.h.b16 %v4583
    %v5666 = vunpack.c.l.b16 %v4584
    %v5667 = vunpack.c.h.b16 %v4584
    %v5668 = vunpack.c.l.b16 %v4585
    %v5669 = vunpack.c.h.b16 %v4585
    %v5670 = vunpack.c.l.b16 %v4586
    %v5671 = vunpack.c.h.b16 %v4586
    %v5672 = vunpack.c.l.b16 %v4587
    %v5673 = vunpack.c.h.b16 %v4587
    %v5674 = vunpack.c.l.b16 %v4588
    %v5675 = vunpack.c.h.b16 %v4588
    %v5676 = vunpack.c.l.b16 %v4589
    %v5677 = vunpack.c.h.b16 %v4589
    %v5678 = vunpack.c.l.b16 %v4590
    %v5679 = vunpack.c.h.b16 %v4590
    %v5680 = vunpack.c.l.b16 %v4591
    %v5681 = vunpack.c.h.b16 %v4591
    %v5682 = vunpack.c.l.b16 %v4592
    %v5683 = vunpack.c.h.b16 %v4592
    %v5684 = vunpack.c.l.b16 %v4593
    %v5685 = vunpack.c.h.b16 %v4593
    %v5686 = vunpack.c.l.b16 %v4594
    %v5687 = vunpack.c.h.b16 %v4594
    %v5688 = vunpack.c.l.b16 %v4595
    %v5689 = vunpack.c.h.b16 %v4595
    %v5690 = vunpack.c.l.b16 %v4596
    %v5691 = vunpack.c.h.b16 %v4596
    %v5692 = vunpack.c.l.b16 %v4597
    %v5693 = vunpack.c.h.b16 %v4597
    %v5694 = vunpack.c.l.b16 %v4598
    %v5695 = vunpack.c.h.b16 %v4598
    %v5696 = vunpack.c.l.b16 %v4599
    %v5697 = vunpack.c.h.b16 %v4599
    %v5698 = vunpack.c.l.b16 %v4600
    %v5699 = vunpack.c.h.b16 %v4600
    %v5700 = vunpack.c.l.b16 %v4601
    %v5701 = vunpack.c.h.b16 %v4601
    %v5702 = vunpack.c.l.b16 %v4602
    %v5703 = vunpack.c.h.b16 %v4602
    %v5704 = vunpack.c.l.b16 %v4603
    %v5705 = vunpack.c.h.b16 %v4603
    %v5706 = vunpack.c.l.b16 %v4604
    %v5707 = vunpack.c.h.b16 %v4604
    %v5708 = vunpack.c.l.b16 %v4605
    %v5709 = vunpack.c.h.b16 %v4605
    %v5710 = vunpack.c.l.b16 %v4606
    %v5711 = vunpack.c.h.b16 %v4606
    %v5712 = vunpack.c.l.b16 %v4607
    %v5713 = vunpack.c.h.b16 %v4607
    %v5714 = vunpack.c.l.b16 %v4608
    %v5715 = vunpack.c.h.b16 %v4608
    %v5716 = vunpack.c.l.b16 %v4609
    %v5717 = vunpack.c.h.b16 %v4609
    %v5718 = vunpack.c.l.b16 %v4610
    %v5719 = vunpack.c.h.b16 %v4610
    %v5720 = vunpack.c.l.b16 %v4611
    %v5721 = vunpack.c.h.b16 %v4611
    %v5722 = vunpack.c.l.b16 %v4612
    %v5723 = vunpack.c.h.b16 %v4612
    %v5724 = vunpack.c.l.b16 %v4613
    %v5725 = vunpack.c.h.b16 %v4613
    %v5726 = vunpack.c.l.b16 %v4614
    %v5727 = vunpack.c.h.b16 %v4614
    %v5728 = vunpack.c.l.b16 %v4615
    %v5729 = vunpack.c.h.b16 %v4615
    %v5730 = vunpack.c.l.b16 %v4616
    %v5731 = vunpack.c.h.b16 %v4616
    %v5732 = vunpack.c.l.b16 %v4617
    %v5733 = vunpack.c.h.b16 %v4617
    %v5734 = vunpack.c.l.b16 %v4618
    %v5735 = vunpack.c.h.b16 %v4618
    %v5736 = vunpack.c.l.b16 %v4619
    %v5737 = vunpack.c.h.b16 %v4619
    %v5738 = vunpack.c.l.b16 %v4620
    %v5739 = vunpack.c.h.b16 %v4620
    %v5740 = vunpack.c.l.b16 %v4621
    %v5741 = vunpack.c.h.b16 %v4621
    %v5742 = vunpack.c.l.b16 %v4622
    %v5743 = vunpack.c.h.b16 %v4622
    %v5744 = vunpack.c.l.b16 %v4623
    %v5745 = vunpack.c.h.b16 %v4623
    %v5746 = vunpack.c.l.b16 %v4624
    %v5747 = vunpack.c.h.b16 %v4624
    %v5748 = vunpack.c.l.b16 %v4625
    %v5749 = vunpack.c.h.b16 %v4625
    %v5750 = vunpack.c.l.b16 %v4626
    %v5751 = vunpack.c.h.b16 %v4626
    %v5752 = vunpack.c.l.b16 %v4627
    %v5753 = vunpack.c.h.b16 %v4627
    %v5754 = vunpack.c.l.b16 %v4628
    %v5755 = vunpack.c.h.b16 %v4628
    %v5756 = vunpack.c.l.b16 %v4629
    %v5757 = vunpack.c.h.b16 %v4629
    %v5758 = vunpack.c.l.b16 %v4630
    %v5759 = vunpack.c.h.b16 %v4630
    %v5760 = vunpack.c.l.b16 %v4631
    %v5761 = vunpack.c.h.b16 %v4631
    %v5762 = vunpack.c.l.b16 %v4632
    %v5763 = vunpack.c.h.b16 %v4632
    %v5764 = vunpack.c.l.b16 %v4633
    %v5765 = vunpack.c.h.b16 %v4633
    %v5766 = vunpack.c.l.b16 %v4634
    %v5767 = vunpack.c.h.b16 %v4634
    %v5768 = vunpack.c.l.b16 %v4635
    %v5769 = vunpack.c.h.b16 %v4635
    %v5770 = vunpack.c.l.b16 %v4636
    %v5771 = vunpack.c.h.b16 %v4636
    %v5772 = vunpack.c.l.b16 %v4637
    %v5773 = vunpack.c.h.b16 %v4637
    %v5774 = vunpack.c.l.b16 %v4638
    %v5775 = vunpack.c.h.b16 %v4638
    %v5776 = vunpack.c.l.b16 %v4639
    %v5777 = vunpack.c.h.b16 %v4639
    %v5778 = vunpack.c.l.b16 %v4640
    %v5779 = vunpack.c.h.b16 %v4640
    %v5780 = vunpack.c.l.b16 %v4641
    %v5781 = vunpack.c.h.b16 %v4641
    %v5782 = vunpack.c.l.b16 %v4642
    %v5783 = vunpack.c.h.b16 %v4642
    %v5784 = vunpack.c.l.b16 %v4643
    %v5785 = vunpack.c.h.b16 %v4643
    %v5786 = vunpack.c.l.b16 %v4644
    %v5787 = vunpack.c.h.b16 %v4644
    %v5788 = vunpack.c.l.b16 %v4645
    %v5789 = vunpack.c.h.b16 %v4645
    %v5790 = vunpack.c.l.b16 %v4646
    %v5791 = vunpack.c.h.b16 %v4646
    %v5792 = vunpack.c.l.b16 %v4647
    %v5793 = vunpack.c.h.b16 %v4647
    %v5794 = vunpack.c.l.b16 %v4648
    %v5795 = vunpack.c.h.b16 %v4648
    %v5796 = vunpack.c.l.b16 %v4649
    %v5797 = vunpack.c.h.b16 %v4649
    %v5798 = vunpack.c.l.b16 %v4650
    %v5799 = vunpack.c.h.b16 %v4650
    %v5800 = vunpack.c.l.b16 %v4651
    %v5801 = vunpack.c.h.b16 %v4651
    %v5802 = vunpack.c.l.b16 %v4652
    %v5803 = vunpack.c.h.b16 %v4652
    %v5804 = vunpack.c.l.b16 %v4653
    %v5805 = vunpack.c.h.b16 %v4653
    %v5806 = vunpack.c.l.b16 %v4654
    %v5807 = vunpack.c.h.b16 %v4654
    %v5808 = vunpack.c.l.b16 %v4655
    %v5809 = vunpack.c.h.b16 %v4655
    %v5810 = vunpack.c.l.b16 %v4656
    %v5811 = vunpack.c.h.b16 %v4656
    %v5812 = vunpack.c.l.b16 %v4657
    %v5813 = vunpack.c.h.b16 %v4657
    %v5814 = vunpack.c.l.b16 %v4658
    %v5815 = vunpack.c.h.b16 %v4658
    %v5816 = vunpack.c.l.b16 %v4659
    %v5817 = vunpack.c.h.b16 %v4659
    %v5818 = vunpack.c.l.b16 %v4660
    %v5819 = vunpack.c.h.b16 %v4660
    %v5820 = vunpack.c.l.b16 %v4661
    %v5821 = vunpack.c.h.b16 %v4661
    %v5822 = vunpack.c.l.b16 %v4662
    %v5823 = vunpack.c.h.b16 %v4662
    %v5824 = vunpack.c.l.b16 %v4663
    %v5825 = vunpack.c.h.b16 %v4663
    %v5826 = vunpack.c.l.b16 %v4664
    %v5827 = vunpack.c.h.b16 %v4664
    %v5828 = vunpack.c.l.b16 %v4665
    %v5829 = vunpack.c.h.b16 %v4665
    %v5830 = vunpack.c.l.b16 %v4666
    %v5831 = vunpack.c.h.b16 %v4666
    %v5832 = vunpack.c.l.b16 %v4667
    %v5833 = vunpack.c.h.b16 %v4667
    %v5834 = vunpack.c.l.b16 %v4668
    %v5835 = vunpack.c.h.b16 %v4668
    %v5836 = vunpack.c.l.b16 %v4669
    %v5837 = vunpack.c.h.b16 %v4669
    %v5838 = vunpack.c.l.b16 %v4670
    %v5839 = vunpack.c.h.b16 %v4670
    %v5840 = vunpack.c.l.b16 %v4671
    %v5841 = vunpack.c.h.b16 %v4671
    %v5842 = vunpack.c.l.b16 %v4672
    %v5843 = vunpack.c.h.b16 %v4672
    %v5844 = vunpack.c.l.b16 %v4673
    %v5845 = vunpack.c.h.b16 %v4673
    %v5846 = vunpack.c.l.b16 %v4674
    %v5847 = vunpack.c.h.b16 %v4674
    %v5848 = vunpack.c.l.b16 %v4675
    %v5849 = vunpack.c.h.b16 %v4675
    %v5850 = vunpack.c.l.b16 %v4676
    %v5851 = vunpack.c.h.b16 %v4676
    %v5852 = vunpack.c.l.b16 %v4677
    %v5853 = vunpack.c.h.b16 %v4677
    %v5854 = vunpack.c.l.b16 %v4678
    %v5855 = vunpack.c.h.b16 %v4678
    %v5856 = vunpack.c.l.b16 %v4679
    %v5857 = vunpack.c.h.b16 %v4679
    %v5858 = vunpack.c.l.b16 %v4680
    %v5859 = vunpack.c.h.b16 %v4680
    %v5860 = vunpack.c.l.b16 %v4681
    %v5861 = vunpack.c.h.b16 %v4681
    %v5862 = vunpack.c.l.b16 %v4682
    %v5863 = vunpack.c.h.b16 %v4682
    %v5864 = vunpack.c.l.b16 %v4683
    %v5865 = vunpack.c.h.b16 %v4683
    %v5866 = vunpack.c.l.b16 %v4684
    %v5867 = vunpack.c.h.b16 %v4684
    %v5868 = vunpack.c.l.b16 %v4685
    %v5869 = vunpack.c.h.b16 %v4685
    %v5870 = vunpack.c.l.b16 %v4686
    %v5871 = vunpack.c.h.b16 %v4686
    %v5872 = vunpack.c.l.b16 %v4687
    %v5873 = vunpack.c.h.b16 %v4687
    %v5874 = vunpack.c.l.b16 %v4688
    %v5875 = vunpack.c.h.b16 %v4688
    %v5876 = vunpack.c.l.b16 %v4689
    %v5877 = vunpack.c.h.b16 %v4689
    %v5878 = vunpack.c.l.b16 %v4690
    %v5879 = vunpack.c.h.b16 %v4690
    %v5880 = vunpack.c.l.b16 %v4691
    %v5881 = vunpack.c.h.b16 %v4691
    %v5882 = vunpack.c.l.b16 %v4692
    %v5883 = vunpack.c.h.b16 %v4692
    %v5884 = vunpack.c.l.b16 %v4693
    %v5885 = vunpack.c.h.b16 %v4693
    %v5886 = vunpack.c.l.b16 %v4694
    %v5887 = vunpack.c.h.b16 %v4694
    %v5888 = vunpack.c.l.b16 %v4695
    %v5889 = vunpack.c.h.b16 %v4695
    %v5890 = vunpack.c.l.b16 %v4696
    %v5891 = vunpack.c.h.b16 %v4696
    %v5892 = vunpack.c.l.b16 %v4697
    %v5893 = vunpack.c.h.b16 %v4697
    %v5894 = vunpack.c.l.b16 %v4698
    %v5895 = vunpack.c.h.b16 %v4698
    %v5896 = vunpack.c.l.b16 %v4699
    %v5897 = vunpack.c.h.b16 %v4699
    %v5898 = vunpack.c.l.b16 %v4700
    %v5899 = vunpack.c.h.b16 %v4700
    %v5900 = vunpack.c.l.b16 %v4701
    %v5901 = vunpack.c.h.b16 %v4701
    %v5902 = vunpack.c.l.b16 %v4702
    %v5903 = vunpack.c.h.b16 %v4702
    %v5904 = vunpack.c.l.b16 %v4703
    %v5905 = vunpack.c.h.b16 %v4703
    %v5906 = vunpack.c.l.b16 %v4704
    %v5907 = vunpack.c.h.b16 %v4704
    %v5908 = vunpack.c.l.b16 %v4705
    %v5909 = vunpack.c.h.b16 %v4705
    %v5910 = vunpack.c.l.b16 %v4706
    %v5911 = vunpack.c.h.b16 %v4706
    %v5912 = vunpack.c.l.b16 %v4707
    %v5913 = vunpack.c.h.b16 %v4707
    %v5914 = vunpack.c.l.b16 %v4708
    %v5915 = vunpack.c.h.b16 %v4708
    %v5916 = vunpack.c.l.b16 %v4709
    %v5917 = vunpack.c.h.b16 %v4709
    %v5918 = vunpack.c.l.b16 %v4710
    %v5919 = vunpack.c.h.b16 %v4710
    %v5920 = vunpack.c.l.b16 %v4711
    %v5921 = vunpack.c.h.b16 %v4711
    %v5922 = vunpack.c.l.b16 %v4712
    %v5923 = vunpack.c.h.b16 %v4712
    %v5924 = vunpack.c.l.b16 %v4713
    %v5925 = vunpack.c.h.b16 %v4713
    %v5926 = vunpack.c.l.b16 %v4714
    %v5927 = vunpack.c.h.b16 %v4714
    %v5928 = vunpack.c.l.b16 %v4715
    %v5929 = vunpack.c.h.b16 %v4715
    %v5930 = vunpack.c.l.b16 %v4716
    %v5931 = vunpack.c.h.b16 %v4716
    %v5932 = vunpack.c.l.b16 %v4717
    %v5933 = vunpack.c.h.b16 %v4717
    %v5934 = vunpack.c.l.b16 %v4718
    %v5935 = vunpack.c.h.b16 %v4718
    %v5936 = vunpack.c.l.b16 %v4719
    %v5937 = vunpack.c.h.b16 %v4719
    %v5938 = vunpack.c.l.b16 %v4720
    %v5939 = vunpack.c.h.b16 %v4720
    %v5940 = vunpack.c.l.b16 %v4721
    %v5941 = vunpack.c.h.b16 %v4721
    %v5942 = vunpack.c.l.b16 %v4722
    %v5943 = vunpack.c.h.b16 %v4722
    %v5944 = vunpack.c.l.b16 %v4723
    %v5945 = vunpack.c.h.b16 %v4723
    %v5946 = vunpack.c.l.b16 %v4724
    %v5947 = vunpack.c.h.b16 %v4724
    %v5948 = vunpack.c.l.b16 %v4725
    %v5949 = vunpack.c.h.b16 %v4725
    %v5950 = vunpack.c.l.b16 %v4726
    %v5951 = vunpack.c.h.b16 %v4726
    %v5952 = vunpack.c.l.b16 %v4727
    %v5953 = vunpack.c.h.b16 %v4727
    %v5954 = vunpack.c.l.b16 %v4728
    %v5955 = vunpack.c.h.b16 %v4728
    %v5956 = vunpack.c.l.b16 %v4729
    %v5957 = vunpack.c.h.b16 %v4729
    %v5958 = vunpack.c.l.b16 %v4730
    %v5959 = vunpack.c.h.b16 %v4730
    %v5960 = vunpack.c.l.b16 %v4731
    %v5961 = vunpack.c.h.b16 %v4731
    %v5962 = vunpack.c.l.b16 %v4732
    %v5963 = vunpack.c.h.b16 %v4732
    %v5964 = vunpack.c.l.b16 %v4733
    %v5965 = vunpack.c.h.b16 %v4733
    %v5966 = vunpack.c.l.b16 %v4734
    %v5967 = vunpack.c.h.b16 %v4734
    %v5968 = vunpack.c.l.b16 %v4735
    %v5969 = vunpack.c.h.b16 %v4735
    %v5970 = vunpack.c.l.b16 %v4736
    %v5971 = vunpack.c.h.b16 %v4736
    %v5972 = vunpack.c.l.b16 %v4737
    %v5973 = vunpack.c.h.b16 %v4737
    %v5974 = vunpack.c.l.b16 %v4738
    %v5975 = vunpack.c.h.b16 %v4738
    %v5976 = vunpack.c.l.b16 %v4739
    %v5977 = vunpack.c.h.b16 %v4739
    %v5978 = vunpack.c.l.b16 %v4740
    %v5979 = vunpack.c.h.b16 %v4740
    %v5980 = vunpack.c.l.b16 %v4741
    %v5981 = vunpack.c.h.b16 %v4741
    %v5982 = vunpack.c.l.b16 %v4742
    %v5983 = vunpack.c.h.b16 %v4742
    %v5984 = vunpack.c.l.b16 %v4743
    %v5985 = vunpack.c.h.b16 %v4743
    %v5986 = vunpack.c.l.b16 %v4744
    %v5987 = vunpack.c.h.b16 %v4744
    %v5988 = vunpack.c.l.b16 %v4745
    %v5989 = vunpack.c.h.b16 %v4745
    %v5990 = vunpack.c.l.b16 %v4746
    %v5991 = vunpack.c.h.b16 %v4746
    %v5992 = vunpack.c.l.b16 %v4747
    %v5993 = vunpack.c.h.b16 %v4747
    %v5994 = vunpack.c.l.b16 %v4748
    %v5995 = vunpack.c.h.b16 %v4748
    %v5996 = vunpack.c.l.b16 %v4749
    %v5997 = vunpack.c.h.b16 %v4749
    %v5998 = vunpack.c.l.b16 %v4750
    %v5999 = vunpack.c.h.b16 %v4750
    %v6000 = vunpack.c.l.b16 %v4751
    %v6001 = vunpack.c.h.b16 %v4751
    %v6002 = vunpack.c.l.b16 %v4752
    %v6003 = vunpack.c.h.b16 %v4752
    %v6004 = vunpack.c.l.b16 %v4753
    %v6005 = vunpack.c.h.b16 %v4753
    %v6006 = vunpack.c.l.b16 %v4754
    %v6007 = vunpack.c.h.b16 %v4754
    %v6008 = vunpack.c.l.b16 %v4755
    %v6009 = vunpack.c.h.b16 %v4755
    %v6010 = vunpack.c.l.b16 %v4756
    %v6011 = vunpack.c.h.b16 %v4756
    %v6012 = vunpack.c.l.b16 %v4757
    %v6013 = vunpack.c.h.b16 %v4757
    %v6014 = vunpack.c.l.b16 %v4758
    %v6015 = vunpack.c.h.b16 %v4758
    %v6016 = vunpack.c.l.b16 %v4759
    %v6017 = vunpack.c.h.b16 %v4759
    %v6018 = vunpack.c.l.b16 %v4760
    %v6019 = vunpack.c.h.b16 %v4760
    %v6020 = vunpack.c.l.b16 %v4761
    %v6021 = vunpack.c.h.b16 %v4761
    %v6022 = vunpack.c.l.b16 %v4762
    %v6023 = vunpack.c.h.b16 %v4762
    %v6024 = vunpack.c.l.b16 %v4763
    %v6025 = vunpack.c.h.b16 %v4763
    %v6026 = vunpack.c.l.b16 %v4764
    %v6027 = vunpack.c.h.b16 %v4764
    %v6028 = vunpack.c.l.b16 %v4765
    %v6029 = vunpack.c.h.b16 %v4765
    %v6030 = vunpack.c.l.b16 %v4766
    %v6031 = vunpack.c.h.b16 %v4766
    %v6032 = vunpack.c.l.b16 %v4767
    %v6033 = vunpack.c.h.b16 %v4767
    %v6034 = vunpack.c.l.b16 %v4768
    %v6035 = vunpack.c.h.b16 %v4768
    %v6036 = vunpack.c.l.b16 %v4769
    %v6037 = vunpack.c.h.b16 %v4769
    %v6038 = vunpack.c.l.b16 %v4770
    %v6039 = vunpack.c.h.b16 %v4770
    %v6040 = vunpack.c.l.b16 %v4771
    %v6041 = vunpack.c.h.b16 %v4771
    %v6042 = vunpack.c.l.b16 %v4772
    %v6043 = vunpack.c.h.b16 %v4772
    %v6044 = vunpack.c.l.b16 %v4773
    %v6045 = vunpack.c.h.b16 %v4773
    %v6046 = vunpack.c.l.b16 %v4774
    %v6047 = vunpack.c.h.b16 %v4774
    %v6048 = vunpack.c.l.b16 %v4775
    %v6049 = vunpack.c.h.b16 %v4775
    %v6050 = vunpack.c.l.b16 %v4776
    %v6051 = vunpack.c.h.b16 %v4776
    %v6052 = vunpack.c.l.b16 %v4777
    %v6053 = vunpack.c.h.b16 %v4777
    %v6054 = vunpack.c.l.b16 %v4778
    %v6055 = vunpack.c.h.b16 %v4778
    %v6056 = vunpack.c.l.b16 %v4779
    %v6057 = vunpack.c.h.b16 %v4779
    %v6058 = vunpack.c.l.b16 %v4780
    %v6059 = vunpack.c.h.b16 %v4780
    %v6060 = vunpack.c.l.b16 %v4781
    %v6061 = vunpack.c.h.b16 %v4781
    %v6062 = vunpack.c.l.b16 %v4782
    %v6063 = vunpack.c.h.b16 %v4782
    %v6064 = vunpack.c.l.b16 %v4783
    %v6065 = vunpack.c.h.b16 %v4783
    %v6066 = vunpack.c.l.b16 %v4784
    %v6067 = vunpack.c.h.b16 %v4784
    %v6068 = vunpack.c.l.b16 %v4785
    %v6069 = vunpack.c.h.b16 %v4785
    %v6070 = vunpack.c.l.b16 %v4786
    %v6071 = vunpack.c.h.b16 %v4786
    %v6072 = vunpack.c.l.b16 %v4787
    %v6073 = vunpack.c.h.b16 %v4787
    %v6074 = vunpack.c.l.b16 %v4788
    %v6075 = vunpack.c.h.b16 %v4788
    %v6076 = vunpack.c.l.b16 %v4789
    %v6077 = vunpack.c.h.b16 %v4789
    %v6078 = vunpack.c.l.b16 %v4790
    %v6079 = vunpack.c.h.b16 %v4790
    %v6080 = vunpack.c.l.b16 %v4791
    %v6081 = vunpack.c.h.b16 %v4791
    %v6082 = vunpack.c.l.b16 %v4792
    %v6083 = vunpack.c.h.b16 %v4792
    %v6084 = vunpack.c.l.b16 %v4793
    %v6085 = vunpack.c.h.b16 %v4793
    %v6086 = vunpack.c.l.b16 %v4794
    %v6087 = vunpack.c.h.b16 %v4794
    %v6088 = vunpack.c.l.b16 %v4795
    %v6089 = vunpack.c.h.b16 %v4795
    %v6090 = vunpack.c.l.b16 %v4796
    %v6091 = vunpack.c.h.b16 %v4796
    %v6092 = vunpack.c.l.b16 %v4797
    %v6093 = vunpack.c.h.b16 %v4797
    %v6094 = vunpack.c.l.b16 %v4798
    %v6095 = vunpack.c.h.b16 %v4798
    %v6096 = vunpack.c.l.b16 %v4799
    %v6097 = vunpack.c.h.b16 %v4799
    %v6098 = vunpack.c.l.b16 %v4800
    %v6099 = vunpack.c.h.b16 %v4800
    %v6100 = vunpack.c.l.b16 %v4801
    %v6101 = vunpack.c.h.b16 %v4801
    %v6102 = vunpack.c.l.b16 %v4802
    %v6103 = vunpack.c.h.b16 %v4802
    %v6104 = vunpack.c.l.b16 %v4803
    %v6105 = vunpack.c.h.b16 %v4803
    %v6106 = vunpack.c.l.b16 %v4804
    %v6107 = vunpack.c.h.b16 %v4804
    %v6108 = vunpack.c.l.b16 %v4805
    %v6109 = vunpack.c.h.b16 %v4805
    %v6110 = vunpack.c.l.b16 %v4806
    %v6111 = vunpack.c.h.b16 %v4806
    %v6112 = vunpack.c.l.b16 %v4807
    %v6113 = vunpack.c.h.b16 %v4807
    %v6114 = vunpack.c.l.b16 %v4808
    %v6115 = vunpack.c.h.b16 %v4808
    %v6116 = vunpack.c.l.b16 %v4809
    %v6117 = vunpack.c.h.b16 %v4809
    %v6118 = vunpack.c.l.b16 %v4810
    %v6119 = vunpack.c.h.b16 %v4810
    %v6120 = vunpack.c.l.b16 %v4811
    %v6121 = vunpack.c.h.b16 %v4811
    %v6122 = vunpack.c.l.b16 %v4812
    %v6123 = vunpack.c.h.b16 %v4812
    %v6124 = vunpack.c.l.b16 %v4813
    %v6125 = vunpack.c.h.b16 %v4813
    %v6126 = vunpack.c.l.b16 %v4814
    %v6127 = vunpack.c.h.b16 %v4814
    %v6128 = vunpack.c.l.b16 %v4815
    %v6129 = vunpack.c.h.b16 %v4815
    %v6130 = vunpack.c.l.b16 %v4816
    %v6131 = vunpack.c.h.b16 %v4816
    %v6132 = vunpack.c.l.b16 %v4817
    %v6133 = vunpack.c.h.b16 %v4817
    %v6134 = vunpack.c.l.b16 %v4818
    %v6135 = vunpack.c.h.b16 %v4818
    %v6136 = vunpack.c.l.b16 %v4819
    %v6137 = vunpack.c.h.b16 %v4819
    %v6138 = vunpack.c.l.b16 %v4820
    %v6139 = vunpack.c.h.b16 %v4820
    %v6140 = vunpack.c.l.b16 %v4821
    %v6141 = vunpack.c.h.b16 %v4821
    %v6142 = vunpack.c.l.b16 %v4822
    %v6143 = vunpack.c.h.b16 %v4822
    %v6144 = vunpack.c.l.b16 %v4823
    %v6145 = vunpack.c.h.b16 %v4823
    %v6146 = vunpack.c.l.b16 %v4824
    %v6147 = vunpack.c.h.b16 %v4824
    %v6148 = vunpack.c.l.b16 %v4825
    %v6149 = vunpack.c.h.b16 %v4825
    %v6150 = vunpack.c.l.b16 %v4826
    %v6151 = vunpack.c.h.b16 %v4826
    %v6152 = vunpack.c.l.b16 %v4827
    %v6153 = vunpack.c.h.b16 %v4827
    %v6154 = vunpack.c.l.b16 %v4828
    %v6155 = vunpack.c.h.b16 %v4828
    %v6156 = vunpack.c.l.b16 %v4829
    %v6157 = vunpack.c.h.b16 %v4829
    %v6158 = vunpack.c.l.b16 %v4830
    %v6159 = vunpack.c.h.b16 %v4830
    %v6160 = vunpack.c.l.b16 %v4831
    %v6161 = vunpack.c.h.b16 %v4831
    %v6162 = vunpack.c.l.b16 %v4832
    %v6163 = vunpack.c.h.b16 %v4832
    %v6164 = vunpack.c.l.b16 %v4833
    %v6165 = vunpack.c.h.b16 %v4833
    %v6166 = vunpack.c.l.b16 %v4834
    %v6167 = vunpack.c.h.b16 %v4834
    %v6168 = vunpack.c.l.b16 %v4835
    %v6169 = vunpack.c.h.b16 %v4835
    %v6170 = vunpack.c.l.b16 %v4836
    %v6171 = vunpack.c.h.b16 %v4836
    %v6172 = vunpack.c.l.b16 %v4837
    %v6173 = vunpack.c.h.b16 %v4837
    %v6174 = vunpack.c.l.b16 %v4838
    %v6175 = vunpack.c.h.b16 %v4838
    %v6176 = vunpack.c.l.b16 %v4839
    %v6177 = vunpack.c.h.b16 %v4839
    %v6178 = vunpack.c.l.b16 %v4840
    %v6179 = vunpack.c.h.b16 %v4840
    %v6180 = vunpack.c.l.b16 %v4841
    %v6181 = vunpack.c.h.b16 %v4841
    %v6182 = vunpack.c.l.b16 %v4842
    %v6183 = vunpack.c.h.b16 %v4842
    %v6184 = vunpack.c.l.b16 %v4843
    %v6185 = vunpack.c.h.b16 %v4843
    %v6186 = vunpack.c.l.b16 %v4844
    %v6187 = vunpack.c.h.b16 %v4844
    %v6188 = vunpack.c.l.b16 %v4845
    %v6189 = vunpack.c.h.b16 %v4845
    %v6190 = vunpack.c.l.b16 %v4846
    %v6191 = vunpack.c.h.b16 %v4846
    %v6192 = vunpack.c.l.b16 %v4847
    %v6193 = vunpack.c.h.b16 %v4847
    %v6194 = vunpack.c.l.b16 %v4848
    %v6195 = vunpack.c.h.b16 %v4848
    %v6196 = vunpack.c.l.b16 %v4849
    %v6197 = vunpack.c.h.b16 %v4849
    %v6198 = vunpack.c.l.b16 %v4850
    %v6199 = vunpack.c.h.b16 %v4850
    %v6200 = vunpack.c.l.b16 %v4851
    %v6201 = vunpack.c.h.b16 %v4851
    %v6202 = vunpack.c.l.b16 %v4852
    %v6203 = vunpack.c.h.b16 %v4852
    %v6204 = vunpack.c.l.b16 %v4853
    %v6205 = vunpack.c.h.b16 %v4853
    %v6206 = vunpack.c.l.b16 %v4854
    %v6207 = vunpack.c.h.b16 %v4854
    %v6208 = vunpack.c.l.b16 %v4855
    %v6209 = vunpack.c.h.b16 %v4855
    %v6210 = vunpack.c.l.b16 %v4856
    %v6211 = vunpack.c.h.b16 %v4856
    %v6212 = vunpack.c.l.b16 %v4857
    %v6213 = vunpack.c.h.b16 %v4857
    %v6214 = vunpack.c.l.b16 %v4858
    %v6215 = vunpack.c.h.b16 %v4858
    %v6216 = vunpack.c.l.b16 %v4859
    %v6217 = vunpack.c.h.b16 %v4859
    %v6218 = vunpack.c.l.b16 %v4860
    %v6219 = vunpack.c.h.b16 %v4860
    %v6220 = vunpack.c.l.b16 %v4861
    %v6221 = vunpack.c.h.b16 %v4861
    %v6222 = vunpack.c.l.b16 %v4862
    %v6223 = vunpack.c.h.b16 %v4862
    %v6224 = vunpack.c.l.b16 %v4863
    %v6225 = vunpack.c.h.b16 %v4863
    %v6226 = vunpack.c.l.b16 %v4864
    %v6227 = vunpack.c.h.b16 %v4864
    %v6228 = vunpack.c.l.b16 %v4865
    %v6229 = vunpack.c.h.b16 %v4865
    %v6230 = vunpack.c.l.b16 %v4866
    %v6231 = vunpack.c.h.b16 %v4866
    %v6232 = vunpack.c.l.b16 %v4867
    %v6233 = vunpack.c.h.b16 %v4867
    %v6234 = vunpack.c.l.b16 %v4868
    %v6235 = vunpack.c.h.b16 %v4868
    %v6236 = vunpack.c.l.b16 %v4869
    %v6237 = vunpack.c.h.b16 %v4869
    %v6238 = vunpack.c.l.b16 %v4870
    %v6239 = vunpack.c.h.b16 %v4870
    %v6240 = vunpack.c.l.b16 %v4871
    %v6241 = vunpack.c.h.b16 %v4871
    %v6242 = vunpack.c.l.b16 %v4872
    %v6243 = vunpack.c.h.b16 %v4872
    %v6244 = vunpack.c.l.b16 %v4873
    %v6245 = vunpack.c.h.b16 %v4873
    %v6246 = vunpack.c.l.b16 %v4874
    %v6247 = vunpack.c.h.b16 %v4874
    %v6248 = vunpack.c.l.b16 %v4875
    %v6249 = vunpack.c.h.b16 %v4875
    %v6250 = vunpack.c.l.b16 %v4876
    %v6251 = vunpack.c.h.b16 %v4876
    %v6252 = vunpack.c.l.b16 %v4877
    %v6253 = vunpack.c.h.b16 %v4877
    %v6254 = vunpack.c.l.b16 %v4878
    %v6255 = vunpack.c.h.b16 %v4878
    %v6256 = vunpack.c.l.b16 %v4879
    %v6257 = vunpack.c.h.b16 %v4879
    %v6258 = vunpack.c.l.b16 %v4880
    %v6259 = vunpack.c.h.b16 %v4880
    %v6260 = vunpack.c.l.b16 %v4881
    %v6261 = vunpack.c.h.b16 %v4881
    %v6262 = vunpack.c.l.b16 %v4882
    %v6263 = vunpack.c.h.b16 %v4882
    %v6264 = vunpack.c.l.b16 %v4883
    %v6265 = vunpack.c.h.b16 %v4883
    %v6266 = vunpack.c.l.b16 %v4884
    %v6267 = vunpack.c.h.b16 %v4884
    %v6268 = vunpack.c.l.b16 %v4885
    %v6269 = vunpack.c.h.b16 %v4885
    %v6270 = vunpack.c.l.b16 %v4886
    %v6271 = vunpack.c.h.b16 %v4886
    %v6272 = vunpack.c.l.b16 %v4887
    %v6273 = vunpack.c.h.b16 %v4887
    %v6274 = vunpack.c.l.b16 %v4888
    %v6275 = vunpack.c.h.b16 %v4888
    %v6276 = vunpack.c.l.b16 %v4889
    %v6277 = vunpack.c.h.b16 %v4889
    %v6278 = vunpack.c.l.b16 %v4890
    %v6279 = vunpack.c.h.b16 %v4890
    %v6280 = vunpack.c.l.b16 %v4891
    %v6281 = vunpack.c.h.b16 %v4891
    %v6282 = vunpack.c.l.b16 %v4892
    %v6283 = vunpack.c.h.b16 %v4892
    %v6284 = vunpack.c.l.b16 %v4893
    %v6285 = vunpack.c.h.b16 %v4893
    %v6286 = vunpack.c.l.b16 %v4894
    %v6287 = vunpack.c.h.b16 %v4894
    %v6288 = vunpack.c.l.b16 %v4895
    %v6289 = vunpack.c.h.b16 %v4895
    %v6290 = vunpack.c.l.b16 %v4896
    %v6291 = vunpack.c.h.b16 %v4896
    %v6292 = vunpack.c.l.b16 %v4897
    %v6293 = vunpack.c.h.b16 %v4897
    %v6294 = vunpack.c.l.b16 %v4898
    %v6295 = vunpack.c.h.b16 %v4898
    %v6296 = vunpack.c.l.b16 %v4899
    %v6297 = vunpack.c.h.b16 %v4899
    %v6298 = vunpack.c.l.b16 %v4900
    %v6299 = vunpack.c.h.b16 %v4900
    %v6300 = vunpack.c.l.b16 %v4901
    %v6301 = vunpack.c.h.b16 %v4901
    %v6302 = vunpack.c.l.b16 %v4902
    %v6303 = vunpack.c.h.b16 %v4902
    %v6304 = vunpack.c.l.b16 %v4903
    %v6305 = vunpack.c.h.b16 %v4903
    %v6306 = vunpack.c.l.b16 %v4904
    %v6307 = vunpack.c.h.b16 %v4904
    %v6308 = vunpack.c.l.b16 %v4905
    %v6309 = vunpack.c.h.b16 %v4905
    %v6310 = vunpack.c.l.b16 %v4906
    %v6311 = vunpack.c.h.b16 %v4906
    %v6312 = vunpack.c.l.b16 %v4907
    %v6313 = vunpack.c.h.b16 %v4907
    %v6314 = vunpack.c.l.b16 %v4908
    %v6315 = vunpack.c.h.b16 %v4908
    %v6316 = vunpack.c.l.b16 %v4909
    %v6317 = vunpack.c.h.b16 %v4909
    %v6318 = vunpack.c.l.b16 %v4910
    %v6319 = vunpack.c.h.b16 %v4910
    %v6320 = vunpack.c.l.b16 %v4911
    %v6321 = vunpack.c.h.b16 %v4911
    %v6322 = vunpack.c.l.b16 %v4912
    %v6323 = vunpack.c.h.b16 %v4912
    %v6324 = vunpack.c.l.b16 %v4913
    %v6325 = vunpack.c.h.b16 %v4913
    %v6326 = vunpack.c.l.b16 %v4914
    %v6327 = vunpack.c.h.b16 %v4914
    %v6328 = vunpack.c.l.b16 %v4915
    %v6329 = vunpack.c.h.b16 %v4915
    %v6330 = vunpack.c.l.b16 %v4916
    %v6331 = vunpack.c.h.b16 %v4916
    %v6332 = vunpack.c.l.b16 %v4917
    %v6333 = vunpack.c.h.b16 %v4917
    %v6334 = vunpack.c.l.b16 %v4918
    %v6335 = vunpack.c.h.b16 %v4918
    %v6336 = vunpack.c.l.b16 %v4919
    %v6337 = vunpack.c.h.b16 %v4919
    %v6338 = vunpack.c.l.b16 %v4920
    %v6339 = vunpack.c.h.b16 %v4920
    %v6340 = vunpack.c.l.b16 %v4921
    %v6341 = vunpack.c.h.b16 %v4921
    %v6342 = vunpack.c.l.b16 %v4922
    %v6343 = vunpack.c.h.b16 %v4922
    %v6344 = vunpack.c.l.b16 %v4923
    %v6345 = vunpack.c.h.b16 %v4923
    %v6346 = vunpack.c.l.b16 %v4924
    %v6347 = vunpack.c.h.b16 %v4924
    %v6348 = vunpack.c.l.b16 %v4925
    %v6349 = vunpack.c.h.b16 %v4925
    %v6350 = vunpack.c.l.b16 %v4926
    %v6351 = vunpack.c.h.b16 %v4926
    %v6352 = vunpack.c.l.b16 %v4927
    %v6353 = vunpack.c.h.b16 %v4927
    %v6354 = vunpack.c.l.b16 %v4928
    %v6355 = vunpack.c.h.b16 %v4928
    %v6356 = vunpack.c.l.b16 %v4929
    %v6357 = vunpack.c.h.b16 %v4929
    %v6358 = vunpack.c.l.b16 %v4930
    %v6359 = vunpack.c.h.b16 %v4930
    %v6360 = vunpack.c.l.b16 %v4931
    %v6361 = vunpack.c.h.b16 %v4931
    %v6362 = vunpack.c.l.b16 %v4932
    %v6363 = vunpack.c.h.b16 %v4932
    %v6364 = vunpack.c.l.b16 %v4933
    %v6365 = vunpack.c.h.b16 %v4933
    %v6366 = vunpack.c.l.b16 %v4934
    %v6367 = vunpack.c.h.b16 %v4934
    %v6368 = vunpack.c.l.b16 %v4935
    %v6369 = vunpack.c.h.b16 %v4935
    %v6370 = vunpack.c.l.b16 %v4936
    %v6371 = vunpack.c.h.b16 %v4936
    %v6372 = vunpack.c.l.b16 %v4937
    %v6373 = vunpack.c.h.b16 %v4937
    %v6374 = vunpack.c.l.b16 %v4938
    %v6375 = vunpack.c.h.b16 %v4938
    %v6376 = vunpack.c.l.b16 %v4939
    %v6377 = vunpack.c.h.b16 %v4939
    %v6378 = vunpack.c.l.b16 %v4940
    %v6379 = vunpack.c.h.b16 %v4940
    %v6380 = vunpack.c.l.b16 %v4941
    %v6381 = vunpack.c.h.b16 %v4941
    %v6382 = vunpack.c.l.b16 %v4942
    %v6383 = vunpack.c.h.b16 %v4942
    %v6384 = vunpack.c.l.b16 %v4943
    %v6385 = vunpack.c.h.b16 %v4943
    %v6386 = vunpack.c.l.b16 %v4944
    %v6387 = vunpack.c.h.b16 %v4944
    %v6388 = vunpack.c.l.b16 %v4945
    %v6389 = vunpack.c.h.b16 %v4945
    %v6390 = vunpack.c.l.b16 %v4946
    %v6391 = vunpack.c.h.b16 %v4946
    %v6392 = vunpack.c.l.b16 %v4947
    %v6393 = vunpack.c.h.b16 %v4947
    %v6394 = vunpack.c.l.b16 %v4948
    %v6395 = vunpack.c.h.b16 %v4948
    %v6396 = vunpack.c.l.b16 %v4949
    %v6397 = vunpack.c.h.b16 %v4949
    %v6398 = vunpack.c.l.b16 %v4950
    %v6399 = vunpack.c.h.b16 %v4950
    %v6400 = vunpack.c.l.b16 %v4951
    %v6401 = vunpack.c.h.b16 %v4951
    %v6402 = vunpack.c.l.b16 %v4952
    %v6403 = vunpack.c.h.b16 %v4952
    %v6404 = vunpack.c.l.b16 %v4953
    %v6405 = vunpack.c.h.b16 %v4953
    %v6406 = vunpack.c.l.b16 %v4954
    %v6407 = vunpack.c.h.b16 %v4954
    %v6408 = vunpack.c.l.b16 %v4955
    %v6409 = vunpack.c.h.b16 %v4955
    %v6410 = vunpack.c.l.b16 %v4956
    %v6411 = vunpack.c.h.b16 %v4956
    %v6412 = vunpack.c.l.b16 %v4957
    %v6413 = vunpack.c.h.b16 %v4957
    %v6414 = vunpack.c.l.b16 %v4958
    %v6415 = vunpack.c.h.b16 %v4958
    %v6416 = vunpack.c.l.b16 %v4959
    %v6417 = vunpack.c.h.b16 %v4959
    %v6418 = vunpack.c.l.b16 %v4960
    %v6419 = vunpack.c.h.b16 %v4960
    %v6420 = vunpack.c.l.b16 %v4961
    %v6421 = vunpack.c.h.b16 %v4961
    %v6422 = vunpack.c.l.b16 %v4962
    %v6423 = vunpack.c.h.b16 %v4962
    %v6424 = vunpack.c.l.b16 %v4963
    %v6425 = vunpack.c.h.b16 %v4963
    %v6426 = vunpack.c.l.b16 %v4964
    %v6427 = vunpack.c.h.b16 %v4964
    %v6428 = vunpack.c.l.b16 %v4965
    %v6429 = vunpack.c.h.b16 %v4965
    %v6430 = vunpack.c.l.b16 %v4966
    %v6431 = vunpack.c.h.b16 %v4966
    %v6432 = vunpack.c.l.b16 %v4967
    %v6433 = vunpack.c.h.b16 %v4967
    %v6434 = vunpack.c.l.b16 %v4968
    %v6435 = vunpack.c.h.b16 %v4968
    %v6436 = vunpack.c.l.b16 %v4969
    %v6437 = vunpack.c.h.b16 %v4969
    %v6438 = vunpack.c.l.b16 %v4970
    %v6439 = vunpack.c.h.b16 %v4970
    %v6440 = vunpack.c.l.b16 %v4971
    %v6441 = vunpack.c.h.b16 %v4971
    %v6442 = vunpack.c.l.b16 %v4972
    %v6443 = vunpack.c.h.b16 %v4972
    %v6444 = vunpack.c.l.b16 %v4973
    %v6445 = vunpack.c.h.b16 %v4973
    %v6446 = vunpack.c.l.b16 %v4974
    %v6447 = vunpack.c.h.b16 %v4974
    %v6448 = vunpack.c.l.b16 %v4975
    %v6449 = vunpack.c.h.b16 %v4975
    %v6450 = vunpack.c.l.b16 %v4976
    %v6451 = vunpack.c.h.b16 %v4976
    %v6452 = vunpack.c.l.b16 %v4977
    %v6453 = vunpack.c.h.b16 %v4977
    %v6454 = vunpack.c.l.b16 %v4978
    %v6455 = vunpack.c.h.b16 %v4978
    %v6456 = vunpack.c.l.b16 %v4979
    %v6457 = vunpack.c.h.b16 %v4979
    %v6458 = vunpack.c.l.b16 %v4980
    %v6459 = vunpack.c.h.b16 %v4980
    %v6460 = vunpack.c.l.b16 %v4981
    %v6461 = vunpack.c.h.b16 %v4981
    %v6462 = vunpack.c.l.b16 %v4982
    %v6463 = vunpack.c.h.b16 %v4982
    %v6464 = vunpack.c.l.b16 %v4983
    %v6465 = vunpack.c.h.b16 %v4983
    %v6466 = vunpack.c.l.b16 %v4984
    %v6467 = vunpack.c.h.b16 %v4984
    %v6468 = vunpack.c.l.b16 %v4985
    %v6469 = vunpack.c.h.b16 %v4985
    %v6470 = vunpack.c.l.b16 %v4986
    %v6471 = vunpack.c.h.b16 %v4986
    %v6472 = vunpack.c.l.b16 %v4987
    %v6473 = vunpack.c.h.b16 %v4987
    %v6474 = vunpack.c.l.b16 %v4988
    %v6475 = vunpack.c.h.b16 %v4988
    %v6476 = vunpack.c.l.b16 %v4989
    %v6477 = vunpack.c.h.b16 %v4989
    %v6478 = vunpack.c.l.b16 %v4990
    %v6479 = vunpack.c.h.b16 %v4990
    %v6480 = vunpack.c.l.b16 %v4991
    %v6481 = vunpack.c.h.b16 %v4991
    %v6482 = vunpack.c.l.b16 %v4992
    %v6483 = vunpack.c.h.b16 %v4992
    %v6484 = vunpack.c.l.b16 %v4993
    %v6485 = vunpack.c.h.b16 %v4993
    %v6486 = vunpack.c.l.b16 %v4994
    %v6487 = vunpack.c.h.b16 %v4994
    %v6488 = vunpack.c.l.b16 %v4995
    %v6489 = vunpack.c.h.b16 %v4995
    %v6490 = vunpack.c.l.b16 %v4996
    %v6491 = vunpack.c.h.b16 %v4996
    %v6492 = vunpack.c.l.b16 %v4997
    %v6493 = vunpack.c.h.b16 %v4997
    %v6494 = vunpack.c.l.b16 %v4998
    %v6495 = vunpack.c.h.b16 %v4998
    %v6496 = vunpack.c.l.b16 %v4999
    %v6497 = vunpack.c.h.b16 %v4999
    %v6498 = vunpack.c.l.b16 %v5000
    %v6499 = vunpack.c.h.b16 %v5000
    %v6500 = vunpack.c.l.b16 %v5001
    %v6501 = vunpack.c.h.b16 %v5001
    %v6502 = vunpack.c.l.b16 %v5002
    %v6503 = vunpack.c.h.b16 %v5002
    %v6504 = vunpack.c.l.b16 %v5003
    %v6505 = vunpack.c.h.b16 %v5003
    %v6506 = vunpack.c.l.b16 %v5004
    %v6507 = vunpack.c.h.b16 %v5004
    %v6508 = vunpack.c.l.b16 %v5005
    %v6509 = vunpack.c.h.b16 %v5005
    %v6510 = vunpack.c.l.b16 %v5006
    %v6511 = vunpack.c.h.b16 %v5006
    %v6512 = vunpack.c.l.b16 %v5007
    %v6513 = vunpack.c.h.b16 %v5007
    %v6514 = vunpack.c.l.b16 %v5008
    %v6515 = vunpack.c.h.b16 %v5008
    %v6516 = vunpack.c.l.b16 %v5009
    %v6517 = vunpack.c.h.b16 %v5009
    %v6518 = vunpack.c.l.b16 %v5010
    %v6519 = vunpack.c.h.b16 %v5010
    %v6520 = vunpack.c.l.b16 %v5011
    %v6521 = vunpack.c.h.b16 %v5011
    %v6522 = vunpack.c.l.b16 %v5012
    %v6523 = vunpack.c.h.b16 %v5012
    %v6524 = vunpack.c.l.b16 %v5013
    %v6525 = vunpack.c.h.b16 %v5013
    %v6526 = vunpack.c.l.b16 %v5014
    %v6527 = vunpack.c.h.b16 %v5014
    %v6528 = vunpack.c.l.b16 %v5015
    %v6529 = vunpack.c.h.b16 %v5015
    %v6530 = vunpack.c.l.b16 %v5016
    %v6531 = vunpack.c.h.b16 %v5016
    %v6532 = vunpack.c.l.b16 %v5017
    %v6533 = vunpack.c.h.b16 %v5017
    %v6534 = vunpack.c.l.b16 %v5018
    %v6535 = vunpack.c.h.b16 %v5018
    %v6536 = vunpack.c.l.b16 %v5019
    %v6537 = vunpack.c.h.b16 %v5019
    %v6538 = vunpack.c.l.b16 %v5020
    %v6539 = vunpack.c.h.b16 %v5020
    %v6540 = vunpack.c.l.b16 %v5021
    %v6541 = vunpack.c.h.b16 %v5021
    %v6542 = vunpack.c.l.b16 %v5022
    %v6543 = vunpack.c.h.b16 %v5022
    %v6544 = vunpack.c.l.b16 %v5023
    %v6545 = vunpack.c.h.b16 %v5023
    %v6546 = vunpack.c.l.b16 %v5024
    %v6547 = vunpack.c.h.b16 %v5024
    %v6548 = vunpack.c.l.b16 %v5025
    %v6549 = vunpack.c.h.b16 %v5025
    %v6550 = vunpack.c.l.b16 %v5026
    %v6551 = vunpack.c.h.b16 %v5026
    %v6552 = vunpack.c.l.b16 %v5027
    %v6553 = vunpack.c.h.b16 %v5027
    %v6554 = vunpack.c.l.b16 %v5028
    %v6555 = vunpack.c.h.b16 %v5028
    %v6556 = vunpack.c.l.b16 %v5029
    %v6557 = vunpack.c.h.b16 %v5029
    %v6558 = vunpack.c.l.b16 %v5030
    %v6559 = vunpack.c.h.b16 %v5030
    %v6560 = vunpack.c.l.b16 %v5031
    %v6561 = vunpack.c.h.b16 %v5031
    %v6562 = vunpack.c.l.b16 %v5032
    %v6563 = vunpack.c.h.b16 %v5032
    %v6564 = vunpack.c.l.b16 %v5033
    %v6565 = vunpack.c.h.b16 %v5033
    %v6566 = vunpack.c.l.b16 %v5034
    %v6567 = vunpack.c.h.b16 %v5034
    %v6568 = vunpack.c.l.b16 %v5035
    %v6569 = vunpack.c.h.b16 %v5035
    %v6570 = vunpack.c.l.b16 %v5036
    %v6571 = vunpack.c.h.b16 %v5036
    %v6572 = vunpack.c.l.b16 %v5037
    %v6573 = vunpack.c.h.b16 %v5037
    %v6574 = vunpack.c.l.b16 %v5038
    %v6575 = vunpack.c.h.b16 %v5038
    %v6576 = vunpack.c.l.b16 %v5039
    %v6577 = vunpack.c.h.b16 %v5039
    %v6578 = vunpack.c.l.b16 %v5040
    %v6579 = vunpack.c.h.b16 %v5040
    %v6580 = vunpack.c.l.b16 %v5041
    %v6581 = vunpack.c.h.b16 %v5041
    %v6582 = vunpack.c.l.b16 %v5042
    %v6583 = vunpack.c.h.b16 %v5042
    %v6584 = vunpack.c.l.b16 %v5043
    %v6585 = vunpack.c.h.b16 %v5043
    %v6586 = vunpack.c.l.b16 %v5044
    %v6587 = vunpack.c.h.b16 %v5044
    %v6588 = vunpack.c.l.b16 %v5045
    %v6589 = vunpack.c.h.b16 %v5045
    %v6590 = vunpack.c.l.b16 %v5046
    %v6591 = vunpack.c.h.b16 %v5046
    %v6592 = vunpack.c.l.b16 %v5047
    %v6593 = vunpack.c.h.b16 %v5047
    %v6594 = vunpack.c.l.b16 %v5048
    %v6595 = vunpack.c.h.b16 %v5048
    %v6596 = vunpack.c.l.b16 %v5049
    %v6597 = vunpack.c.h.b16 %v5049
    %v6598 = vunpack.c.l.b16 %v5050
    %v6599 = vunpack.c.h.b16 %v5050
    %v6600 = vunpack.c.l.b16 %v5051
    %v6601 = vunpack.c.h.b16 %v5051
    %v6602 = vunpack.c.l.b16 %v5052
    %v6603 = vunpack.c.h.b16 %v5052
    %v6604 = vunpack.c.l.b16 %v5053
    %v6605 = vunpack.c.h.b16 %v5053
    %v6606 = vunpack.c.l.b16 %v5054
    %v6607 = vunpack.c.h.b16 %v5054
    %v6608 = vunpack.c.l.b16 %v5055
    %v6609 = vunpack.c.h.b16 %v5055
    %v6610 = vpack.c.b16 %v5594, %v5586
    %v6611 = vpack.c.b16 %v5595, %v5587
    %v6612 = vpack.c.b16 %v5596, %v5588
    %v6613 = vpack.c.b16 %v5597, %v5589
    %v6614 = vpack.c.b16 %v5598, %v5590
    %v6615 = vpack.c.b16 %v5599, %v5591
    %v6616 = vpack.c.b16 %v5600, %v5592
    %v6617 = vpack.c.b16 %v5601, %v5593
    %v6618 = vpack.c.b16 %v5610, %v5602
    %v6619 = vpack.c.b16 %v5611, %v5603
    %v6620 = vpack.c.b16 %v5612, %v5604
    %v6621 = vpack.c.b16 %v5613, %v5605
    %v6622 = vpack.c.b16 %v5614, %v5606
    %v6623 = vpack.c.b16 %v5615, %v5607
    %v6624 = vpack.c.b16 %v5616, %v5608
    %v6625 = vpack.c.b16 %v5617, %v5609
    %v6626 = vpack.c.b16 %v5626, %v5618
    %v6627 = vpack.c.b16 %v5627, %v5619
    %v6628 = vpack.c.b16 %v5628, %v5620
    %v6629 = vpack.c.b16 %v5629, %v5621
    %v6630 = vpack.c.b16 %v5630, %v5622
    %v6631 = vpack.c.b16 %v5631, %v5623
    %v6632 = vpack.c.b16 %v5632, %v5624
    %v6633 = vpack.c.b16 %v5633, %v5625
    %v6634 = vpack.c.b16 %v5642, %v5634
    %v6635 = vpack.c.b16 %v5643, %v5635
    %v6636 = vpack.c.b16 %v5644, %v5636
    %v6637 = vpack.c.b16 %v5645, %v5637
    %v6638 = vpack.c.b16 %v5646, %v5638
    %v6639 = vpack.c.b16 %v5647, %v5639
    %v6640 = vpack.c.b16 %v5648, %v5640
    %v6641 = vpack.c.b16 %v5649, %v5641
    %v6642 = vpack.c.b16 %v5658, %v5650
    %v6643 = vpack.c.b16 %v5659, %v5651
    %v6644 = vpack.c.b16 %v5660, %v5652
    %v6645 = vpack.c.b16 %v5661, %v5653
    %v6646 = vpack.c.b16 %v5662, %v5654
    %v6647 = vpack.c.b16 %v5663, %v5655
    %v6648 = vpack.c.b16 %v5664, %v5656
    %v6649 = vpack.c.b16 %v5665, %v5657
    %v6650 = vpack.c.b16 %v5674, %v5666
    %v6651 = vpack.c.b16 %v5675, %v5667
    %v6652 = vpack.c.b16 %v5676, %v5668
    %v6653 = vpack.c.b16 %v5677, %v5669
    %v6654 = vpack.c.b16 %v5678, %v5670
    %v6655 = vpack.c.b16 %v5679, %v5671
    %v6656 = vpack.c.b16 %v5680, %v5672
    %v6657 = vpack.c.b16 %v5681, %v5673
    %v6658 = vpack.c.b16 %v5690, %v5682
    %v6659 = vpack.c.b16 %v5691, %v5683
    %v6660 = vpack.c.b16 %v5692, %v5684
    %v6661 = vpack.c.b16 %v5693, %v5685
    %v6662 = vpack.c.b16 %v5694, %v5686
    %v6663 = vpack.c.b16 %v5695, %v5687
    %v6664 = vpack.c.b16 %v5696, %v5688
    %v6665 = vpack.c.b16 %v5697, %v5689
    %v6666 = vpack.c.b16 %v5706, %v5698
    %v6667 = vpack.c.b16 %v5707, %v5699
    %v6668 = vpack.c.b16 %v5708, %v5700
    %v6669 = vpack.c.b16 %v5709, %v5701
    %v6670 = vpack.c.b16 %v5710, %v5702
    %v6671 = vpack.c.b16 %v5711, %v5703
    %v6672 = vpack.c.b16 %v5712, %v5704
    %v6673 = vpack.c.b16 %v5713, %v5705
    %v6674 = vpack.c.b16 %v5722, %v5714
    %v6675 = vpack.c.b16 %v5723, %v5715
    %v6676 = vpack.c.b16 %v5724, %v5716
    %v6677 = vpack.c.b16 %v5725, %v5717
    %v6678 = vpack.c.b16 %v5726, %v5718
    %v6679 = vpack.c.b16 %v5727, %v5719
    %v6680 = vpack.c.b16 %v5728, %v5720
    %v6681 = vpack.c.b16 %v5729, %v5721
    %v6682 = vpack.c.b16 %v5738, %v5730
    %v6683 = vpack.c.b16 %v5739, %v5731
    %v6684 = vpack.c.b16 %v5740, %v5732
    %v6685 = vpack.c.b16 %v5741, %v5733
    %v6686 = vpack.c.b16 %v5742, %v5734
    %v6687 = vpack.c.b16 %v5743, %v5735
    %v6688 = vpack.c.b16 %v5744, %v5736
    %v6689 = vpack.c.b16 %v5745, %v5737
    %v6690 = vpack.c.b16 %v5754, %v5746
    %v6691 = vpack.c.b16 %v5755, %v5747
    %v6692 = vpack.c.b16 %v5756, %v5748
    %v6693 = vpack.c.b16 %v5757, %v5749
    %v6694 = vpack.c.b16 %v5758, %v5750
    %v6695 = vpack.c.b16 %v5759, %v5751
    %v6696 = vpack.c.b16 %v5760, %v5752
    %v6697 = vpack.c.b16 %v5761, %v5753
    %v6698 = vpack.c.b16 %v5770, %v5762
    %v6699 = vpack.c.b16 %v5771, %v5763
    %v6700 = vpack.c.b16 %v5772, %v5764
    %v6701 = vpack.c.b16 %v5773, %v5765
    %v6702 = vpack.c.b16 %v5774, %v5766
    %v6703 = vpack.c.b16 %v5775, %v5767
    %v6704 = vpack.c.b16 %v5776, %v5768
    %v6705 = vpack.c.b16 %v5777, %v5769
    %v6706 = vpack.c.b16 %v5786, %v5778
    %v6707 = vpack.c.b16 %v5787, %v5779
    %v6708 = vpack.c.b16 %v5788, %v5780
    %v6709 = vpack.c.b16 %v5789, %v5781
    %v6710 = vpack.c.b16 %v5790, %v5782
    %v6711 = vpack.c.b16 %v5791, %v5783
    %v6712 = vpack.c.b16 %v5792, %v5784
    %v6713 = vpack.c.b16 %v5793, %v5785
    %v6714 = vpack.c.b16 %v5802, %v5794
    %v6715 = vpack.c.b16 %v5803, %v5795
    %v6716 = vpack.c.b16 %v5804, %v5796
    %v6717 = vpack.c.b16 %v5805, %v5797
    %v6718 = vpack.c.b16 %v5806, %v5798
    %v6719 = vpack.c.b16 %v5807, %v5799
    %v6720 = vpack.c.b16 %v5808, %v5800
    %v6721 = vpack.c.b16 %v5809, %v5801
    %v6722 = vpack.c.b16 %v5818, %v5810
    %v6723 = vpack.c.b16 %v5819, %v5811
    %v6724 = vpack.c.b16 %v5820, %v5812
    %v6725 = vpack.c.b16 %v5821, %v5813
    %v6726 = vpack.c.b16 %v5822, %v5814
    %v6727 = vpack.c.b16 %v5823, %v5815
    %v6728 = vpack.c.b16 %v5824, %v5816
    %v6729 = vpack.c.b16 %v5825, %v5817
    %v6730 = vpack.c.b16 %v5834, %v5826
    %v6731 = vpack.c.b16 %v5835, %v5827
    %v6732 = vpack.c.b16 %v5836, %v5828
    %v6733 = vpack.c.b16 %v5837, %v5829
    %v6734 = vpack.c.b16 %v5838, %v5830
    %v6735 = vpack.c.b16 %v5839, %v5831
    %v6736 = vpack.c.b16 %v5840, %v5832
    %v6737 = vpack.c.b16 %v5841, %v5833
    %v6738 = vpack.c.b16 %v5850, %v5842
    %v6739 = vpack.c.b16 %v5851, %v5843
    %v6740 = vpack.c.b16 %v5852, %v5844
    %v6741 = vpack.c.b16 %v5853, %v5845
    %v6742 = vpack.c.b16 %v5854, %v5846
    %v6743 = vpack.c.b16 %v5855, %v5847
    %v6744 = vpack.c.b16 %v5856, %v5848
    %v6745 = vpack.c.b16 %v5857, %v5849
    %v6746 = vpack.c.b16 %v5866, %v5858
    %v6747 = vpack.c.b16 %v5867, %v5859
    %v6748 = vpack.c.b16 %v5868, %v5860
    %v6749 = vpack.c.b16 %v5869, %v5861
    %v6750 = vpack.c.b16 %v5870, %v5862
    %v6751 = vpack.c.b16 %v5871, %v5863
    %v6752 = vpack.c.b16 %v5872, %v5864
    %v6753 = vpack.c.b16 %v5873, %v5865
    %v6754 = vpack.c.b16 %v5882, %v5874
    %v6755 = vpack.c.b16 %v5883, %v5875
    %v6756 = vpack.c.b16 %v5884, %v5876
    %v6757 = vpack.c.b16 %v5885, %v5877
    %v6758 = vpack.c.b16 %v5886, %v5878
    %v6759 = vpack.c.b16 %v5887, %v5879
    %v6760 = vpack.c.b16 %v5888, %v5880
    %v6761 = vpack.c.b16 %v5889, %v5881
    %v6762 = vpack.c.b16 %v5898, %v5890
    %v6763 = vpack.c.b16 %v5899, %v5891
    %v6764 = vpack.c.b16 %v5900, %v5892
    %v6765 = vpack.c.b16 %v5901, %v5893
    %v6766 = vpack.c.b16 %v5902, %v5894
    %v6767 = vpack.c.b16 %v5903, %v5895
    %v6768 = vpack.c.b16 %v5904, %v5896
    %v6769 = vpack.c.b16 %v5905, %v5897
    %v6770 = vpack.c.b16 %v5914, %v5906
    %v6771 = vpack.c.b16 %v5915, %v5907
    %v6772 = vpack.c.b16 %v5916, %v5908
    %v6773 = vpack.c.b16 %v5917, %v5909
    %v6774 = vpack.c.b16 %v5918, %v5910
    %v6775 = vpack.c.b16 %v5919, %v5911
    %v6776 = vpack.c.b16 %v5920, %v5912
    %v6777 = vpack.c.b16 %v5921, %v5913
    %v6778 = vpack.c.b16 %v5930, %v5922
    %v6779 = vpack.c.b16 %v5931, %v5923
    %v6780 = vpack.c.b16 %v5932, %v5924
    %v6781 = vpack.c.b16 %v5933, %v5925
    %v6782 = vpack.c.b16 %v5934, %v5926
    %v6783 = vpack.c.b16 %v5935, %v5927
    %v6784 = vpack.c.b16 %v5936, %v5928
    %v6785 = vpack.c.b16 %v5937, %v5929
    %v6786 = vpack.c.b16 %v5946, %v5938
    %v6787 = vpack.c.b16 %v5947, %v5939
    %v6788 = vpack.c.b16 %v5948, %v5940
    %v6789 = vpack.c.b16 %v5949, %v5941
    %v6790 = vpack.c.b16 %v5950, %v5942
    %v6791 = vpack.c.b16 %v5951, %v5943
    %v6792 = vpack.c.b16 %v5952, %v5944
    %v6793 = vpack.c.b16 %v5953, %v5945
    %v6794 = vpack.c.b16 %v5962, %v5954
    %v6795 = vpack.c.b16 %v5963, %v5955
    %v6796 = vpack.c.b16 %v5964, %v5956
    %v6797 = vpack.c.b16 %v5965, %v5957
    %v6798 = vpack.c.b16 %v5966, %v5958
    %v6799 = vpack.c.b16 %v5967, %v5959
    %v6800 = vpack.c.b16 %v5968, %v5960
    %v6801 = vpack.c.b16 %v5969, %v5961
    %v6802 = vpack.c.b16 %v5978, %v5970
    %v6803 = vpack.c.b16 %v5979, %v5971
    %v6804 = vpack.c.b16 %v5980, %v5972
    %v6805 = vpack.c.b16 %v5981, %v5973
    %v6806 = vpack.c.b16 %v5982, %v5974
    %v6807 = vpack.c.b16 %v5983, %v5975
    %v6808 = vpack.c.b16 %v5984, %v5976
    %v6809 = vpack.c.b16 %v5985, %v5977
    %v6810 = vpack.c.b16 %v5994, %v5986
    %v6811 = vpack.c.b16 %v5995, %v5987
    %v6812 = vpack.c.b16 %v5996, %v5988
    %v6813 = vpack.c.b16 %v5997, %v5989
    %v6814 = vpack.c.b16 %v5998, %v5990
    %v6815 = vpack.c.b16 %v5999, %v5991
    %v6816 = vpack.c.b16 %v6000, %v5992
    %v6817 = vpack.c.b16 %v6001, %v5993
    %v6818 = vpack.c.b16 %v6010, %v6002
    %v6819 = vpack.c.b16 %v6011, %v6003
    %v6820 = vpack.c.b16 %v6012, %v6004
    %v6821 = vpack.c.b16 %v6013, %v6005
    %v6822 = vpack.c.b16 %v6014, %v6006
    %v6823 = vpack.c.b16 %v6015, %v6007
    %v6824 = vpack.c.b16 %v6016, %v6008
    %v6825 = vpack.c.b16 %v6017, %v6009
    %v6826 = vpack.c.b16 %v6026, %v6018
    %v6827 = vpack.c.b16 %v6027, %v6019
    %v6828 = vpack.c.b16 %v6028, %v6020
    %v6829 = vpack.c.b16 %v6029, %v6021
    %v6830 = vpack.c.b16 %v6030, %v6022
    %v6831 = vpack.c.b16 %v6031, %v6023
    %v6832 = vpack.c.b16 %v6032, %v6024
    %v6833 = vpack.c.b16 %v6033, %v6025
    %v6834 = vpack.c.b16 %v6042, %v6034
    %v6835 = vpack.c.b16 %v6043, %v6035
    %v6836 = vpack.c.b16 %v6044, %v6036
    %v6837 = vpack.c.b16 %v6045, %v6037
    %v6838 = vpack.c.b16 %v6046, %v6038
    %v6839 = vpack.c.b16 %v6047, %v6039
    %v6840 = vpack.c.b16 %v6048, %v6040
    %v6841 = vpack.c.b16 %v6049, %v6041
    %v6842 = vpack.c.b16 %v6058, %v6050
    %v6843 = vpack.c.b16 %v6059, %v6051
    %v6844 = vpack.c.b16 %v6060, %v6052
    %v6845 = vpack.c.b16 %v6061, %v6053
    %v6846 = vpack.c.b16 %v6062, %v6054
    %v6847 = vpack.c.b16 %v6063, %v6055
    %v6848 = vpack.c.b16 %v6064, %v6056
    %v6849 = vpack.c.b16 %v6065, %v6057
    %v6850 = vpack.c.b16 %v6074, %v6066
    %v6851 = vpack.c.b16 %v6075, %v6067
    %v6852 = vpack.c.b16 %v6076, %v6068
    %v6853 = vpack.c.b16 %v6077, %v6069
    %v6854 = vpack.c.b16 %v6078, %v6070
    %v6855 = vpack.c.b16 %v6079, %v6071
    %v6856 = vpack.c.b16 %v6080, %v6072
    %v6857 = vpack.c.b16 %v6081, %v6073
    %v6858 = vpack.c.b16 %v6090, %v6082
    %v6859 = vpack.c.b16 %v6091, %v6083
    %v6860 = vpack.c.b16 %v6092, %v6084
    %v6861 = vpack.c.b16 %v6093, %v6085
    %v6862 = vpack.c.b16 %v6094, %v6086
    %v6863 = vpack.c.b16 %v6095, %v6087
    %v6864 = vpack.c.b16 %v6096, %v6088
    %v6865 = vpack.c.b16 %v6097, %v6089
    %v6866 = vpack.c.b16 %v6106, %v6098
    %v6867 = vpack.c.b16 %v6107, %v6099
    %v6868 = vpack.c.b16 %v6108, %v6100
    %v6869 = vpack.c.b16 %v6109, %v6101
    %v6870 = vpack.c.b16 %v6110, %v6102
    %v6871 = vpack.c.b16 %v6111, %v6103
    %v6872 = vpack.c.b16 %v6112, %v6104
    %v6873 = vpack.c.b16 %v6113, %v6105
    %v6874 = vpack.c.b16 %v6122, %v6114
    %v6875 = vpack.c.b16 %v6123, %v6115
    %v6876 = vpack.c.b16 %v6124, %v6116
    %v6877 = vpack.c.b16 %v6125, %v6117
    %v6878 = vpack.c.b16 %v6126, %v6118
    %v6879 = vpack.c.b16 %v6127, %v6119
    %v6880 = vpack.c.b16 %v6128, %v6120
    %v6881 = vpack.c.b16 %v6129, %v6121
    %v6882 = vpack.c.b16 %v6138, %v6130
    %v6883 = vpack.c.b16 %v6139, %v6131
    %v6884 = vpack.c.b16 %v6140, %v6132
    %v6885 = vpack.c.b16 %v6141, %v6133
    %v6886 = vpack.c.b16 %v6142, %v6134
    %v6887 = vpack.c.b16 %v6143, %v6135
    %v6888 = vpack.c.b16 %v6144, %v6136
    %v6889 = vpack.c.b16 %v6145, %v6137
    %v6890 = vpack.c.b16 %v6154, %v6146
    %v6891 = vpack.c.b16 %v6155, %v6147
    %v6892 = vpack.c.b16 %v6156, %v6148
    %v6893 = vpack.c.b16 %v6157, %v6149
    %v6894 = vpack.c.b16 %v6158, %v6150
    %v6895 = vpack.c.b16 %v6159, %v6151
    %v6896 = vpack.c.b16 %v6160, %v6152
    %v6897 = vpack.c.b16 %v6161, %v6153
    %v6898 = vpack.c.b16 %v6170, %v6162
    %v6899 = vpack.c.b16 %v6171, %v6163
    %v6900 = vpack.c.b16 %v6172, %v6164
    %v6901 = vpack.c.b16 %v6173, %v6165
    %v6902 = vpack.c.b16 %v6174, %v6166
    %v6903 = vpack.c.b16 %v6175, %v6167
    %v6904 = vpack.c.b16 %v6176, %v6168
    %v6905 = vpack.c.b16 %v6177, %v6169
    %v6906 = vpack.c.b16 %v6186, %v6178
    %v6907 = vpack.c.b16 %v6187, %v6179
    %v6908 = vpack.c.b16 %v6188, %v6180
    %v6909 = vpack.c.b16 %v6189, %v6181
    %v6910 = vpack.c.b16 %v6190, %v6182
    %v6911 = vpack.c.b16 %v6191, %v6183
    %v6912 = vpack.c.b16 %v6192, %v6184
    %v6913 = vpack.c.b16 %v6193, %v6185
    %v6914 = vpack.c.b16 %v6202, %v6194
    %v6915 = vpack.c.b16 %v6203, %v6195
    %v6916 = vpack.c.b16 %v6204, %v6196
    %v6917 = vpack.c.b16 %v6205, %v6197
    %v6918 = vpack.c.b16 %v6206, %v6198
    %v6919 = vpack.c.b16 %v6207, %v6199
    %v6920 = vpack.c.b16 %v6208, %v6200
    %v6921 = vpack.c.b16 %v6209, %v6201
    %v6922 = vpack.c.b16 %v6218, %v6210
    %v6923 = vpack.c.b16 %v6219, %v6211
    %v6924 = vpack.c.b16 %v6220, %v6212
    %v6925 = vpack.c.b16 %v6221, %v6213
    %v6926 = vpack.c.b16 %v6222, %v6214
    %v6927 = vpack.c.b16 %v6223, %v6215
    %v6928 = vpack.c.b16 %v6224, %v6216
    %v6929 = vpack.c.b16 %v6225, %v6217
    %v6930 = vpack.c.b16 %v6234, %v6226
    %v6931 = vpack.c.b16 %v6235, %v6227
    %v6932 = vpack.c.b16 %v6236, %v6228
    %v6933 = vpack.c.b16 %v6237, %v6229
    %v6934 = vpack.c.b16 %v6238, %v6230
    %v6935 = vpack.c.b16 %v6239, %v6231
    %v6936 = vpack.c.b16 %v6240, %v6232
    %v6937 = vpack.c.b16 %v6241, %v6233
    %v6938 = vpack.c.b16 %v6250, %v6242
    %v6939 = vpack.c.b16 %v6251, %v6243
    %v6940 = vpack.c.b16 %v6252, %v6244
    %v6941 = vpack.c.b16 %v6253, %v6245
    %v6942 = vpack.c.b16 %v6254, %v6246
    %v6943 = vpack.c.b16 %v6255, %v6247
    %v6944 = vpack.c.b16 %v6256, %v6248
    %v6945 = vpack.c.b16 %v6257, %v6249
    %v6946 = vpack.c.b16 %v6266, %v6258
    %v6947 = vpack.c.b16 %v6267, %v6259
    %v6948 = vpack.c.b16 %v6268, %v6260
    %v6949 = vpack.c.b16 %v6269, %v6261
    %v6950 = vpack.c.b16 %v6270, %v6262
    %v6951 = vpack.c.b16 %v6271, %v6263
    %v6952 = vpack.c.b16 %v6272, %v6264
    %v6953 = vpack.c.b16 %v6273, %v6265
    %v6954 = vpack.c.b16 %v6282, %v6274
    %v6955 = vpack.c.b16 %v6283, %v6275
    %v6956 = vpack.c.b16 %v6284, %v6276
    %v6957 = vpack.c.b16 %v6285, %v6277
    %v6958 = vpack.c.b16 %v6286, %v6278
    %v6959 = vpack.c.b16 %v6287, %v6279
    %v6960 = vpack.c.b16 %v6288, %v6280
    %v6961 = vpack.c.b16 %v6289, %v6281
    %v6962 = vpack.c.b16 %v6298, %v6290
    %v6963 = vpack.c.b16 %v6299, %v6291
    %v6964 = vpack.c.b16 %v6300, %v6292
    %v6965 = vpack.c.b16 %v6301, %v6293
    %v6966 = vpack.c.b16 %v6302, %v6294
    %v6967 = vpack.c.b16 %v6303, %v6295
    %v6968 = vpack.c.b16 %v6304, %v6296
    %v6969 = vpack.c.b16 %v6305, %v6297
    %v6970 = vpack.c.b16 %v6314, %v6306
    %v6971 = vpack.c.b16 %v6315, %v6307
    %v6972 = vpack.c.b16 %v6316, %v6308
    %v6973 = vpack.c.b16 %v6317, %v6309
    %v6974 = vpack.c.b16 %v6318, %v6310
    %v6975 = vpack.c.b16 %v6319, %v6311
    %v6976 = vpack.c.b16 %v6320, %v6312
    %v6977 = vpack.c.b16 %v6321, %v6313
    %v6978 = vpack.c.b16 %v6330, %v6322
    %v6979 = vpack.c.b16 %v6331, %v6323
    %v6980 = vpack.c.b16 %v6332, %v6324
    %v6981 = vpack.c.b16 %v6333, %v6325
    %v6982 = vpack.c.b16 %v6334, %v6326
    %v6983 = vpack.c.b16 %v6335, %v6327
    %v6984 = vpack.c.b16 %v6336, %v6328
    %v6985 = vpack.c.b16 %v6337, %v6329
    %v6986 = vpack.c.b16 %v6346, %v6338
    %v6987 = vpack.c.b16 %v6347, %v6339
    %v6988 = vpack.c.b16 %v6348, %v6340
    %v6989 = vpack.c.b16 %v6349, %v6341
    %v6990 = vpack.c.b16 %v6350, %v6342
    %v6991 = vpack.c.b16 %v6351, %v6343
    %v6992 = vpack.c.b16 %v6352, %v6344
    %v6993 = vpack.c.b16 %v6353, %v6345
    %v6994 = vpack.c.b16 %v6362, %v6354
    %v6995 = vpack.c.b16 %v6363, %v6355
    %v6996 = vpack.c.b16 %v6364, %v6356
    %v6997 = vpack.c.b16 %v6365, %v6357
    %v6998 = vpack.c.b16 %v6366, %v6358
    %v6999 = vpack.c.b16 %v6367, %v6359
    %v7000 = vpack.c.b16 %v6368, %v6360
    %v7001 = vpack.c.b16 %v6369, %v6361
    %v7002 = vpack.c.b16 %v6378, %v6370
    %v7003 = vpack.c.b16 %v6379, %v6371
    %v7004 = vpack.c.b16 %v6380, %v6372
    %v7005 = vpack.c.b16 %v6381, %v6373
    %v7006 = vpack.c.b16 %v6382, %v6374
    %v7007 = vpack.c.b16 %v6383, %v6375
    %v7008 = vpack.c.b16 %v6384, %v6376
    %v7009 = vpack.c.b16 %v6385, %v6377
    %v7010 = vpack.c.b16 %v6394, %v6386
    %v7011 = vpack.c.b16 %v6395, %v6387
    %v7012 = vpack.c.b16 %v6396, %v6388
    %v7013 = vpack.c.b16 %v6397, %v6389
    %v7014 = vpack.c.b16 %v6398, %v6390
    %v7015 = vpack.c.b16 %v6399, %v6391
    %v7016 = vpack.c.b16 %v6400, %v6392
    %v7017 = vpack.c.b16 %v6401, %v6393
    %v7018 = vpack.c.b16 %v6410, %v6402
    %v7019 = vpack.c.b16 %v6411, %v6403
    %v7020 = vpack.c.b16 %v6412, %v6404
    %v7021 = vpack.c.b16 %v6413, %v6405
    %v7022 = vpack.c.b16 %v6414, %v6406
    %v7023 = vpack.c.b16 %v6415, %v6407
    %v7024 = vpack.c.b16 %v6416, %v6408
    %v7025 = vpack.c.b16 %v6417, %v6409
    %v7026 = vpack.c.b16 %v6426, %v6418
    %v7027 = vpack.c.b16 %v6427, %v6419
    %v7028 = vpack.c.b16 %v6428, %v6420
    %v7029 = vpack.c.b16 %v6429, %v6421
    %v7030 = vpack.c.b16 %v6430, %v6422
    %v7031 = vpack.c.b16 %v6431, %v6423
    %v7032 = vpack.c.b16 %v6432, %v6424
    %v7033 = vpack.c.b16 %v6433, %v6425
    %v7034 = vpack.c.b16 %v6442, %v6434
    %v7035 = vpack.c.b16 %v6443, %v6435
    %v7036 = vpack.c.b16 %v6444, %v6436
    %v7037 = vpack.c.b16 %v6445, %v6437
    %v7038 = vpack.c.b16 %v6446, %v6438
    %v7039 = vpack.c.b16 %v6447, %v6439
    %v7040 = vpack.c.b16 %v6448, %v6440
    %v7041 = vpack.c.b16 %v6449, %v6441
    %v7042 = vpack.c.b16 %v6458, %v6450
    %v7043 = vpack.c.b16 %v6459, %v6451
    %v7044 = vpack.c.b16 %v6460, %v6452
    %v7045 = vpack.c.b16 %v6461, %v6453
    %v7046 = vpack.c.b16 %v6462, %v6454
    %v7047 = vpack.c.b16 %v6463, %v6455
    %v7048 = vpack.c.b16 %v6464, %v6456
    %v7049 = vpack.c.b16 %v6465, %v6457
    %v7050 = vpack.c.b16 %v6474, %v6466
    %v7051 = vpack.c.b16 %v6475, %v6467
    %v7052 = vpack.c.b16 %v6476, %v6468
    %v7053 = vpack.c.b16 %v6477, %v6469
    %v7054 = vpack.c.b16 %v6478, %v6470
    %v7055 = vpack.c.b16 %v6479, %v6471
    %v7056 = vpack.c.b16 %v6480, %v6472
    %v7057 = vpack.c.b16 %v6481, %v6473
    %v7058 = vpack.c.b16 %v6490, %v6482
    %v7059 = vpack.c.b16 %v6491, %v6483
    %v7060 = vpack.c.b16 %v6492, %v6484
    %v7061 = vpack.c.b16 %v6493, %v6485
    %v7062 = vpack.c.b16 %v6494, %v6486
    %v7063 = vpack.c.b16 %v6495, %v6487
    %v7064 = vpack.c.b16 %v6496, %v6488
    %v7065 = vpack.c.b16 %v6497, %v6489
    %v7066 = vpack.c.b16 %v6506, %v6498
    %v7067 = vpack.c.b16 %v6507, %v6499
    %v7068 = vpack.c.b16 %v6508, %v6500
    %v7069 = vpack.c.b16 %v6509, %v6501
    %v7070 = vpack.c.b16 %v6510, %v6502
    %v7071 = vpack.c.b16 %v6511, %v6503
    %v7072 = vpack.c.b16 %v6512, %v6504
    %v7073 = vpack.c.b16 %v6513, %v6505
    %v7074 = vpack.c.b16 %v6522, %v6514
    %v7075 = vpack.c.b16 %v6523, %v6515
    %v7076 = vpack.c.b16 %v6524, %v6516
    %v7077 = vpack.c.b16 %v6525, %v6517
    %v7078 = vpack.c.b16 %v6526, %v6518
    %v7079 = vpack.c.b16 %v6527, %v6519
    %v7080 = vpack.c.b16 %v6528, %v6520
    %v7081 = vpack.c.b16 %v6529, %v6521
    %v7082 = vpack.c.b16 %v6538, %v6530
    %v7083 = vpack.c.b16 %v6539, %v6531
    %v7084 = vpack.c.b16 %v6540, %v6532
    %v7085 = vpack.c.b16 %v6541, %v6533
    %v7086 = vpack.c.b16 %v6542, %v6534
    %v7087 = vpack.c.b16 %v6543, %v6535
    %v7088 = vpack.c.b16 %v6544, %v6536
    %v7089 = vpack.c.b16 %v6545, %v6537
    %v7090 = vpack.c.b16 %v6554, %v6546
    %v7091 = vpack.c.b16 %v6555, %v6547
    %v7092 = vpack.c.b16 %v6556, %v6548
    %v7093 = vpack.c.b16 %v6557, %v6549
    %v7094 = vpack.c.b16 %v6558, %v6550
    %v7095 = vpack.c.b16 %v6559, %v6551
    %v7096 = vpack.c.b16 %v6560, %v6552
    %v7097 = vpack.c.b16 %v6561, %v6553
    %v7098 = vpack.c.b16 %v6570, %v6562
    %v7099 = vpack.c.b16 %v6571, %v6563
    %v7100 = vpack.c.b16 %v6572, %v6564
    %v7101 = vpack.c.b16 %v6573, %v6565
    %v7102 = vpack.c.b16 %v6574, %v6566
    %v7103 = vpack.c.b16 %v6575, %v6567
    %v7104 = vpack.c.b16 %v6576, %v6568
    %v7105 = vpack.c.b16 %v6577, %v6569
    %v7106 = vpack.c.b16 %v6586, %v6578
    %v7107 = vpack.c.b16 %v6587, %v6579
    %v7108 = vpack.c.b16 %v6588, %v6580
    %v7109 = vpack.c.b16 %v6589, %v6581
    %v7110 = vpack.c.b16 %v6590, %v6582
    %v7111 = vpack.c.b16 %v6591, %v6583
    %v7112 = vpack.c.b16 %v6592, %v6584
    %v7113 = vpack.c.b16 %v6593, %v6585
    %v7114 = vpack.c.b16 %v6602, %v6594
    %v7115 = vpack.c.b16 %v6603, %v6595
    %v7116 = vpack.c.b16 %v6604, %v6596
    %v7117 = vpack.c.b16 %v6605, %v6597
    %v7118 = vpack.c.b16 %v6606, %v6598
    %v7119 = vpack.c.b16 %v6607, %v6599
    %v7120 = vpack.c.b16 %v6608, %v6600
    %v7121 = vpack.c.b16 %v6609, %v6601
    %7634 = vmatpush.bf16.msra.mxu0 %v6666
    %7635 = vmatpush.bf16.msra.mxu0 %v6658
    %7636 = vmatpush.bf16.msra.mxu0 %v6650
    %7637 = vmatpush.bf16.msra.mxu0 %v6642
    %7638 = vmatpush.bf16.msra.mxu0 %v6634
    %7639 = vmatpush.bf16.msra.mxu0 %v6626
    %7640 = vmatpush.bf16.msra.mxu0 %v6618
    %7641 = vmatpush.bf16.msra.mxu0 %v6610
    %7642 = vmatmul.bf16.gmra.mxu0 %v4536
    %v7643 = vpop.f32.mrf.mxu0
    %v7644 = vadd.f32 %v5058, %v7643
    %v7645 = vpop.f32.mrf.mxu0
    %7646 = vdwg.mxu0
    %7647 = vmatpush.bf16.msra.mxu0 %v6730
    %7648 = vmatpush.bf16.msra.mxu0 %v6722
    %7649 = vmatpush.bf16.msra.mxu0 %v6714
    %7650 = vmatpush.bf16.msra.mxu0 %v6706
    %7651 = vmatpush.bf16.msra.mxu0 %v6698
    %7652 = vmatpush.bf16.msra.mxu0 %v6690
    %7653 = vmatpush.bf16.msra.mxu0 %v6682
    %7654 = vmatpush.bf16.msra.mxu0 %v6674
    %7655 = vmatmul.bf16.gmra.mxu0 %v4537
    %v7656 = vpop.f32.mrf.mxu0
    %v7657 = vadd.f32 %v7644, %v7656
    %v7658 = vpop.f32.mrf.mxu0
    %7659 = vdwg.mxu0
    %7660 = vmatpush.bf16.msra.mxu0 %v6794
    %7661 = vmatpush.bf16.msra.mxu0 %v6786
    %7662 = vmatpush.bf16.msra.mxu0 %v6778
    %7663 = vmatpush.bf16.msra.mxu0 %v6770
    %7664 = vmatpush.bf16.msra.mxu0 %v6762
    %7665 = vmatpush.bf16.msra.mxu0 %v6754
    %7666 = vmatpush.bf16.msra.mxu0 %v6746
    %7667 = vmatpush.bf16.msra.mxu0 %v6738
    %7668 = vmatmul.bf16.gmra.mxu0 %v4538
    %v7669 = vpop.f32.mrf.mxu0
    %v7670 = vadd.f32 %v7657, %v7669
    %v7671 = vpop.f32.mrf.mxu0
    %7672 = vdwg.mxu0
    %7673 = vmatpush.bf16.msra.mxu0 %v6858
    %7674 = vmatpush.bf16.msra.mxu0 %v6850
    %7675 = vmatpush.bf16.msra.mxu0 %v6842
    %7676 = vmatpush.bf16.msra.mxu0 %v6834
    %7677 = vmatpush.bf16.msra.mxu0 %v6826
    %7678 = vmatpush.bf16.msra.mxu0 %v6818
    %7679 = vmatpush.bf16.msra.mxu0 %v6810
    %7680 = vmatpush.bf16.msra.mxu0 %v6802
    %7681 = vmatmul.bf16.gmra.mxu0 %v4539
    %v7682 = vpop.f32.mrf.mxu0
    %v7683 = vadd.f32 %v7670, %v7682
    %v7684 = vpop.f32.mrf.mxu0
    %7685 = vdwg.mxu0
    %7686 = vmatpush.bf16.msra.mxu0 %v6922
    %7687 = vmatpush.bf16.msra.mxu0 %v6914
    %7688 = vmatpush.bf16.msra.mxu0 %v6906
    %7689 = vmatpush.bf16.msra.mxu0 %v6898
    %7690 = vmatpush.bf16.msra.mxu0 %v6890
    %7691 = vmatpush.bf16.msra.mxu0 %v6882
    %7692 = vmatpush.bf16.msra.mxu0 %v6874
    %7693 = vmatpush.bf16.msra.mxu0 %v6866
    %7694 = vmatmul.bf16.gmra.mxu0 %v4540
    %v7695 = vpop.f32.mrf.mxu0
    %v7696 = vadd.f32 %v7683, %v7695
    %v7697 = vpop.f32.mrf.mxu0
    %7698 = vdwg.mxu0
    %7699 = vmatpush.bf16.msra.mxu0 %v6986
    %7700 = vmatpush.bf16.msra.mxu0 %v6978
    %7701 = vmatpush.bf16.msra.mxu0 %v6970
    %7702 = vmatpush.bf16.msra.mxu0 %v6962
    %7703 = vmatpush.bf16.msra.mxu0 %v6954
    %7704 = vmatpush.bf16.msra.mxu0 %v6946
    %7705 = vmatpush.bf16.msra.mxu0 %v6938
    %7706 = vmatpush.bf16.msra.mxu0 %v6930
    %7707 = vmatmul.bf16.gmra.mxu0 %v4541
    %v7708 = vpop.f32.mrf.mxu0
    %v7709 = vadd.f32 %v7696, %v7708
    %v7710 = vpop.f32.mrf.mxu0
    %7711 = vdwg.mxu0
    %7712 = vmatpush.bf16.msra.mxu0 %v7050
    %7713 = vmatpush.bf16.msra.mxu0 %v7042
    %7714 = vmatpush.bf16.msra.mxu0 %v7034
    %7715 = vmatpush.bf16.msra.mxu0 %v7026
    %7716 = vmatpush.bf16.msra.mxu0 %v7018
    %7717 = vmatpush.bf16.msra.mxu0 %v7010
    %7718 = vmatpush.bf16.msra.mxu0 %v7002
    %7719 = vmatpush.bf16.msra.mxu0 %v6994
    %7720 = vmatmul.bf16.gmra.mxu0 %v4542
    %v7721 = vpop.f32.mrf.mxu0
    %v7722 = vadd.f32 %v7709, %v7721
    %v7723 = vpop.f32.mrf.mxu0
    %7724 = vdwg.mxu0
    %7725 = vmatpush.bf16.msra.mxu0 %v7114
    %7726 = vmatpush.bf16.msra.mxu0 %v7106
    %7727 = vmatpush.bf16.msra.mxu0 %v7098
    %7728 = vmatpush.bf16.msra.mxu0 %v7090
    %7729 = vmatpush.bf16.msra.mxu0 %v7082
    %7730 = vmatpush.bf16.msra.mxu0 %v7074
    %7731 = vmatpush.bf16.msra.mxu0 %v7066
    %7732 = vmatpush.bf16.msra.mxu0 %v7058
    %7733 = vmatmul.bf16.gmra.mxu0 %v4543
    %v7734 = vpop.f32.mrf.mxu0
    %v7735 = vadd.f32 %v7722, %v7734
    %v7736 = vpop.f32.mrf.mxu0
    %7737 = vdwg.mxu0
    %7738 = vmatpush.bf16.msra.mxu0 %v6667
    %7739 = vmatpush.bf16.msra.mxu0 %v6659
    %7740 = vmatpush.bf16.msra.mxu0 %v6651
    %7741 = vmatpush.bf16.msra.mxu0 %v6643
    %7742 = vmatpush.bf16.msra.mxu0 %v6635
    %7743 = vmatpush.bf16.msra.mxu0 %v6627
    %7744 = vmatpush.bf16.msra.mxu0 %v6619
    %7745 = vmatpush.bf16.msra.mxu0 %v6611
    %7746 = vmatmul.bf16.gmra.mxu0 %v4536
    %v7747 = vpop.f32.mrf.mxu0
    %v7748 = vadd.f32 %v5059, %v7747
    %v7749 = vpop.f32.mrf.mxu0
    %7750 = vdwg.mxu0
    %7751 = vmatpush.bf16.msra.mxu0 %v6731
    %7752 = vmatpush.bf16.msra.mxu0 %v6723
    %7753 = vmatpush.bf16.msra.mxu0 %v6715
    %7754 = vmatpush.bf16.msra.mxu0 %v6707
    %7755 = vmatpush.bf16.msra.mxu0 %v6699
    %7756 = vmatpush.bf16.msra.mxu0 %v6691
    %7757 = vmatpush.bf16.msra.mxu0 %v6683
    %7758 = vmatpush.bf16.msra.mxu0 %v6675
    %7759 = vmatmul.bf16.gmra.mxu0 %v4537
    %v7760 = vpop.f32.mrf.mxu0
    %v7761 = vadd.f32 %v7748, %v7760
    %v7762 = vpop.f32.mrf.mxu0
    %7763 = vdwg.mxu0
    %7764 = vmatpush.bf16.msra.mxu0 %v6795
    %7765 = vmatpush.bf16.msra.mxu0 %v6787
    %7766 = vmatpush.bf16.msra.mxu0 %v6779
    %7767 = vmatpush.bf16.msra.mxu0 %v6771
    %7768 = vmatpush.bf16.msra.mxu0 %v6763
    %7769 = vmatpush.bf16.msra.mxu0 %v6755
    %7770 = vmatpush.bf16.msra.mxu0 %v6747
    %7771 = vmatpush.bf16.msra.mxu0 %v6739
    %7772 = vmatmul.bf16.gmra.mxu0 %v4538
    %v7773 = vpop.f32.mrf.mxu0
    %v7774 = vadd.f32 %v7761, %v7773
    %v7775 = vpop.f32.mrf.mxu0
    %7776 = vdwg.mxu0
    %7777 = vmatpush.bf16.msra.mxu0 %v6859
    %7778 = vmatpush.bf16.msra.mxu0 %v6851
    %7779 = vmatpush.bf16.msra.mxu0 %v6843
    %7780 = vmatpush.bf16.msra.mxu0 %v6835
    %7781 = vmatpush.bf16.msra.mxu0 %v6827
    %7782 = vmatpush.bf16.msra.mxu0 %v6819
    %7783 = vmatpush.bf16.msra.mxu0 %v6811
    %7784 = vmatpush.bf16.msra.mxu0 %v6803
    %7785 = vmatmul.bf16.gmra.mxu0 %v4539
    %v7786 = vpop.f32.mrf.mxu0
    %v7787 = vadd.f32 %v7774, %v7786
    %v7788 = vpop.f32.mrf.mxu0
    %7789 = vdwg.mxu0
    %7790 = vmatpush.bf16.msra.mxu0 %v6923
    %7791 = vmatpush.bf16.msra.mxu0 %v6915
    %7792 = vmatpush.bf16.msra.mxu0 %v6907
    %7793 = vmatpush.bf16.msra.mxu0 %v6899
    %7794 = vmatpush.bf16.msra.mxu0 %v6891
    %7795 = vmatpush.bf16.msra.mxu0 %v6883
    %7796 = vmatpush.bf16.msra.mxu0 %v6875
    %7797 = vmatpush.bf16.msra.mxu0 %v6867
    %7798 = vmatmul.bf16.gmra.mxu0 %v4540
    %v7799 = vpop.f32.mrf.mxu0
    %v7800 = vadd.f32 %v7787, %v7799
    %v7801 = vpop.f32.mrf.mxu0
    %7802 = vdwg.mxu0
    %7803 = vmatpush.bf16.msra.mxu0 %v6987
    %7804 = vmatpush.bf16.msra.mxu0 %v6979
    %7805 = vmatpush.bf16.msra.mxu0 %v6971
    %7806 = vmatpush.bf16.msra.mxu0 %v6963
    %7807 = vmatpush.bf16.msra.mxu0 %v6955
    %7808 = vmatpush.bf16.msra.mxu0 %v6947
    %7809 = vmatpush.bf16.msra.mxu0 %v6939
    %7810 = vmatpush.bf16.msra.mxu0 %v6931
    %7811 = vmatmul.bf16.gmra.mxu0 %v4541
    %v7812 = vpop.f32.mrf.mxu0
    %v7813 = vadd.f32 %v7800, %v7812
    %v7814 = vpop.f32.mrf.mxu0
    %7815 = vdwg.mxu0
    %7816 = vmatpush.bf16.msra.mxu0 %v7051
    %7817 = vmatpush.bf16.msra.mxu0 %v7043
    %7818 = vmatpush.bf16.msra.mxu0 %v7035
    %7819 = vmatpush.bf16.msra.mxu0 %v7027
    %7820 = vmatpush.bf16.msra.mxu0 %v7019
    %7821 = vmatpush.bf16.msra.mxu0 %v7011
    %7822 = vmatpush.bf16.msra.mxu0 %v7003
    %7823 = vmatpush.bf16.msra.mxu0 %v6995
    %7824 = vmatmul.bf16.gmra.mxu0 %v4542
    %v7825 = vpop.f32.mrf.mxu0
    %v7826 = vadd.f32 %v7813, %v7825
    %v7827 = vpop.f32.mrf.mxu0
    %7828 = vdwg.mxu0
    %7829 = vmatpush.bf16.msra.mxu0 %v7115
    %7830 = vmatpush.bf16.msra.mxu0 %v7107
    %7831 = vmatpush.bf16.msra.mxu0 %v7099
    %7832 = vmatpush.bf16.msra.mxu0 %v7091
    %7833 = vmatpush.bf16.msra.mxu0 %v7083
    %7834 = vmatpush.bf16.msra.mxu0 %v7075
    %7835 = vmatpush.bf16.msra.mxu0 %v7067
    %7836 = vmatpush.bf16.msra.mxu0 %v7059
    %7837 = vmatmul.bf16.gmra.mxu0 %v4543
    %v7838 = vpop.f32.mrf.mxu0
    %v7839 = vadd.f32 %v7826, %v7838
    %v7840 = vpop.f32.mrf.mxu0
    %7841 = vdwg.mxu0
    %7842 = vmatpush.bf16.msra.mxu0 %v6668
    %7843 = vmatpush.bf16.msra.mxu0 %v6660
    %7844 = vmatpush.bf16.msra.mxu0 %v6652
    %7845 = vmatpush.bf16.msra.mxu0 %v6644
    %7846 = vmatpush.bf16.msra.mxu0 %v6636
    %7847 = vmatpush.bf16.msra.mxu0 %v6628
    %7848 = vmatpush.bf16.msra.mxu0 %v6620
    %7849 = vmatpush.bf16.msra.mxu0 %v6612
    %7850 = vmatmul.bf16.gmra.mxu0 %v4536
    %v7851 = vpop.f32.mrf.mxu0
    %v7852 = vadd.f32 %v5060, %v7851
    %v7853 = vpop.f32.mrf.mxu0
    %7854 = vdwg.mxu0
    %7855 = vmatpush.bf16.msra.mxu0 %v6732
    %7856 = vmatpush.bf16.msra.mxu0 %v6724
    %7857 = vmatpush.bf16.msra.mxu0 %v6716
    %7858 = vmatpush.bf16.msra.mxu0 %v6708
    %7859 = vmatpush.bf16.msra.mxu0 %v6700
    %7860 = vmatpush.bf16.msra.mxu0 %v6692
    %7861 = vmatpush.bf16.msra.mxu0 %v6684
    %7862 = vmatpush.bf16.msra.mxu0 %v6676
    %7863 = vmatmul.bf16.gmra.mxu0 %v4537
    %v7864 = vpop.f32.mrf.mxu0
    %v7865 = vadd.f32 %v7852, %v7864
    %v7866 = vpop.f32.mrf.mxu0
    %7867 = vdwg.mxu0
    %7868 = vmatpush.bf16.msra.mxu0 %v6796
    %7869 = vmatpush.bf16.msra.mxu0 %v6788
    %7870 = vmatpush.bf16.msra.mxu0 %v6780
    %7871 = vmatpush.bf16.msra.mxu0 %v6772
    %7872 = vmatpush.bf16.msra.mxu0 %v6764
    %7873 = vmatpush.bf16.msra.mxu0 %v6756
    %7874 = vmatpush.bf16.msra.mxu0 %v6748
    %7875 = vmatpush.bf16.msra.mxu0 %v6740
    %7876 = vmatmul.bf16.gmra.mxu0 %v4538
    %v7877 = vpop.f32.mrf.mxu0
    %v7878 = vadd.f32 %v7865, %v7877
    %v7879 = vpop.f32.mrf.mxu0
    %7880 = vdwg.mxu0
    %7881 = vmatpush.bf16.msra.mxu0 %v6860
    %7882 = vmatpush.bf16.msra.mxu0 %v6852
    %7883 = vmatpush.bf16.msra.mxu0 %v6844
    %7884 = vmatpush.bf16.msra.mxu0 %v6836
    %7885 = vmatpush.bf16.msra.mxu0 %v6828
    %7886 = vmatpush.bf16.msra.mxu0 %v6820
    %7887 = vmatpush.bf16.msra.mxu0 %v6812
    %7888 = vmatpush.bf16.msra.mxu0 %v6804
    %7889 = vmatmul.bf16.gmra.mxu0 %v4539
    %v7890 = vpop.f32.mrf.mxu0
    %v7891 = vadd.f32 %v7878, %v7890
    %v7892 = vpop.f32.mrf.mxu0
    %7893 = vdwg.mxu0
    %7894 = vmatpush.bf16.msra.mxu0 %v6924
    %7895 = vmatpush.bf16.msra.mxu0 %v6916
    %7896 = vmatpush.bf16.msra.mxu0 %v6908
    %7897 = vmatpush.bf16.msra.mxu0 %v6900
    %7898 = vmatpush.bf16.msra.mxu0 %v6892
    %7899 = vmatpush.bf16.msra.mxu0 %v6884
    %7900 = vmatpush.bf16.msra.mxu0 %v6876
    %7901 = vmatpush.bf16.msra.mxu0 %v6868
    %7902 = vmatmul.bf16.gmra.mxu0 %v4540
    %v7903 = vpop.f32.mrf.mxu0
    %v7904 = vadd.f32 %v7891, %v7903
    %v7905 = vpop.f32.mrf.mxu0
    %7906 = vdwg.mxu0
    %7907 = vmatpush.bf16.msra.mxu0 %v6988
    %7908 = vmatpush.bf16.msra.mxu0 %v6980
    %7909 = vmatpush.bf16.msra.mxu0 %v6972
    %7910 = vmatpush.bf16.msra.mxu0 %v6964
    %7911 = vmatpush.bf16.msra.mxu0 %v6956
    %7912 = vmatpush.bf16.msra.mxu0 %v6948
    %7913 = vmatpush.bf16.msra.mxu0 %v6940
    %7914 = vmatpush.bf16.msra.mxu0 %v6932
    %7915 = vmatmul.bf16.gmra.mxu0 %v4541
    %v7916 = vpop.f32.mrf.mxu0
    %v7917 = vadd.f32 %v7904, %v7916
    %v7918 = vpop.f32.mrf.mxu0
    %7919 = vdwg.mxu0
    %7920 = vmatpush.bf16.msra.mxu0 %v7052
    %7921 = vmatpush.bf16.msra.mxu0 %v7044
    %7922 = vmatpush.bf16.msra.mxu0 %v7036
    %7923 = vmatpush.bf16.msra.mxu0 %v7028
    %7924 = vmatpush.bf16.msra.mxu0 %v7020
    %7925 = vmatpush.bf16.msra.mxu0 %v7012
    %7926 = vmatpush.bf16.msra.mxu0 %v7004
    %7927 = vmatpush.bf16.msra.mxu0 %v6996
    %7928 = vmatmul.bf16.gmra.mxu0 %v4542
    %v7929 = vpop.f32.mrf.mxu0
    %v7930 = vadd.f32 %v7917, %v7929
    %v7931 = vpop.f32.mrf.mxu0
    %7932 = vdwg.mxu0
    %7933 = vmatpush.bf16.msra.mxu0 %v7116
    %7934 = vmatpush.bf16.msra.mxu0 %v7108
    %7935 = vmatpush.bf16.msra.mxu0 %v7100
    %7936 = vmatpush.bf16.msra.mxu0 %v7092
    %7937 = vmatpush.bf16.msra.mxu0 %v7084
    %7938 = vmatpush.bf16.msra.mxu0 %v7076
    %7939 = vmatpush.bf16.msra.mxu0 %v7068
    %7940 = vmatpush.bf16.msra.mxu0 %v7060
    %7941 = vmatmul.bf16.gmra.mxu0 %v4543
    %v7942 = vpop.f32.mrf.mxu0
    %v7943 = vadd.f32 %v7930, %v7942
    %v7944 = vpop.f32.mrf.mxu0
    %7945 = vdwg.mxu0
    %7946 = vmatpush.bf16.msra.mxu0 %v6669
    %7947 = vmatpush.bf16.msra.mxu0 %v6661
    %7948 = vmatpush.bf16.msra.mxu0 %v6653
    %7949 = vmatpush.bf16.msra.mxu0 %v6645
    %7950 = vmatpush.bf16.msra.mxu0 %v6637
    %7951 = vmatpush.bf16.msra.mxu0 %v6629
    %7952 = vmatpush.bf16.msra.mxu0 %v6621
    %7953 = vmatpush.bf16.msra.mxu0 %v6613
    %7954 = vmatmul.bf16.gmra.mxu0 %v4536
    %v7955 = vpop.f32.mrf.mxu0
    %v7956 = vadd.f32 %v5061, %v7955
    %v7957 = vpop.f32.mrf.mxu0
    %7958 = vdwg.mxu0
    %7959 = vmatpush.bf16.msra.mxu0 %v6733
    %7960 = vmatpush.bf16.msra.mxu0 %v6725
    %7961 = vmatpush.bf16.msra.mxu0 %v6717
    %7962 = vmatpush.bf16.msra.mxu0 %v6709
    %7963 = vmatpush.bf16.msra.mxu0 %v6701
    %7964 = vmatpush.bf16.msra.mxu0 %v6693
    %7965 = vmatpush.bf16.msra.mxu0 %v6685
    %7966 = vmatpush.bf16.msra.mxu0 %v6677
    %7967 = vmatmul.bf16.gmra.mxu0 %v4537
    %v7968 = vpop.f32.mrf.mxu0
    %v7969 = vadd.f32 %v7956, %v7968
    %v7970 = vpop.f32.mrf.mxu0
    %7971 = vdwg.mxu0
    %7972 = vmatpush.bf16.msra.mxu0 %v6797
    %7973 = vmatpush.bf16.msra.mxu0 %v6789
    %7974 = vmatpush.bf16.msra.mxu0 %v6781
    %7975 = vmatpush.bf16.msra.mxu0 %v6773
    %7976 = vmatpush.bf16.msra.mxu0 %v6765
    %7977 = vmatpush.bf16.msra.mxu0 %v6757
    %7978 = vmatpush.bf16.msra.mxu0 %v6749
    %7979 = vmatpush.bf16.msra.mxu0 %v6741
    %7980 = vmatmul.bf16.gmra.mxu0 %v4538
    %v7981 = vpop.f32.mrf.mxu0
    %v7982 = vadd.f32 %v7969, %v7981
    %v7983 = vpop.f32.mrf.mxu0
    %7984 = vdwg.mxu0
    %7985 = vmatpush.bf16.msra.mxu0 %v6861
    %7986 = vmatpush.bf16.msra.mxu0 %v6853
    %7987 = vmatpush.bf16.msra.mxu0 %v6845
    %7988 = vmatpush.bf16.msra.mxu0 %v6837
    %7989 = vmatpush.bf16.msra.mxu0 %v6829
    %7990 = vmatpush.bf16.msra.mxu0 %v6821
    %7991 = vmatpush.bf16.msra.mxu0 %v6813
    %7992 = vmatpush.bf16.msra.mxu0 %v6805
    %7993 = vmatmul.bf16.gmra.mxu0 %v4539
    %v7994 = vpop.f32.mrf.mxu0
    %v7995 = vadd.f32 %v7982, %v7994
    %v7996 = vpop.f32.mrf.mxu0
    %7997 = vdwg.mxu0
    %7998 = vmatpush.bf16.msra.mxu0 %v6925
    %7999 = vmatpush.bf16.msra.mxu0 %v6917
    %8000 = vmatpush.bf16.msra.mxu0 %v6909
    %8001 = vmatpush.bf16.msra.mxu0 %v6901
    %8002 = vmatpush.bf16.msra.mxu0 %v6893
    %8003 = vmatpush.bf16.msra.mxu0 %v6885
    %8004 = vmatpush.bf16.msra.mxu0 %v6877
    %8005 = vmatpush.bf16.msra.mxu0 %v6869
    %8006 = vmatmul.bf16.gmra.mxu0 %v4540
    %v8007 = vpop.f32.mrf.mxu0
    %v8008 = vadd.f32 %v7995, %v8007
    %v8009 = vpop.f32.mrf.mxu0
    %8010 = vdwg.mxu0
    %8011 = vmatpush.bf16.msra.mxu0 %v6989
    %8012 = vmatpush.bf16.msra.mxu0 %v6981
    %8013 = vmatpush.bf16.msra.mxu0 %v6973
    %8014 = vmatpush.bf16.msra.mxu0 %v6965
    %8015 = vmatpush.bf16.msra.mxu0 %v6957
    %8016 = vmatpush.bf16.msra.mxu0 %v6949
    %8017 = vmatpush.bf16.msra.mxu0 %v6941
    %8018 = vmatpush.bf16.msra.mxu0 %v6933
    %8019 = vmatmul.bf16.gmra.mxu0 %v4541
    %v8020 = vpop.f32.mrf.mxu0
    %v8021 = vadd.f32 %v8008, %v8020
    %v8022 = vpop.f32.mrf.mxu0
    %8023 = vdwg.mxu0
    %8024 = vmatpush.bf16.msra.mxu0 %v7053
    %8025 = vmatpush.bf16.msra.mxu0 %v7045
    %8026 = vmatpush.bf16.msra.mxu0 %v7037
    %8027 = vmatpush.bf16.msra.mxu0 %v7029
    %8028 = vmatpush.bf16.msra.mxu0 %v7021
    %8029 = vmatpush.bf16.msra.mxu0 %v7013
    %8030 = vmatpush.bf16.msra.mxu0 %v7005
    %8031 = vmatpush.bf16.msra.mxu0 %v6997
    %8032 = vmatmul.bf16.gmra.mxu0 %v4542
    %v8033 = vpop.f32.mrf.mxu0
    %v8034 = vadd.f32 %v8021, %v8033
    %v8035 = vpop.f32.mrf.mxu0
    %8036 = vdwg.mxu0
    %8037 = vmatpush.bf16.msra.mxu0 %v7117
    %8038 = vmatpush.bf16.msra.mxu0 %v7109
    %8039 = vmatpush.bf16.msra.mxu0 %v7101
    %8040 = vmatpush.bf16.msra.mxu0 %v7093
    %8041 = vmatpush.bf16.msra.mxu0 %v7085
    %8042 = vmatpush.bf16.msra.mxu0 %v7077
    %8043 = vmatpush.bf16.msra.mxu0 %v7069
    %8044 = vmatpush.bf16.msra.mxu0 %v7061
    %8045 = vmatmul.bf16.gmra.mxu0 %v4543
    %v8046 = vpop.f32.mrf.mxu0
    %v8047 = vadd.f32 %v8034, %v8046
    %v8048 = vpop.f32.mrf.mxu0
    %8049 = vdwg.mxu0
    %8050 = vmatpush.bf16.msra.mxu0 %v6670
    %8051 = vmatpush.bf16.msra.mxu0 %v6662
    %8052 = vmatpush.bf16.msra.mxu0 %v6654
    %8053 = vmatpush.bf16.msra.mxu0 %v6646
    %8054 = vmatpush.bf16.msra.mxu0 %v6638
    %8055 = vmatpush.bf16.msra.mxu0 %v6630
    %8056 = vmatpush.bf16.msra.mxu0 %v6622
    %8057 = vmatpush.bf16.msra.mxu0 %v6614
    %8058 = vmatmul.bf16.gmra.mxu0 %v4536
    %v8059 = vpop.f32.mrf.mxu0
    %v8060 = vadd.f32 %v5062, %v8059
    %v8061 = vpop.f32.mrf.mxu0
    %8062 = vdwg.mxu0
    %8063 = vmatpush.bf16.msra.mxu0 %v6734
    %8064 = vmatpush.bf16.msra.mxu0 %v6726
    %8065 = vmatpush.bf16.msra.mxu0 %v6718
    %8066 = vmatpush.bf16.msra.mxu0 %v6710
    %8067 = vmatpush.bf16.msra.mxu0 %v6702
    %8068 = vmatpush.bf16.msra.mxu0 %v6694
    %8069 = vmatpush.bf16.msra.mxu0 %v6686
    %8070 = vmatpush.bf16.msra.mxu0 %v6678
    %8071 = vmatmul.bf16.gmra.mxu0 %v4537
    %v8072 = vpop.f32.mrf.mxu0
    %v8073 = vadd.f32 %v8060, %v8072
    %v8074 = vpop.f32.mrf.mxu0
    %8075 = vdwg.mxu0
    %8076 = vmatpush.bf16.msra.mxu0 %v6798
    %8077 = vmatpush.bf16.msra.mxu0 %v6790
    %8078 = vmatpush.bf16.msra.mxu0 %v6782
    %8079 = vmatpush.bf16.msra.mxu0 %v6774
    %8080 = vmatpush.bf16.msra.mxu0 %v6766
    %8081 = vmatpush.bf16.msra.mxu0 %v6758
    %8082 = vmatpush.bf16.msra.mxu0 %v6750
    %8083 = vmatpush.bf16.msra.mxu0 %v6742
    %8084 = vmatmul.bf16.gmra.mxu0 %v4538
    %v8085 = vpop.f32.mrf.mxu0
    %v8086 = vadd.f32 %v8073, %v8085
    %v8087 = vpop.f32.mrf.mxu0
    %8088 = vdwg.mxu0
    %8089 = vmatpush.bf16.msra.mxu0 %v6862
    %8090 = vmatpush.bf16.msra.mxu0 %v6854
    %8091 = vmatpush.bf16.msra.mxu0 %v6846
    %8092 = vmatpush.bf16.msra.mxu0 %v6838
    %8093 = vmatpush.bf16.msra.mxu0 %v6830
    %8094 = vmatpush.bf16.msra.mxu0 %v6822
    %8095 = vmatpush.bf16.msra.mxu0 %v6814
    %8096 = vmatpush.bf16.msra.mxu0 %v6806
    %8097 = vmatmul.bf16.gmra.mxu0 %v4539
    %v8098 = vpop.f32.mrf.mxu0
    %v8099 = vadd.f32 %v8086, %v8098
    %v8100 = vpop.f32.mrf.mxu0
    %8101 = vdwg.mxu0
    %8102 = vmatpush.bf16.msra.mxu0 %v6926
    %8103 = vmatpush.bf16.msra.mxu0 %v6918
    %8104 = vmatpush.bf16.msra.mxu0 %v6910
    %8105 = vmatpush.bf16.msra.mxu0 %v6902
    %8106 = vmatpush.bf16.msra.mxu0 %v6894
    %8107 = vmatpush.bf16.msra.mxu0 %v6886
    %8108 = vmatpush.bf16.msra.mxu0 %v6878
    %8109 = vmatpush.bf16.msra.mxu0 %v6870
    %8110 = vmatmul.bf16.gmra.mxu0 %v4540
    %v8111 = vpop.f32.mrf.mxu0
    %v8112 = vadd.f32 %v8099, %v8111
    %v8113 = vpop.f32.mrf.mxu0
    %8114 = vdwg.mxu0
    %8115 = vmatpush.bf16.msra.mxu0 %v6990
    %8116 = vmatpush.bf16.msra.mxu0 %v6982
    %8117 = vmatpush.bf16.msra.mxu0 %v6974
    %8118 = vmatpush.bf16.msra.mxu0 %v6966
    %8119 = vmatpush.bf16.msra.mxu0 %v6958
    %8120 = vmatpush.bf16.msra.mxu0 %v6950
    %8121 = vmatpush.bf16.msra.mxu0 %v6942
    %8122 = vmatpush.bf16.msra.mxu0 %v6934
    %8123 = vmatmul.bf16.gmra.mxu0 %v4541
    %v8124 = vpop.f32.mrf.mxu0
    %v8125 = vadd.f32 %v8112, %v8124
    %v8126 = vpop.f32.mrf.mxu0
    %8127 = vdwg.mxu0
    %8128 = vmatpush.bf16.msra.mxu0 %v7054
    %8129 = vmatpush.bf16.msra.mxu0 %v7046
    %8130 = vmatpush.bf16.msra.mxu0 %v7038
    %8131 = vmatpush.bf16.msra.mxu0 %v7030
    %8132 = vmatpush.bf16.msra.mxu0 %v7022
    %8133 = vmatpush.bf16.msra.mxu0 %v7014
    %8134 = vmatpush.bf16.msra.mxu0 %v7006
    %8135 = vmatpush.bf16.msra.mxu0 %v6998
    %8136 = vmatmul.bf16.gmra.mxu0 %v4542
    %v8137 = vpop.f32.mrf.mxu0
    %v8138 = vadd.f32 %v8125, %v8137
    %v8139 = vpop.f32.mrf.mxu0
    %8140 = vdwg.mxu0
    %8141 = vmatpush.bf16.msra.mxu0 %v7118
    %8142 = vmatpush.bf16.msra.mxu0 %v7110
    %8143 = vmatpush.bf16.msra.mxu0 %v7102
    %8144 = vmatpush.bf16.msra.mxu0 %v7094
    %8145 = vmatpush.bf16.msra.mxu0 %v7086
    %8146 = vmatpush.bf16.msra.mxu0 %v7078
    %8147 = vmatpush.bf16.msra.mxu0 %v7070
    %8148 = vmatpush.bf16.msra.mxu0 %v7062
    %8149 = vmatmul.bf16.gmra.mxu0 %v4543
    %v8150 = vpop.f32.mrf.mxu0
    %v8151 = vadd.f32 %v8138, %v8150
    %v8152 = vpop.f32.mrf.mxu0
    %8153 = vdwg.mxu0
    %8154 = vmatpush.bf16.msra.mxu0 %v6671
    %8155 = vmatpush.bf16.msra.mxu0 %v6663
    %8156 = vmatpush.bf16.msra.mxu0 %v6655
    %8157 = vmatpush.bf16.msra.mxu0 %v6647
    %8158 = vmatpush.bf16.msra.mxu0 %v6639
    %8159 = vmatpush.bf16.msra.mxu0 %v6631
    %8160 = vmatpush.bf16.msra.mxu0 %v6623
    %8161 = vmatpush.bf16.msra.mxu0 %v6615
    %8162 = vmatmul.bf16.gmra.mxu0 %v4536
    %v8163 = vpop.f32.mrf.mxu0
    %v8164 = vadd.f32 %v5063, %v8163
    %v8165 = vpop.f32.mrf.mxu0
    %8166 = vdwg.mxu0
    %8167 = vmatpush.bf16.msra.mxu0 %v6735
    %8168 = vmatpush.bf16.msra.mxu0 %v6727
    %8169 = vmatpush.bf16.msra.mxu0 %v6719
    %8170 = vmatpush.bf16.msra.mxu0 %v6711
    %8171 = vmatpush.bf16.msra.mxu0 %v6703
    %8172 = vmatpush.bf16.msra.mxu0 %v6695
    %8173 = vmatpush.bf16.msra.mxu0 %v6687
    %8174 = vmatpush.bf16.msra.mxu0 %v6679
    %8175 = vmatmul.bf16.gmra.mxu0 %v4537
    %v8176 = vpop.f32.mrf.mxu0
    %v8177 = vadd.f32 %v8164, %v8176
    %v8178 = vpop.f32.mrf.mxu0
    %8179 = vdwg.mxu0
    %8180 = vmatpush.bf16.msra.mxu0 %v6799
    %8181 = vmatpush.bf16.msra.mxu0 %v6791
    %8182 = vmatpush.bf16.msra.mxu0 %v6783
    %8183 = vmatpush.bf16.msra.mxu0 %v6775
    %8184 = vmatpush.bf16.msra.mxu0 %v6767
    %8185 = vmatpush.bf16.msra.mxu0 %v6759
    %8186 = vmatpush.bf16.msra.mxu0 %v6751
    %8187 = vmatpush.bf16.msra.mxu0 %v6743
    %8188 = vmatmul.bf16.gmra.mxu0 %v4538
    %v8189 = vpop.f32.mrf.mxu0
    %v8190 = vadd.f32 %v8177, %v8189
    %v8191 = vpop.f32.mrf.mxu0
    %8192 = vdwg.mxu0
    %8193 = vmatpush.bf16.msra.mxu0 %v6863
    %8194 = vmatpush.bf16.msra.mxu0 %v6855
    %8195 = vmatpush.bf16.msra.mxu0 %v6847
    %8196 = vmatpush.bf16.msra.mxu0 %v6839
    %8197 = vmatpush.bf16.msra.mxu0 %v6831
    %8198 = vmatpush.bf16.msra.mxu0 %v6823
    %8199 = vmatpush.bf16.msra.mxu0 %v6815
    %8200 = vmatpush.bf16.msra.mxu0 %v6807
    %8201 = vmatmul.bf16.gmra.mxu0 %v4539
    %v8202 = vpop.f32.mrf.mxu0
    %v8203 = vadd.f32 %v8190, %v8202
    %v8204 = vpop.f32.mrf.mxu0
    %8205 = vdwg.mxu0
    %8206 = vmatpush.bf16.msra.mxu0 %v6927
    %8207 = vmatpush.bf16.msra.mxu0 %v6919
    %8208 = vmatpush.bf16.msra.mxu0 %v6911
    %8209 = vmatpush.bf16.msra.mxu0 %v6903
    %8210 = vmatpush.bf16.msra.mxu0 %v6895
    %8211 = vmatpush.bf16.msra.mxu0 %v6887
    %8212 = vmatpush.bf16.msra.mxu0 %v6879
    %8213 = vmatpush.bf16.msra.mxu0 %v6871
    %8214 = vmatmul.bf16.gmra.mxu0 %v4540
    %v8215 = vpop.f32.mrf.mxu0
    %v8216 = vadd.f32 %v8203, %v8215
    %v8217 = vpop.f32.mrf.mxu0
    %8218 = vdwg.mxu0
    %8219 = vmatpush.bf16.msra.mxu0 %v6991
    %8220 = vmatpush.bf16.msra.mxu0 %v6983
    %8221 = vmatpush.bf16.msra.mxu0 %v6975
    %8222 = vmatpush.bf16.msra.mxu0 %v6967
    %8223 = vmatpush.bf16.msra.mxu0 %v6959
    %8224 = vmatpush.bf16.msra.mxu0 %v6951
    %8225 = vmatpush.bf16.msra.mxu0 %v6943
    %8226 = vmatpush.bf16.msra.mxu0 %v6935
    %8227 = vmatmul.bf16.gmra.mxu0 %v4541
    %v8228 = vpop.f32.mrf.mxu0
    %v8229 = vadd.f32 %v8216, %v8228
    %v8230 = vpop.f32.mrf.mxu0
    %8231 = vdwg.mxu0
    %8232 = vmatpush.bf16.msra.mxu0 %v7055
    %8233 = vmatpush.bf16.msra.mxu0 %v7047
    %8234 = vmatpush.bf16.msra.mxu0 %v7039
    %8235 = vmatpush.bf16.msra.mxu0 %v7031
    %8236 = vmatpush.bf16.msra.mxu0 %v7023
    %8237 = vmatpush.bf16.msra.mxu0 %v7015
    %8238 = vmatpush.bf16.msra.mxu0 %v7007
    %8239 = vmatpush.bf16.msra.mxu0 %v6999
    %8240 = vmatmul.bf16.gmra.mxu0 %v4542
    %v8241 = vpop.f32.mrf.mxu0
    %v8242 = vadd.f32 %v8229, %v8241
    %v8243 = vpop.f32.mrf.mxu0
    %8244 = vdwg.mxu0
    %8245 = vmatpush.bf16.msra.mxu0 %v7119
    %8246 = vmatpush.bf16.msra.mxu0 %v7111
    %8247 = vmatpush.bf16.msra.mxu0 %v7103
    %8248 = vmatpush.bf16.msra.mxu0 %v7095
    %8249 = vmatpush.bf16.msra.mxu0 %v7087
    %8250 = vmatpush.bf16.msra.mxu0 %v7079
    %8251 = vmatpush.bf16.msra.mxu0 %v7071
    %8252 = vmatpush.bf16.msra.mxu0 %v7063
    %8253 = vmatmul.bf16.gmra.mxu0 %v4543
    %v8254 = vpop.f32.mrf.mxu0
    %v8255 = vadd.f32 %v8242, %v8254
    %v8256 = vpop.f32.mrf.mxu0
    %8257 = vdwg.mxu0
    %8258 = vmatpush.bf16.msra.mxu0 %v6672
    %8259 = vmatpush.bf16.msra.mxu0 %v6664
    %8260 = vmatpush.bf16.msra.mxu0 %v6656
    %8261 = vmatpush.bf16.msra.mxu0 %v6648
    %8262 = vmatpush.bf16.msra.mxu0 %v6640
    %8263 = vmatpush.bf16.msra.mxu0 %v6632
    %8264 = vmatpush.bf16.msra.mxu0 %v6624
    %8265 = vmatpush.bf16.msra.mxu0 %v6616
    %8266 = vmatmul.bf16.gmra.mxu0 %v4536
    %v8267 = vpop.f32.mrf.mxu0
    %v8268 = vadd.f32 %v5064, %v8267
    %v8269 = vpop.f32.mrf.mxu0
    %8270 = vdwg.mxu0
    %8271 = vmatpush.bf16.msra.mxu0 %v6736
    %8272 = vmatpush.bf16.msra.mxu0 %v6728
    %8273 = vmatpush.bf16.msra.mxu0 %v6720
    %8274 = vmatpush.bf16.msra.mxu0 %v6712
    %8275 = vmatpush.bf16.msra.mxu0 %v6704
    %8276 = vmatpush.bf16.msra.mxu0 %v6696
    %8277 = vmatpush.bf16.msra.mxu0 %v6688
    %8278 = vmatpush.bf16.msra.mxu0 %v6680
    %8279 = vmatmul.bf16.gmra.mxu0 %v4537
    %v8280 = vpop.f32.mrf.mxu0
    %v8281 = vadd.f32 %v8268, %v8280
    %v8282 = vpop.f32.mrf.mxu0
    %8283 = vdwg.mxu0
    %8284 = vmatpush.bf16.msra.mxu0 %v6800
    %8285 = vmatpush.bf16.msra.mxu0 %v6792
    %8286 = vmatpush.bf16.msra.mxu0 %v6784
    %8287 = vmatpush.bf16.msra.mxu0 %v6776
    %8288 = vmatpush.bf16.msra.mxu0 %v6768
    %8289 = vmatpush.bf16.msra.mxu0 %v6760
    %8290 = vmatpush.bf16.msra.mxu0 %v6752
    %8291 = vmatpush.bf16.msra.mxu0 %v6744
    %8292 = vmatmul.bf16.gmra.mxu0 %v4538
    %v8293 = vpop.f32.mrf.mxu0
    %v8294 = vadd.f32 %v8281, %v8293
    %v8295 = vpop.f32.mrf.mxu0
    %8296 = vdwg.mxu0
    %8297 = vmatpush.bf16.msra.mxu0 %v6864
    %8298 = vmatpush.bf16.msra.mxu0 %v6856
    %8299 = vmatpush.bf16.msra.mxu0 %v6848
    %8300 = vmatpush.bf16.msra.mxu0 %v6840
    %8301 = vmatpush.bf16.msra.mxu0 %v6832
    %8302 = vmatpush.bf16.msra.mxu0 %v6824
    %8303 = vmatpush.bf16.msra.mxu0 %v6816
    %8304 = vmatpush.bf16.msra.mxu0 %v6808
    %8305 = vmatmul.bf16.gmra.mxu0 %v4539
    %v8306 = vpop.f32.mrf.mxu0
    %v8307 = vadd.f32 %v8294, %v8306
    %v8308 = vpop.f32.mrf.mxu0
    %8309 = vdwg.mxu0
    %8310 = vmatpush.bf16.msra.mxu0 %v6928
    %8311 = vmatpush.bf16.msra.mxu0 %v6920
    %8312 = vmatpush.bf16.msra.mxu0 %v6912
    %8313 = vmatpush.bf16.msra.mxu0 %v6904
    %8314 = vmatpush.bf16.msra.mxu0 %v6896
    %8315 = vmatpush.bf16.msra.mxu0 %v6888
    %8316 = vmatpush.bf16.msra.mxu0 %v6880
    %8317 = vmatpush.bf16.msra.mxu0 %v6872
    %8318 = vmatmul.bf16.gmra.mxu0 %v4540
    %v8319 = vpop.f32.mrf.mxu0
    %v8320 = vadd.f32 %v8307, %v8319
    %v8321 = vpop.f32.mrf.mxu0
    %8322 = vdwg.mxu0
    %8323 = vmatpush.bf16.msra.mxu0 %v6992
    %8324 = vmatpush.bf16.msra.mxu0 %v6984
    %8325 = vmatpush.bf16.msra.mxu0 %v6976
    %8326 = vmatpush.bf16.msra.mxu0 %v6968
    %8327 = vmatpush.bf16.msra.mxu0 %v6960
    %8328 = vmatpush.bf16.msra.mxu0 %v6952
    %8329 = vmatpush.bf16.msra.mxu0 %v6944
    %8330 = vmatpush.bf16.msra.mxu0 %v6936
    %8331 = vmatmul.bf16.gmra.mxu0 %v4541
    %v8332 = vpop.f32.mrf.mxu0
    %v8333 = vadd.f32 %v8320, %v8332
    %v8334 = vpop.f32.mrf.mxu0
    %8335 = vdwg.mxu0
    %8336 = vmatpush.bf16.msra.mxu0 %v7056
    %8337 = vmatpush.bf16.msra.mxu0 %v7048
    %8338 = vmatpush.bf16.msra.mxu0 %v7040
    %8339 = vmatpush.bf16.msra.mxu0 %v7032
    %8340 = vmatpush.bf16.msra.mxu0 %v7024
    %8341 = vmatpush.bf16.msra.mxu0 %v7016
    %8342 = vmatpush.bf16.msra.mxu0 %v7008
    %8343 = vmatpush.bf16.msra.mxu0 %v7000
    %8344 = vmatmul.bf16.gmra.mxu0 %v4542
    %v8345 = vpop.f32.mrf.mxu0
    %v8346 = vadd.f32 %v8333, %v8345
    %v8347 = vpop.f32.mrf.mxu0
    %8348 = vdwg.mxu0
    %8349 = vmatpush.bf16.msra.mxu0 %v7120
    %8350 = vmatpush.bf16.msra.mxu0 %v7112
    %8351 = vmatpush.bf16.msra.mxu0 %v7104
    %8352 = vmatpush.bf16.msra.mxu0 %v7096
    %8353 = vmatpush.bf16.msra.mxu0 %v7088
    %8354 = vmatpush.bf16.msra.mxu0 %v7080
    %8355 = vmatpush.bf16.msra.mxu0 %v7072
    %8356 = vmatpush.bf16.msra.mxu0 %v7064
    %8357 = vmatmul.bf16.gmra.mxu0 %v4543
    %v8358 = vpop.f32.mrf.mxu0
    %v8359 = vadd.f32 %v8346, %v8358
    %v8360 = vpop.f32.mrf.mxu0
    %8361 = vdwg.mxu0
    %8362 = vmatpush.bf16.msra.mxu0 %v6673
    %8363 = vmatpush.bf16.msra.mxu0 %v6665
    %8364 = vmatpush.bf16.msra.mxu0 %v6657
    %8365 = vmatpush.bf16.msra.mxu0 %v6649
    %8366 = vmatpush.bf16.msra.mxu0 %v6641
    %8367 = vmatpush.bf16.msra.mxu0 %v6633
    %8368 = vmatpush.bf16.msra.mxu0 %v6625
    %8369 = vmatpush.bf16.msra.mxu0 %v6617
    %8370 = vmatmul.bf16.gmra.mxu0 %v4536
    %v8371 = vpop.f32.mrf.mxu0
    %v8372 = vadd.f32 %v5065, %v8371
    %v8373 = vpop.f32.mrf.mxu0
    %8374 = vdwg.mxu0
    %8375 = vmatpush.bf16.msra.mxu0 %v6737
    %8376 = vmatpush.bf16.msra.mxu0 %v6729
    %8377 = vmatpush.bf16.msra.mxu0 %v6721
    %8378 = vmatpush.bf16.msra.mxu0 %v6713
    %8379 = vmatpush.bf16.msra.mxu0 %v6705
    %8380 = vmatpush.bf16.msra.mxu0 %v6697
    %8381 = vmatpush.bf16.msra.mxu0 %v6689
    %8382 = vmatpush.bf16.msra.mxu0 %v6681
    %8383 = vmatmul.bf16.gmra.mxu0 %v4537
    %v8384 = vpop.f32.mrf.mxu0
    %v8385 = vadd.f32 %v8372, %v8384
    %v8386 = vpop.f32.mrf.mxu0
    %8387 = vdwg.mxu0
    %8388 = vmatpush.bf16.msra.mxu0 %v6801
    %8389 = vmatpush.bf16.msra.mxu0 %v6793
    %8390 = vmatpush.bf16.msra.mxu0 %v6785
    %8391 = vmatpush.bf16.msra.mxu0 %v6777
    %8392 = vmatpush.bf16.msra.mxu0 %v6769
    %8393 = vmatpush.bf16.msra.mxu0 %v6761
    %8394 = vmatpush.bf16.msra.mxu0 %v6753
    %8395 = vmatpush.bf16.msra.mxu0 %v6745
    %8396 = vmatmul.bf16.gmra.mxu0 %v4538
    %v8397 = vpop.f32.mrf.mxu0
    %v8398 = vadd.f32 %v8385, %v8397
    %v8399 = vpop.f32.mrf.mxu0
    %8400 = vdwg.mxu0
    %8401 = vmatpush.bf16.msra.mxu0 %v6865
    %8402 = vmatpush.bf16.msra.mxu0 %v6857
    %8403 = vmatpush.bf16.msra.mxu0 %v6849
    %8404 = vmatpush.bf16.msra.mxu0 %v6841
    %8405 = vmatpush.bf16.msra.mxu0 %v6833
    %8406 = vmatpush.bf16.msra.mxu0 %v6825
    %8407 = vmatpush.bf16.msra.mxu0 %v6817
    %8408 = vmatpush.bf16.msra.mxu0 %v6809
    %8409 = vmatmul.bf16.gmra.mxu0 %v4539
    %v8410 = vpop.f32.mrf.mxu0
    %v8411 = vadd.f32 %v8398, %v8410
    %v8412 = vpop.f32.mrf.mxu0
    %8413 = vdwg.mxu0
    %8414 = vmatpush.bf16.msra.mxu0 %v6929
    %8415 = vmatpush.bf16.msra.mxu0 %v6921
    %8416 = vmatpush.bf16.msra.mxu0 %v6913
    %8417 = vmatpush.bf16.msra.mxu0 %v6905
    %8418 = vmatpush.bf16.msra.mxu0 %v6897
    %8419 = vmatpush.bf16.msra.mxu0 %v6889
    %8420 = vmatpush.bf16.msra.mxu0 %v6881
    %8421 = vmatpush.bf16.msra.mxu0 %v6873
    %8422 = vmatmul.bf16.gmra.mxu0 %v4540
    %v8423 = vpop.f32.mrf.mxu0
    %v8424 = vadd.f32 %v8411, %v8423
    %v8425 = vpop.f32.mrf.mxu0
    %8426 = vdwg.mxu0
    %8427 = vmatpush.bf16.msra.mxu0 %v6993
    %8428 = vmatpush.bf16.msra.mxu0 %v6985
    %8429 = vmatpush.bf16.msra.mxu0 %v6977
    %8430 = vmatpush.bf16.msra.mxu0 %v6969
    %8431 = vmatpush.bf16.msra.mxu0 %v6961
    %8432 = vmatpush.bf16.msra.mxu0 %v6953
    %8433 = vmatpush.bf16.msra.mxu0 %v6945
    %8434 = vmatpush.bf16.msra.mxu0 %v6937
    %8435 = vmatmul.bf16.gmra.mxu0 %v4541
    %v8436 = vpop.f32.mrf.mxu0
    %v8437 = vadd.f32 %v8424, %v8436
    %v8438 = vpop.f32.mrf.mxu0
    %8439 = vdwg.mxu0
    %8440 = vmatpush.bf16.msra.mxu0 %v7057
    %8441 = vmatpush.bf16.msra.mxu0 %v7049
    %8442 = vmatpush.bf16.msra.mxu0 %v7041
    %8443 = vmatpush.bf16.msra.mxu0 %v7033
    %8444 = vmatpush.bf16.msra.mxu0 %v7025
    %8445 = vmatpush.bf16.msra.mxu0 %v7017
    %8446 = vmatpush.bf16.msra.mxu0 %v7009
    %8447 = vmatpush.bf16.msra.mxu0 %v7001
    %8448 = vmatmul.bf16.gmra.mxu0 %v4542
    %v8449 = vpop.f32.mrf.mxu0
    %v8450 = vadd.f32 %v8437, %v8449
    %v8451 = vpop.f32.mrf.mxu0
    %8452 = vdwg.mxu0
    %8453 = vmatpush.bf16.msra.mxu0 %v7121
    %8454 = vmatpush.bf16.msra.mxu0 %v7113
    %8455 = vmatpush.bf16.msra.mxu0 %v7105
    %8456 = vmatpush.bf16.msra.mxu0 %v7097
    %8457 = vmatpush.bf16.msra.mxu0 %v7089
    %8458 = vmatpush.bf16.msra.mxu0 %v7081
    %8459 = vmatpush.bf16.msra.mxu0 %v7073
    %8460 = vmatpush.bf16.msra.mxu0 %v7065
    %8461 = vmatmul.bf16.gmra.mxu0 %v4543
    %v8462 = vpop.f32.mrf.mxu0
    %v8463 = vadd.f32 %v8450, %v8462
    %v8464 = vpop.f32.mrf.mxu0
    %8465 = vdwg.mxu0
    %v8466 = vld [vmem:[#allocation15] sm:$0xff]
    %v8467 = vld [vmem:[#allocation16] sm:$0xff]
    %v8468 = vadd.f32 %v7735, %v7839
    %v8469 = vadd.f32 %v8468, %v7943
    %v8470 = vadd.f32 %v8469, %v8047
    %v8471 = vadd.f32 %v8470, %v8151
    %v8472 = vadd.f32 %v8471, %v8255
    %v8473 = vadd.f32 %v8472, %v8359
    %v8474 = vadd.f32 %v8473, %v8463
    %8475 = vadd.xlane.f32.xlu0 %v8474
    %v8476 = vpop.xlane.xlu0 %8475
    %v8477 = vmul.f32 %v8476, %v4431
    %v8478 = vsub.f32 %v7735, %v8477
    %v8479 = vsub.f32 %v7839, %v8477
    %v8480 = vsub.f32 %v7943, %v8477
    %v8481 = vsub.f32 %v8047, %v8477
    %v8482 = vsub.f32 %v8151, %v8477
    %v8483 = vsub.f32 %v8255, %v8477
    %v8484 = vsub.f32 %v8359, %v8477
    %v8485 = vsub.f32 %v8463, %v8477
    %v8486 = vmul.f32 %v8478, %v8478
    %v8487 = vmul.f32 %v8479, %v8479
    %v8488 = vmul.f32 %v8480, %v8480
    %v8489 = vmul.f32 %v8481, %v8481
    %v8490 = vmul.f32 %v8482, %v8482
    %v8491 = vmul.f32 %v8483, %v8483
    %v8492 = vmul.f32 %v8484, %v8484
    %v8493 = vmul.f32 %v8485, %v8485
    %v8494 = vadd.f32 %v8486, %v8487
    %v8495 = vadd.f32 %v8494, %v8488
    %v8496 = vadd.f32 %v8495, %v8489
    %v8497 = vadd.f32 %v8496, %v8490
    %v8498 = vadd.f32 %v8497, %v8491
    %v8499 = vadd.f32 %v8498, %v8492
    %v8500 = vadd.f32 %v8499, %v8493
    %8501 = vadd.xlane.f32.xlu0 %v8500
    %v8502 = vpop.xlane.xlu0 %8501
    %v8503 = vmul.f32 %v8502, %v4431
    %v8504 = vadd.f32 %v8503, 1e-05
    %v8505 = vrsqrt.pop %v8504
    %v8506 = vmul.f32 %v8505, %v8504
    %v8507 = vmul.f32 %v8506, %v8505
    %v8508 = vmul.f32 0.5, %v8507
    %v8509 = vsub.f32 1.5, %v8508
    %v8510 = vmul.f32 %v8505, %v8509
    %vm8511 = vweird.f32 %v8504
    %vm8512 = vweird.f32 %v8505
    %vm8513 = vmor %vm8511, %vm8512
    %v8514 = vsel %vm8513, %v8505, %v8510
    %v8515 = vmul.f32 %v8478, %v8514
    %v8516 = vmul.f32 %v8479, %v8514
    %v8517 = vmul.f32 %v8480, %v8514
    %v8518 = vmul.f32 %v8481, %v8514
    %v8519 = vmul.f32 %v8482, %v8514
    %v8520 = vmul.f32 %v8483, %v8514
    %v8521 = vmul.f32 %v8484, %v8514
    %v8522 = vmul.f32 %v8485, %v8514
    %v8524 = vperm.slane %v8466, 0
    %v8525 = vperm.slane %v8466, 1
    %v8526 = vperm.slane %v8466, 2
    %v8527 = vperm.slane %v8466, 3
    %v8528 = vperm.slane %v8466, 4
    %v8529 = vperm.slane %v8466, 5
    %v8530 = vperm.slane %v8466, 6
    %v8531 = vperm.slane %v8466, 7
    %v8540 = vmul.f32 %v8515, %v8524
    %v8541 = vmul.f32 %v8516, %v8525
    %v8542 = vmul.f32 %v8517, %v8526
    %v8543 = vmul.f32 %v8518, %v8527
    %v8544 = vmul.f32 %v8519, %v8528
    %v8545 = vmul.f32 %v8520, %v8529
    %v8546 = vmul.f32 %v8521, %v8530
    %v8547 = vmul.f32 %v8522, %v8531
    %v8549 = vperm.slane %v8467, 0
    %v8550 = vperm.slane %v8467, 1
    %v8551 = vperm.slane %v8467, 2
    %v8552 = vperm.slane %v8467, 3
    %v8553 = vperm.slane %v8467, 4
    %v8554 = vperm.slane %v8467, 5
    %v8555 = vperm.slane %v8467, 6
    %v8556 = vperm.slane %v8467, 7
    %v8565 = vadd.f32 %v8540, %v8549
    %v8566 = vadd.f32 %v8541, %v8550
    %v8567 = vadd.f32 %v8542, %v8551
    %v8568 = vadd.f32 %v8543, %v8552
    %v8569 = vadd.f32 %v8544, %v8553
    %v8570 = vadd.f32 %v8545, %v8554
    %v8571 = vadd.f32 %v8546, %v8555
    %v8572 = vadd.f32 %v8547, %v8556
    %v8573 = vadd.f32 %v476, %v8565
    %v8574 = vadd.f32 %v477, %v8566
    %v8575 = vadd.f32 %v478, %v8567
    %v8576 = vadd.f32 %v479, %v8568
    %v8577 = vadd.f32 %v480, %v8569
    %v8578 = vadd.f32 %v481, %v8570
    %v8579 = vadd.f32 %v482, %v8571
    %v8580 = vadd.f32 %v483, %v8572
    %v8581 = vmax.f32 %v8573, 0.0
    %v8582 = vmax.f32 %v8574, 0.0
    %v8583 = vmax.f32 %v8575, 0.0
    %v8584 = vmax.f32 %v8576, 0.0
    %v8585 = vmax.f32 %v8577, 0.0
    %v8586 = vmax.f32 %v8578, 0.0
    %v8587 = vmax.f32 %v8579, 0.0
    %v8588 = vmax.f32 %v8580, 0.0
    %v8589 = vpack.c.bf16 %v8581, %v8581
    %v8590 = vpack.c.bf16 %v8582, %v8582
    %v8591 = vpack.c.bf16 %v8583, %v8583
    %v8592 = vpack.c.bf16 %v8584, %v8584
    %v8593 = vpack.c.bf16 %v8585, %v8585
    %v8594 = vpack.c.bf16 %v8586, %v8586
    %v8595 = vpack.c.bf16 %v8587, %v8587
    %v8596 = vpack.c.bf16 %v8588, %v8588
    %v8597 = vld [vmem:[%s11] sm:$0xf]
    %v8598 = vld [vmem:[%s11 + $0x4] sm:$0xf]
    %v8599 = vld [vmem:[%s11 + $0x8] sm:$0xf]
    %v8600 = vld [vmem:[%s11 + $0xc] sm:$0xf]
    %v8601 = vld [vmem:[%s11 + $0x10] sm:$0xf]
    %v8602 = vld [vmem:[%s11 + $0x14] sm:$0xf]
    %v8603 = vld [vmem:[%s11 + $0x18] sm:$0xf]
    %v8604 = vld [vmem:[%s11 + $0x1c] sm:$0xf]
    %v8605 = vld [vmem:[%s11 + $0x20] sm:$0xf]
    %v8606 = vld [vmem:[%s11 + $0x24] sm:$0xf]
    %v8607 = vld [vmem:[%s11 + $0x28] sm:$0xf]
    %v8608 = vld [vmem:[%s11 + $0x2c] sm:$0xf]
    %v8609 = vld [vmem:[%s11 + $0x30] sm:$0xf]
    %v8610 = vld [vmem:[%s11 + $0x34] sm:$0xf]
    %v8611 = vld [vmem:[%s11 + $0x38] sm:$0xf]
    %v8612 = vld [vmem:[%s11 + $0x3c] sm:$0xf]
    %v8613 = vld [vmem:[%s11 + $0x40] sm:$0xf]
    %v8614 = vld [vmem:[%s11 + $0x44] sm:$0xf]
    %v8615 = vld [vmem:[%s11 + $0x48] sm:$0xf]
    %v8616 = vld [vmem:[%s11 + $0x4c] sm:$0xf]
    %v8617 = vld [vmem:[%s11 + $0x50] sm:$0xf]
    %v8618 = vld [vmem:[%s11 + $0x54] sm:$0xf]
    %v8619 = vld [vmem:[%s11 + $0x58] sm:$0xf]
    %v8620 = vld [vmem:[%s11 + $0x5c] sm:$0xf]
    %v8621 = vld [vmem:[%s11 + $0x60] sm:$0xf]
    %v8622 = vld [vmem:[%s11 + $0x64] sm:$0xf]
    %v8623 = vld [vmem:[%s11 + $0x68] sm:$0xf]
    %v8624 = vld [vmem:[%s11 + $0x6c] sm:$0xf]
    %v8625 = vld [vmem:[%s11 + $0x70] sm:$0xf]
    %v8626 = vld [vmem:[%s11 + $0x74] sm:$0xf]
    %v8627 = vld [vmem:[%s11 + $0x78] sm:$0xf]
    %v8628 = vld [vmem:[%s11 + $0x7c] sm:$0xf]
    %v8629 = vld [vmem:[%s11 + $0x80] sm:$0xf]
    %v8630 = vld [vmem:[%s11 + $0x84] sm:$0xf]
    %v8631 = vld [vmem:[%s11 + $0x88] sm:$0xf]
    %v8632 = vld [vmem:[%s11 + $0x8c] sm:$0xf]
    %v8633 = vld [vmem:[%s11 + $0x90] sm:$0xf]
    %v8634 = vld [vmem:[%s11 + $0x94] sm:$0xf]
    %v8635 = vld [vmem:[%s11 + $0x98] sm:$0xf]
    %v8636 = vld [vmem:[%s11 + $0x9c] sm:$0xf]
    %v8637 = vld [vmem:[%s11 + $0xa0] sm:$0xf]
    %v8638 = vld [vmem:[%s11 + $0xa4] sm:$0xf]
    %v8639 = vld [vmem:[%s11 + $0xa8] sm:$0xf]
    %v8640 = vld [vmem:[%s11 + $0xac] sm:$0xf]
    %v8641 = vld [vmem:[%s11 + $0xb0] sm:$0xf]
    %v8642 = vld [vmem:[%s11 + $0xb4] sm:$0xf]
    %v8643 = vld [vmem:[%s11 + $0xb8] sm:$0xf]
    %v8644 = vld [vmem:[%s11 + $0xbc] sm:$0xf]
    %v8645 = vld [vmem:[%s11 + $0xc0] sm:$0xf]
    %v8646 = vld [vmem:[%s11 + $0xc4] sm:$0xf]
    %v8647 = vld [vmem:[%s11 + $0xc8] sm:$0xf]
    %v8648 = vld [vmem:[%s11 + $0xcc] sm:$0xf]
    %v8649 = vld [vmem:[%s11 + $0xd0] sm:$0xf]
    %v8650 = vld [vmem:[%s11 + $0xd4] sm:$0xf]
    %v8651 = vld [vmem:[%s11 + $0xd8] sm:$0xf]
    %v8652 = vld [vmem:[%s11 + $0xdc] sm:$0xf]
    %v8653 = vld [vmem:[%s11 + $0xe0] sm:$0xf]
    %v8654 = vld [vmem:[%s11 + $0xe4] sm:$0xf]
    %v8655 = vld [vmem:[%s11 + $0xe8] sm:$0xf]
    %v8656 = vld [vmem:[%s11 + $0xec] sm:$0xf]
    %v8657 = vld [vmem:[%s11 + $0xf0] sm:$0xf]
    %v8658 = vld [vmem:[%s11 + $0xf4] sm:$0xf]
    %v8659 = vld [vmem:[%s11 + $0xf8] sm:$0xf]
    %v8660 = vld [vmem:[%s11 + $0xfc] sm:$0xf]
    %v8661 = vld [vmem:[%s11 + $0x100] sm:$0xf]
    %v8662 = vld [vmem:[%s11 + $0x104] sm:$0xf]
    %v8663 = vld [vmem:[%s11 + $0x108] sm:$0xf]
    %v8664 = vld [vmem:[%s11 + $0x10c] sm:$0xf]
    %v8665 = vld [vmem:[%s11 + $0x110] sm:$0xf]
    %v8666 = vld [vmem:[%s11 + $0x114] sm:$0xf]
    %v8667 = vld [vmem:[%s11 + $0x118] sm:$0xf]
    %v8668 = vld [vmem:[%s11 + $0x11c] sm:$0xf]
    %v8669 = vld [vmem:[%s11 + $0x120] sm:$0xf]
    %v8670 = vld [vmem:[%s11 + $0x124] sm:$0xf]
    %v8671 = vld [vmem:[%s11 + $0x128] sm:$0xf]
    %v8672 = vld [vmem:[%s11 + $0x12c] sm:$0xf]
    %v8673 = vld [vmem:[%s11 + $0x130] sm:$0xf]
    %v8674 = vld [vmem:[%s11 + $0x134] sm:$0xf]
    %v8675 = vld [vmem:[%s11 + $0x138] sm:$0xf]
    %v8676 = vld [vmem:[%s11 + $0x13c] sm:$0xf]
    %v8677 = vld [vmem:[%s11 + $0x140] sm:$0xf]
    %v8678 = vld [vmem:[%s11 + $0x144] sm:$0xf]
    %v8679 = vld [vmem:[%s11 + $0x148] sm:$0xf]
    %v8680 = vld [vmem:[%s11 + $0x14c] sm:$0xf]
    %v8681 = vld [vmem:[%s11 + $0x150] sm:$0xf]
    %v8682 = vld [vmem:[%s11 + $0x154] sm:$0xf]
    %v8683 = vld [vmem:[%s11 + $0x158] sm:$0xf]
    %v8684 = vld [vmem:[%s11 + $0x15c] sm:$0xf]
    %v8685 = vld [vmem:[%s11 + $0x160] sm:$0xf]
    %v8686 = vld [vmem:[%s11 + $0x164] sm:$0xf]
    %v8687 = vld [vmem:[%s11 + $0x168] sm:$0xf]
    %v8688 = vld [vmem:[%s11 + $0x16c] sm:$0xf]
    %v8689 = vld [vmem:[%s11 + $0x170] sm:$0xf]
    %v8690 = vld [vmem:[%s11 + $0x174] sm:$0xf]
    %v8691 = vld [vmem:[%s11 + $0x178] sm:$0xf]
    %v8692 = vld [vmem:[%s11 + $0x17c] sm:$0xf]
    %v8693 = vld [vmem:[%s11 + $0x180] sm:$0xf]
    %v8694 = vld [vmem:[%s11 + $0x184] sm:$0xf]
    %v8695 = vld [vmem:[%s11 + $0x188] sm:$0xf]
    %v8696 = vld [vmem:[%s11 + $0x18c] sm:$0xf]
    %v8697 = vld [vmem:[%s11 + $0x190] sm:$0xf]
    %v8698 = vld [vmem:[%s11 + $0x194] sm:$0xf]
    %v8699 = vld [vmem:[%s11 + $0x198] sm:$0xf]
    %v8700 = vld [vmem:[%s11 + $0x19c] sm:$0xf]
    %v8701 = vld [vmem:[%s11 + $0x1a0] sm:$0xf]
    %v8702 = vld [vmem:[%s11 + $0x1a4] sm:$0xf]
    %v8703 = vld [vmem:[%s11 + $0x1a8] sm:$0xf]
    %v8704 = vld [vmem:[%s11 + $0x1ac] sm:$0xf]
    %v8705 = vld [vmem:[%s11 + $0x1b0] sm:$0xf]
    %v8706 = vld [vmem:[%s11 + $0x1b4] sm:$0xf]
    %v8707 = vld [vmem:[%s11 + $0x1b8] sm:$0xf]
    %v8708 = vld [vmem:[%s11 + $0x1bc] sm:$0xf]
    %v8709 = vld [vmem:[%s11 + $0x1c0] sm:$0xf]
    %v8710 = vld [vmem:[%s11 + $0x1c4] sm:$0xf]
    %v8711 = vld [vmem:[%s11 + $0x1c8] sm:$0xf]
    %v8712 = vld [vmem:[%s11 + $0x1cc] sm:$0xf]
    %v8713 = vld [vmem:[%s11 + $0x1d0] sm:$0xf]
    %v8714 = vld [vmem:[%s11 + $0x1d4] sm:$0xf]
    %v8715 = vld [vmem:[%s11 + $0x1d8] sm:$0xf]
    %v8716 = vld [vmem:[%s11 + $0x1dc] sm:$0xf]
    %v8717 = vld [vmem:[%s11 + $0x1e0] sm:$0xf]
    %v8718 = vld [vmem:[%s11 + $0x1e4] sm:$0xf]
    %v8719 = vld [vmem:[%s11 + $0x1e8] sm:$0xf]
    %v8720 = vld [vmem:[%s11 + $0x1ec] sm:$0xf]
    %v8721 = vld [vmem:[%s11 + $0x1f0] sm:$0xf]
    %v8722 = vld [vmem:[%s11 + $0x1f4] sm:$0xf]
    %v8723 = vld [vmem:[%s11 + $0x1f8] sm:$0xf]
    %v8724 = vld [vmem:[%s11 + $0x1fc] sm:$0xf]
    %v8725 = vld [vmem:[#allocation18] sm:$0x1]
    %v8727 = vperm.slane %v8725, 0
    %v8857 = vunpack.c.l.b16 %v8597
    %v8858 = vunpack.c.l.b16 %v8598
    %v8859 = vunpack.c.l.b16 %v8599
    %v8860 = vunpack.c.l.b16 %v8600
    %v8861 = vunpack.c.l.b16 %v8601
    %v8862 = vunpack.c.l.b16 %v8602
    %v8863 = vunpack.c.l.b16 %v8603
    %v8864 = vunpack.c.l.b16 %v8604
    %v8865 = vunpack.c.l.b16 %v8605
    %v8866 = vunpack.c.l.b16 %v8606
    %v8867 = vunpack.c.l.b16 %v8607
    %v8868 = vunpack.c.l.b16 %v8608
    %v8869 = vunpack.c.l.b16 %v8609
    %v8870 = vunpack.c.l.b16 %v8610
    %v8871 = vunpack.c.l.b16 %v8611
    %v8872 = vunpack.c.l.b16 %v8612
    %v8873 = vunpack.c.l.b16 %v8613
    %v8874 = vunpack.c.l.b16 %v8614
    %v8875 = vunpack.c.l.b16 %v8615
    %v8876 = vunpack.c.l.b16 %v8616
    %v8877 = vunpack.c.l.b16 %v8617
    %v8878 = vunpack.c.l.b16 %v8618
    %v8879 = vunpack.c.l.b16 %v8619
    %v8880 = vunpack.c.l.b16 %v8620
    %v8881 = vunpack.c.l.b16 %v8621
    %v8882 = vunpack.c.l.b16 %v8622
    %v8883 = vunpack.c.l.b16 %v8623
    %v8884 = vunpack.c.l.b16 %v8624
    %v8885 = vunpack.c.l.b16 %v8625
    %v8886 = vunpack.c.l.b16 %v8626
    %v8887 = vunpack.c.l.b16 %v8627
    %v8888 = vunpack.c.l.b16 %v8628
    %v8889 = vunpack.c.l.b16 %v8629
    %v8890 = vunpack.c.l.b16 %v8630
    %v8891 = vunpack.c.l.b16 %v8631
    %v8892 = vunpack.c.l.b16 %v8632
    %v8893 = vunpack.c.l.b16 %v8633
    %v8894 = vunpack.c.l.b16 %v8634
    %v8895 = vunpack.c.l.b16 %v8635
    %v8896 = vunpack.c.l.b16 %v8636
    %v8897 = vunpack.c.l.b16 %v8637
    %v8898 = vunpack.c.l.b16 %v8638
    %v8899 = vunpack.c.l.b16 %v8639
    %v8900 = vunpack.c.l.b16 %v8640
    %v8901 = vunpack.c.l.b16 %v8641
    %v8902 = vunpack.c.l.b16 %v8642
    %v8903 = vunpack.c.l.b16 %v8643
    %v8904 = vunpack.c.l.b16 %v8644
    %v8905 = vunpack.c.l.b16 %v8645
    %v8906 = vunpack.c.l.b16 %v8646
    %v8907 = vunpack.c.l.b16 %v8647
    %v8908 = vunpack.c.l.b16 %v8648
    %v8909 = vunpack.c.l.b16 %v8649
    %v8910 = vunpack.c.l.b16 %v8650
    %v8911 = vunpack.c.l.b16 %v8651
    %v8912 = vunpack.c.l.b16 %v8652
    %v8913 = vunpack.c.l.b16 %v8653
    %v8914 = vunpack.c.l.b16 %v8654
    %v8915 = vunpack.c.l.b16 %v8655
    %v8916 = vunpack.c.l.b16 %v8656
    %v8917 = vunpack.c.l.b16 %v8657
    %v8918 = vunpack.c.l.b16 %v8658
    %v8919 = vunpack.c.l.b16 %v8659
    %v8920 = vunpack.c.l.b16 %v8660
    %v8921 = vunpack.c.l.b16 %v8661
    %v8922 = vunpack.c.l.b16 %v8662
    %v8923 = vunpack.c.l.b16 %v8663
    %v8924 = vunpack.c.l.b16 %v8664
    %v8925 = vunpack.c.l.b16 %v8665
    %v8926 = vunpack.c.l.b16 %v8666
    %v8927 = vunpack.c.l.b16 %v8667
    %v8928 = vunpack.c.l.b16 %v8668
    %v8929 = vunpack.c.l.b16 %v8669
    %v8930 = vunpack.c.l.b16 %v8670
    %v8931 = vunpack.c.l.b16 %v8671
    %v8932 = vunpack.c.l.b16 %v8672
    %v8933 = vunpack.c.l.b16 %v8673
    %v8934 = vunpack.c.l.b16 %v8674
    %v8935 = vunpack.c.l.b16 %v8675
    %v8936 = vunpack.c.l.b16 %v8676
    %v8937 = vunpack.c.l.b16 %v8677
    %v8938 = vunpack.c.l.b16 %v8678
    %v8939 = vunpack.c.l.b16 %v8679
    %v8940 = vunpack.c.l.b16 %v8680
    %v8941 = vunpack.c.l.b16 %v8681
    %v8942 = vunpack.c.l.b16 %v8682
    %v8943 = vunpack.c.l.b16 %v8683
    %v8944 = vunpack.c.l.b16 %v8684
    %v8945 = vunpack.c.l.b16 %v8685
    %v8946 = vunpack.c.l.b16 %v8686
    %v8947 = vunpack.c.l.b16 %v8687
    %v8948 = vunpack.c.l.b16 %v8688
    %v8949 = vunpack.c.l.b16 %v8689
    %v8950 = vunpack.c.l.b16 %v8690
    %v8951 = vunpack.c.l.b16 %v8691
    %v8952 = vunpack.c.l.b16 %v8692
    %v8953 = vunpack.c.l.b16 %v8693
    %v8954 = vunpack.c.l.b16 %v8694
    %v8955 = vunpack.c.l.b16 %v8695
    %v8956 = vunpack.c.l.b16 %v8696
    %v8957 = vunpack.c.l.b16 %v8697
    %v8958 = vunpack.c.l.b16 %v8698
    %v8959 = vunpack.c.l.b16 %v8699
    %v8960 = vunpack.c.l.b16 %v8700
    %v8961 = vunpack.c.l.b16 %v8701
    %v8962 = vunpack.c.l.b16 %v8702
    %v8963 = vunpack.c.l.b16 %v8703
    %v8964 = vunpack.c.l.b16 %v8704
    %v8965 = vunpack.c.l.b16 %v8705
    %v8966 = vunpack.c.l.b16 %v8706
    %v8967 = vunpack.c.l.b16 %v8707
    %v8968 = vunpack.c.l.b16 %v8708
    %v8969 = vunpack.c.l.b16 %v8709
    %v8970 = vunpack.c.l.b16 %v8710
    %v8971 = vunpack.c.l.b16 %v8711
    %v8972 = vunpack.c.l.b16 %v8712
    %v8973 = vunpack.c.l.b16 %v8713
    %v8974 = vunpack.c.l.b16 %v8714
    %v8975 = vunpack.c.l.b16 %v8715
    %v8976 = vunpack.c.l.b16 %v8716
    %v8977 = vunpack.c.l.b16 %v8717
    %v8978 = vunpack.c.l.b16 %v8718
    %v8979 = vunpack.c.l.b16 %v8719
    %v8980 = vunpack.c.l.b16 %v8720
    %v8981 = vunpack.c.l.b16 %v8721
    %v8982 = vunpack.c.l.b16 %v8722
    %v8983 = vunpack.c.l.b16 %v8723
    %v8984 = vunpack.c.l.b16 %v8724
    %v8985 = vpack.c.b16 %v8858, %v8857
    %v8986 = vpack.c.b16 %v8860, %v8859
    %v8987 = vpack.c.b16 %v8862, %v8861
    %v8988 = vpack.c.b16 %v8864, %v8863
    %v8989 = vpack.c.b16 %v8866, %v8865
    %v8990 = vpack.c.b16 %v8868, %v8867
    %v8991 = vpack.c.b16 %v8870, %v8869
    %v8992 = vpack.c.b16 %v8872, %v8871
    %v8993 = vpack.c.b16 %v8874, %v8873
    %v8994 = vpack.c.b16 %v8876, %v8875
    %v8995 = vpack.c.b16 %v8878, %v8877
    %v8996 = vpack.c.b16 %v8880, %v8879
    %v8997 = vpack.c.b16 %v8882, %v8881
    %v8998 = vpack.c.b16 %v8884, %v8883
    %v8999 = vpack.c.b16 %v8886, %v8885
    %v9000 = vpack.c.b16 %v8888, %v8887
    %v9001 = vpack.c.b16 %v8890, %v8889
    %v9002 = vpack.c.b16 %v8892, %v8891
    %v9003 = vpack.c.b16 %v8894, %v8893
    %v9004 = vpack.c.b16 %v8896, %v8895
    %v9005 = vpack.c.b16 %v8898, %v8897
    %v9006 = vpack.c.b16 %v8900, %v8899
    %v9007 = vpack.c.b16 %v8902, %v8901
    %v9008 = vpack.c.b16 %v8904, %v8903
    %v9009 = vpack.c.b16 %v8906, %v8905
    %v9010 = vpack.c.b16 %v8908, %v8907
    %v9011 = vpack.c.b16 %v8910, %v8909
    %v9012 = vpack.c.b16 %v8912, %v8911
    %v9013 = vpack.c.b16 %v8914, %v8913
    %v9014 = vpack.c.b16 %v8916, %v8915
    %v9015 = vpack.c.b16 %v8918, %v8917
    %v9016 = vpack.c.b16 %v8920, %v8919
    %v9017 = vpack.c.b16 %v8922, %v8921
    %v9018 = vpack.c.b16 %v8924, %v8923
    %v9019 = vpack.c.b16 %v8926, %v8925
    %v9020 = vpack.c.b16 %v8928, %v8927
    %v9021 = vpack.c.b16 %v8930, %v8929
    %v9022 = vpack.c.b16 %v8932, %v8931
    %v9023 = vpack.c.b16 %v8934, %v8933
    %v9024 = vpack.c.b16 %v8936, %v8935
    %v9025 = vpack.c.b16 %v8938, %v8937
    %v9026 = vpack.c.b16 %v8940, %v8939
    %v9027 = vpack.c.b16 %v8942, %v8941
    %v9028 = vpack.c.b16 %v8944, %v8943
    %v9029 = vpack.c.b16 %v8946, %v8945
    %v9030 = vpack.c.b16 %v8948, %v8947
    %v9031 = vpack.c.b16 %v8950, %v8949
    %v9032 = vpack.c.b16 %v8952, %v8951
    %v9033 = vpack.c.b16 %v8954, %v8953
    %v9034 = vpack.c.b16 %v8956, %v8955
    %v9035 = vpack.c.b16 %v8958, %v8957
    %v9036 = vpack.c.b16 %v8960, %v8959
    %v9037 = vpack.c.b16 %v8962, %v8961
    %v9038 = vpack.c.b16 %v8964, %v8963
    %v9039 = vpack.c.b16 %v8966, %v8965
    %v9040 = vpack.c.b16 %v8968, %v8967
    %v9041 = vpack.c.b16 %v8970, %v8969
    %v9042 = vpack.c.b16 %v8972, %v8971
    %v9043 = vpack.c.b16 %v8974, %v8973
    %v9044 = vpack.c.b16 %v8976, %v8975
    %v9045 = vpack.c.b16 %v8978, %v8977
    %v9046 = vpack.c.b16 %v8980, %v8979
    %v9047 = vpack.c.b16 %v8982, %v8981
    %v9048 = vpack.c.b16 %v8984, %v8983
    %9113 = vmatpush.bf16.msra.mxu0 %v8992
    %9114 = vmatpush.bf16.msra.mxu0 %v8991
    %9115 = vmatpush.bf16.msra.mxu0 %v8990
    %9116 = vmatpush.bf16.msra.mxu0 %v8989
    %9117 = vmatpush.bf16.msra.mxu0 %v8988
    %9118 = vmatpush.bf16.msra.mxu0 %v8987
    %9119 = vmatpush.bf16.msra.mxu0 %v8986
    %9120 = vmatpush.bf16.msra.mxu0 %v8985
    %9121 = vmatmul.bf16.gmra.mxu0 %v8589
    %v9122 = vpop.f32.mrf.mxu0
    %v9123 = vadd.f32 %v8727, %v9122
    %v9124 = vpop.f32.mrf.mxu0
    %9125 = vdwg.mxu0
    %9126 = vmatpush.bf16.msra.mxu0 %v9000
    %9127 = vmatpush.bf16.msra.mxu0 %v8999
    %9128 = vmatpush.bf16.msra.mxu0 %v8998
    %9129 = vmatpush.bf16.msra.mxu0 %v8997
    %9130 = vmatpush.bf16.msra.mxu0 %v8996
    %9131 = vmatpush.bf16.msra.mxu0 %v8995
    %9132 = vmatpush.bf16.msra.mxu0 %v8994
    %9133 = vmatpush.bf16.msra.mxu0 %v8993
    %9134 = vmatmul.bf16.gmra.mxu0 %v8590
    %v9135 = vpop.f32.mrf.mxu0
    %v9136 = vadd.f32 %v9123, %v9135
    %v9137 = vpop.f32.mrf.mxu0
    %9138 = vdwg.mxu0
    %9139 = vmatpush.bf16.msra.mxu0 %v9008
    %9140 = vmatpush.bf16.msra.mxu0 %v9007
    %9141 = vmatpush.bf16.msra.mxu0 %v9006
    %9142 = vmatpush.bf16.msra.mxu0 %v9005
    %9143 = vmatpush.bf16.msra.mxu0 %v9004
    %9144 = vmatpush.bf16.msra.mxu0 %v9003
    %9145 = vmatpush.bf16.msra.mxu0 %v9002
    %9146 = vmatpush.bf16.msra.mxu0 %v9001
    %9147 = vmatmul.bf16.gmra.mxu0 %v8591
    %v9148 = vpop.f32.mrf.mxu0
    %v9149 = vadd.f32 %v9136, %v9148
    %v9150 = vpop.f32.mrf.mxu0
    %9151 = vdwg.mxu0
    %9152 = vmatpush.bf16.msra.mxu0 %v9016
    %9153 = vmatpush.bf16.msra.mxu0 %v9015
    %9154 = vmatpush.bf16.msra.mxu0 %v9014
    %9155 = vmatpush.bf16.msra.mxu0 %v9013
    %9156 = vmatpush.bf16.msra.mxu0 %v9012
    %9157 = vmatpush.bf16.msra.mxu0 %v9011
    %9158 = vmatpush.bf16.msra.mxu0 %v9010
    %9159 = vmatpush.bf16.msra.mxu0 %v9009
    %9160 = vmatmul.bf16.gmra.mxu0 %v8592
    %v9161 = vpop.f32.mrf.mxu0
    %v9162 = vadd.f32 %v9149, %v9161
    %v9163 = vpop.f32.mrf.mxu0
    %9164 = vdwg.mxu0
    %9165 = vmatpush.bf16.msra.mxu0 %v9024
    %9166 = vmatpush.bf16.msra.mxu0 %v9023
    %9167 = vmatpush.bf16.msra.mxu0 %v9022
    %9168 = vmatpush.bf16.msra.mxu0 %v9021
    %9169 = vmatpush.bf16.msra.mxu0 %v9020
    %9170 = vmatpush.bf16.msra.mxu0 %v9019
    %9171 = vmatpush.bf16.msra.mxu0 %v9018
    %9172 = vmatpush.bf16.msra.mxu0 %v9017
    %9173 = vmatmul.bf16.gmra.mxu0 %v8593
    %v9174 = vpop.f32.mrf.mxu0
    %v9175 = vadd.f32 %v9162, %v9174
    %v9176 = vpop.f32.mrf.mxu0
    %9177 = vdwg.mxu0
    %9178 = vmatpush.bf16.msra.mxu0 %v9032
    %9179 = vmatpush.bf16.msra.mxu0 %v9031
    %9180 = vmatpush.bf16.msra.mxu0 %v9030
    %9181 = vmatpush.bf16.msra.mxu0 %v9029
    %9182 = vmatpush.bf16.msra.mxu0 %v9028
    %9183 = vmatpush.bf16.msra.mxu0 %v9027
    %9184 = vmatpush.bf16.msra.mxu0 %v9026
    %9185 = vmatpush.bf16.msra.mxu0 %v9025
    %9186 = vmatmul.bf16.gmra.mxu0 %v8594
    %v9187 = vpop.f32.mrf.mxu0
    %v9188 = vadd.f32 %v9175, %v9187
    %v9189 = vpop.f32.mrf.mxu0
    %9190 = vdwg.mxu0
    %9191 = vmatpush.bf16.msra.mxu0 %v9040
    %9192 = vmatpush.bf16.msra.mxu0 %v9039
    %9193 = vmatpush.bf16.msra.mxu0 %v9038
    %9194 = vmatpush.bf16.msra.mxu0 %v9037
    %9195 = vmatpush.bf16.msra.mxu0 %v9036
    %9196 = vmatpush.bf16.msra.mxu0 %v9035
    %9197 = vmatpush.bf16.msra.mxu0 %v9034
    %9198 = vmatpush.bf16.msra.mxu0 %v9033
    %9199 = vmatmul.bf16.gmra.mxu0 %v8595
    %v9200 = vpop.f32.mrf.mxu0
    %v9201 = vadd.f32 %v9188, %v9200
    %v9202 = vpop.f32.mrf.mxu0
    %9203 = vdwg.mxu0
    %9204 = vmatpush.bf16.msra.mxu0 %v9048
    %9205 = vmatpush.bf16.msra.mxu0 %v9047
    %9206 = vmatpush.bf16.msra.mxu0 %v9046
    %9207 = vmatpush.bf16.msra.mxu0 %v9045
    %9208 = vmatpush.bf16.msra.mxu0 %v9044
    %9209 = vmatpush.bf16.msra.mxu0 %v9043
    %9210 = vmatpush.bf16.msra.mxu0 %v9042
    %9211 = vmatpush.bf16.msra.mxu0 %v9041
    %9212 = vmatmul.bf16.gmra.mxu0 %v8596
    %v9213 = vpop.f32.mrf.mxu0
    %v9214 = vadd.f32 %v9201, %v9213
    %v9215 = vpop.f32.mrf.mxu0
    %9216 = vdwg.mxu0
    %vm9217 = vcmask 80896
    %v9218 = vsel %vm9217, %v9214, -inf
    %9219 = vmax.xlane.f32.xlu0 %v9218
    %v9220 = vpop.xlane.xlu0 %9219
    %v9221 = vsub.f32 %v9214, %v9220
    %v9222 = vmul.f32 %v9221, 1.442695
    %v9223 = vpow.pop %v9222
    %v9224 = vsel %vm9217, %v9223, 0.0
    %9225 = vadd.xlane.f32.xlu0 %v9224
    %v9226 = vpop.xlane.xlu0 %9225
    %v9227 = vrcp.pop %v9226
    %v9228 = vmul.f32 %v9226, %v9227
    %v9229 = vsub.f32 1.0, %v9228
    %v9230 = vmul.f32 %v9227, %v9229
    %v9231 = vadd.f32 %v9227, %v9230
    %vm9232 = vweird.f32 %v9226
    %vm9233 = vweird.f32 %v9227
    %vm9234 = vmor %vm9232, %vm9233
    %v9235 = vsel %vm9234, %v9227, %v9231
    %v9236 = vand.u32 2147483647, %v9226
    %vm9237 = vcmp.eq.f32.partialorder %v9236, 8.507059e+37
    %v9238 = vand.u32 %v9226, 2147483648
    %v9239 = vor.u32 1.1754944e-38, %v9238
    %v9240 = vsel %vm9237, %v9239, %v9235
    %v9241 = vmul.f32 %v9223, %v9240
    %9242 = vst.msk [vmem:[%s13] sm:$0xff] %vm9217, %v9241
    // Predicated region
    $region98: #{dropoff_lstm_forward.5} parent=1 // pred_check
      _
    $region99: #{dropoff_lstm_forward.5} parent=1 // pred_check_branch
      %9244 = sbr.rel (0) target = $region101
    $region100: #{dropoff_lstm_forward.5} parent=1 // pred_region
      _
    $region101: #{dropoff_lstm_forward.5} parent=1 // pred_fallthru
      _
    // Predicated region
    $region102: #{dropoff_lstm_forward.5} parent=1 // pred_check
      _
    $region103: #{dropoff_lstm_forward.5} parent=1 // pred_check_branch
      %9246 = sbr.rel (0) target = $region105
    $region104: #{dropoff_lstm_forward.5} parent=1 // pred_region
      _
    $region105: #{dropoff_lstm_forward.5} parent=1 // pred_fallthru
      _
    %9247 = vsyncpa [#allocation3], 1
    %9248 = vsyncpa [#allocation5], 1
    %9249 = vsyncpa [#allocation8], 1
    %9250 = vsyncpa [#allocation11], 1
    %9251 = vsyncpa [#allocation14], 1
    %9252 = vsyncpa [#allocation17], 1

</llo_original>
